<compile_context>
chip_gen: v6e
topology: v6e:2x2x1
jax: 0.10.0
libtpu: 0.0.40
codegen_flags: <defaults>
</compile_context>

<pallas_src>
import functools

import jax
import jax.numpy as jnp
import numpy as np
from jax.experimental import pallas as pl
from jax.experimental.pallas import tpu as pltpu

EPS = 1e-5
NEG_SLOPE = 0.2


# ---------------------------------------------------------------------------
# Fully fused kernel: one grid step, everything resident in VMEM.
# Activation rows are pair-major: row p = j*(N*H) + n*H + h holds the channels
# of pixels (n, h, 2j) in lanes [0:C) and (n, h, 2j+1) in lanes [C:2C).
# ---------------------------------------------------------------------------
def _conv_block_kernel(x_ref, w1_ref, w2_ref, p_ref, o_ref, pad_ref, patch_ref,
                       *, N, H, W, C, mxu_dtype):
    C2 = 2 * C                      # paired-pixel channel width (128 lanes)
    WP = W // 2                     # pixel pairs per image row
    M2 = N * H * WP                 # rows of the packed im2col matrix
    PADW = (W + 2) * C              # flattened padded-row width

    def fold_pair(v):
        # v: (1, 2C) column statistic over the M2 pair-rows.  Averaging the
        # even-pixel and odd-pixel halves yields the true per-channel statistic
        # over all N*H*W pixels, replicated back to (1, 2C).
        half = 0.5 * (v[:, :C] + v[:, C:])
        return jnp.concatenate([half, half], axis=-1)

    def write_interior(src):
        # src: (M2, 2C) f32 (Ref or value), pair-major rows.  Pair j lands at
        # padded columns 2j+1, 2j+2  ->  lanes (2j+1)*C .. (2j+3)*C.
        for j in range(WP):
            rows = src[j * N * H:(j + 1) * N * H, :]
            pad_ref[:, 1:H + 1, (2 * j + 1) * C:(2 * j + 3) * C] = (
                rows.reshape(N, H, C2))

    def conv(w_ref):
        # Pixel-pair-packed im2col + one MXU matmul (K = 12*C, Nout = 2*C).
        # Each patch store is a 128-lane-aligned, 256-wide write; the single
        # bf16 cast per tap slab is the only dtype conversion on this path.
        for ky in range(3):
            for j in range(WP):
                slab = pad_ref[:, ky:ky + H, 2 * j * C:(2 * j + 4) * C]
                patch_ref[j * N * H:(j + 1) * N * H,
                          ky * 4 * C:(ky + 1) * 4 * C] = (
                    slab.reshape(N * H, 4 * C).astype(mxu_dtype))
        return jnp.dot(patch_ref[...], w_ref[...],
                       preferred_element_type=jnp.float32)      # (M2, 2C) f32

    def batchnorm(y, g_row, b_row):
        # PyTorch BatchNorm2d training-mode semantics: per-channel batch mean,
        # biased batch variance, eps=1e-5.  Two-pass variance avoids
        # E[x^2]-E[x]^2 cancellation.  All f32 on the VPU, 128-lane dense.
        mean = fold_pair(jnp.sum(y, axis=0, keepdims=True) * (1.0 / M2))
        d = y - mean
        var = fold_pair(jnp.sum(d * d, axis=0, keepdims=True) * (1.0 / M2))
        return d * (g_row * jax.lax.rsqrt(var + EPS)) + b_row

    # --- zero ONLY the pad border (interior fully overwritten before each conv)
    zrow = jnp.zeros((N, 1, PADW), jnp.float32)
    pad_ref[:, 0:1, :] = zrow
    pad_ref[:, H + 1:H + 2, :] = zrow
    zcol = jnp.zeros((N, H + 2, C), jnp.float32)
    pad_ref[:, :, 0:C] = zcol
    pad_ref[:, :, (W + 1) * C:(W + 2) * C] = zcol

    g1 = p_ref[0:1, :]
    b1 = p_ref[1:2, :]
    g2 = p_ref[2:3, :]
    b2 = p_ref[3:4, :]

    # conv1 -> BN1 -> LeakyReLU(0.2)
    write_interior(x_ref)
    a1 = batchnorm(conv(w1_ref), g1, b1)
    a1 = jnp.where(a1 >= 0, a1, NEG_SLOPE * a1)

    # conv2 -> BN2 -> residual (re-read x_ref; no long-lived copy of x)
    write_interior(a1)
    out = batchnorm(conv(w2_ref), g2, b2) + x_ref[...]
    o_ref[...] = out.astype(o_ref.dtype)                         # unmasked 128-lane store


# ---------------------------------------------------------------------------
# _Conv_Block.forward
# ---------------------------------------------------------------------------
def conv_block_forward(x_nchw, w1_oihw, w2_oihw, gamma1, beta1, gamma2, beta2,
                       *, mxu_dtype=jnp.bfloat16):
    N, C, H, W = x_nchw.shape
    assert W % 2 == 0, "pixel-pair packing requires even W"
    assert (N * H) % 8 == 0, "patch row blocks must be sublane aligned"
    WP = W // 2
    M2 = N * H * WP

    # Pair-major activation layout: (W/2, N, H, 2, C) -> (M2, 2C).  W*... lane
    # width is 2C = 128, so every kernel-side pass and the final store are
    # unmasked full-lane ops.  (All layout plumbing stays in the XLA wrapper.)
    x = x_nchw.astype(jnp.float32)
    x = jnp.transpose(x, (3, 0, 2, 1))                 # (W, N, H, C)
    x = x.reshape(WP, 2, N, H, C)
    x = jnp.transpose(x, (0, 2, 3, 1, 4))              # (W/2, N, H, 2, C)
    x = x.reshape(M2, 2 * C)

    def prep_w(w_oihw):
        # OIHW -> HWIO, then the pixel-pair-packed (12*Cin, 2*Cout) matrix:
        # output columns [0:C] compute the even pixel of a pair (window taps
        # kxw=0..2), columns [C:2C] the odd pixel (kxw=1..3); unused
        # (tap, half) combinations are exact zeros.
        w_hwio = jnp.transpose(w_oihw, (2, 3, 1, 0)).astype(jnp.float32)
        wp = jnp.zeros((3, 4, C, 2 * C), jnp.float32)
        wp = wp.at[:, 0:3, :, 0:C].set(w_hwio)
        wp = wp.at[:, 1:4, :, C:2 * C].set(w_hwio)
        return wp.reshape(12 * C, 2 * C).astype(mxu_dtype)

    w1 = prep_w(w1_oihw)
    w2 = prep_w(w2_oihw)
    # gamma/beta pre-tiled to the paired-channel width: (4, 2C)
    params = jnp.tile(
        jnp.stack([gamma1, beta1, gamma2, beta2]).astype(jnp.float32), (1, 2))

    kern = functools.partial(_conv_block_kernel, N=N, H=H, W=W, C=C,
                             mxu_dtype=mxu_dtype)
    out_flat = pl.pallas_call(
        kern,
        out_shape=jax.ShapeDtypeStruct((M2, 2 * C), jnp.float32),
        grid_spec=pltpu.PrefetchScalarGridSpec(
            num_scalar_prefetch=0,
            grid=(1,),                                        # single fused step
            in_specs=[
                pl.BlockSpec((M2, 2 * C), lambda i: (0, 0)),      # x (pair-major)
                pl.BlockSpec((12 * C, 2 * C), lambda i: (0, 0)),  # w1 packed
                pl.BlockSpec((12 * C, 2 * C), lambda i: (0, 0)),  # w2 packed
                pl.BlockSpec((4, 2 * C), lambda i: (0, 0)),       # gamma/beta
            ],
            out_specs=pl.BlockSpec((M2, 2 * C), lambda i: (0, 0)),
            scratch_shapes=[
                pltpu.VMEM((N, H + 2, (W + 2) * C), jnp.float32),  # padded acts
                pltpu.VMEM((M2, 12 * C), mxu_dtype),               # packed im2col
            ],
        ),
        compiler_params=pltpu.CompilerParams(dimension_semantics=("arbitrary",)),
    )(x, w1, w2, params)

    # Undo the pair-major layout: (M2, 2C) -> NCHW.
    o = out_flat.reshape(WP, N, H, 2, C)
    o = jnp.transpose(o, (1, 4, 2, 0, 3))              # (N, C, H, W/2, 2)
    return o.reshape(N, C, H, W)


# ---------------------------------------------------------------------------
# Pure-JAX reference (matches the PyTorch forward in training mode)
# ---------------------------------------------------------------------------
def _ref_forward(x, w1, w2, g1, b1, g2, b2):
    def conv(a, w):
        return jax.lax.conv_general_dilated(
            a, w, (1, 1), 'SAME', dimension_numbers=('NCHW', 'OIHW', 'NCHW'))

    def bn(a, g, b):
        mean = a.mean(axis=(0, 2, 3), keepdims=True)
        var = ((a - mean) ** 2).mean(axis=(0, 2, 3), keepdims=True)
        return ((a - mean) / jnp.sqrt(var + EPS)) * g.reshape(1, -1, 1, 1) \
            + b.reshape(1, -1, 1, 1)

    y = bn(conv(x, w1), g1, b1)
    y = jnp.where(y >= 0, y, NEG_SLOPE * y)
    y = bn(conv(y, w2), g2, b2)
    return y + x


if __name__ == "__main__":
    key = jax.random.PRNGKey(0)
    k1, k2, k3, k4, k5 = jax.random.split(key, 5)
    N, C, H, W = 2, 64, 16, 16                       # C must be 64 per the module
    x = jax.random.normal(k1, (N, C, H, W), jnp.float32)
    w1 = jax.random.normal(k2, (C, C, 3, 3), jnp.float32) * 0.05   # conv1.weight (OIHW)
    w2 = jax.random.normal(k3, (C, C, 3, 3), jnp.float32) * 0.05   # conv2.weight (OIHW)
    gamma1 = 1.0 + 0.1 * jax.random.normal(k4, (C,), jnp.float32)
    beta1 = 0.1 * jax.random.normal(k5, (C,), jnp.float32)
    gamma2 = jnp.ones((C,), jnp.float32)
    beta2 = jnp.zeros((C,), jnp.float32)

    ref = _ref_forward(x, w1, w2, gamma1, beta1, gamma2, beta2)

    # f32 MXU operands: numerically faithful to the PyTorch forward -> tight tol.
    out_f32 = jax.jit(functools.partial(conv_block_forward, mxu_dtype=jnp.float32))(
        x, w1, w2, gamma1, beta1, gamma2, beta2)
    out_f32 = jax.block_until_ready(out_f32)
    np.testing.assert_allclose(np.asarray(out_f32), np.asarray(ref),
                               rtol=2e-3, atol=2e-3)

    # bf16 MXU operands (default on all generations): f32 accumulation and f32
    # element-wise math, so only the matmul operands are rounded.
    out_bf16 = jax.jit(conv_block_forward)(
        x, w1, w2, gamma1, beta1, gamma2, beta2)
    out_bf16 = jax.block_until_ready(out_bf16)
    np.testing.assert_allclose(np.asarray(out_bf16), np.asarray(ref),
                               rtol=2e-2, atol=2e-2)

    print("KERNEL_OK")
</pallas_src>

<mosaic_0001>
module attributes {stable_mosaic.version = 11 : i64} {
  func.func @_conv_block_kernel(%arg0: i32, %arg1: memref<256x128xf32, #tpu.memory_space<vmem>>, %arg2: memref<768x128xf32, #tpu.memory_space<vmem>>, %arg3: memref<768x128xf32, #tpu.memory_space<vmem>>, %arg4: memref<4x128xf32, #tpu.memory_space<vmem>>, %arg5: memref<256x128xf32, #tpu.memory_space<vmem>>, %arg6: memref<2x18x1152xf32, #tpu.memory_space<vmem>>, %arg7: memref<256x768xf32, #tpu.memory_space<vmem>>) attributes {dimension_semantics = [#tpu.dimension_semantics<arbitrary>], iteration_bounds = array<i64: 1>, scalar_prefetch = 0 : i64, scratch_operands = 2 : i64, tpu.core_type = #tpu.core_type<tc>, window_params = [{pipeline_mode = #tpu.pipeline_mode<synchronous>, transform_indices = @transform_0, window_bounds = array<i64: 256, 128>}, {pipeline_mode = #tpu.pipeline_mode<synchronous>, transform_indices = @transform_1, window_bounds = array<i64: 768, 128>}, {pipeline_mode = #tpu.pipeline_mode<synchronous>, transform_indices = @transform_2, window_bounds = array<i64: 768, 128>}, {pipeline_mode = #tpu.pipeline_mode<synchronous>, transform_indices = @transform_3, window_bounds = array<i64: 4, 128>}, {pipeline_mode = #tpu.pipeline_mode<synchronous>, transform_indices = @transform_4, window_bounds = array<i64: 256, 128>}]} {
    %cst = arith.constant 0.000000e+00 : f32
    %0 = vector.broadcast %cst : f32 to vector<2x1x1152xf32>
    %c0 = arith.constant 0 : index
    %c0_0 = arith.constant 0 : index
    %c0_1 = arith.constant 0 : index
    %1 = vector.load %arg6[%c0, %c0_0, %c0_1] : memref<2x18x1152xf32, #tpu.memory_space<vmem>>, vector<2x1x1152xf32>
    tpu.vector_store %arg6[%c0, %c0_0, %c0_1], %0 {strides = array<i32>} : memref<2x18x1152xf32, #tpu.memory_space<vmem>>, vector<2x1x1152xf32>,
    %c0_2 = arith.constant 0 : index
    %c17 = arith.constant 17 : index
    %c0_3 = arith.constant 0 : index
    %2 = vector.load %arg6[%c0_2, %c17, %c0_3] : memref<2x18x1152xf32, #tpu.memory_space<vmem>>, vector<2x1x1152xf32>
    tpu.vector_store %arg6[%c0_2, %c17, %c0_3], %0 {strides = array<i32>} : memref<2x18x1152xf32, #tpu.memory_space<vmem>>, vector<2x1x1152xf32>,
    %cst_4 = arith.constant 0.000000e+00 : f32
    %3 = vector.broadcast %cst_4 : f32 to vector<2x18x64xf32>
    %c0_5 = arith.constant 0 : index
    %c0_6 = arith.constant 0 : index
    %c0_7 = arith.constant 0 : index
    %4 = vector.load %arg6[%c0_5, %c0_6, %c0_7] : memref<2x18x1152xf32, #tpu.memory_space<vmem>>, vector<2x18x64xf32>
    tpu.vector_store %arg6[%c0_5, %c0_6, %c0_7], %3 {strides = array<i32>} : memref<2x18x1152xf32, #tpu.memory_space<vmem>>, vector<2x18x64xf32>,
    %c0_8 = arith.constant 0 : index
    %c0_9 = arith.constant 0 : index
    %c1088 = arith.constant 1088 : index
    %5 = vector.load %arg6[%c0_8, %c0_9, %c1088] : memref<2x18x1152xf32, #tpu.memory_space<vmem>>, vector<2x18x64xf32>
    tpu.vector_store %arg6[%c0_8, %c0_9, %c1088], %3 {strides = array<i32>} : memref<2x18x1152xf32, #tpu.memory_space<vmem>>, vector<2x18x64xf32>,
    %c0_10 = arith.constant 0 : index
    %c0_11 = arith.constant 0 : index
    %6 = vector.load %arg4[%c0_10, %c0_11] : memref<4x128xf32, #tpu.memory_space<vmem>>, vector<1x128xf32>
    %c1 = arith.constant 1 : index
    %c0_12 = arith.constant 0 : index
    %7 = vector.load %arg4[%c1, %c0_12] : memref<4x128xf32, #tpu.memory_space<vmem>>, vector<1x128xf32>
    %c2 = arith.constant 2 : index
    %c0_13 = arith.constant 0 : index
    %8 = vector.load %arg4[%c2, %c0_13] : memref<4x128xf32, #tpu.memory_space<vmem>>, vector<1x128xf32>
    %c3 = arith.constant 3 : index
    %c0_14 = arith.constant 0 : index
    %9 = vector.load %arg4[%c3, %c0_14] : memref<4x128xf32, #tpu.memory_space<vmem>>, vector<1x128xf32>
    %c0_15 = arith.constant 0 : index
    %c0_16 = arith.constant 0 : index
    %10 = vector.load %arg1[%c0_15, %c0_16] : memref<256x128xf32, #tpu.memory_space<vmem>>, vector<32x128xf32>
    %11 = vector.shape_cast %10 : vector<32x128xf32> to vector<2x16x128xf32>
    %c0_17 = arith.constant 0 : index
    %c1_18 = arith.constant 1 : index
    %c64 = arith.constant 64 : index
    %12 = vector.load %arg6[%c0_17, %c1_18, %c64] : memref<2x18x1152xf32, #tpu.memory_space<vmem>>, vector<2x16x128xf32>
    tpu.vector_store %arg6[%c0_17, %c1_18, %c64], %11 {strides = array<i32>} : memref<2x18x1152xf32, #tpu.memory_space<vmem>>, vector<2x16x128xf32>,
    %c32 = arith.constant 32 : index
    %c0_19 = arith.constant 0 : index
    %13 = vector.load %arg1[%c32, %c0_19] : memref<256x128xf32, #tpu.memory_space<vmem>>, vector<32x128xf32>
    %14 = vector.shape_cast %13 : vector<32x128xf32> to vector<2x16x128xf32>
    %c0_20 = arith.constant 0 : index
    %c1_21 = arith.constant 1 : index
    %c192 = arith.constant 192 : index
    %15 = vector.load %arg6[%c0_20, %c1_21, %c192] : memref<2x18x1152xf32, #tpu.memory_space<vmem>>, vector<2x16x128xf32>
    tpu.vector_store %arg6[%c0_20, %c1_21, %c192], %14 {strides = array<i32>} : memref<2x18x1152xf32, #tpu.memory_space<vmem>>, vector<2x16x128xf32>,
    %c64_22 = arith.constant 64 : index
    %c0_23 = arith.constant 0 : index
    %16 = vector.load %arg1[%c64_22, %c0_23] : memref<256x128xf32, #tpu.memory_space<vmem>>, vector<32x128xf32>
    %17 = vector.shape_cast %16 : vector<32x128xf32> to vector<2x16x128xf32>
    %c0_24 = arith.constant 0 : index
    %c1_25 = arith.constant 1 : index
    %c320 = arith.constant 320 : index
    %18 = vector.load %arg6[%c0_24, %c1_25, %c320] : memref<2x18x1152xf32, #tpu.memory_space<vmem>>, vector<2x16x128xf32>
    tpu.vector_store %arg6[%c0_24, %c1_25, %c320], %17 {strides = array<i32>} : memref<2x18x1152xf32, #tpu.memory_space<vmem>>, vector<2x16x128xf32>,
    %c96 = arith.constant 96 : index
    %c0_26 = arith.constant 0 : index
    %19 = vector.load %arg1[%c96, %c0_26] : memref<256x128xf32, #tpu.memory_space<vmem>>, vector<32x128xf32>
    %20 = vector.shape_cast %19 : vector<32x128xf32> to vector<2x16x128xf32>
    %c0_27 = arith.constant 0 : index
    %c1_28 = arith.constant 1 : index
    %c448 = arith.constant 448 : index
    %21 = vector.load %arg6[%c0_27, %c1_28, %c448] : memref<2x18x1152xf32, #tpu.memory_space<vmem>>, vector<2x16x128xf32>
    tpu.vector_store %arg6[%c0_27, %c1_28, %c448], %20 {strides = array<i32>} : memref<2x18x1152xf32, #tpu.memory_space<vmem>>, vector<2x16x128xf32>,
    %c128 = arith.constant 128 : index
    %c0_29 = arith.constant 0 : index
    %22 = vector.load %arg1[%c128, %c0_29] : memref<256x128xf32, #tpu.memory_space<vmem>>, vector<32x128xf32>
    %23 = vector.shape_cast %22 : vector<32x128xf32> to vector<2x16x128xf32>
    %c0_30 = arith.constant 0 : index
    %c1_31 = arith.constant 1 : index
    %c576 = arith.constant 576 : index
    %24 = vector.load %arg6[%c0_30, %c1_31, %c576] : memref<2x18x1152xf32, #tpu.memory_space<vmem>>, vector<2x16x128xf32>
    tpu.vector_store %arg6[%c0_30, %c1_31, %c576], %23 {strides = array<i32>} : memref<2x18x1152xf32, #tpu.memory_space<vmem>>, vector<2x16x128xf32>,
    %c160 = arith.constant 160 : index
    %c0_32 = arith.constant 0 : index
    %25 = vector.load %arg1[%c160, %c0_32] : memref<256x128xf32, #tpu.memory_space<vmem>>, vector<32x128xf32>
    %26 = vector.shape_cast %25 : vector<32x128xf32> to vector<2x16x128xf32>
    %c0_33 = arith.constant 0 : index
    %c1_34 = arith.constant 1 : index
    %c704 = arith.constant 704 : index
    %27 = vector.load %arg6[%c0_33, %c1_34, %c704] : memref<2x18x1152xf32, #tpu.memory_space<vmem>>, vector<2x16x128xf32>
    tpu.vector_store %arg6[%c0_33, %c1_34, %c704], %26 {strides = array<i32>} : memref<2x18x1152xf32, #tpu.memory_space<vmem>>, vector<2x16x128xf32>,
    %c192_35 = arith.constant 192 : index
    %c0_36 = arith.constant 0 : index
    %28 = vector.load %arg1[%c192_35, %c0_36] : memref<256x128xf32, #tpu.memory_space<vmem>>, vector<32x128xf32>
    %29 = vector.shape_cast %28 : vector<32x128xf32> to vector<2x16x128xf32>
    %c0_37 = arith.constant 0 : index
    %c1_38 = arith.constant 1 : index
    %c832 = arith.constant 832 : index
    %30 = vector.load %arg6[%c0_37, %c1_38, %c832] : memref<2x18x1152xf32, #tpu.memory_space<vmem>>, vector<2x16x128xf32>
    tpu.vector_store %arg6[%c0_37, %c1_38, %c832], %29 {strides = array<i32>} : memref<2x18x1152xf32, #tpu.memory_space<vmem>>, vector<2x16x128xf32>,
    %c224 = arith.constant 224 : index
    %c0_39 = arith.constant 0 : index
    %31 = vector.load %arg1[%c224, %c0_39] : memref<256x128xf32, #tpu.memory_space<vmem>>, vector<32x128xf32>
    %32 = vector.shape_cast %31 : vector<32x128xf32> to vector<2x16x128xf32>
    %c0_40 = arith.constant 0 : index
    %c1_41 = arith.constant 1 : index
    %c960 = arith.constant 960 : index
    %33 = vector.load %arg6[%c0_40, %c1_41, %c960] : memref<2x18x1152xf32, #tpu.memory_space<vmem>>, vector<2x16x128xf32>
    tpu.vector_store %arg6[%c0_40, %c1_41, %c960], %32 {strides = array<i32>} : memref<2x18x1152xf32, #tpu.memory_space<vmem>>, vector<2x16x128xf32>,
    %c0_42 = arith.constant 0 : index
    %c0_43 = arith.constant 0 : index
    %c0_44 = arith.constant 0 : index
    %34 = vector.load %arg6[%c0_42, %c0_43, %c0_44] : memref<2x18x1152xf32, #tpu.memory_space<vmem>>, vector<2x16x256xf32>
    %35 = vector.shape_cast %34 : vector<2x16x256xf32> to vector<32x256xf32>
    %c0_45 = arith.constant 0 : index
    %c0_46 = arith.constant 0 : index
    %36 = vector.load %arg7[%c0_45, %c0_46] : memref<256x768xf32, #tpu.memory_space<vmem>>, vector<32x256xf32>
    tpu.vector_store %arg7[%c0_45, %c0_46], %35 {strides = array<i32>} : memref<256x768xf32, #tpu.memory_space<vmem>>, vector<32x256xf32>,
    %c0_47 = arith.constant 0 : index
    %c0_48 = arith.constant 0 : index
    %c128_49 = arith.constant 128 : index
    %37 = vector.load %arg6[%c0_47, %c0_48, %c128_49] : memref<2x18x1152xf32, #tpu.memory_space<vmem>>, vector<2x16x256xf32>
    %38 = vector.shape_cast %37 : vector<2x16x256xf32> to vector<32x256xf32>
    %c32_50 = arith.constant 32 : index
    %c0_51 = arith.constant 0 : index
    %39 = vector.load %arg7[%c32_50, %c0_51] : memref<256x768xf32, #tpu.memory_space<vmem>>, vector<32x256xf32>
    tpu.vector_store %arg7[%c32_50, %c0_51], %38 {strides = array<i32>} : memref<256x768xf32, #tpu.memory_space<vmem>>, vector<32x256xf32>,
    %c0_52 = arith.constant 0 : index
    %c0_53 = arith.constant 0 : index
    %c256 = arith.constant 256 : index
    %40 = vector.load %arg6[%c0_52, %c0_53, %c256] : memref<2x18x1152xf32, #tpu.memory_space<vmem>>, vector<2x16x256xf32>
    %41 = vector.shape_cast %40 : vector<2x16x256xf32> to vector<32x256xf32>
    %c64_54 = arith.constant 64 : index
    %c0_55 = arith.constant 0 : index
    %42 = vector.load %arg7[%c64_54, %c0_55] : memref<256x768xf32, #tpu.memory_space<vmem>>, vector<32x256xf32>
    tpu.vector_store %arg7[%c64_54, %c0_55], %41 {strides = array<i32>} : memref<256x768xf32, #tpu.memory_space<vmem>>, vector<32x256xf32>,
    %c0_56 = arith.constant 0 : index
    %c0_57 = arith.constant 0 : index
    %c384 = arith.constant 384 : index
    %43 = vector.load %arg6[%c0_56, %c0_57, %c384] : memref<2x18x1152xf32, #tpu.memory_space<vmem>>, vector<2x16x256xf32>
    %44 = vector.shape_cast %43 : vector<2x16x256xf32> to vector<32x256xf32>
    %c96_58 = arith.constant 96 : index
    %c0_59 = arith.constant 0 : index
    %45 = vector.load %arg7[%c96_58, %c0_59] : memref<256x768xf32, #tpu.memory_space<vmem>>, vector<32x256xf32>
    tpu.vector_store %arg7[%c96_58, %c0_59], %44 {strides = array<i32>} : memref<256x768xf32, #tpu.memory_space<vmem>>, vector<32x256xf32>,
    %c0_60 = arith.constant 0 : index
    %c0_61 = arith.constant 0 : index
    %c512 = arith.constant 512 : index
    %46 = vector.load %arg6[%c0_60, %c0_61, %c512] : memref<2x18x1152xf32, #tpu.memory_space<vmem>>, vector<2x16x256xf32>
    %47 = vector.shape_cast %46 : vector<2x16x256xf32> to vector<32x256xf32>
    %c128_62 = arith.constant 128 : index
    %c0_63 = arith.constant 0 : index
    %48 = vector.load %arg7[%c128_62, %c0_63] : memref<256x768xf32, #tpu.memory_space<vmem>>, vector<32x256xf32>
    tpu.vector_store %arg7[%c128_62, %c0_63], %47 {strides = array<i32>} : memref<256x768xf32, #tpu.memory_space<vmem>>, vector<32x256xf32>,
    %c0_64 = arith.constant 0 : index
    %c0_65 = arith.constant 0 : index
    %c640 = arith.constant 640 : index
    %49 = vector.load %arg6[%c0_64, %c0_65, %c640] : memref<2x18x1152xf32, #tpu.memory_space<vmem>>, vector<2x16x256xf32>
    %50 = vector.shape_cast %49 : vector<2x16x256xf32> to vector<32x256xf32>
    %c160_66 = arith.constant 160 : index
    %c0_67 = arith.constant 0 : index
    %51 = vector.load %arg7[%c160_66, %c0_67] : memref<256x768xf32, #tpu.memory_space<vmem>>, vector<32x256xf32>
    tpu.vector_store %arg7[%c160_66, %c0_67], %50 {strides = array<i32>} : memref<256x768xf32, #tpu.memory_space<vmem>>, vector<32x256xf32>,
    %c0_68 = arith.constant 0 : index
    %c0_69 = arith.constant 0 : index
    %c768 = arith.constant 768 : index
    %52 = vector.load %arg6[%c0_68, %c0_69, %c768] : memref<2x18x1152xf32, #tpu.memory_space<vmem>>, vector<2x16x256xf32>
    %53 = vector.shape_cast %52 : vector<2x16x256xf32> to vector<32x256xf32>
    %c192_70 = arith.constant 192 : index
    %c0_71 = arith.constant 0 : index
    %54 = vector.load %arg7[%c192_70, %c0_71] : memref<256x768xf32, #tpu.memory_space<vmem>>, vector<32x256xf32>
    tpu.vector_store %arg7[%c192_70, %c0_71], %53 {strides = array<i32>} : memref<256x768xf32, #tpu.memory_space<vmem>>, vector<32x256xf32>,
    %c0_72 = arith.constant 0 : index
    %c0_73 = arith.constant 0 : index
    %c896 = arith.constant 896 : index
    %55 = vector.load %arg6[%c0_72, %c0_73, %c896] : memref<2x18x1152xf32, #tpu.memory_space<vmem>>, vector<2x16x256xf32>
    %56 = vector.shape_cast %55 : vector<2x16x256xf32> to vector<32x256xf32>
    %c224_74 = arith.constant 224 : index
    %c0_75 = arith.constant 0 : index
    %57 = vector.load %arg7[%c224_74, %c0_75] : memref<256x768xf32, #tpu.memory_space<vmem>>, vector<32x256xf32>
    tpu.vector_store %arg7[%c224_74, %c0_75], %56 {strides = array<i32>} : memref<256x768xf32, #tpu.memory_space<vmem>>, vector<32x256xf32>,
    %c0_76 = arith.constant 0 : index
    %c1_77 = arith.constant 1 : index
    %c0_78 = arith.constant 0 : index
    %58 = vector.load %arg6[%c0_76, %c1_77, %c0_78] : memref<2x18x1152xf32, #tpu.memory_space<vmem>>, vector<2x16x256xf32>
    %59 = vector.shape_cast %58 : vector<2x16x256xf32> to vector<32x256xf32>
    %c0_79 = arith.constant 0 : index
    %c256_80 = arith.constant 256 : index
    %60 = vector.load %arg7[%c0_79, %c256_80] : memref<256x768xf32, #tpu.memory_space<vmem>>, vector<32x256xf32>
    tpu.vector_store %arg7[%c0_79, %c256_80], %59 {strides = array<i32>} : memref<256x768xf32, #tpu.memory_space<vmem>>, vector<32x256xf32>,
    %c0_81 = arith.constant 0 : index
    %c1_82 = arith.constant 1 : index
    %c128_83 = arith.constant 128 : index
    %61 = vector.load %arg6[%c0_81, %c1_82, %c128_83] : memref<2x18x1152xf32, #tpu.memory_space<vmem>>, vector<2x16x256xf32>
    %62 = vector.shape_cast %61 : vector<2x16x256xf32> to vector<32x256xf32>
    %c32_84 = arith.constant 32 : index
    %c256_85 = arith.constant 256 : index
    %63 = vector.load %arg7[%c32_84, %c256_85] : memref<256x768xf32, #tpu.memory_space<vmem>>, vector<32x256xf32>
    tpu.vector_store %arg7[%c32_84, %c256_85], %62 {strides = array<i32>} : memref<256x768xf32, #tpu.memory_space<vmem>>, vector<32x256xf32>,
    %c0_86 = arith.constant 0 : index
    %c1_87 = arith.constant 1 : index
    %c256_88 = arith.constant 256 : index
    %64 = vector.load %arg6[%c0_86, %c1_87, %c256_88] : memref<2x18x1152xf32, #tpu.memory_space<vmem>>, vector<2x16x256xf32>
    %65 = vector.shape_cast %64 : vector<2x16x256xf32> to vector<32x256xf32>
    %c64_89 = arith.constant 64 : index
    %c256_90 = arith.constant 256 : index
    %66 = vector.load %arg7[%c64_89, %c256_90] : memref<256x768xf32, #tpu.memory_space<vmem>>, vector<32x256xf32>
    tpu.vector_store %arg7[%c64_89, %c256_90], %65 {strides = array<i32>} : memref<256x768xf32, #tpu.memory_space<vmem>>, vector<32x256xf32>,
    %c0_91 = arith.constant 0 : index
    %c1_92 = arith.constant 1 : index
    %c384_93 = arith.constant 384 : index
    %67 = vector.load %arg6[%c0_91, %c1_92, %c384_93] : memref<2x18x1152xf32, #tpu.memory_space<vmem>>, vector<2x16x256xf32>
    %68 = vector.shape_cast %67 : vector<2x16x256xf32> to vector<32x256xf32>
    %c96_94 = arith.constant 96 : index
    %c256_95 = arith.constant 256 : index
    %69 = vector.load %arg7[%c96_94, %c256_95] : memref<256x768xf32, #tpu.memory_space<vmem>>, vector<32x256xf32>
    tpu.vector_store %arg7[%c96_94, %c256_95], %68 {strides = array<i32>} : memref<256x768xf32, #tpu.memory_space<vmem>>, vector<32x256xf32>,
    %c0_96 = arith.constant 0 : index
    %c1_97 = arith.constant 1 : index
    %c512_98 = arith.constant 512 : index
    %70 = vector.load %arg6[%c0_96, %c1_97, %c512_98] : memref<2x18x1152xf32, #tpu.memory_space<vmem>>, vector<2x16x256xf32>
    %71 = vector.shape_cast %70 : vector<2x16x256xf32> to vector<32x256xf32>
    %c128_99 = arith.constant 128 : index
    %c256_100 = arith.constant 256 : index
    %72 = vector.load %arg7[%c128_99, %c256_100] : memref<256x768xf32, #tpu.memory_space<vmem>>, vector<32x256xf32>
    tpu.vector_store %arg7[%c128_99, %c256_100], %71 {strides = array<i32>} : memref<256x768xf32, #tpu.memory_space<vmem>>, vector<32x256xf32>,
    %c0_101 = arith.constant 0 : index
    %c1_102 = arith.constant 1 : index
    %c640_103 = arith.constant 640 : index
    %73 = vector.load %arg6[%c0_101, %c1_102, %c640_103] : memref<2x18x1152xf32, #tpu.memory_space<vmem>>, vector<2x16x256xf32>
    %74 = vector.shape_cast %73 : vector<2x16x256xf32> to vector<32x256xf32>
    %c160_104 = arith.constant 160 : index
    %c256_105 = arith.constant 256 : index
    %75 = vector.load %arg7[%c160_104, %c256_105] : memref<256x768xf32, #tpu.memory_space<vmem>>, vector<32x256xf32>
    tpu.vector_store %arg7[%c160_104, %c256_105], %74 {strides = array<i32>} : memref<256x768xf32, #tpu.memory_space<vmem>>, vector<32x256xf32>,
    %c0_106 = arith.constant 0 : index
    %c1_107 = arith.constant 1 : index
    %c768_108 = arith.constant 768 : index
    %76 = vector.load %arg6[%c0_106, %c1_107, %c768_108] : memref<2x18x1152xf32, #tpu.memory_space<vmem>>, vector<2x16x256xf32>
    %77 = vector.shape_cast %76 : vector<2x16x256xf32> to vector<32x256xf32>
    %c192_109 = arith.constant 192 : index
    %c256_110 = arith.constant 256 : index
    %78 = vector.load %arg7[%c192_109, %c256_110] : memref<256x768xf32, #tpu.memory_space<vmem>>, vector<32x256xf32>
    tpu.vector_store %arg7[%c192_109, %c256_110], %77 {strides = array<i32>} : memref<256x768xf32, #tpu.memory_space<vmem>>, vector<32x256xf32>,
    %c0_111 = arith.constant 0 : index
    %c1_112 = arith.constant 1 : index
    %c896_113 = arith.constant 896 : index
    %79 = vector.load %arg6[%c0_111, %c1_112, %c896_113] : memref<2x18x1152xf32, #tpu.memory_space<vmem>>, vector<2x16x256xf32>
    %80 = vector.shape_cast %79 : vector<2x16x256xf32> to vector<32x256xf32>
    %c224_114 = arith.constant 224 : index
    %c256_115 = arith.constant 256 : index
    %81 = vector.load %arg7[%c224_114, %c256_115] : memref<256x768xf32, #tpu.memory_space<vmem>>, vector<32x256xf32>
    tpu.vector_store %arg7[%c224_114, %c256_115], %80 {strides = array<i32>} : memref<256x768xf32, #tpu.memory_space<vmem>>, vector<32x256xf32>,
    %c0_116 = arith.constant 0 : index
    %c2_117 = arith.constant 2 : index
    %c0_118 = arith.constant 0 : index
    %82 = vector.load %arg6[%c0_116, %c2_117, %c0_118] : memref<2x18x1152xf32, #tpu.memory_space<vmem>>, vector<2x16x256xf32>
    %83 = vector.shape_cast %82 : vector<2x16x256xf32> to vector<32x256xf32>
    %c0_119 = arith.constant 0 : index
    %c512_120 = arith.constant 512 : index
    %84 = vector.load %arg7[%c0_119, %c512_120] : memref<256x768xf32, #tpu.memory_space<vmem>>, vector<32x256xf32>
    tpu.vector_store %arg7[%c0_119, %c512_120], %83 {strides = array<i32>} : memref<256x768xf32, #tpu.memory_space<vmem>>, vector<32x256xf32>,
    %c0_121 = arith.constant 0 : index
    %c2_122 = arith.constant 2 : index
    %c128_123 = arith.constant 128 : index
    %85 = vector.load %arg6[%c0_121, %c2_122, %c128_123] : memref<2x18x1152xf32, #tpu.memory_space<vmem>>, vector<2x16x256xf32>
    %86 = vector.shape_cast %85 : vector<2x16x256xf32> to vector<32x256xf32>
    %c32_124 = arith.constant 32 : index
    %c512_125 = arith.constant 512 : index
    %87 = vector.load %arg7[%c32_124, %c512_125] : memref<256x768xf32, #tpu.memory_space<vmem>>, vector<32x256xf32>
    tpu.vector_store %arg7[%c32_124, %c512_125], %86 {strides = array<i32>} : memref<256x768xf32, #tpu.memory_space<vmem>>, vector<32x256xf32>,
    %c0_126 = arith.constant 0 : index
    %c2_127 = arith.constant 2 : index
    %c256_128 = arith.constant 256 : index
    %88 = vector.load %arg6[%c0_126, %c2_127, %c256_128] : memref<2x18x1152xf32, #tpu.memory_space<vmem>>, vector<2x16x256xf32>
    %89 = vector.shape_cast %88 : vector<2x16x256xf32> to vector<32x256xf32>
    %c64_129 = arith.constant 64 : index
    %c512_130 = arith.constant 512 : index
    %90 = vector.load %arg7[%c64_129, %c512_130] : memref<256x768xf32, #tpu.memory_space<vmem>>, vector<32x256xf32>
    tpu.vector_store %arg7[%c64_129, %c512_130], %89 {strides = array<i32>} : memref<256x768xf32, #tpu.memory_space<vmem>>, vector<32x256xf32>,
    %c0_131 = arith.constant 0 : index
    %c2_132 = arith.constant 2 : index
    %c384_133 = arith.constant 384 : index
    %91 = vector.load %arg6[%c0_131, %c2_132, %c384_133] : memref<2x18x1152xf32, #tpu.memory_space<vmem>>, vector<2x16x256xf32>
    %92 = vector.shape_cast %91 : vector<2x16x256xf32> to vector<32x256xf32>
    %c96_134 = arith.constant 96 : index
    %c512_135 = arith.constant 512 : index
    %93 = vector.load %arg7[%c96_134, %c512_135] : memref<256x768xf32, #tpu.memory_space<vmem>>, vector<32x256xf32>
    tpu.vector_store %arg7[%c96_134, %c512_135], %92 {strides = array<i32>} : memref<256x768xf32, #tpu.memory_space<vmem>>, vector<32x256xf32>,
    %c0_136 = arith.constant 0 : index
    %c2_137 = arith.constant 2 : index
    %c512_138 = arith.constant 512 : index
    %94 = vector.load %arg6[%c0_136, %c2_137, %c512_138] : memref<2x18x1152xf32, #tpu.memory_space<vmem>>, vector<2x16x256xf32>
    %95 = vector.shape_cast %94 : vector<2x16x256xf32> to vector<32x256xf32>
    %c128_139 = arith.constant 128 : index
    %c512_140 = arith.constant 512 : index
    %96 = vector.load %arg7[%c128_139, %c512_140] : memref<256x768xf32, #tpu.memory_space<vmem>>, vector<32x256xf32>
    tpu.vector_store %arg7[%c128_139, %c512_140], %95 {strides = array<i32>} : memref<256x768xf32, #tpu.memory_space<vmem>>, vector<32x256xf32>,
    %c0_141 = arith.constant 0 : index
    %c2_142 = arith.constant 2 : index
    %c640_143 = arith.constant 640 : index
    %97 = vector.load %arg6[%c0_141, %c2_142, %c640_143] : memref<2x18x1152xf32, #tpu.memory_space<vmem>>, vector<2x16x256xf32>
    %98 = vector.shape_cast %97 : vector<2x16x256xf32> to vector<32x256xf32>
    %c160_144 = arith.constant 160 : index
    %c512_145 = arith.constant 512 : index
    %99 = vector.load %arg7[%c160_144, %c512_145] : memref<256x768xf32, #tpu.memory_space<vmem>>, vector<32x256xf32>
    tpu.vector_store %arg7[%c160_144, %c512_145], %98 {strides = array<i32>} : memref<256x768xf32, #tpu.memory_space<vmem>>, vector<32x256xf32>,
    %c0_146 = arith.constant 0 : index
    %c2_147 = arith.constant 2 : index
    %c768_148 = arith.constant 768 : index
    %100 = vector.load %arg6[%c0_146, %c2_147, %c768_148] : memref<2x18x1152xf32, #tpu.memory_space<vmem>>, vector<2x16x256xf32>
    %101 = vector.shape_cast %100 : vector<2x16x256xf32> to vector<32x256xf32>
    %c192_149 = arith.constant 192 : index
    %c512_150 = arith.constant 512 : index
    %102 = vector.load %arg7[%c192_149, %c512_150] : memref<256x768xf32, #tpu.memory_space<vmem>>, vector<32x256xf32>
    tpu.vector_store %arg7[%c192_149, %c512_150], %101 {strides = array<i32>} : memref<256x768xf32, #tpu.memory_space<vmem>>, vector<32x256xf32>,
    %c0_151 = arith.constant 0 : index
    %c2_152 = arith.constant 2 : index
    %c896_153 = arith.constant 896 : index
    %103 = vector.load %arg6[%c0_151, %c2_152, %c896_153] : memref<2x18x1152xf32, #tpu.memory_space<vmem>>, vector<2x16x256xf32>
    %104 = vector.shape_cast %103 : vector<2x16x256xf32> to vector<32x256xf32>
    %c224_154 = arith.constant 224 : index
    %c512_155 = arith.constant 512 : index
    %105 = vector.load %arg7[%c224_154, %c512_155] : memref<256x768xf32, #tpu.memory_space<vmem>>, vector<32x256xf32>
    tpu.vector_store %arg7[%c224_154, %c512_155], %104 {strides = array<i32>} : memref<256x768xf32, #tpu.memory_space<vmem>>, vector<32x256xf32>,
    %c0_156 = arith.constant 0 : index
    %c0_157 = arith.constant 0 : index
    %106 = vector.load %arg7[%c0_156, %c0_157] : memref<256x768xf32, #tpu.memory_space<vmem>>, vector<256x768xf32>
    %c0_158 = arith.constant 0 : index
    %c0_159 = arith.constant 0 : index
    %107 = vector.load %arg2[%c0_158, %c0_159] : memref<768x128xf32, #tpu.memory_space<vmem>>, vector<768x128xf32>
    %cst_160 = arith.constant dense<0.000000e+00> : vector<256x128xf32>
    %108 = tpu.matmul %106, %107, %cst_160 {dimension_numbers = #tpu.dot_dimension_numbers<[1], [0], [0], [1], [0, 0, 1, 1], [], []>} : vector<256x768xf32>, vector<768x128xf32>, vector<256x128xf32> -> vector<256x128xf32>
    %cst_161 = arith.constant dense<0.000000e+00> : vector<128xf32>
    %109 = vector.multi_reduction <add>, %108, %cst_161 [0] : vector<256x128xf32> to vector<128xf32>
    %110 = vector.shape_cast %109 : vector<128xf32> to vector<1x128xf32>
    %cst_162 = arith.constant 3.906250e-03 : f32
    %111 = vector.broadcast %cst_162 : f32 to vector<1x128xf32>
    %112 = arith.mulf %110, %111 : vector<1x128xf32>
    %113 = vector.extract_strided_slice %112 {offsets = [0, 0], sizes = [1, 64], strides = [1, 1]} : vector<1x128xf32> to vector<1x64xf32>
    %114 = vector.extract_strided_slice %112 {offsets = [0, 64], sizes = [1, 64], strides = [1, 1]} : vector<1x128xf32> to vector<1x64xf32>
    %115 = arith.addf %113, %114 : vector<1x64xf32>
    %cst_163 = arith.constant 5.000000e-01 : f32
    %116 = vector.broadcast %cst_163 : f32 to vector<1x64xf32>
    %117 = arith.mulf %116, %115 : vector<1x64xf32>
    %118 = tpu.concatenate %117, %117 in 1 : vector<1x64xf32>, vector<1x64xf32> -> vector<1x128xf32>
    %119 = vector.broadcast %118 : vector<1x128xf32> to vector<256x128xf32>
    %120 = arith.subf %108, %119 : vector<256x128xf32>
    %121 = arith.mulf %120, %120 : vector<256x128xf32>
    %cst_164 = arith.constant dense<0.000000e+00> : vector<128xf32>
    %122 = vector.multi_reduction <add>, %121, %cst_164 [0] : vector<256x128xf32> to vector<128xf32>
    %123 = vector.shape_cast %122 : vector<128xf32> to vector<1x128xf32>
    %cst_165 = arith.constant 3.906250e-03 : f32
    %124 = vector.broadcast %cst_165 : f32 to vector<1x128xf32>
    %125 = arith.mulf %123, %124 : vector<1x128xf32>
    %126 = vector.extract_strided_slice %125 {offsets = [0, 0], sizes = [1, 64], strides = [1, 1]} : vector<1x128xf32> to vector<1x64xf32>
    %127 = vector.extract_strided_slice %125 {offsets = [0, 64], sizes = [1, 64], strides = [1, 1]} : vector<1x128xf32> to vector<1x64xf32>
    %128 = arith.addf %126, %127 : vector<1x64xf32>
    %cst_166 = arith.constant 5.000000e-01 : f32
    %129 = vector.broadcast %cst_166 : f32 to vector<1x64xf32>
    %130 = arith.mulf %129, %128 : vector<1x64xf32>
    %131 = tpu.concatenate %130, %130 in 1 : vector<1x64xf32>, vector<1x64xf32> -> vector<1x128xf32>
    %cst_167 = arith.constant 9.99999974E-6 : f32
    %132 = vector.broadcast %cst_167 : f32 to vector<1x128xf32>
    %133 = arith.addf %131, %132 : vector<1x128xf32>
    %134 = math.rsqrt %133 : vector<1x128xf32>
    %135 = arith.mulf %6, %134 : vector<1x128xf32>
    %136 = vector.broadcast %135 : vector<1x128xf32> to vector<256x128xf32>
    %137 = arith.mulf %120, %136 : vector<256x128xf32>
    %138 = vector.broadcast %7 : vector<1x128xf32> to vector<256x128xf32>
    %139 = arith.addf %137, %138 : vector<256x128xf32>
    %cst_168 = arith.constant 0.000000e+00 : f32
    %140 = vector.broadcast %cst_168 : f32 to vector<256x128xf32>
    %141 = arith.cmpf oge, %139, %140 : vector<256x128xf32>
    %cst_169 = arith.constant 2.000000e-01 : f32
    %142 = vector.broadcast %cst_169 : f32 to vector<256x128xf32>
    %143 = arith.mulf %142, %139 : vector<256x128xf32>
    %144 = arith.select %141, %139, %143 : vector<256x128xi1>, vector<256x128xf32>
    %145 = vector.extract_strided_slice %144 {offsets = [0, 0], sizes = [32, 128], strides = [1, 1]} : vector<256x128xf32> to vector<32x128xf32>
    %146 = vector.shape_cast %145 : vector<32x128xf32> to vector<2x16x128xf32>
    %c0_170 = arith.constant 0 : index
    %c1_171 = arith.constant 1 : index
    %c64_172 = arith.constant 64 : index
    %147 = vector.load %arg6[%c0_170, %c1_171, %c64_172] : memref<2x18x1152xf32, #tpu.memory_space<vmem>>, vector<2x16x128xf32>
    tpu.vector_store %arg6[%c0_170, %c1_171, %c64_172], %146 {strides = array<i32>} : memref<2x18x1152xf32, #tpu.memory_space<vmem>>, vector<2x16x128xf32>,
    %148 = vector.extract_strided_slice %144 {offsets = [32, 0], sizes = [32, 128], strides = [1, 1]} : vector<256x128xf32> to vector<32x128xf32>
    %149 = vector.shape_cast %148 : vector<32x128xf32> to vector<2x16x128xf32>
    %c0_173 = arith.constant 0 : index
    %c1_174 = arith.constant 1 : index
    %c192_175 = arith.constant 192 : index
    %150 = vector.load %arg6[%c0_173, %c1_174, %c192_175] : memref<2x18x1152xf32, #tpu.memory_space<vmem>>, vector<2x16x128xf32>
    tpu.vector_store %arg6[%c0_173, %c1_174, %c192_175], %149 {strides = array<i32>} : memref<2x18x1152xf32, #tpu.memory_space<vmem>>, vector<2x16x128xf32>,
    %151 = vector.extract_strided_slice %144 {offsets = [64, 0], sizes = [32, 128], strides = [1, 1]} : vector<256x128xf32> to vector<32x128xf32>
    %152 = vector.shape_cast %151 : vector<32x128xf32> to vector<2x16x128xf32>
    %c0_176 = arith.constant 0 : index
    %c1_177 = arith.constant 1 : index
    %c320_178 = arith.constant 320 : index
    %153 = vector.load %arg6[%c0_176, %c1_177, %c320_178] : memref<2x18x1152xf32, #tpu.memory_space<vmem>>, vector<2x16x128xf32>
    tpu.vector_store %arg6[%c0_176, %c1_177, %c320_178], %152 {strides = array<i32>} : memref<2x18x1152xf32, #tpu.memory_space<vmem>>, vector<2x16x128xf32>,
    %154 = vector.extract_strided_slice %144 {offsets = [96, 0], sizes = [32, 128], strides = [1, 1]} : vector<256x128xf32> to vector<32x128xf32>
    %155 = vector.shape_cast %154 : vector<32x128xf32> to vector<2x16x128xf32>
    %c0_179 = arith.constant 0 : index
    %c1_180 = arith.constant 1 : index
    %c448_181 = arith.constant 448 : index
    %156 = vector.load %arg6[%c0_179, %c1_180, %c448_181] : memref<2x18x1152xf32, #tpu.memory_space<vmem>>, vector<2x16x128xf32>
    tpu.vector_store %arg6[%c0_179, %c1_180, %c448_181], %155 {strides = array<i32>} : memref<2x18x1152xf32, #tpu.memory_space<vmem>>, vector<2x16x128xf32>,
    %157 = vector.extract_strided_slice %144 {offsets = [128, 0], sizes = [32, 128], strides = [1, 1]} : vector<256x128xf32> to vector<32x128xf32>
    %158 = vector.shape_cast %157 : vector<32x128xf32> to vector<2x16x128xf32>
    %c0_182 = arith.constant 0 : index
    %c1_183 = arith.constant 1 : index
    %c576_184 = arith.constant 576 : index
    %159 = vector.load %arg6[%c0_182, %c1_183, %c576_184] : memref<2x18x1152xf32, #tpu.memory_space<vmem>>, vector<2x16x128xf32>
    tpu.vector_store %arg6[%c0_182, %c1_183, %c576_184], %158 {strides = array<i32>} : memref<2x18x1152xf32, #tpu.memory_space<vmem>>, vector<2x16x128xf32>,
    %160 = vector.extract_strided_slice %144 {offsets = [160, 0], sizes = [32, 128], strides = [1, 1]} : vector<256x128xf32> to vector<32x128xf32>
    %161 = vector.shape_cast %160 : vector<32x128xf32> to vector<2x16x128xf32>
    %c0_185 = arith.constant 0 : index
    %c1_186 = arith.constant 1 : index
    %c704_187 = arith.constant 704 : index
    %162 = vector.load %arg6[%c0_185, %c1_186, %c704_187] : memref<2x18x1152xf32, #tpu.memory_space<vmem>>, vector<2x16x128xf32>
    tpu.vector_store %arg6[%c0_185, %c1_186, %c704_187], %161 {strides = array<i32>} : memref<2x18x1152xf32, #tpu.memory_space<vmem>>, vector<2x16x128xf32>,
    %163 = vector.extract_strided_slice %144 {offsets = [192, 0], sizes = [32, 128], strides = [1, 1]} : vector<256x128xf32> to vector<32x128xf32>
    %164 = vector.shape_cast %163 : vector<32x128xf32> to vector<2x16x128xf32>
    %c0_188 = arith.constant 0 : index
    %c1_189 = arith.constant 1 : index
    %c832_190 = arith.constant 832 : index
    %165 = vector.load %arg6[%c0_188, %c1_189, %c832_190] : memref<2x18x1152xf32, #tpu.memory_space<vmem>>, vector<2x16x128xf32>
    tpu.vector_store %arg6[%c0_188, %c1_189, %c832_190], %164 {strides = array<i32>} : memref<2x18x1152xf32, #tpu.memory_space<vmem>>, vector<2x16x128xf32>,
    %166 = vector.extract_strided_slice %144 {offsets = [224, 0], sizes = [32, 128], strides = [1, 1]} : vector<256x128xf32> to vector<32x128xf32>
    %167 = vector.shape_cast %166 : vector<32x128xf32> to vector<2x16x128xf32>
    %c0_191 = arith.constant 0 : index
    %c1_192 = arith.constant 1 : index
    %c960_193 = arith.constant 960 : index
    %168 = vector.load %arg6[%c0_191, %c1_192, %c960_193] : memref<2x18x1152xf32, #tpu.memory_space<vmem>>, vector<2x16x128xf32>
    tpu.vector_store %arg6[%c0_191, %c1_192, %c960_193], %167 {strides = array<i32>} : memref<2x18x1152xf32, #tpu.memory_space<vmem>>, vector<2x16x128xf32>,
    %c0_194 = arith.constant 0 : index
    %c0_195 = arith.constant 0 : index
    %c0_196 = arith.constant 0 : index
    %169 = vector.load %arg6[%c0_194, %c0_195, %c0_196] : memref<2x18x1152xf32, #tpu.memory_space<vmem>>, vector<2x16x256xf32>
    %170 = vector.shape_cast %169 : vector<2x16x256xf32> to vector<32x256xf32>
    %c0_197 = arith.constant 0 : index
    %c0_198 = arith.constant 0 : index
    %171 = vector.load %arg7[%c0_197, %c0_198] : memref<256x768xf32, #tpu.memory_space<vmem>>, vector<32x256xf32>
    tpu.vector_store %arg7[%c0_197, %c0_198], %170 {strides = array<i32>} : memref<256x768xf32, #tpu.memory_space<vmem>>, vector<32x256xf32>,
    %c0_199 = arith.constant 0 : index
    %c0_200 = arith.constant 0 : index
    %c128_201 = arith.constant 128 : index
    %172 = vector.load %arg6[%c0_199, %c0_200, %c128_201] : memref<2x18x1152xf32, #tpu.memory_space<vmem>>, vector<2x16x256xf32>
    %173 = vector.shape_cast %172 : vector<2x16x256xf32> to vector<32x256xf32>
    %c32_202 = arith.constant 32 : index
    %c0_203 = arith.constant 0 : index
    %174 = vector.load %arg7[%c32_202, %c0_203] : memref<256x768xf32, #tpu.memory_space<vmem>>, vector<32x256xf32>
    tpu.vector_store %arg7[%c32_202, %c0_203], %173 {strides = array<i32>} : memref<256x768xf32, #tpu.memory_space<vmem>>, vector<32x256xf32>,
    %c0_204 = arith.constant 0 : index
    %c0_205 = arith.constant 0 : index
    %c256_206 = arith.constant 256 : index
    %175 = vector.load %arg6[%c0_204, %c0_205, %c256_206] : memref<2x18x1152xf32, #tpu.memory_space<vmem>>, vector<2x16x256xf32>
    %176 = vector.shape_cast %175 : vector<2x16x256xf32> to vector<32x256xf32>
    %c64_207 = arith.constant 64 : index
    %c0_208 = arith.constant 0 : index
    %177 = vector.load %arg7[%c64_207, %c0_208] : memref<256x768xf32, #tpu.memory_space<vmem>>, vector<32x256xf32>
    tpu.vector_store %arg7[%c64_207, %c0_208], %176 {strides = array<i32>} : memref<256x768xf32, #tpu.memory_space<vmem>>, vector<32x256xf32>,
    %c0_209 = arith.constant 0 : index
    %c0_210 = arith.constant 0 : index
    %c384_211 = arith.constant 384 : index
    %178 = vector.load %arg6[%c0_209, %c0_210, %c384_211] : memref<2x18x1152xf32, #tpu.memory_space<vmem>>, vector<2x16x256xf32>
    %179 = vector.shape_cast %178 : vector<2x16x256xf32> to vector<32x256xf32>
    %c96_212 = arith.constant 96 : index
    %c0_213 = arith.constant 0 : index
    %180 = vector.load %arg7[%c96_212, %c0_213] : memref<256x768xf32, #tpu.memory_space<vmem>>, vector<32x256xf32>
    tpu.vector_store %arg7[%c96_212, %c0_213], %179 {strides = array<i32>} : memref<256x768xf32, #tpu.memory_space<vmem>>, vector<32x256xf32>,
    %c0_214 = arith.constant 0 : index
    %c0_215 = arith.constant 0 : index
    %c512_216 = arith.constant 512 : index
    %181 = vector.load %arg6[%c0_214, %c0_215, %c512_216] : memref<2x18x1152xf32, #tpu.memory_space<vmem>>, vector<2x16x256xf32>
    %182 = vector.shape_cast %181 : vector<2x16x256xf32> to vector<32x256xf32>
    %c128_217 = arith.constant 128 : index
    %c0_218 = arith.constant 0 : index
    %183 = vector.load %arg7[%c128_217, %c0_218] : memref<256x768xf32, #tpu.memory_space<vmem>>, vector<32x256xf32>
    tpu.vector_store %arg7[%c128_217, %c0_218], %182 {strides = array<i32>} : memref<256x768xf32, #tpu.memory_space<vmem>>, vector<32x256xf32>,
    %c0_219 = arith.constant 0 : index
    %c0_220 = arith.constant 0 : index
    %c640_221 = arith.constant 640 : index
    %184 = vector.load %arg6[%c0_219, %c0_220, %c640_221] : memref<2x18x1152xf32, #tpu.memory_space<vmem>>, vector<2x16x256xf32>
    %185 = vector.shape_cast %184 : vector<2x16x256xf32> to vector<32x256xf32>
    %c160_222 = arith.constant 160 : index
    %c0_223 = arith.constant 0 : index
    %186 = vector.load %arg7[%c160_222, %c0_223] : memref<256x768xf32, #tpu.memory_space<vmem>>, vector<32x256xf32>
    tpu.vector_store %arg7[%c160_222, %c0_223], %185 {strides = array<i32>} : memref<256x768xf32, #tpu.memory_space<vmem>>, vector<32x256xf32>,
    %c0_224 = arith.constant 0 : index
    %c0_225 = arith.constant 0 : index
    %c768_226 = arith.constant 768 : index
    %187 = vector.load %arg6[%c0_224, %c0_225, %c768_226] : memref<2x18x1152xf32, #tpu.memory_space<vmem>>, vector<2x16x256xf32>
    %188 = vector.shape_cast %187 : vector<2x16x256xf32> to vector<32x256xf32>
    %c192_227 = arith.constant 192 : index
    %c0_228 = arith.constant 0 : index
    %189 = vector.load %arg7[%c192_227, %c0_228] : memref<256x768xf32, #tpu.memory_space<vmem>>, vector<32x256xf32>
    tpu.vector_store %arg7[%c192_227, %c0_228], %188 {strides = array<i32>} : memref<256x768xf32, #tpu.memory_space<vmem>>, vector<32x256xf32>,
    %c0_229 = arith.constant 0 : index
    %c0_230 = arith.constant 0 : index
    %c896_231 = arith.constant 896 : index
    %190 = vector.load %arg6[%c0_229, %c0_230, %c896_231] : memref<2x18x1152xf32, #tpu.memory_space<vmem>>, vector<2x16x256xf32>
    %191 = vector.shape_cast %190 : vector<2x16x256xf32> to vector<32x256xf32>
    %c224_232 = arith.constant 224 : index
    %c0_233 = arith.constant 0 : index
    %192 = vector.load %arg7[%c224_232, %c0_233] : memref<256x768xf32, #tpu.memory_space<vmem>>, vector<32x256xf32>
    tpu.vector_store %arg7[%c224_232, %c0_233], %191 {strides = array<i32>} : memref<256x768xf32, #tpu.memory_space<vmem>>, vector<32x256xf32>,
    %c0_234 = arith.constant 0 : index
    %c1_235 = arith.constant 1 : index
    %c0_236 = arith.constant 0 : index
    %193 = vector.load %arg6[%c0_234, %c1_235, %c0_236] : memref<2x18x1152xf32, #tpu.memory_space<vmem>>, vector<2x16x256xf32>
    %194 = vector.shape_cast %193 : vector<2x16x256xf32> to vector<32x256xf32>
    %c0_237 = arith.constant 0 : index
    %c256_238 = arith.constant 256 : index
    %195 = vector.load %arg7[%c0_237, %c256_238] : memref<256x768xf32, #tpu.memory_space<vmem>>, vector<32x256xf32>
    tpu.vector_store %arg7[%c0_237, %c256_238], %194 {strides = array<i32>} : memref<256x768xf32, #tpu.memory_space<vmem>>, vector<32x256xf32>,
    %c0_239 = arith.constant 0 : index
    %c1_240 = arith.constant 1 : index
    %c128_241 = arith.constant 128 : index
    %196 = vector.load %arg6[%c0_239, %c1_240, %c128_241] : memref<2x18x1152xf32, #tpu.memory_space<vmem>>, vector<2x16x256xf32>
    %197 = vector.shape_cast %196 : vector<2x16x256xf32> to vector<32x256xf32>
    %c32_242 = arith.constant 32 : index
    %c256_243 = arith.constant 256 : index
    %198 = vector.load %arg7[%c32_242, %c256_243] : memref<256x768xf32, #tpu.memory_space<vmem>>, vector<32x256xf32>
    tpu.vector_store %arg7[%c32_242, %c256_243], %197 {strides = array<i32>} : memref<256x768xf32, #tpu.memory_space<vmem>>, vector<32x256xf32>,
    %c0_244 = arith.constant 0 : index
    %c1_245 = arith.constant 1 : index
    %c256_246 = arith.constant 256 : index
    %199 = vector.load %arg6[%c0_244, %c1_245, %c256_246] : memref<2x18x1152xf32, #tpu.memory_space<vmem>>, vector<2x16x256xf32>
    %200 = vector.shape_cast %199 : vector<2x16x256xf32> to vector<32x256xf32>
    %c64_247 = arith.constant 64 : index
    %c256_248 = arith.constant 256 : index
    %201 = vector.load %arg7[%c64_247, %c256_248] : memref<256x768xf32, #tpu.memory_space<vmem>>, vector<32x256xf32>
    tpu.vector_store %arg7[%c64_247, %c256_248], %200 {strides = array<i32>} : memref<256x768xf32, #tpu.memory_space<vmem>>, vector<32x256xf32>,
    %c0_249 = arith.constant 0 : index
    %c1_250 = arith.constant 1 : index
    %c384_251 = arith.constant 384 : index
    %202 = vector.load %arg6[%c0_249, %c1_250, %c384_251] : memref<2x18x1152xf32, #tpu.memory_space<vmem>>, vector<2x16x256xf32>
    %203 = vector.shape_cast %202 : vector<2x16x256xf32> to vector<32x256xf32>
    %c96_252 = arith.constant 96 : index
    %c256_253 = arith.constant 256 : index
    %204 = vector.load %arg7[%c96_252, %c256_253] : memref<256x768xf32, #tpu.memory_space<vmem>>, vector<32x256xf32>
    tpu.vector_store %arg7[%c96_252, %c256_253], %203 {strides = array<i32>} : memref<256x768xf32, #tpu.memory_space<vmem>>, vector<32x256xf32>,
    %c0_254 = arith.constant 0 : index
    %c1_255 = arith.constant 1 : index
    %c512_256 = arith.constant 512 : index
    %205 = vector.load %arg6[%c0_254, %c1_255, %c512_256] : memref<2x18x1152xf32, #tpu.memory_space<vmem>>, vector<2x16x256xf32>
    %206 = vector.shape_cast %205 : vector<2x16x256xf32> to vector<32x256xf32>
    %c128_257 = arith.constant 128 : index
    %c256_258 = arith.constant 256 : index
    %207 = vector.load %arg7[%c128_257, %c256_258] : memref<256x768xf32, #tpu.memory_space<vmem>>, vector<32x256xf32>
    tpu.vector_store %arg7[%c128_257, %c256_258], %206 {strides = array<i32>} : memref<256x768xf32, #tpu.memory_space<vmem>>, vector<32x256xf32>,
    %c0_259 = arith.constant 0 : index
    %c1_260 = arith.constant 1 : index
    %c640_261 = arith.constant 640 : index
    %208 = vector.load %arg6[%c0_259, %c1_260, %c640_261] : memref<2x18x1152xf32, #tpu.memory_space<vmem>>, vector<2x16x256xf32>
    %209 = vector.shape_cast %208 : vector<2x16x256xf32> to vector<32x256xf32>
    %c160_262 = arith.constant 160 : index
    %c256_263 = arith.constant 256 : index
    %210 = vector.load %arg7[%c160_262, %c256_263] : memref<256x768xf32, #tpu.memory_space<vmem>>, vector<32x256xf32>
    tpu.vector_store %arg7[%c160_262, %c256_263], %209 {strides = array<i32>} : memref<256x768xf32, #tpu.memory_space<vmem>>, vector<32x256xf32>,
    %c0_264 = arith.constant 0 : index
    %c1_265 = arith.constant 1 : index
    %c768_266 = arith.constant 768 : index
    %211 = vector.load %arg6[%c0_264, %c1_265, %c768_266] : memref<2x18x1152xf32, #tpu.memory_space<vmem>>, vector<2x16x256xf32>
    %212 = vector.shape_cast %211 : vector<2x16x256xf32> to vector<32x256xf32>
    %c192_267 = arith.constant 192 : index
    %c256_268 = arith.constant 256 : index
    %213 = vector.load %arg7[%c192_267, %c256_268] : memref<256x768xf32, #tpu.memory_space<vmem>>, vector<32x256xf32>
    tpu.vector_store %arg7[%c192_267, %c256_268], %212 {strides = array<i32>} : memref<256x768xf32, #tpu.memory_space<vmem>>, vector<32x256xf32>,
    %c0_269 = arith.constant 0 : index
    %c1_270 = arith.constant 1 : index
    %c896_271 = arith.constant 896 : index
    %214 = vector.load %arg6[%c0_269, %c1_270, %c896_271] : memref<2x18x1152xf32, #tpu.memory_space<vmem>>, vector<2x16x256xf32>
    %215 = vector.shape_cast %214 : vector<2x16x256xf32> to vector<32x256xf32>
    %c224_272 = arith.constant 224 : index
    %c256_273 = arith.constant 256 : index
    %216 = vector.load %arg7[%c224_272, %c256_273] : memref<256x768xf32, #tpu.memory_space<vmem>>, vector<32x256xf32>
    tpu.vector_store %arg7[%c224_272, %c256_273], %215 {strides = array<i32>} : memref<256x768xf32, #tpu.memory_space<vmem>>, vector<32x256xf32>,
    %c0_274 = arith.constant 0 : index
    %c2_275 = arith.constant 2 : index
    %c0_276 = arith.constant 0 : index
    %217 = vector.load %arg6[%c0_274, %c2_275, %c0_276] : memref<2x18x1152xf32, #tpu.memory_space<vmem>>, vector<2x16x256xf32>
    %218 = vector.shape_cast %217 : vector<2x16x256xf32> to vector<32x256xf32>
    %c0_277 = arith.constant 0 : index
    %c512_278 = arith.constant 512 : index
    %219 = vector.load %arg7[%c0_277, %c512_278] : memref<256x768xf32, #tpu.memory_space<vmem>>, vector<32x256xf32>
    tpu.vector_store %arg7[%c0_277, %c512_278], %218 {strides = array<i32>} : memref<256x768xf32, #tpu.memory_space<vmem>>, vector<32x256xf32>,
    %c0_279 = arith.constant 0 : index
    %c2_280 = arith.constant 2 : index
    %c128_281 = arith.constant 128 : index
    %220 = vector.load %arg6[%c0_279, %c2_280, %c128_281] : memref<2x18x1152xf32, #tpu.memory_space<vmem>>, vector<2x16x256xf32>
    %221 = vector.shape_cast %220 : vector<2x16x256xf32> to vector<32x256xf32>
    %c32_282 = arith.constant 32 : index
    %c512_283 = arith.constant 512 : index
    %222 = vector.load %arg7[%c32_282, %c512_283] : memref<256x768xf32, #tpu.memory_space<vmem>>, vector<32x256xf32>
    tpu.vector_store %arg7[%c32_282, %c512_283], %221 {strides = array<i32>} : memref<256x768xf32, #tpu.memory_space<vmem>>, vector<32x256xf32>,
    %c0_284 = arith.constant 0 : index
    %c2_285 = arith.constant 2 : index
    %c256_286 = arith.constant 256 : index
    %223 = vector.load %arg6[%c0_284, %c2_285, %c256_286] : memref<2x18x1152xf32, #tpu.memory_space<vmem>>, vector<2x16x256xf32>
    %224 = vector.shape_cast %223 : vector<2x16x256xf32> to vector<32x256xf32>
    %c64_287 = arith.constant 64 : index
    %c512_288 = arith.constant 512 : index
    %225 = vector.load %arg7[%c64_287, %c512_288] : memref<256x768xf32, #tpu.memory_space<vmem>>, vector<32x256xf32>
    tpu.vector_store %arg7[%c64_287, %c512_288], %224 {strides = array<i32>} : memref<256x768xf32, #tpu.memory_space<vmem>>, vector<32x256xf32>,
    %c0_289 = arith.constant 0 : index
    %c2_290 = arith.constant 2 : index
    %c384_291 = arith.constant 384 : index
    %226 = vector.load %arg6[%c0_289, %c2_290, %c384_291] : memref<2x18x1152xf32, #tpu.memory_space<vmem>>, vector<2x16x256xf32>
    %227 = vector.shape_cast %226 : vector<2x16x256xf32> to vector<32x256xf32>
    %c96_292 = arith.constant 96 : index
    %c512_293 = arith.constant 512 : index
    %228 = vector.load %arg7[%c96_292, %c512_293] : memref<256x768xf32, #tpu.memory_space<vmem>>, vector<32x256xf32>
    tpu.vector_store %arg7[%c96_292, %c512_293], %227 {strides = array<i32>} : memref<256x768xf32, #tpu.memory_space<vmem>>, vector<32x256xf32>,
    %c0_294 = arith.constant 0 : index
    %c2_295 = arith.constant 2 : index
    %c512_296 = arith.constant 512 : index
    %229 = vector.load %arg6[%c0_294, %c2_295, %c512_296] : memref<2x18x1152xf32, #tpu.memory_space<vmem>>, vector<2x16x256xf32>
    %230 = vector.shape_cast %229 : vector<2x16x256xf32> to vector<32x256xf32>
    %c128_297 = arith.constant 128 : index
    %c512_298 = arith.constant 512 : index
    %231 = vector.load %arg7[%c128_297, %c512_298] : memref<256x768xf32, #tpu.memory_space<vmem>>, vector<32x256xf32>
    tpu.vector_store %arg7[%c128_297, %c512_298], %230 {strides = array<i32>} : memref<256x768xf32, #tpu.memory_space<vmem>>, vector<32x256xf32>,
    %c0_299 = arith.constant 0 : index
    %c2_300 = arith.constant 2 : index
    %c640_301 = arith.constant 640 : index
    %232 = vector.load %arg6[%c0_299, %c2_300, %c640_301] : memref<2x18x1152xf32, #tpu.memory_space<vmem>>, vector<2x16x256xf32>
    %233 = vector.shape_cast %232 : vector<2x16x256xf32> to vector<32x256xf32>
    %c160_302 = arith.constant 160 : index
    %c512_303 = arith.constant 512 : index
    %234 = vector.load %arg7[%c160_302, %c512_303] : memref<256x768xf32, #tpu.memory_space<vmem>>, vector<32x256xf32>
    tpu.vector_store %arg7[%c160_302, %c512_303], %233 {strides = array<i32>} : memref<256x768xf32, #tpu.memory_space<vmem>>, vector<32x256xf32>,
    %c0_304 = arith.constant 0 : index
    %c2_305 = arith.constant 2 : index
    %c768_306 = arith.constant 768 : index
    %235 = vector.load %arg6[%c0_304, %c2_305, %c768_306] : memref<2x18x1152xf32, #tpu.memory_space<vmem>>, vector<2x16x256xf32>
    %236 = vector.shape_cast %235 : vector<2x16x256xf32> to vector<32x256xf32>
    %c192_307 = arith.constant 192 : index
    %c512_308 = arith.constant 512 : index
    %237 = vector.load %arg7[%c192_307, %c512_308] : memref<256x768xf32, #tpu.memory_space<vmem>>, vector<32x256xf32>
    tpu.vector_store %arg7[%c192_307, %c512_308], %236 {strides = array<i32>} : memref<256x768xf32, #tpu.memory_space<vmem>>, vector<32x256xf32>,
    %c0_309 = arith.constant 0 : index
    %c2_310 = arith.constant 2 : index
    %c896_311 = arith.constant 896 : index
    %238 = vector.load %arg6[%c0_309, %c2_310, %c896_311] : memref<2x18x1152xf32, #tpu.memory_space<vmem>>, vector<2x16x256xf32>
    %239 = vector.shape_cast %238 : vector<2x16x256xf32> to vector<32x256xf32>
    %c224_312 = arith.constant 224 : index
    %c512_313 = arith.constant 512 : index
    %240 = vector.load %arg7[%c224_312, %c512_313] : memref<256x768xf32, #tpu.memory_space<vmem>>, vector<32x256xf32>
    tpu.vector_store %arg7[%c224_312, %c512_313], %239 {strides = array<i32>} : memref<256x768xf32, #tpu.memory_space<vmem>>, vector<32x256xf32>,
    %c0_314 = arith.constant 0 : index
    %c0_315 = arith.constant 0 : index
    %241 = vector.load %arg7[%c0_314, %c0_315] : memref<256x768xf32, #tpu.memory_space<vmem>>, vector<256x768xf32>
    %c0_316 = arith.constant 0 : index
    %c0_317 = arith.constant 0 : index
    %242 = vector.load %arg3[%c0_316, %c0_317] : memref<768x128xf32, #tpu.memory_space<vmem>>, vector<768x128xf32>
    %cst_318 = arith.constant dense<0.000000e+00> : vector<256x128xf32>
    %243 = tpu.matmul %241, %242, %cst_318 {dimension_numbers = #tpu.dot_dimension_numbers<[1], [0], [0], [1], [0, 0, 1, 1], [], []>} : vector<256x768xf32>, vector<768x128xf32>, vector<256x128xf32> -> vector<256x128xf32>
    %cst_319 = arith.constant dense<0.000000e+00> : vector<128xf32>
    %244 = vector.multi_reduction <add>, %243, %cst_319 [0] : vector<256x128xf32> to vector<128xf32>
    %245 = vector.shape_cast %244 : vector<128xf32> to vector<1x128xf32>
    %cst_320 = arith.constant 3.906250e-03 : f32
    %246 = vector.broadcast %cst_320 : f32 to vector<1x128xf32>
    %247 = arith.mulf %245, %246 : vector<1x128xf32>
    %248 = vector.extract_strided_slice %247 {offsets = [0, 0], sizes = [1, 64], strides = [1, 1]} : vector<1x128xf32> to vector<1x64xf32>
    %249 = vector.extract_strided_slice %247 {offsets = [0, 64], sizes = [1, 64], strides = [1, 1]} : vector<1x128xf32> to vector<1x64xf32>
    %250 = arith.addf %248, %249 : vector<1x64xf32>
    %cst_321 = arith.constant 5.000000e-01 : f32
    %251 = vector.broadcast %cst_321 : f32 to vector<1x64xf32>
    %252 = arith.mulf %251, %250 : vector<1x64xf32>
    %253 = tpu.concatenate %252, %252 in 1 : vector<1x64xf32>, vector<1x64xf32> -> vector<1x128xf32>
    %254 = vector.broadcast %253 : vector<1x128xf32> to vector<256x128xf32>
    %255 = arith.subf %243, %254 : vector<256x128xf32>
    %256 = arith.mulf %255, %255 : vector<256x128xf32>
    %cst_322 = arith.constant dense<0.000000e+00> : vector<128xf32>
    %257 = vector.multi_reduction <add>, %256, %cst_322 [0] : vector<256x128xf32> to vector<128xf32>
    %258 = vector.shape_cast %257 : vector<128xf32> to vector<1x128xf32>
    %cst_323 = arith.constant 3.906250e-03 : f32
    %259 = vector.broadcast %cst_323 : f32 to vector<1x128xf32>
    %260 = arith.mulf %258, %259 : vector<1x128xf32>
    %261 = vector.extract_strided_slice %260 {offsets = [0, 0], sizes = [1, 64], strides = [1, 1]} : vector<1x128xf32> to vector<1x64xf32>
    %262 = vector.extract_strided_slice %260 {offsets = [0, 64], sizes = [1, 64], strides = [1, 1]} : vector<1x128xf32> to vector<1x64xf32>
    %263 = arith.addf %261, %262 : vector<1x64xf32>
    %cst_324 = arith.constant 5.000000e-01 : f32
    %264 = vector.broadcast %cst_324 : f32 to vector<1x64xf32>
    %265 = arith.mulf %264, %263 : vector<1x64xf32>
    %266 = tpu.concatenate %265, %265 in 1 : vector<1x64xf32>, vector<1x64xf32> -> vector<1x128xf32>
    %cst_325 = arith.constant 9.99999974E-6 : f32
    %267 = vector.broadcast %cst_325 : f32 to vector<1x128xf32>
    %268 = arith.addf %266, %267 : vector<1x128xf32>
    %269 = math.rsqrt %268 : vector<1x128xf32>
    %270 = arith.mulf %8, %269 : vector<1x128xf32>
    %271 = vector.broadcast %270 : vector<1x128xf32> to vector<256x128xf32>
    %272 = arith.mulf %255, %271 : vector<256x128xf32>
    %273 = vector.broadcast %9 : vector<1x128xf32> to vector<256x128xf32>
    %274 = arith.addf %272, %273 : vector<256x128xf32>
    %c0_326 = arith.constant 0 : index
    %c0_327 = arith.constant 0 : index
    %275 = vector.load %arg1[%c0_326, %c0_327] : memref<256x128xf32, #tpu.memory_space<vmem>>, vector<256x128xf32>
    %276 = arith.addf %274, %275 : vector<256x128xf32>
    %c0_328 = arith.constant 0 : index
    %c0_329 = arith.constant 0 : index
    %277 = vector.load %arg5[%c0_328, %c0_329] : memref<256x128xf32, #tpu.memory_space<vmem>>, vector<256x128xf32>
    tpu.vector_store %arg5[%c0_328, %c0_329], %276 {strides = array<i32>} : memref<256x128xf32, #tpu.memory_space<vmem>>, vector<256x128xf32>,
    return
  }
  func.func @transform_0(%arg0: i32) -> (i32, i32) {
    %c0_i32 = arith.constant 0 : i32
    %c0_i32_0 = arith.constant 0 : i32
    %c0_i32_1 = arith.constant 0 : i32
    return %c0_i32, %c0_i32_0 : i32, i32
  }
  func.func @transform_1(%arg0: i32) -> (i32, i32) {
    %c0_i32 = arith.constant 0 : i32
    %c0_i32_0 = arith.constant 0 : i32
    %c0_i32_1 = arith.constant 0 : i32
    return %c0_i32, %c0_i32_0 : i32, i32
  }
  func.func @transform_2(%arg0: i32) -> (i32, i32) {
    %c0_i32 = arith.constant 0 : i32
    %c0_i32_0 = arith.constant 0 : i32
    %c0_i32_1 = arith.constant 0 : i32
    return %c0_i32, %c0_i32_0 : i32, i32
  }
  func.func @transform_3(%arg0: i32) -> (i32, i32) {
    %c0_i32 = arith.constant 0 : i32
    %c0_i32_0 = arith.constant 0 : i32
    %c0_i32_1 = arith.constant 0 : i32
    return %c0_i32, %c0_i32_0 : i32, i32
  }
  func.func @transform_4(%arg0: i32) -> (i32, i32) {
    %c0_i32 = arith.constant 0 : i32
    %c0_i32_0 = arith.constant 0 : i32
    %c0_i32_1 = arith.constant 0 : i32
    return %c0_i32, %c0_i32_0 : i32, i32
  }
}

</mosaic_0001>

<llo_original>
// kernel: tile.9
$region0: #{tile.9}
  %s0 = inlined_call_operand.vmem [shape: f32[4,2,64], index: 0, kind: input, shape index: {}]
  %s1 = inlined_call_operand.vmem [shape: f32[4,128], index: 1, kind: output, shape index: {}]
  $region1: #{tile.9} parent=0
    #allocation0 [shape = 'u8[4096]{0}', space=vmem, size = 0x1000, scoped, tag = 'scoped mem for output reshape']
    #allocation1 [shape = 'u8[16384]{0}', space=vmem, size = 0x4000, scoped, tag = 'scoped mem for input reshape']
    %s3 = sshll.u32 1, 2
    %s4 = ssub.s32 %s3, 1
    %s5 = smul.addr 2, 3
    %s6 = scalar_lea.vmem %s0, %s5
    %v7 = vld [vmem:[%s6] sm:%s4]
    %s8 = scalar_lea.vmem [#allocation1], 24
    %9 = vst [vmem:[%s8] sm:%s4] %v7
    %s10 = smul.addr 2, 2
    %s11 = scalar_lea.vmem %s0, %s10
    %v12 = vld [vmem:[%s11] sm:%s4]
    %s13 = scalar_lea.vmem [#allocation1], 16
    %14 = vst [vmem:[%s13] sm:%s4] %v12
    %s15 = scalar_lea.vmem %s0, 2
    %v16 = vld [vmem:[%s15] sm:%s4]
    %s17 = scalar_lea.vmem [#allocation1], 8
    %18 = vst [vmem:[%s17] sm:%s4] %v16
    %v19 = vld [vmem:[%s0] sm:%s4]
    %20 = vst [vmem:[#allocation1] sm:%s4] %v19
    %v21 = vld [vmem:[#allocation1] ss:$8 sm:$0xf]
    %vm22 = vcmask 523264
    %23 = vst.msk [vmem:[#allocation0] sm:$0xf] %vm22, %v21
    %s24 = scalar_lea.vmem [#allocation1], 1
    %v25 = vld [vmem:[%s24] ss:$8 sm:$0xf]
    %26 = vrot.lane.b32.xlu0 %v25, 64
    %v27 = vpop.permute.xlu0 %26
    %vm28 = vcmask 1048064
    %29 = vst.msk [vmem:[#allocation0] sm:$0xf] %vm28, %v27
    %s31 = sshll.u32 1, 4
    %s32 = ssub.s32 %s31, 1
    %v34 = vld [vmem:[#allocation0] sm:%s32]
    %s35 = sshll.u32 1, 4
    %s36 = ssub.s32 %s35, 1
    %37 = vst [vmem:[%s1] sm:%s36] %v34

// kernel: conv_block_forward.1
$region0: #{conv_block_forward.1}
  #allocation0 [shape = 'u32[]', space=smem, size = 0x4, offset = 0x4, fixed_abs, tag = 'smem constant byte address 0x4 - core index']
  #allocation1 [shape = 'u32[144,128]{1,0:T(1,128)}', space=vmem, size = 0x12000, scoped, tag = 'internal scratch']
  #allocation2 [shape = 'f32[2,18,1152]{2,1,0:T(8,128)}', space=vmem, size = 0x36000, scoped, tag = 'scratch operand']
  #allocation3 [shape = 'f32[256,768]{1,0:T(8,128)}', space=vmem, size = 0xc0000, scoped, tag = 'scratch operand']
  %s0 = inlined_call_operand.vmem [shape: f32[256,128], index: 0, kind: input, shape index: {}]
  %s1 = inlined_call_operand.vmem [shape: f32[768,128], index: 1, kind: input, shape index: {}]
  %s2 = inlined_call_operand.vmem [shape: f32[768,128], index: 2, kind: input, shape index: {}]
  %s3 = inlined_call_operand.vmem [shape: f32[4,128], index: 3, kind: input, shape index: {}]
  %s4 = inlined_call_operand.vmem [shape: f32[256,128], index: 4, kind: output, shape index: {}]
  %s5 = sld [smem:[#allocation0]]
  $region26: #{conv_block_forward.1} parent=0
    _
  %s7 = ssub.s32 1, %s5
  %s8 = scalar_select 0, %s7, %s5
  // Predicated region
  $region2: #{conv_block_forward.1} parent=0 // pred_check
    _
  $region3: #{conv_block_forward.1} parent=0 // pred_check_branch
    %10 = sbr.rel (0) target = $region5
  $region4: #{conv_block_forward.1} parent=0 // pred_region
    _
  $region5: #{conv_block_forward.1} parent=0 // pred_fallthru
    _
  // Predicated region
  $region6: #{conv_block_forward.1} parent=0 // pred_check
    _
  $region7: #{conv_block_forward.1} parent=0 // pred_check_branch
    %12 = sbr.rel (0) target = $region9
  $region8: #{conv_block_forward.1} parent=0 // pred_region
    _
  $region9: #{conv_block_forward.1} parent=0 // pred_fallthru
    _
  // Predicated region
  $region10: #{conv_block_forward.1} parent=0 // pred_check
    _
  $region11: #{conv_block_forward.1} parent=0 // pred_check_branch
    %14 = sbr.rel (0) target = $region13
  $region12: #{conv_block_forward.1} parent=0 // pred_region
    _
  $region13: #{conv_block_forward.1} parent=0 // pred_fallthru
    _
  // Predicated region
  $region14: #{conv_block_forward.1} parent=0 // pred_check
    _
  $region15: #{conv_block_forward.1} parent=0 // pred_check_branch
    %16 = sbr.rel (0) target = $region17
  $region16: #{conv_block_forward.1} parent=0 // pred_region
    _
  $region17: #{conv_block_forward.1} parent=0 // pred_fallthru
    _
  %17 = vst [vmem:[#allocation2] ss:$8 sm:$0xf] 0.0
  %18 = vst [vmem:[#allocation2] ss:$8 sm:$0xf0] 0.0
  %v19 = vlaneseq
  %vm20 = vcmp.ge.s32.totalorder %v19, 0
  %vm21 = vcmp.lt.s32.totalorder %v19, 128
  %vm22 = vmand %vm20, %vm21
  %s23 = scalar_lea.vmem [#allocation2], 64
  %24 = vst.msk [vmem:[%s23] ss:$8 sm:$0x1] %vm22, 0.0
  %25 = vst.msk [vmem:[%s23] ss:$8 sm:$0x0] %vm22, 0.0
  %s26 = scalar_lea.vmem [#allocation2], 216
  %27 = vst [vmem:[%s26] ss:$8 sm:$0xf] 0.0
  %28 = vst [vmem:[%s26] ss:$8 sm:$0xf0] 0.0
  %s29 = scalar_lea.vmem [#allocation2], 280
  %30 = vst.msk [vmem:[%s29] ss:$8 sm:$0x1] %vm22, 0.0
  %31 = vst.msk [vmem:[%s29] ss:$8 sm:$0x0] %vm22, 0.0
  %s32 = scalar_lea.vmem [#allocation2], 145
  %33 = vst [vmem:[%s32] ss:$8 sm:$0xf] 0.0
  %34 = vst [vmem:[%s32] ss:$8 sm:$0xf0] 0.0
  %s35 = scalar_lea.vmem [#allocation2], 209
  %36 = vst.msk [vmem:[%s35] ss:$8 sm:$0x1] %vm22, 0.0
  %37 = vst.msk [vmem:[%s35] ss:$8 sm:$0x0] %vm22, 0.0
  %s38 = scalar_lea.vmem [#allocation2], 361
  %39 = vst [vmem:[%s38] ss:$8 sm:$0xf] 0.0
  %40 = vst [vmem:[%s38] ss:$8 sm:$0xf0] 0.0
  %s41 = scalar_lea.vmem [#allocation2], 425
  %42 = vst.msk [vmem:[%s41] ss:$8 sm:$0x1] %vm22, 0.0
  %43 = vst.msk [vmem:[%s41] ss:$8 sm:$0x0] %vm22, 0.0
  %vm44 = vcmask 523264
  %45 = vst.msk [vmem:[#allocation2] sm:$0xff] %vm44, 0.0
  %46 = vst.msk [vmem:[#allocation2 + $0x48] sm:$0xff] %vm44, 0.0
  %vm47 = vcmask 517120
  %48 = vst.msk [vmem:[#allocation2 + $0x90] sm:$0x3] %vm47, 0.0
  %49 = vst.msk [vmem:[#allocation2 + $0xd8] sm:$0xff] %vm44, 0.0
  %50 = vst.msk [vmem:[#allocation2 + $0x120] sm:$0xff] %vm44, 0.0
  %51 = vst.msk [vmem:[#allocation2 + $0x168] sm:$0x3] %vm47, 0.0
  %vm52 = vcmask 1048064
  %53 = vst.msk [vmem:[#allocation2 + $0x40] sm:$0xff] %vm52, 0.0
  %54 = vst.msk [vmem:[#allocation2 + $0x88] sm:$0xff] %vm52, 0.0
  %vm55 = vcmask 1041920
  %56 = vst.msk [vmem:[#allocation2 + $0xd0] sm:$0x3] %vm55, 0.0
  %57 = vst.msk [vmem:[#allocation2 + $0x118] sm:$0xff] %vm52, 0.0
  %58 = vst.msk [vmem:[#allocation2 + $0x160] sm:$0xff] %vm52, 0.0
  %59 = vst.msk [vmem:[#allocation2 + $0x1a8] sm:$0x3] %vm55, 0.0
  %v60 = vld [vmem:[%s3] sm:$0x1]
  %v61 = vld [vmem:[%s3 + $0x1] sm:$0x1]
  %v62 = vld [vmem:[%s3 + $0x2] sm:$0x1]
  %v63 = vld [vmem:[%s3 + $0x3] sm:$0x1]
  %v64 = vld [vmem:[%s0] sm:$0xff]
  %v65 = vld [vmem:[%s0 + $0x8] sm:$0xff]
  %v66 = vld [vmem:[%s0 + $0x10] sm:$0xff]
  %v67 = vld [vmem:[%s0 + $0x18] sm:$0xff]
  %vm72 = vcmask 1040384
  %v73 = vrot.slane %v64, 7
  %v74 = vrot.slane %v65, 7
  %v75 = vsel %vm72, %v73, %v74
  %v76 = vrot.slane %v66, 7
  %v77 = vrot.slane %v67, 7
  %v78 = vsel %vm72, %v76, %v77
  %79 = vrot.lane.b32.xlu0 %v73, 64
  %v80 = vpop.permute.xlu0 %79
  %81 = vrot.lane.b32.xlu0 %v75, 64
  %v82 = vpop.permute.xlu0 %81
  %83 = vrot.lane.b32.xlu0 %v74, 64
  %v84 = vpop.permute.xlu0 %83
  %85 = vrot.lane.b32.xlu0 %v76, 64
  %v86 = vpop.permute.xlu0 %85
  %87 = vrot.lane.b32.xlu0 %v78, 64
  %v88 = vpop.permute.xlu0 %87
  %89 = vrot.lane.b32.xlu0 %v77, 64
  %v90 = vpop.permute.xlu0 %89
  %vm97 = vcmask 1048065
  %98 = vst.msk [vmem:[#allocation2] sm:$0xfe] %vm97, %v80
  %vm99 = vcmask 523265
  %100 = vst.msk [vmem:[#allocation2 + $0x8] sm:$0xfe] %vm99, %v80
  %101 = vst.msk [vmem:[#allocation2 + $0x48] sm:$0xff] %vm52, %v82
  %102 = vst.msk [vmem:[#allocation2 + $0x50] sm:$0xff] %vm44, %v82
  %vm103 = vcmask 1040896
  %104 = vst.msk [vmem:[#allocation2 + $0x90] sm:$0x1] %vm103, %v84
  %vm105 = vcmask 516096
  %106 = vst.msk [vmem:[#allocation2 + $0x98] sm:$0x1] %vm105, %v84
  %107 = vst.msk [vmem:[#allocation2 + $0xd8] sm:$0xfe] %vm97, %v86
  %108 = vst.msk [vmem:[#allocation2 + $0xe0] sm:$0xfe] %vm99, %v86
  %109 = vst.msk [vmem:[#allocation2 + $0x120] sm:$0xff] %vm52, %v88
  %110 = vst.msk [vmem:[#allocation2 + $0x128] sm:$0xff] %vm44, %v88
  %111 = vst.msk [vmem:[#allocation2 + $0x168] sm:$0x1] %vm103, %v90
  %112 = vst.msk [vmem:[#allocation2 + $0x170] sm:$0x1] %vm105, %v90
  %v113 = vld [vmem:[%s0 + $0x20] sm:$0xff]
  %v114 = vld [vmem:[%s0 + $0x28] sm:$0xff]
  %v115 = vld [vmem:[%s0 + $0x30] sm:$0xff]
  %v116 = vld [vmem:[%s0 + $0x38] sm:$0xff]
  %v121 = vrot.slane %v113, 7
  %v122 = vrot.slane %v114, 7
  %v123 = vsel %vm72, %v121, %v122
  %v124 = vrot.slane %v115, 7
  %v125 = vrot.slane %v116, 7
  %v126 = vsel %vm72, %v124, %v125
  %127 = vrot.lane.b32.xlu0 %v121, 64
  %v128 = vpop.permute.xlu0 %127
  %129 = vrot.lane.b32.xlu0 %v123, 64
  %v130 = vpop.permute.xlu0 %129
  %131 = vrot.lane.b32.xlu0 %v122, 64
  %v132 = vpop.permute.xlu0 %131
  %133 = vrot.lane.b32.xlu0 %v124, 64
  %v134 = vpop.permute.xlu0 %133
  %135 = vrot.lane.b32.xlu0 %v126, 64
  %v136 = vpop.permute.xlu0 %135
  %137 = vrot.lane.b32.xlu0 %v125, 64
  %v138 = vpop.permute.xlu0 %137
  %145 = vst.msk [vmem:[#allocation2 + $0x8] sm:$0xfe] %vm97, %v128
  %146 = vst.msk [vmem:[#allocation2 + $0x10] sm:$0xfe] %vm99, %v128
  %147 = vst.msk [vmem:[#allocation2 + $0x50] sm:$0xff] %vm52, %v130
  %148 = vst.msk [vmem:[#allocation2 + $0x58] sm:$0xff] %vm44, %v130
  %149 = vst.msk [vmem:[#allocation2 + $0x98] sm:$0x1] %vm103, %v132
  %150 = vst.msk [vmem:[#allocation2 + $0xa0] sm:$0x1] %vm105, %v132
  %151 = vst.msk [vmem:[#allocation2 + $0xe0] sm:$0xfe] %vm97, %v134
  %152 = vst.msk [vmem:[#allocation2 + $0xe8] sm:$0xfe] %vm99, %v134
  %153 = vst.msk [vmem:[#allocation2 + $0x128] sm:$0xff] %vm52, %v136
  %154 = vst.msk [vmem:[#allocation2 + $0x130] sm:$0xff] %vm44, %v136
  %155 = vst.msk [vmem:[#allocation2 + $0x170] sm:$0x1] %vm103, %v138
  %156 = vst.msk [vmem:[#allocation2 + $0x178] sm:$0x1] %vm105, %v138
  %v157 = vld [vmem:[%s0 + $0x40] sm:$0xff]
  %v158 = vld [vmem:[%s0 + $0x48] sm:$0xff]
  %v159 = vld [vmem:[%s0 + $0x50] sm:$0xff]
  %v160 = vld [vmem:[%s0 + $0x58] sm:$0xff]
  %v165 = vrot.slane %v157, 7
  %v166 = vrot.slane %v158, 7
  %v167 = vsel %vm72, %v165, %v166
  %v168 = vrot.slane %v159, 7
  %v169 = vrot.slane %v160, 7
  %v170 = vsel %vm72, %v168, %v169
  %171 = vrot.lane.b32.xlu0 %v165, 64
  %v172 = vpop.permute.xlu0 %171
  %173 = vrot.lane.b32.xlu0 %v167, 64
  %v174 = vpop.permute.xlu0 %173
  %175 = vrot.lane.b32.xlu0 %v166, 64
  %v176 = vpop.permute.xlu0 %175
  %177 = vrot.lane.b32.xlu0 %v168, 64
  %v178 = vpop.permute.xlu0 %177
  %179 = vrot.lane.b32.xlu0 %v170, 64
  %v180 = vpop.permute.xlu0 %179
  %181 = vrot.lane.b32.xlu0 %v169, 64
  %v182 = vpop.permute.xlu0 %181
  %189 = vst.msk [vmem:[#allocation2 + $0x10] sm:$0xfe] %vm97, %v172
  %190 = vst.msk [vmem:[#allocation2 + $0x18] sm:$0xfe] %vm99, %v172
  %191 = vst.msk [vmem:[#allocation2 + $0x58] sm:$0xff] %vm52, %v174
  %192 = vst.msk [vmem:[#allocation2 + $0x60] sm:$0xff] %vm44, %v174
  %193 = vst.msk [vmem:[#allocation2 + $0xa0] sm:$0x1] %vm103, %v176
  %194 = vst.msk [vmem:[#allocation2 + $0xa8] sm:$0x1] %vm105, %v176
  %195 = vst.msk [vmem:[#allocation2 + $0xe8] sm:$0xfe] %vm97, %v178
  %196 = vst.msk [vmem:[#allocation2 + $0xf0] sm:$0xfe] %vm99, %v178
  %197 = vst.msk [vmem:[#allocation2 + $0x130] sm:$0xff] %vm52, %v180
  %198 = vst.msk [vmem:[#allocation2 + $0x138] sm:$0xff] %vm44, %v180
  %199 = vst.msk [vmem:[#allocation2 + $0x178] sm:$0x1] %vm103, %v182
  %200 = vst.msk [vmem:[#allocation2 + $0x180] sm:$0x1] %vm105, %v182
  %v201 = vld [vmem:[%s0 + $0x60] sm:$0xff]
  %v202 = vld [vmem:[%s0 + $0x68] sm:$0xff]
  %v203 = vld [vmem:[%s0 + $0x70] sm:$0xff]
  %v204 = vld [vmem:[%s0 + $0x78] sm:$0xff]
  %v209 = vrot.slane %v201, 7
  %v210 = vrot.slane %v202, 7
  %v211 = vsel %vm72, %v209, %v210
  %v212 = vrot.slane %v203, 7
  %v213 = vrot.slane %v204, 7
  %v214 = vsel %vm72, %v212, %v213
  %215 = vrot.lane.b32.xlu0 %v209, 64
  %v216 = vpop.permute.xlu0 %215
  %217 = vrot.lane.b32.xlu0 %v211, 64
  %v218 = vpop.permute.xlu0 %217
  %219 = vrot.lane.b32.xlu0 %v210, 64
  %v220 = vpop.permute.xlu0 %219
  %221 = vrot.lane.b32.xlu0 %v212, 64
  %v222 = vpop.permute.xlu0 %221
  %223 = vrot.lane.b32.xlu0 %v214, 64
  %v224 = vpop.permute.xlu0 %223
  %225 = vrot.lane.b32.xlu0 %v213, 64
  %v226 = vpop.permute.xlu0 %225
  %233 = vst.msk [vmem:[#allocation2 + $0x18] sm:$0xfe] %vm97, %v216
  %234 = vst.msk [vmem:[#allocation2 + $0x20] sm:$0xfe] %vm99, %v216
  %235 = vst.msk [vmem:[#allocation2 + $0x60] sm:$0xff] %vm52, %v218
  %236 = vst.msk [vmem:[#allocation2 + $0x68] sm:$0xff] %vm44, %v218
  %237 = vst.msk [vmem:[#allocation2 + $0xa8] sm:$0x1] %vm103, %v220
  %238 = vst.msk [vmem:[#allocation2 + $0xb0] sm:$0x1] %vm105, %v220
  %239 = vst.msk [vmem:[#allocation2 + $0xf0] sm:$0xfe] %vm97, %v222
  %240 = vst.msk [vmem:[#allocation2 + $0xf8] sm:$0xfe] %vm99, %v222
  %241 = vst.msk [vmem:[#allocation2 + $0x138] sm:$0xff] %vm52, %v224
  %242 = vst.msk [vmem:[#allocation2 + $0x140] sm:$0xff] %vm44, %v224
  %243 = vst.msk [vmem:[#allocation2 + $0x180] sm:$0x1] %vm103, %v226
  %244 = vst.msk [vmem:[#allocation2 + $0x188] sm:$0x1] %vm105, %v226
  %v245 = vld [vmem:[%s0 + $0x80] sm:$0xff]
  %v246 = vld [vmem:[%s0 + $0x88] sm:$0xff]
  %v247 = vld [vmem:[%s0 + $0x90] sm:$0xff]
  %v248 = vld [vmem:[%s0 + $0x98] sm:$0xff]
  %v253 = vrot.slane %v245, 7
  %v254 = vrot.slane %v246, 7
  %v255 = vsel %vm72, %v253, %v254
  %v256 = vrot.slane %v247, 7
  %v257 = vrot.slane %v248, 7
  %v258 = vsel %vm72, %v256, %v257
  %259 = vrot.lane.b32.xlu0 %v253, 64
  %v260 = vpop.permute.xlu0 %259
  %261 = vrot.lane.b32.xlu0 %v255, 64
  %v262 = vpop.permute.xlu0 %261
  %263 = vrot.lane.b32.xlu0 %v254, 64
  %v264 = vpop.permute.xlu0 %263
  %265 = vrot.lane.b32.xlu0 %v256, 64
  %v266 = vpop.permute.xlu0 %265
  %267 = vrot.lane.b32.xlu0 %v258, 64
  %v268 = vpop.permute.xlu0 %267
  %269 = vrot.lane.b32.xlu0 %v257, 64
  %v270 = vpop.permute.xlu0 %269
  %277 = vst.msk [vmem:[#allocation2 + $0x20] sm:$0xfe] %vm97, %v260
  %278 = vst.msk [vmem:[#allocation2 + $0x28] sm:$0xfe] %vm99, %v260
  %279 = vst.msk [vmem:[#allocation2 + $0x68] sm:$0xff] %vm52, %v262
  %280 = vst.msk [vmem:[#allocation2 + $0x70] sm:$0xff] %vm44, %v262
  %281 = vst.msk [vmem:[#allocation2 + $0xb0] sm:$0x1] %vm103, %v264
  %282 = vst.msk [vmem:[#allocation2 + $0xb8] sm:$0x1] %vm105, %v264
  %283 = vst.msk [vmem:[#allocation2 + $0xf8] sm:$0xfe] %vm97, %v266
  %284 = vst.msk [vmem:[#allocation2 + $0x100] sm:$0xfe] %vm99, %v266
  %285 = vst.msk [vmem:[#allocation2 + $0x140] sm:$0xff] %vm52, %v268
  %286 = vst.msk [vmem:[#allocation2 + $0x148] sm:$0xff] %vm44, %v268
  %287 = vst.msk [vmem:[#allocation2 + $0x188] sm:$0x1] %vm103, %v270
  %288 = vst.msk [vmem:[#allocation2 + $0x190] sm:$0x1] %vm105, %v270
  %v289 = vld [vmem:[%s0 + $0xa0] sm:$0xff]
  %v290 = vld [vmem:[%s0 + $0xa8] sm:$0xff]
  %v291 = vld [vmem:[%s0 + $0xb0] sm:$0xff]
  %v292 = vld [vmem:[%s0 + $0xb8] sm:$0xff]
  %v297 = vrot.slane %v289, 7
  %v298 = vrot.slane %v290, 7
  %v299 = vsel %vm72, %v297, %v298
  %v300 = vrot.slane %v291, 7
  %v301 = vrot.slane %v292, 7
  %v302 = vsel %vm72, %v300, %v301
  %303 = vrot.lane.b32.xlu0 %v297, 64
  %v304 = vpop.permute.xlu0 %303
  %305 = vrot.lane.b32.xlu0 %v299, 64
  %v306 = vpop.permute.xlu0 %305
  %307 = vrot.lane.b32.xlu0 %v298, 64
  %v308 = vpop.permute.xlu0 %307
  %309 = vrot.lane.b32.xlu0 %v300, 64
  %v310 = vpop.permute.xlu0 %309
  %311 = vrot.lane.b32.xlu0 %v302, 64
  %v312 = vpop.permute.xlu0 %311
  %313 = vrot.lane.b32.xlu0 %v301, 64
  %v314 = vpop.permute.xlu0 %313
  %321 = vst.msk [vmem:[#allocation2 + $0x28] sm:$0xfe] %vm97, %v304
  %322 = vst.msk [vmem:[#allocation2 + $0x30] sm:$0xfe] %vm99, %v304
  %323 = vst.msk [vmem:[#allocation2 + $0x70] sm:$0xff] %vm52, %v306
  %324 = vst.msk [vmem:[#allocation2 + $0x78] sm:$0xff] %vm44, %v306
  %325 = vst.msk [vmem:[#allocation2 + $0xb8] sm:$0x1] %vm103, %v308
  %326 = vst.msk [vmem:[#allocation2 + $0xc0] sm:$0x1] %vm105, %v308
  %327 = vst.msk [vmem:[#allocation2 + $0x100] sm:$0xfe] %vm97, %v310
  %328 = vst.msk [vmem:[#allocation2 + $0x108] sm:$0xfe] %vm99, %v310
  %329 = vst.msk [vmem:[#allocation2 + $0x148] sm:$0xff] %vm52, %v312
  %330 = vst.msk [vmem:[#allocation2 + $0x150] sm:$0xff] %vm44, %v312
  %331 = vst.msk [vmem:[#allocation2 + $0x190] sm:$0x1] %vm103, %v314
  %332 = vst.msk [vmem:[#allocation2 + $0x198] sm:$0x1] %vm105, %v314
  %v333 = vld [vmem:[%s0 + $0xc0] sm:$0xff]
  %v334 = vld [vmem:[%s0 + $0xc8] sm:$0xff]
  %v335 = vld [vmem:[%s0 + $0xd0] sm:$0xff]
  %v336 = vld [vmem:[%s0 + $0xd8] sm:$0xff]
  %v341 = vrot.slane %v333, 7
  %v342 = vrot.slane %v334, 7
  %v343 = vsel %vm72, %v341, %v342
  %v344 = vrot.slane %v335, 7
  %v345 = vrot.slane %v336, 7
  %v346 = vsel %vm72, %v344, %v345
  %347 = vrot.lane.b32.xlu0 %v341, 64
  %v348 = vpop.permute.xlu0 %347
  %349 = vrot.lane.b32.xlu0 %v343, 64
  %v350 = vpop.permute.xlu0 %349
  %351 = vrot.lane.b32.xlu0 %v342, 64
  %v352 = vpop.permute.xlu0 %351
  %353 = vrot.lane.b32.xlu0 %v344, 64
  %v354 = vpop.permute.xlu0 %353
  %355 = vrot.lane.b32.xlu0 %v346, 64
  %v356 = vpop.permute.xlu0 %355
  %357 = vrot.lane.b32.xlu0 %v345, 64
  %v358 = vpop.permute.xlu0 %357
  %365 = vst.msk [vmem:[#allocation2 + $0x30] sm:$0xfe] %vm97, %v348
  %366 = vst.msk [vmem:[#allocation2 + $0x38] sm:$0xfe] %vm99, %v348
  %367 = vst.msk [vmem:[#allocation2 + $0x78] sm:$0xff] %vm52, %v350
  %368 = vst.msk [vmem:[#allocation2 + $0x80] sm:$0xff] %vm44, %v350
  %369 = vst.msk [vmem:[#allocation2 + $0xc0] sm:$0x1] %vm103, %v352
  %370 = vst.msk [vmem:[#allocation2 + $0xc8] sm:$0x1] %vm105, %v352
  %371 = vst.msk [vmem:[#allocation2 + $0x108] sm:$0xfe] %vm97, %v354
  %372 = vst.msk [vmem:[#allocation2 + $0x110] sm:$0xfe] %vm99, %v354
  %373 = vst.msk [vmem:[#allocation2 + $0x150] sm:$0xff] %vm52, %v356
  %374 = vst.msk [vmem:[#allocation2 + $0x158] sm:$0xff] %vm44, %v356
  %375 = vst.msk [vmem:[#allocation2 + $0x198] sm:$0x1] %vm103, %v358
  %376 = vst.msk [vmem:[#allocation2 + $0x1a0] sm:$0x1] %vm105, %v358
  %v377 = vld [vmem:[%s0 + $0xe0] sm:$0xff]
  %v378 = vld [vmem:[%s0 + $0xe8] sm:$0xff]
  %v379 = vld [vmem:[%s0 + $0xf0] sm:$0xff]
  %v380 = vld [vmem:[%s0 + $0xf8] sm:$0xff]
  %v385 = vrot.slane %v377, 7
  %v386 = vrot.slane %v378, 7
  %v387 = vsel %vm72, %v385, %v386
  %v388 = vrot.slane %v379, 7
  %v389 = vrot.slane %v380, 7
  %v390 = vsel %vm72, %v388, %v389
  %391 = vrot.lane.b32.xlu0 %v385, 64
  %v392 = vpop.permute.xlu0 %391
  %393 = vrot.lane.b32.xlu0 %v387, 64
  %v394 = vpop.permute.xlu0 %393
  %395 = vrot.lane.b32.xlu0 %v386, 64
  %v396 = vpop.permute.xlu0 %395
  %397 = vrot.lane.b32.xlu0 %v388, 64
  %v398 = vpop.permute.xlu0 %397
  %399 = vrot.lane.b32.xlu0 %v390, 64
  %v400 = vpop.permute.xlu0 %399
  %401 = vrot.lane.b32.xlu0 %v389, 64
  %v402 = vpop.permute.xlu0 %401
  %409 = vst.msk [vmem:[#allocation2 + $0x38] sm:$0xfe] %vm97, %v392
  %410 = vst.msk [vmem:[#allocation2 + $0x40] sm:$0xfe] %vm99, %v392
  %411 = vst.msk [vmem:[#allocation2 + $0x80] sm:$0xff] %vm52, %v394
  %412 = vst.msk [vmem:[#allocation2 + $0x88] sm:$0xff] %vm44, %v394
  %413 = vst.msk [vmem:[#allocation2 + $0xc8] sm:$0x1] %vm103, %v396
  %414 = vst.msk [vmem:[#allocation2 + $0xd0] sm:$0x1] %vm105, %v396
  %415 = vst.msk [vmem:[#allocation2 + $0x110] sm:$0xfe] %vm97, %v398
  %416 = vst.msk [vmem:[#allocation2 + $0x118] sm:$0xfe] %vm99, %v398
  %417 = vst.msk [vmem:[#allocation2 + $0x158] sm:$0xff] %vm52, %v400
  %418 = vst.msk [vmem:[#allocation2 + $0x160] sm:$0xff] %vm44, %v400
  %419 = vst.msk [vmem:[#allocation2 + $0x1a0] sm:$0x1] %vm103, %v402
  %420 = vst.msk [vmem:[#allocation2 + $0x1a8] sm:$0x1] %vm105, %v402
  %v421 = vld [vmem:[#allocation2] sm:$0xff]
  %v422 = vld [vmem:[#allocation2 + $0x8] sm:$0xff]
  %v423 = vld [vmem:[#allocation2 + $0x48] sm:$0xff]
  %v424 = vld [vmem:[#allocation2 + $0x50] sm:$0xff]
  %v425 = vld [vmem:[#allocation2 + $0xd8] sm:$0xff]
  %v426 = vld [vmem:[#allocation2 + $0xe0] sm:$0xff]
  %v427 = vld [vmem:[#allocation2 + $0x120] sm:$0xff]
  %v428 = vld [vmem:[#allocation2 + $0x128] sm:$0xff]
  %429 = vst [vmem:[#allocation3] sm:$0xff] %v421
  %430 = vst [vmem:[#allocation3 + $0x8] sm:$0xff] %v422
  %431 = vst [vmem:[#allocation3 + $0x30] sm:$0xff] %v423
  %432 = vst [vmem:[#allocation3 + $0x38] sm:$0xff] %v424
  %433 = vst [vmem:[#allocation3 + $0x60] sm:$0xff] %v425
  %434 = vst [vmem:[#allocation3 + $0x68] sm:$0xff] %v426
  %435 = vst [vmem:[#allocation3 + $0x90] sm:$0xff] %v427
  %436 = vst [vmem:[#allocation3 + $0x98] sm:$0xff] %v428
  %v437 = vld [vmem:[#allocation2 + $0x8] sm:$0xff]
  %v438 = vld [vmem:[#allocation2 + $0x10] sm:$0xff]
  %v439 = vld [vmem:[#allocation2 + $0x50] sm:$0xff]
  %v440 = vld [vmem:[#allocation2 + $0x58] sm:$0xff]
  %v441 = vld [vmem:[#allocation2 + $0xe0] sm:$0xff]
  %v442 = vld [vmem:[#allocation2 + $0xe8] sm:$0xff]
  %v443 = vld [vmem:[#allocation2 + $0x128] sm:$0xff]
  %v444 = vld [vmem:[#allocation2 + $0x130] sm:$0xff]
  %445 = vst [vmem:[#allocation3 + $0xc0] sm:$0xff] %v437
  %446 = vst [vmem:[#allocation3 + $0xc8] sm:$0xff] %v438
  %447 = vst [vmem:[#allocation3 + $0xf0] sm:$0xff] %v439
  %448 = vst [vmem:[#allocation3 + $0xf8] sm:$0xff] %v440
  %449 = vst [vmem:[#allocation3 + $0x120] sm:$0xff] %v441
  %450 = vst [vmem:[#allocation3 + $0x128] sm:$0xff] %v442
  %451 = vst [vmem:[#allocation3 + $0x150] sm:$0xff] %v443
  %452 = vst [vmem:[#allocation3 + $0x158] sm:$0xff] %v444
  %v453 = vld [vmem:[#allocation2 + $0x10] sm:$0xff]
  %v454 = vld [vmem:[#allocation2 + $0x18] sm:$0xff]
  %v455 = vld [vmem:[#allocation2 + $0x58] sm:$0xff]
  %v456 = vld [vmem:[#allocation2 + $0x60] sm:$0xff]
  %v457 = vld [vmem:[#allocation2 + $0xe8] sm:$0xff]
  %v458 = vld [vmem:[#allocation2 + $0xf0] sm:$0xff]
  %v459 = vld [vmem:[#allocation2 + $0x130] sm:$0xff]
  %v460 = vld [vmem:[#allocation2 + $0x138] sm:$0xff]
  %461 = vst [vmem:[#allocation3 + $0x180] sm:$0xff] %v453
  %462 = vst [vmem:[#allocation3 + $0x188] sm:$0xff] %v454
  %463 = vst [vmem:[#allocation3 + $0x1b0] sm:$0xff] %v455
  %464 = vst [vmem:[#allocation3 + $0x1b8] sm:$0xff] %v456
  %465 = vst [vmem:[#allocation3 + $0x1e0] sm:$0xff] %v457
  %466 = vst [vmem:[#allocation3 + $0x1e8] sm:$0xff] %v458
  %467 = vst [vmem:[#allocation3 + $0x210] sm:$0xff] %v459
  %468 = vst [vmem:[#allocation3 + $0x218] sm:$0xff] %v460
  %v469 = vld [vmem:[#allocation2 + $0x18] sm:$0xff]
  %v470 = vld [vmem:[#allocation2 + $0x20] sm:$0xff]
  %v471 = vld [vmem:[#allocation2 + $0x60] sm:$0xff]
  %v472 = vld [vmem:[#allocation2 + $0x68] sm:$0xff]
  %v473 = vld [vmem:[#allocation2 + $0xf0] sm:$0xff]
  %v474 = vld [vmem:[#allocation2 + $0xf8] sm:$0xff]
  %v475 = vld [vmem:[#allocation2 + $0x138] sm:$0xff]
  %v476 = vld [vmem:[#allocation2 + $0x140] sm:$0xff]
  %477 = vst [vmem:[#allocation3 + $0x240] sm:$0xff] %v469
  %478 = vst [vmem:[#allocation3 + $0x248] sm:$0xff] %v470
  %479 = vst [vmem:[#allocation3 + $0x270] sm:$0xff] %v471
  %480 = vst [vmem:[#allocation3 + $0x278] sm:$0xff] %v472
  %481 = vst [vmem:[#allocation3 + $0x2a0] sm:$0xff] %v473
  %482 = vst [vmem:[#allocation3 + $0x2a8] sm:$0xff] %v474
  %483 = vst [vmem:[#allocation3 + $0x2d0] sm:$0xff] %v475
  %484 = vst [vmem:[#allocation3 + $0x2d8] sm:$0xff] %v476
  %v485 = vld [vmem:[#allocation2 + $0x20] sm:$0xff]
  %v486 = vld [vmem:[#allocation2 + $0x28] sm:$0xff]
  %v487 = vld [vmem:[#allocation2 + $0x68] sm:$0xff]
  %v488 = vld [vmem:[#allocation2 + $0x70] sm:$0xff]
  %v489 = vld [vmem:[#allocation2 + $0xf8] sm:$0xff]
  %v490 = vld [vmem:[#allocation2 + $0x100] sm:$0xff]
  %v491 = vld [vmem:[#allocation2 + $0x140] sm:$0xff]
  %v492 = vld [vmem:[#allocation2 + $0x148] sm:$0xff]
  %493 = vst [vmem:[#allocation3 + $0x300] sm:$0xff] %v485
  %494 = vst [vmem:[#allocation3 + $0x308] sm:$0xff] %v486
  %495 = vst [vmem:[#allocation3 + $0x330] sm:$0xff] %v487
  %496 = vst [vmem:[#allocation3 + $0x338] sm:$0xff] %v488
  %497 = vst [vmem:[#allocation3 + $0x360] sm:$0xff] %v489
  %498 = vst [vmem:[#allocation3 + $0x368] sm:$0xff] %v490
  %499 = vst [vmem:[#allocation3 + $0x390] sm:$0xff] %v491
  %500 = vst [vmem:[#allocation3 + $0x398] sm:$0xff] %v492
  %v501 = vld [vmem:[#allocation2 + $0x28] sm:$0xff]
  %v502 = vld [vmem:[#allocation2 + $0x30] sm:$0xff]
  %v503 = vld [vmem:[#allocation2 + $0x70] sm:$0xff]
  %v504 = vld [vmem:[#allocation2 + $0x78] sm:$0xff]
  %v505 = vld [vmem:[#allocation2 + $0x100] sm:$0xff]
  %v506 = vld [vmem:[#allocation2 + $0x108] sm:$0xff]
  %v507 = vld [vmem:[#allocation2 + $0x148] sm:$0xff]
  %v508 = vld [vmem:[#allocation2 + $0x150] sm:$0xff]
  %509 = vst [vmem:[#allocation3 + $0x3c0] sm:$0xff] %v501
  %510 = vst [vmem:[#allocation3 + $0x3c8] sm:$0xff] %v502
  %511 = vst [vmem:[#allocation3 + $0x3f0] sm:$0xff] %v503
  %512 = vst [vmem:[#allocation3 + $0x3f8] sm:$0xff] %v504
  %513 = vst [vmem:[#allocation3 + $0x420] sm:$0xff] %v505
  %514 = vst [vmem:[#allocation3 + $0x428] sm:$0xff] %v506
  %515 = vst [vmem:[#allocation3 + $0x450] sm:$0xff] %v507
  %516 = vst [vmem:[#allocation3 + $0x458] sm:$0xff] %v508
  %v517 = vld [vmem:[#allocation2 + $0x30] sm:$0xff]
  %v518 = vld [vmem:[#allocation2 + $0x38] sm:$0xff]
  %v519 = vld [vmem:[#allocation2 + $0x78] sm:$0xff]
  %v520 = vld [vmem:[#allocation2 + $0x80] sm:$0xff]
  %v521 = vld [vmem:[#allocation2 + $0x108] sm:$0xff]
  %v522 = vld [vmem:[#allocation2 + $0x110] sm:$0xff]
  %v523 = vld [vmem:[#allocation2 + $0x150] sm:$0xff]
  %v524 = vld [vmem:[#allocation2 + $0x158] sm:$0xff]
  %525 = vst [vmem:[#allocation3 + $0x480] sm:$0xff] %v517
  %526 = vst [vmem:[#allocation3 + $0x488] sm:$0xff] %v518
  %527 = vst [vmem:[#allocation3 + $0x4b0] sm:$0xff] %v519
  %528 = vst [vmem:[#allocation3 + $0x4b8] sm:$0xff] %v520
  %529 = vst [vmem:[#allocation3 + $0x4e0] sm:$0xff] %v521
  %530 = vst [vmem:[#allocation3 + $0x4e8] sm:$0xff] %v522
  %531 = vst [vmem:[#allocation3 + $0x510] sm:$0xff] %v523
  %532 = vst [vmem:[#allocation3 + $0x518] sm:$0xff] %v524
  %v533 = vld [vmem:[#allocation2 + $0x38] sm:$0xff]
  %v534 = vld [vmem:[#allocation2 + $0x40] sm:$0xff]
  %v535 = vld [vmem:[#allocation2 + $0x80] sm:$0xff]
  %v536 = vld [vmem:[#allocation2 + $0x88] sm:$0xff]
  %v537 = vld [vmem:[#allocation2 + $0x110] sm:$0xff]
  %v538 = vld [vmem:[#allocation2 + $0x118] sm:$0xff]
  %v539 = vld [vmem:[#allocation2 + $0x158] sm:$0xff]
  %v540 = vld [vmem:[#allocation2 + $0x160] sm:$0xff]
  %541 = vst [vmem:[#allocation3 + $0x540] sm:$0xff] %v533
  %542 = vst [vmem:[#allocation3 + $0x548] sm:$0xff] %v534
  %543 = vst [vmem:[#allocation3 + $0x570] sm:$0xff] %v535
  %544 = vst [vmem:[#allocation3 + $0x578] sm:$0xff] %v536
  %545 = vst [vmem:[#allocation3 + $0x5a0] sm:$0xff] %v537
  %546 = vst [vmem:[#allocation3 + $0x5a8] sm:$0xff] %v538
  %547 = vst [vmem:[#allocation3 + $0x5d0] sm:$0xff] %v539
  %548 = vst [vmem:[#allocation3 + $0x5d8] sm:$0xff] %v540
  %v549 = vld [vmem:[#allocation2] sm:$0xfe]
  %v550 = vld [vmem:[#allocation2 + $0x8] sm:$0xfe]
  %v551 = vld [vmem:[#allocation2 + $0x48] sm:$0xff]
  %v552 = vld [vmem:[#allocation2 + $0x50] sm:$0xff]
  %v553 = vld [vmem:[#allocation2 + $0x90] sm:$0x1]
  %v554 = vld [vmem:[#allocation2 + $0x98] sm:$0x1]
  %v555 = vld [vmem:[#allocation2 + $0xd8] sm:$0xfe]
  %v556 = vld [vmem:[#allocation2 + $0xe0] sm:$0xfe]
  %v557 = vld [vmem:[#allocation2 + $0x120] sm:$0xff]
  %v558 = vld [vmem:[#allocation2 + $0x128] sm:$0xff]
  %v559 = vld [vmem:[#allocation2 + $0x168] sm:$0x1]
  %v560 = vld [vmem:[#allocation2 + $0x170] sm:$0x1]
  %vm573 = vcmask 1046528
  %v574 = vrot.slane %v549, 1
  %v575 = vrot.slane %v551, 1
  %v576 = vsel %vm573, %v574, %v575
  %v577 = vrot.slane %v550, 1
  %v578 = vrot.slane %v552, 1
  %v579 = vsel %vm573, %v577, %v578
  %v580 = vrot.slane %v553, 1
  %v581 = vsel %vm573, %v575, %v580
  %v582 = vrot.slane %v554, 1
  %v583 = vsel %vm573, %v578, %v582
  %v584 = vrot.slane %v555, 1
  %v585 = vrot.slane %v557, 1
  %v586 = vsel %vm573, %v584, %v585
  %v587 = vrot.slane %v556, 1
  %v588 = vrot.slane %v558, 1
  %v589 = vsel %vm573, %v587, %v588
  %v590 = vrot.slane %v559, 1
  %v591 = vsel %vm573, %v585, %v590
  %v592 = vrot.slane %v560, 1
  %v593 = vsel %vm573, %v588, %v592
  %602 = vst [vmem:[#allocation3 + $0x10] sm:$0xff] %v576
  %603 = vst [vmem:[#allocation3 + $0x18] sm:$0xff] %v579
  %604 = vst [vmem:[#allocation3 + $0x40] sm:$0xff] %v581
  %605 = vst [vmem:[#allocation3 + $0x48] sm:$0xff] %v583
  %606 = vst [vmem:[#allocation3 + $0x70] sm:$0xff] %v586
  %607 = vst [vmem:[#allocation3 + $0x78] sm:$0xff] %v589
  %608 = vst [vmem:[#allocation3 + $0xa0] sm:$0xff] %v591
  %609 = vst [vmem:[#allocation3 + $0xa8] sm:$0xff] %v593
  %v610 = vld [vmem:[#allocation2 + $0x8] sm:$0xfe]
  %v611 = vld [vmem:[#allocation2 + $0x10] sm:$0xfe]
  %v612 = vld [vmem:[#allocation2 + $0x50] sm:$0xff]
  %v613 = vld [vmem:[#allocation2 + $0x58] sm:$0xff]
  %v614 = vld [vmem:[#allocation2 + $0x98] sm:$0x1]
  %v615 = vld [vmem:[#allocation2 + $0xa0] sm:$0x1]
  %v616 = vld [vmem:[#allocation2 + $0xe0] sm:$0xfe]
  %v617 = vld [vmem:[#allocation2 + $0xe8] sm:$0xfe]
  %v618 = vld [vmem:[#allocation2 + $0x128] sm:$0xff]
  %v619 = vld [vmem:[#allocation2 + $0x130] sm:$0xff]
  %v620 = vld [vmem:[#allocation2 + $0x170] sm:$0x1]
  %v621 = vld [vmem:[#allocation2 + $0x178] sm:$0x1]
  %v634 = vrot.slane %v610, 1
  %v635 = vrot.slane %v612, 1
  %v636 = vsel %vm573, %v634, %v635
  %v637 = vrot.slane %v611, 1
  %v638 = vrot.slane %v613, 1
  %v639 = vsel %vm573, %v637, %v638
  %v640 = vrot.slane %v614, 1
  %v641 = vsel %vm573, %v635, %v640
  %v642 = vrot.slane %v615, 1
  %v643 = vsel %vm573, %v638, %v642
  %v644 = vrot.slane %v616, 1
  %v645 = vrot.slane %v618, 1
  %v646 = vsel %vm573, %v644, %v645
  %v647 = vrot.slane %v617, 1
  %v648 = vrot.slane %v619, 1
  %v649 = vsel %vm573, %v647, %v648
  %v650 = vrot.slane %v620, 1
  %v651 = vsel %vm573, %v645, %v650
  %v652 = vrot.slane %v621, 1
  %v653 = vsel %vm573, %v648, %v652
  %662 = vst [vmem:[#allocation3 + $0xd0] sm:$0xff] %v636
  %663 = vst [vmem:[#allocation3 + $0xd8] sm:$0xff] %v639
  %664 = vst [vmem:[#allocation3 + $0x100] sm:$0xff] %v641
  %665 = vst [vmem:[#allocation3 + $0x108] sm:$0xff] %v643
  %666 = vst [vmem:[#allocation3 + $0x130] sm:$0xff] %v646
  %667 = vst [vmem:[#allocation3 + $0x138] sm:$0xff] %v649
  %668 = vst [vmem:[#allocation3 + $0x160] sm:$0xff] %v651
  %669 = vst [vmem:[#allocation3 + $0x168] sm:$0xff] %v653
  %v670 = vld [vmem:[#allocation2 + $0x10] sm:$0xfe]
  %v671 = vld [vmem:[#allocation2 + $0x18] sm:$0xfe]
  %v672 = vld [vmem:[#allocation2 + $0x58] sm:$0xff]
  %v673 = vld [vmem:[#allocation2 + $0x60] sm:$0xff]
  %v674 = vld [vmem:[#allocation2 + $0xa0] sm:$0x1]
  %v675 = vld [vmem:[#allocation2 + $0xa8] sm:$0x1]
  %v676 = vld [vmem:[#allocation2 + $0xe8] sm:$0xfe]
  %v677 = vld [vmem:[#allocation2 + $0xf0] sm:$0xfe]
  %v678 = vld [vmem:[#allocation2 + $0x130] sm:$0xff]
  %v679 = vld [vmem:[#allocation2 + $0x138] sm:$0xff]
  %v680 = vld [vmem:[#allocation2 + $0x178] sm:$0x1]
  %v681 = vld [vmem:[#allocation2 + $0x180] sm:$0x1]
  %v694 = vrot.slane %v670, 1
  %v695 = vrot.slane %v672, 1
  %v696 = vsel %vm573, %v694, %v695
  %v697 = vrot.slane %v671, 1
  %v698 = vrot.slane %v673, 1
  %v699 = vsel %vm573, %v697, %v698
  %v700 = vrot.slane %v674, 1
  %v701 = vsel %vm573, %v695, %v700
  %v702 = vrot.slane %v675, 1
  %v703 = vsel %vm573, %v698, %v702
  %v704 = vrot.slane %v676, 1
  %v705 = vrot.slane %v678, 1
  %v706 = vsel %vm573, %v704, %v705
  %v707 = vrot.slane %v677, 1
  %v708 = vrot.slane %v679, 1
  %v709 = vsel %vm573, %v707, %v708
  %v710 = vrot.slane %v680, 1
  %v711 = vsel %vm573, %v705, %v710
  %v712 = vrot.slane %v681, 1
  %v713 = vsel %vm573, %v708, %v712
  %722 = vst [vmem:[#allocation3 + $0x190] sm:$0xff] %v696
  %723 = vst [vmem:[#allocation3 + $0x198] sm:$0xff] %v699
  %724 = vst [vmem:[#allocation3 + $0x1c0] sm:$0xff] %v701
  %725 = vst [vmem:[#allocation3 + $0x1c8] sm:$0xff] %v703
  %726 = vst [vmem:[#allocation3 + $0x1f0] sm:$0xff] %v706
  %727 = vst [vmem:[#allocation3 + $0x1f8] sm:$0xff] %v709
  %728 = vst [vmem:[#allocation3 + $0x220] sm:$0xff] %v711
  %729 = vst [vmem:[#allocation3 + $0x228] sm:$0xff] %v713
  %v730 = vld [vmem:[#allocation2 + $0x18] sm:$0xfe]
  %v731 = vld [vmem:[#allocation2 + $0x20] sm:$0xfe]
  %v732 = vld [vmem:[#allocation2 + $0x60] sm:$0xff]
  %v733 = vld [vmem:[#allocation2 + $0x68] sm:$0xff]
  %v734 = vld [vmem:[#allocation2 + $0xa8] sm:$0x1]
  %v735 = vld [vmem:[#allocation2 + $0xb0] sm:$0x1]
  %v736 = vld [vmem:[#allocation2 + $0xf0] sm:$0xfe]
  %v737 = vld [vmem:[#allocation2 + $0xf8] sm:$0xfe]
  %v738 = vld [vmem:[#allocation2 + $0x138] sm:$0xff]
  %v739 = vld [vmem:[#allocation2 + $0x140] sm:$0xff]
  %v740 = vld [vmem:[#allocation2 + $0x180] sm:$0x1]
  %v741 = vld [vmem:[#allocation2 + $0x188] sm:$0x1]
  %v754 = vrot.slane %v730, 1
  %v755 = vrot.slane %v732, 1
  %v756 = vsel %vm573, %v754, %v755
  %v757 = vrot.slane %v731, 1
  %v758 = vrot.slane %v733, 1
  %v759 = vsel %vm573, %v757, %v758
  %v760 = vrot.slane %v734, 1
  %v761 = vsel %vm573, %v755, %v760
  %v762 = vrot.slane %v735, 1
  %v763 = vsel %vm573, %v758, %v762
  %v764 = vrot.slane %v736, 1
  %v765 = vrot.slane %v738, 1
  %v766 = vsel %vm573, %v764, %v765
  %v767 = vrot.slane %v737, 1
  %v768 = vrot.slane %v739, 1
  %v769 = vsel %vm573, %v767, %v768
  %v770 = vrot.slane %v740, 1
  %v771 = vsel %vm573, %v765, %v770
  %v772 = vrot.slane %v741, 1
  %v773 = vsel %vm573, %v768, %v772
  %782 = vst [vmem:[#allocation3 + $0x250] sm:$0xff] %v756
  %783 = vst [vmem:[#allocation3 + $0x258] sm:$0xff] %v759
  %784 = vst [vmem:[#allocation3 + $0x280] sm:$0xff] %v761
  %785 = vst [vmem:[#allocation3 + $0x288] sm:$0xff] %v763
  %786 = vst [vmem:[#allocation3 + $0x2b0] sm:$0xff] %v766
  %787 = vst [vmem:[#allocation3 + $0x2b8] sm:$0xff] %v769
  %788 = vst [vmem:[#allocation3 + $0x2e0] sm:$0xff] %v771
  %789 = vst [vmem:[#allocation3 + $0x2e8] sm:$0xff] %v773
  %v790 = vld [vmem:[#allocation2 + $0x20] sm:$0xfe]
  %v791 = vld [vmem:[#allocation2 + $0x28] sm:$0xfe]
  %v792 = vld [vmem:[#allocation2 + $0x68] sm:$0xff]
  %v793 = vld [vmem:[#allocation2 + $0x70] sm:$0xff]
  %v794 = vld [vmem:[#allocation2 + $0xb0] sm:$0x1]
  %v795 = vld [vmem:[#allocation2 + $0xb8] sm:$0x1]
  %v796 = vld [vmem:[#allocation2 + $0xf8] sm:$0xfe]
  %v797 = vld [vmem:[#allocation2 + $0x100] sm:$0xfe]
  %v798 = vld [vmem:[#allocation2 + $0x140] sm:$0xff]
  %v799 = vld [vmem:[#allocation2 + $0x148] sm:$0xff]
  %v800 = vld [vmem:[#allocation2 + $0x188] sm:$0x1]
  %v801 = vld [vmem:[#allocation2 + $0x190] sm:$0x1]
  %v814 = vrot.slane %v790, 1
  %v815 = vrot.slane %v792, 1
  %v816 = vsel %vm573, %v814, %v815
  %v817 = vrot.slane %v791, 1
  %v818 = vrot.slane %v793, 1
  %v819 = vsel %vm573, %v817, %v818
  %v820 = vrot.slane %v794, 1
  %v821 = vsel %vm573, %v815, %v820
  %v822 = vrot.slane %v795, 1
  %v823 = vsel %vm573, %v818, %v822
  %v824 = vrot.slane %v796, 1
  %v825 = vrot.slane %v798, 1
  %v826 = vsel %vm573, %v824, %v825
  %v827 = vrot.slane %v797, 1
  %v828 = vrot.slane %v799, 1
  %v829 = vsel %vm573, %v827, %v828
  %v830 = vrot.slane %v800, 1
  %v831 = vsel %vm573, %v825, %v830
  %v832 = vrot.slane %v801, 1
  %v833 = vsel %vm573, %v828, %v832
  %842 = vst [vmem:[#allocation3 + $0x310] sm:$0xff] %v816
  %843 = vst [vmem:[#allocation3 + $0x318] sm:$0xff] %v819
  %844 = vst [vmem:[#allocation3 + $0x340] sm:$0xff] %v821
  %845 = vst [vmem:[#allocation3 + $0x348] sm:$0xff] %v823
  %846 = vst [vmem:[#allocation3 + $0x370] sm:$0xff] %v826
  %847 = vst [vmem:[#allocation3 + $0x378] sm:$0xff] %v829
  %848 = vst [vmem:[#allocation3 + $0x3a0] sm:$0xff] %v831
  %849 = vst [vmem:[#allocation3 + $0x3a8] sm:$0xff] %v833
  %v850 = vld [vmem:[#allocation2 + $0x28] sm:$0xfe]
  %v851 = vld [vmem:[#allocation2 + $0x30] sm:$0xfe]
  %v852 = vld [vmem:[#allocation2 + $0x70] sm:$0xff]
  %v853 = vld [vmem:[#allocation2 + $0x78] sm:$0xff]
  %v854 = vld [vmem:[#allocation2 + $0xb8] sm:$0x1]
  %v855 = vld [vmem:[#allocation2 + $0xc0] sm:$0x1]
  %v856 = vld [vmem:[#allocation2 + $0x100] sm:$0xfe]
  %v857 = vld [vmem:[#allocation2 + $0x108] sm:$0xfe]
  %v858 = vld [vmem:[#allocation2 + $0x148] sm:$0xff]
  %v859 = vld [vmem:[#allocation2 + $0x150] sm:$0xff]
  %v860 = vld [vmem:[#allocation2 + $0x190] sm:$0x1]
  %v861 = vld [vmem:[#allocation2 + $0x198] sm:$0x1]
  %v874 = vrot.slane %v850, 1
  %v875 = vrot.slane %v852, 1
  %v876 = vsel %vm573, %v874, %v875
  %v877 = vrot.slane %v851, 1
  %v878 = vrot.slane %v853, 1
  %v879 = vsel %vm573, %v877, %v878
  %v880 = vrot.slane %v854, 1
  %v881 = vsel %vm573, %v875, %v880
  %v882 = vrot.slane %v855, 1
  %v883 = vsel %vm573, %v878, %v882
  %v884 = vrot.slane %v856, 1
  %v885 = vrot.slane %v858, 1
  %v886 = vsel %vm573, %v884, %v885
  %v887 = vrot.slane %v857, 1
  %v888 = vrot.slane %v859, 1
  %v889 = vsel %vm573, %v887, %v888
  %v890 = vrot.slane %v860, 1
  %v891 = vsel %vm573, %v885, %v890
  %v892 = vrot.slane %v861, 1
  %v893 = vsel %vm573, %v888, %v892
  %902 = vst [vmem:[#allocation3 + $0x3d0] sm:$0xff] %v876
  %903 = vst [vmem:[#allocation3 + $0x3d8] sm:$0xff] %v879
  %904 = vst [vmem:[#allocation3 + $0x400] sm:$0xff] %v881
  %905 = vst [vmem:[#allocation3 + $0x408] sm:$0xff] %v883
  %906 = vst [vmem:[#allocation3 + $0x430] sm:$0xff] %v886
  %907 = vst [vmem:[#allocation3 + $0x438] sm:$0xff] %v889
  %908 = vst [vmem:[#allocation3 + $0x460] sm:$0xff] %v891
  %909 = vst [vmem:[#allocation3 + $0x468] sm:$0xff] %v893
  %v910 = vld [vmem:[#allocation2 + $0x30] sm:$0xfe]
  %v911 = vld [vmem:[#allocation2 + $0x38] sm:$0xfe]
  %v912 = vld [vmem:[#allocation2 + $0x78] sm:$0xff]
  %v913 = vld [vmem:[#allocation2 + $0x80] sm:$0xff]
  %v914 = vld [vmem:[#allocation2 + $0xc0] sm:$0x1]
  %v915 = vld [vmem:[#allocation2 + $0xc8] sm:$0x1]
  %v916 = vld [vmem:[#allocation2 + $0x108] sm:$0xfe]
  %v917 = vld [vmem:[#allocation2 + $0x110] sm:$0xfe]
  %v918 = vld [vmem:[#allocation2 + $0x150] sm:$0xff]
  %v919 = vld [vmem:[#allocation2 + $0x158] sm:$0xff]
  %v920 = vld [vmem:[#allocation2 + $0x198] sm:$0x1]
  %v921 = vld [vmem:[#allocation2 + $0x1a0] sm:$0x1]
  %v934 = vrot.slane %v910, 1
  %v935 = vrot.slane %v912, 1
  %v936 = vsel %vm573, %v934, %v935
  %v937 = vrot.slane %v911, 1
  %v938 = vrot.slane %v913, 1
  %v939 = vsel %vm573, %v937, %v938
  %v940 = vrot.slane %v914, 1
  %v941 = vsel %vm573, %v935, %v940
  %v942 = vrot.slane %v915, 1
  %v943 = vsel %vm573, %v938, %v942
  %v944 = vrot.slane %v916, 1
  %v945 = vrot.slane %v918, 1
  %v946 = vsel %vm573, %v944, %v945
  %v947 = vrot.slane %v917, 1
  %v948 = vrot.slane %v919, 1
  %v949 = vsel %vm573, %v947, %v948
  %v950 = vrot.slane %v920, 1
  %v951 = vsel %vm573, %v945, %v950
  %v952 = vrot.slane %v921, 1
  %v953 = vsel %vm573, %v948, %v952
  %962 = vst [vmem:[#allocation3 + $0x490] sm:$0xff] %v936
  %963 = vst [vmem:[#allocation3 + $0x498] sm:$0xff] %v939
  %964 = vst [vmem:[#allocation3 + $0x4c0] sm:$0xff] %v941
  %965 = vst [vmem:[#allocation3 + $0x4c8] sm:$0xff] %v943
  %966 = vst [vmem:[#allocation3 + $0x4f0] sm:$0xff] %v946
  %967 = vst [vmem:[#allocation3 + $0x4f8] sm:$0xff] %v949
  %968 = vst [vmem:[#allocation3 + $0x520] sm:$0xff] %v951
  %969 = vst [vmem:[#allocation3 + $0x528] sm:$0xff] %v953
  %v970 = vld [vmem:[#allocation2 + $0x38] sm:$0xfe]
  %v971 = vld [vmem:[#allocation2 + $0x40] sm:$0xfe]
  %v972 = vld [vmem:[#allocation2 + $0x80] sm:$0xff]
  %v973 = vld [vmem:[#allocation2 + $0x88] sm:$0xff]
  %v974 = vld [vmem:[#allocation2 + $0xc8] sm:$0x1]
  %v975 = vld [vmem:[#allocation2 + $0xd0] sm:$0x1]
  %v976 = vld [vmem:[#allocation2 + $0x110] sm:$0xfe]
  %v977 = vld [vmem:[#allocation2 + $0x118] sm:$0xfe]
  %v978 = vld [vmem:[#allocation2 + $0x158] sm:$0xff]
  %v979 = vld [vmem:[#allocation2 + $0x160] sm:$0xff]
  %v980 = vld [vmem:[#allocation2 + $0x1a0] sm:$0x1]
  %v981 = vld [vmem:[#allocation2 + $0x1a8] sm:$0x1]
  %v994 = vrot.slane %v970, 1
  %v995 = vrot.slane %v972, 1
  %v996 = vsel %vm573, %v994, %v995
  %v997 = vrot.slane %v971, 1
  %v998 = vrot.slane %v973, 1
  %v999 = vsel %vm573, %v997, %v998
  %v1000 = vrot.slane %v974, 1
  %v1001 = vsel %vm573, %v995, %v1000
  %v1002 = vrot.slane %v975, 1
  %v1003 = vsel %vm573, %v998, %v1002
  %v1004 = vrot.slane %v976, 1
  %v1005 = vrot.slane %v978, 1
  %v1006 = vsel %vm573, %v1004, %v1005
  %v1007 = vrot.slane %v977, 1
  %v1008 = vrot.slane %v979, 1
  %v1009 = vsel %vm573, %v1007, %v1008
  %v1010 = vrot.slane %v980, 1
  %v1011 = vsel %vm573, %v1005, %v1010
  %v1012 = vrot.slane %v981, 1
  %v1013 = vsel %vm573, %v1008, %v1012
  %1022 = vst [vmem:[#allocation3 + $0x550] sm:$0xff] %v996
  %1023 = vst [vmem:[#allocation3 + $0x558] sm:$0xff] %v999
  %1024 = vst [vmem:[#allocation3 + $0x580] sm:$0xff] %v1001
  %1025 = vst [vmem:[#allocation3 + $0x588] sm:$0xff] %v1003
  %1026 = vst [vmem:[#allocation3 + $0x5b0] sm:$0xff] %v1006
  %1027 = vst [vmem:[#allocation3 + $0x5b8] sm:$0xff] %v1009
  %1028 = vst [vmem:[#allocation3 + $0x5e0] sm:$0xff] %v1011
  %1029 = vst [vmem:[#allocation3 + $0x5e8] sm:$0xff] %v1013
  %v1030 = vld [vmem:[#allocation2] sm:$0xfc]
  %v1031 = vld [vmem:[#allocation2 + $0x8] sm:$0xfc]
  %v1032 = vld [vmem:[#allocation2 + $0x48] sm:$0xff]
  %v1033 = vld [vmem:[#allocation2 + $0x50] sm:$0xff]
  %v1034 = vld [vmem:[#allocation2 + $0x90] sm:$0x3]
  %v1035 = vld [vmem:[#allocation2 + $0x98] sm:$0x3]
  %v1036 = vld [vmem:[#allocation2 + $0xd8] sm:$0xfc]
  %v1037 = vld [vmem:[#allocation2 + $0xe0] sm:$0xfc]
  %v1038 = vld [vmem:[#allocation2 + $0x120] sm:$0xff]
  %v1039 = vld [vmem:[#allocation2 + $0x128] sm:$0xff]
  %v1040 = vld [vmem:[#allocation2 + $0x168] sm:$0x3]
  %v1041 = vld [vmem:[#allocation2 + $0x170] sm:$0x3]
  %vm1054 = vcmask 1045504
  %v1055 = vrot.slane %v1030, 2
  %v1056 = vrot.slane %v1032, 2
  %v1057 = vsel %vm1054, %v1055, %v1056
  %v1058 = vrot.slane %v1031, 2
  %v1059 = vrot.slane %v1033, 2
  %v1060 = vsel %vm1054, %v1058, %v1059
  %v1061 = vrot.slane %v1034, 2
  %v1062 = vsel %vm1054, %v1056, %v1061
  %v1063 = vrot.slane %v1035, 2
  %v1064 = vsel %vm1054, %v1059, %v1063
  %v1065 = vrot.slane %v1036, 2
  %v1066 = vrot.slane %v1038, 2
  %v1067 = vsel %vm1054, %v1065, %v1066
  %v1068 = vrot.slane %v1037, 2
  %v1069 = vrot.slane %v1039, 2
  %v1070 = vsel %vm1054, %v1068, %v1069
  %v1071 = vrot.slane %v1040, 2
  %v1072 = vsel %vm1054, %v1066, %v1071
  %v1073 = vrot.slane %v1041, 2
  %v1074 = vsel %vm1054, %v1069, %v1073
  %1083 = vst [vmem:[#allocation3 + $0x20] sm:$0xff] %v1057
  %1084 = vst [vmem:[#allocation3 + $0x28] sm:$0xff] %v1060
  %1085 = vst [vmem:[#allocation3 + $0x50] sm:$0xff] %v1062
  %1086 = vst [vmem:[#allocation3 + $0x58] sm:$0xff] %v1064
  %1087 = vst [vmem:[#allocation3 + $0x80] sm:$0xff] %v1067
  %1088 = vst [vmem:[#allocation3 + $0x88] sm:$0xff] %v1070
  %1089 = vst [vmem:[#allocation3 + $0xb0] sm:$0xff] %v1072
  %1090 = vst [vmem:[#allocation3 + $0xb8] sm:$0xff] %v1074
  %v1091 = vld [vmem:[#allocation2 + $0x8] sm:$0xfc]
  %v1092 = vld [vmem:[#allocation2 + $0x10] sm:$0xfc]
  %v1093 = vld [vmem:[#allocation2 + $0x50] sm:$0xff]
  %v1094 = vld [vmem:[#allocation2 + $0x58] sm:$0xff]
  %v1095 = vld [vmem:[#allocation2 + $0x98] sm:$0x3]
  %v1096 = vld [vmem:[#allocation2 + $0xa0] sm:$0x3]
  %v1097 = vld [vmem:[#allocation2 + $0xe0] sm:$0xfc]
  %v1098 = vld [vmem:[#allocation2 + $0xe8] sm:$0xfc]
  %v1099 = vld [vmem:[#allocation2 + $0x128] sm:$0xff]
  %v1100 = vld [vmem:[#allocation2 + $0x130] sm:$0xff]
  %v1101 = vld [vmem:[#allocation2 + $0x170] sm:$0x3]
  %v1102 = vld [vmem:[#allocation2 + $0x178] sm:$0x3]
  %v1115 = vrot.slane %v1091, 2
  %v1116 = vrot.slane %v1093, 2
  %v1117 = vsel %vm1054, %v1115, %v1116
  %v1118 = vrot.slane %v1092, 2
  %v1119 = vrot.slane %v1094, 2
  %v1120 = vsel %vm1054, %v1118, %v1119
  %v1121 = vrot.slane %v1095, 2
  %v1122 = vsel %vm1054, %v1116, %v1121
  %v1123 = vrot.slane %v1096, 2
  %v1124 = vsel %vm1054, %v1119, %v1123
  %v1125 = vrot.slane %v1097, 2
  %v1126 = vrot.slane %v1099, 2
  %v1127 = vsel %vm1054, %v1125, %v1126
  %v1128 = vrot.slane %v1098, 2
  %v1129 = vrot.slane %v1100, 2
  %v1130 = vsel %vm1054, %v1128, %v1129
  %v1131 = vrot.slane %v1101, 2
  %v1132 = vsel %vm1054, %v1126, %v1131
  %v1133 = vrot.slane %v1102, 2
  %v1134 = vsel %vm1054, %v1129, %v1133
  %1143 = vst [vmem:[#allocation3 + $0xe0] sm:$0xff] %v1117
  %1144 = vst [vmem:[#allocation3 + $0xe8] sm:$0xff] %v1120
  %1145 = vst [vmem:[#allocation3 + $0x110] sm:$0xff] %v1122
  %1146 = vst [vmem:[#allocation3 + $0x118] sm:$0xff] %v1124
  %1147 = vst [vmem:[#allocation3 + $0x140] sm:$0xff] %v1127
  %1148 = vst [vmem:[#allocation3 + $0x148] sm:$0xff] %v1130
  %1149 = vst [vmem:[#allocation3 + $0x170] sm:$0xff] %v1132
  %1150 = vst [vmem:[#allocation3 + $0x178] sm:$0xff] %v1134
  %v1151 = vld [vmem:[#allocation2 + $0x10] sm:$0xfc]
  %v1152 = vld [vmem:[#allocation2 + $0x18] sm:$0xfc]
  %v1153 = vld [vmem:[#allocation2 + $0x58] sm:$0xff]
  %v1154 = vld [vmem:[#allocation2 + $0x60] sm:$0xff]
  %v1155 = vld [vmem:[#allocation2 + $0xa0] sm:$0x3]
  %v1156 = vld [vmem:[#allocation2 + $0xa8] sm:$0x3]
  %v1157 = vld [vmem:[#allocation2 + $0xe8] sm:$0xfc]
  %v1158 = vld [vmem:[#allocation2 + $0xf0] sm:$0xfc]
  %v1159 = vld [vmem:[#allocation2 + $0x130] sm:$0xff]
  %v1160 = vld [vmem:[#allocation2 + $0x138] sm:$0xff]
  %v1161 = vld [vmem:[#allocation2 + $0x178] sm:$0x3]
  %v1162 = vld [vmem:[#allocation2 + $0x180] sm:$0x3]
  %v1175 = vrot.slane %v1151, 2
  %v1176 = vrot.slane %v1153, 2
  %v1177 = vsel %vm1054, %v1175, %v1176
  %v1178 = vrot.slane %v1152, 2
  %v1179 = vrot.slane %v1154, 2
  %v1180 = vsel %vm1054, %v1178, %v1179
  %v1181 = vrot.slane %v1155, 2
  %v1182 = vsel %vm1054, %v1176, %v1181
  %v1183 = vrot.slane %v1156, 2
  %v1184 = vsel %vm1054, %v1179, %v1183
  %v1185 = vrot.slane %v1157, 2
  %v1186 = vrot.slane %v1159, 2
  %v1187 = vsel %vm1054, %v1185, %v1186
  %v1188 = vrot.slane %v1158, 2
  %v1189 = vrot.slane %v1160, 2
  %v1190 = vsel %vm1054, %v1188, %v1189
  %v1191 = vrot.slane %v1161, 2
  %v1192 = vsel %vm1054, %v1186, %v1191
  %v1193 = vrot.slane %v1162, 2
  %v1194 = vsel %vm1054, %v1189, %v1193
  %1203 = vst [vmem:[#allocation3 + $0x1a0] sm:$0xff] %v1177
  %1204 = vst [vmem:[#allocation3 + $0x1a8] sm:$0xff] %v1180
  %1205 = vst [vmem:[#allocation3 + $0x1d0] sm:$0xff] %v1182
  %1206 = vst [vmem:[#allocation3 + $0x1d8] sm:$0xff] %v1184
  %1207 = vst [vmem:[#allocation3 + $0x200] sm:$0xff] %v1187
  %1208 = vst [vmem:[#allocation3 + $0x208] sm:$0xff] %v1190
  %1209 = vst [vmem:[#allocation3 + $0x230] sm:$0xff] %v1192
  %1210 = vst [vmem:[#allocation3 + $0x238] sm:$0xff] %v1194
  %v1211 = vld [vmem:[#allocation2 + $0x18] sm:$0xfc]
  %v1212 = vld [vmem:[#allocation2 + $0x20] sm:$0xfc]
  %v1213 = vld [vmem:[#allocation2 + $0x60] sm:$0xff]
  %v1214 = vld [vmem:[#allocation2 + $0x68] sm:$0xff]
  %v1215 = vld [vmem:[#allocation2 + $0xa8] sm:$0x3]
  %v1216 = vld [vmem:[#allocation2 + $0xb0] sm:$0x3]
  %v1217 = vld [vmem:[#allocation2 + $0xf0] sm:$0xfc]
  %v1218 = vld [vmem:[#allocation2 + $0xf8] sm:$0xfc]
  %v1219 = vld [vmem:[#allocation2 + $0x138] sm:$0xff]
  %v1220 = vld [vmem:[#allocation2 + $0x140] sm:$0xff]
  %v1221 = vld [vmem:[#allocation2 + $0x180] sm:$0x3]
  %v1222 = vld [vmem:[#allocation2 + $0x188] sm:$0x3]
  %v1235 = vrot.slane %v1211, 2
  %v1236 = vrot.slane %v1213, 2
  %v1237 = vsel %vm1054, %v1235, %v1236
  %v1238 = vrot.slane %v1212, 2
  %v1239 = vrot.slane %v1214, 2
  %v1240 = vsel %vm1054, %v1238, %v1239
  %v1241 = vrot.slane %v1215, 2
  %v1242 = vsel %vm1054, %v1236, %v1241
  %v1243 = vrot.slane %v1216, 2
  %v1244 = vsel %vm1054, %v1239, %v1243
  %v1245 = vrot.slane %v1217, 2
  %v1246 = vrot.slane %v1219, 2
  %v1247 = vsel %vm1054, %v1245, %v1246
  %v1248 = vrot.slane %v1218, 2
  %v1249 = vrot.slane %v1220, 2
  %v1250 = vsel %vm1054, %v1248, %v1249
  %v1251 = vrot.slane %v1221, 2
  %v1252 = vsel %vm1054, %v1246, %v1251
  %v1253 = vrot.slane %v1222, 2
  %v1254 = vsel %vm1054, %v1249, %v1253
  %1263 = vst [vmem:[#allocation3 + $0x260] sm:$0xff] %v1237
  %1264 = vst [vmem:[#allocation3 + $0x268] sm:$0xff] %v1240
  %1265 = vst [vmem:[#allocation3 + $0x290] sm:$0xff] %v1242
  %1266 = vst [vmem:[#allocation3 + $0x298] sm:$0xff] %v1244
  %1267 = vst [vmem:[#allocation3 + $0x2c0] sm:$0xff] %v1247
  %1268 = vst [vmem:[#allocation3 + $0x2c8] sm:$0xff] %v1250
  %1269 = vst [vmem:[#allocation3 + $0x2f0] sm:$0xff] %v1252
  %1270 = vst [vmem:[#allocation3 + $0x2f8] sm:$0xff] %v1254
  %v1271 = vld [vmem:[#allocation2 + $0x20] sm:$0xfc]
  %v1272 = vld [vmem:[#allocation2 + $0x28] sm:$0xfc]
  %v1273 = vld [vmem:[#allocation2 + $0x68] sm:$0xff]
  %v1274 = vld [vmem:[#allocation2 + $0x70] sm:$0xff]
  %v1275 = vld [vmem:[#allocation2 + $0xb0] sm:$0x3]
  %v1276 = vld [vmem:[#allocation2 + $0xb8] sm:$0x3]
  %v1277 = vld [vmem:[#allocation2 + $0xf8] sm:$0xfc]
  %v1278 = vld [vmem:[#allocation2 + $0x100] sm:$0xfc]
  %v1279 = vld [vmem:[#allocation2 + $0x140] sm:$0xff]
  %v1280 = vld [vmem:[#allocation2 + $0x148] sm:$0xff]
  %v1281 = vld [vmem:[#allocation2 + $0x188] sm:$0x3]
  %v1282 = vld [vmem:[#allocation2 + $0x190] sm:$0x3]
  %v1295 = vrot.slane %v1271, 2
  %v1296 = vrot.slane %v1273, 2
  %v1297 = vsel %vm1054, %v1295, %v1296
  %v1298 = vrot.slane %v1272, 2
  %v1299 = vrot.slane %v1274, 2
  %v1300 = vsel %vm1054, %v1298, %v1299
  %v1301 = vrot.slane %v1275, 2
  %v1302 = vsel %vm1054, %v1296, %v1301
  %v1303 = vrot.slane %v1276, 2
  %v1304 = vsel %vm1054, %v1299, %v1303
  %v1305 = vrot.slane %v1277, 2
  %v1306 = vrot.slane %v1279, 2
  %v1307 = vsel %vm1054, %v1305, %v1306
  %v1308 = vrot.slane %v1278, 2
  %v1309 = vrot.slane %v1280, 2
  %v1310 = vsel %vm1054, %v1308, %v1309
  %v1311 = vrot.slane %v1281, 2
  %v1312 = vsel %vm1054, %v1306, %v1311
  %v1313 = vrot.slane %v1282, 2
  %v1314 = vsel %vm1054, %v1309, %v1313
  %1323 = vst [vmem:[#allocation3 + $0x320] sm:$0xff] %v1297
  %1324 = vst [vmem:[#allocation3 + $0x328] sm:$0xff] %v1300
  %1325 = vst [vmem:[#allocation3 + $0x350] sm:$0xff] %v1302
  %1326 = vst [vmem:[#allocation3 + $0x358] sm:$0xff] %v1304
  %1327 = vst [vmem:[#allocation3 + $0x380] sm:$0xff] %v1307
  %1328 = vst [vmem:[#allocation3 + $0x388] sm:$0xff] %v1310
  %1329 = vst [vmem:[#allocation3 + $0x3b0] sm:$0xff] %v1312
  %1330 = vst [vmem:[#allocation3 + $0x3b8] sm:$0xff] %v1314
  %v1331 = vld [vmem:[#allocation2 + $0x28] sm:$0xfc]
  %v1332 = vld [vmem:[#allocation2 + $0x30] sm:$0xfc]
  %v1333 = vld [vmem:[#allocation2 + $0x70] sm:$0xff]
  %v1334 = vld [vmem:[#allocation2 + $0x78] sm:$0xff]
  %v1335 = vld [vmem:[#allocation2 + $0xb8] sm:$0x3]
  %v1336 = vld [vmem:[#allocation2 + $0xc0] sm:$0x3]
  %v1337 = vld [vmem:[#allocation2 + $0x100] sm:$0xfc]
  %v1338 = vld [vmem:[#allocation2 + $0x108] sm:$0xfc]
  %v1339 = vld [vmem:[#allocation2 + $0x148] sm:$0xff]
  %v1340 = vld [vmem:[#allocation2 + $0x150] sm:$0xff]
  %v1341 = vld [vmem:[#allocation2 + $0x190] sm:$0x3]
  %v1342 = vld [vmem:[#allocation2 + $0x198] sm:$0x3]
  %v1355 = vrot.slane %v1331, 2
  %v1356 = vrot.slane %v1333, 2
  %v1357 = vsel %vm1054, %v1355, %v1356
  %v1358 = vrot.slane %v1332, 2
  %v1359 = vrot.slane %v1334, 2
  %v1360 = vsel %vm1054, %v1358, %v1359
  %v1361 = vrot.slane %v1335, 2
  %v1362 = vsel %vm1054, %v1356, %v1361
  %v1363 = vrot.slane %v1336, 2
  %v1364 = vsel %vm1054, %v1359, %v1363
  %v1365 = vrot.slane %v1337, 2
  %v1366 = vrot.slane %v1339, 2
  %v1367 = vsel %vm1054, %v1365, %v1366
  %v1368 = vrot.slane %v1338, 2
  %v1369 = vrot.slane %v1340, 2
  %v1370 = vsel %vm1054, %v1368, %v1369
  %v1371 = vrot.slane %v1341, 2
  %v1372 = vsel %vm1054, %v1366, %v1371
  %v1373 = vrot.slane %v1342, 2
  %v1374 = vsel %vm1054, %v1369, %v1373
  %1383 = vst [vmem:[#allocation3 + $0x3e0] sm:$0xff] %v1357
  %1384 = vst [vmem:[#allocation3 + $0x3e8] sm:$0xff] %v1360
  %1385 = vst [vmem:[#allocation3 + $0x410] sm:$0xff] %v1362
  %1386 = vst [vmem:[#allocation3 + $0x418] sm:$0xff] %v1364
  %1387 = vst [vmem:[#allocation3 + $0x440] sm:$0xff] %v1367
  %1388 = vst [vmem:[#allocation3 + $0x448] sm:$0xff] %v1370
  %1389 = vst [vmem:[#allocation3 + $0x470] sm:$0xff] %v1372
  %1390 = vst [vmem:[#allocation3 + $0x478] sm:$0xff] %v1374
  %v1391 = vld [vmem:[#allocation2 + $0x30] sm:$0xfc]
  %v1392 = vld [vmem:[#allocation2 + $0x38] sm:$0xfc]
  %v1393 = vld [vmem:[#allocation2 + $0x78] sm:$0xff]
  %v1394 = vld [vmem:[#allocation2 + $0x80] sm:$0xff]
  %v1395 = vld [vmem:[#allocation2 + $0xc0] sm:$0x3]
  %v1396 = vld [vmem:[#allocation2 + $0xc8] sm:$0x3]
  %v1397 = vld [vmem:[#allocation2 + $0x108] sm:$0xfc]
  %v1398 = vld [vmem:[#allocation2 + $0x110] sm:$0xfc]
  %v1399 = vld [vmem:[#allocation2 + $0x150] sm:$0xff]
  %v1400 = vld [vmem:[#allocation2 + $0x158] sm:$0xff]
  %v1401 = vld [vmem:[#allocation2 + $0x198] sm:$0x3]
  %v1402 = vld [vmem:[#allocation2 + $0x1a0] sm:$0x3]
  %v1415 = vrot.slane %v1391, 2
  %v1416 = vrot.slane %v1393, 2
  %v1417 = vsel %vm1054, %v1415, %v1416
  %v1418 = vrot.slane %v1392, 2
  %v1419 = vrot.slane %v1394, 2
  %v1420 = vsel %vm1054, %v1418, %v1419
  %v1421 = vrot.slane %v1395, 2
  %v1422 = vsel %vm1054, %v1416, %v1421
  %v1423 = vrot.slane %v1396, 2
  %v1424 = vsel %vm1054, %v1419, %v1423
  %v1425 = vrot.slane %v1397, 2
  %v1426 = vrot.slane %v1399, 2
  %v1427 = vsel %vm1054, %v1425, %v1426
  %v1428 = vrot.slane %v1398, 2
  %v1429 = vrot.slane %v1400, 2
  %v1430 = vsel %vm1054, %v1428, %v1429
  %v1431 = vrot.slane %v1401, 2
  %v1432 = vsel %vm1054, %v1426, %v1431
  %v1433 = vrot.slane %v1402, 2
  %v1434 = vsel %vm1054, %v1429, %v1433
  %1443 = vst [vmem:[#allocation3 + $0x4a0] sm:$0xff] %v1417
  %1444 = vst [vmem:[#allocation3 + $0x4a8] sm:$0xff] %v1420
  %1445 = vst [vmem:[#allocation3 + $0x4d0] sm:$0xff] %v1422
  %1446 = vst [vmem:[#allocation3 + $0x4d8] sm:$0xff] %v1424
  %1447 = vst [vmem:[#allocation3 + $0x500] sm:$0xff] %v1427
  %1448 = vst [vmem:[#allocation3 + $0x508] sm:$0xff] %v1430
  %1449 = vst [vmem:[#allocation3 + $0x530] sm:$0xff] %v1432
  %1450 = vst [vmem:[#allocation3 + $0x538] sm:$0xff] %v1434
  %v1451 = vld [vmem:[#allocation2 + $0x38] sm:$0xfc]
  %v1452 = vld [vmem:[#allocation2 + $0x40] sm:$0xfc]
  %v1453 = vld [vmem:[#allocation2 + $0x80] sm:$0xff]
  %v1454 = vld [vmem:[#allocation2 + $0x88] sm:$0xff]
  %v1455 = vld [vmem:[#allocation2 + $0xc8] sm:$0x3]
  %v1456 = vld [vmem:[#allocation2 + $0xd0] sm:$0x3]
  %v1457 = vld [vmem:[#allocation2 + $0x110] sm:$0xfc]
  %v1458 = vld [vmem:[#allocation2 + $0x118] sm:$0xfc]
  %v1459 = vld [vmem:[#allocation2 + $0x158] sm:$0xff]
  %v1460 = vld [vmem:[#allocation2 + $0x160] sm:$0xff]
  %v1461 = vld [vmem:[#allocation2 + $0x1a0] sm:$0x3]
  %v1462 = vld [vmem:[#allocation2 + $0x1a8] sm:$0x3]
  %v1475 = vrot.slane %v1451, 2
  %v1476 = vrot.slane %v1453, 2
  %v1477 = vsel %vm1054, %v1475, %v1476
  %v1478 = vrot.slane %v1452, 2
  %v1479 = vrot.slane %v1454, 2
  %v1480 = vsel %vm1054, %v1478, %v1479
  %v1481 = vrot.slane %v1455, 2
  %v1482 = vsel %vm1054, %v1476, %v1481
  %v1483 = vrot.slane %v1456, 2
  %v1484 = vsel %vm1054, %v1479, %v1483
  %v1485 = vrot.slane %v1457, 2
  %v1486 = vrot.slane %v1459, 2
  %v1487 = vsel %vm1054, %v1485, %v1486
  %v1488 = vrot.slane %v1458, 2
  %v1489 = vrot.slane %v1460, 2
  %v1490 = vsel %vm1054, %v1488, %v1489
  %v1491 = vrot.slane %v1461, 2
  %v1492 = vsel %vm1054, %v1486, %v1491
  %v1493 = vrot.slane %v1462, 2
  %v1494 = vsel %vm1054, %v1489, %v1493
  %1503 = vst [vmem:[#allocation3 + $0x560] sm:$0xff] %v1477
  %1504 = vst [vmem:[#allocation3 + $0x568] sm:$0xff] %v1480
  %1505 = vst [vmem:[#allocation3 + $0x590] sm:$0xff] %v1482
  %1506 = vst [vmem:[#allocation3 + $0x598] sm:$0xff] %v1484
  %1507 = vst [vmem:[#allocation3 + $0x5c0] sm:$0xff] %v1487
  %1508 = vst [vmem:[#allocation3 + $0x5c8] sm:$0xff] %v1490
  %1509 = vst [vmem:[#allocation3 + $0x5f0] sm:$0xff] %v1492
  %1510 = vst [vmem:[#allocation3 + $0x5f8] sm:$0xff] %v1494
  %v1511 = vld [vmem:[#allocation3] sm:$0xff]
  %v1512 = vld [vmem:[#allocation3 + $0x8] sm:$0xff]
  %v1513 = vld [vmem:[#allocation3 + $0x10] sm:$0xff]
  %v1514 = vld [vmem:[#allocation3 + $0x18] sm:$0xff]
  %v1515 = vld [vmem:[#allocation3 + $0x20] sm:$0xff]
  %v1516 = vld [vmem:[#allocation3 + $0x28] sm:$0xff]
  %v1517 = vld [vmem:[#allocation3 + $0x30] sm:$0xff]
  %v1518 = vld [vmem:[#allocation3 + $0x38] sm:$0xff]
  %v1519 = vld [vmem:[#allocation3 + $0x40] sm:$0xff]
  %v1520 = vld [vmem:[#allocation3 + $0x48] sm:$0xff]
  %v1521 = vld [vmem:[#allocation3 + $0x50] sm:$0xff]
  %v1522 = vld [vmem:[#allocation3 + $0x58] sm:$0xff]
  %v1523 = vld [vmem:[#allocation3 + $0x60] sm:$0xff]
  %v1524 = vld [vmem:[#allocation3 + $0x68] sm:$0xff]
  %v1525 = vld [vmem:[#allocation3 + $0x70] sm:$0xff]
  %v1526 = vld [vmem:[#allocation3 + $0x78] sm:$0xff]
  %v1527 = vld [vmem:[#allocation3 + $0x80] sm:$0xff]
  %v1528 = vld [vmem:[#allocation3 + $0x88] sm:$0xff]
  %v1529 = vld [vmem:[#allocation3 + $0x90] sm:$0xff]
  %v1530 = vld [vmem:[#allocation3 + $0x98] sm:$0xff]
  %v1531 = vld [vmem:[#allocation3 + $0xa0] sm:$0xff]
  %v1532 = vld [vmem:[#allocation3 + $0xa8] sm:$0xff]
  %v1533 = vld [vmem:[#allocation3 + $0xb0] sm:$0xff]
  %v1534 = vld [vmem:[#allocation3 + $0xb8] sm:$0xff]
  %v1535 = vld [vmem:[#allocation3 + $0xc0] sm:$0xff]
  %v1536 = vld [vmem:[#allocation3 + $0xc8] sm:$0xff]
  %v1537 = vld [vmem:[#allocation3 + $0xd0] sm:$0xff]
  %v1538 = vld [vmem:[#allocation3 + $0xd8] sm:$0xff]
  %v1539 = vld [vmem:[#allocation3 + $0xe0] sm:$0xff]
  %v1540 = vld [vmem:[#allocation3 + $0xe8] sm:$0xff]
  %v1541 = vld [vmem:[#allocation3 + $0xf0] sm:$0xff]
  %v1542 = vld [vmem:[#allocation3 + $0xf8] sm:$0xff]
  %v1543 = vld [vmem:[#allocation3 + $0x100] sm:$0xff]
  %v1544 = vld [vmem:[#allocation3 + $0x108] sm:$0xff]
  %v1545 = vld [vmem:[#allocation3 + $0x110] sm:$0xff]
  %v1546 = vld [vmem:[#allocation3 + $0x118] sm:$0xff]
  %v1547 = vld [vmem:[#allocation3 + $0x120] sm:$0xff]
  %v1548 = vld [vmem:[#allocation3 + $0x128] sm:$0xff]
  %v1549 = vld [vmem:[#allocation3 + $0x130] sm:$0xff]
  %v1550 = vld [vmem:[#allocation3 + $0x138] sm:$0xff]
  %v1551 = vld [vmem:[#allocation3 + $0x140] sm:$0xff]
  %v1552 = vld [vmem:[#allocation3 + $0x148] sm:$0xff]
  %v1553 = vld [vmem:[#allocation3 + $0x150] sm:$0xff]
  %v1554 = vld [vmem:[#allocation3 + $0x158] sm:$0xff]
  %v1555 = vld [vmem:[#allocation3 + $0x160] sm:$0xff]
  %v1556 = vld [vmem:[#allocation3 + $0x168] sm:$0xff]
  %v1557 = vld [vmem:[#allocation3 + $0x170] sm:$0xff]
  %v1558 = vld [vmem:[#allocation3 + $0x178] sm:$0xff]
  %v1559 = vld [vmem:[#allocation3 + $0x180] sm:$0xff]
  %v1560 = vld [vmem:[#allocation3 + $0x188] sm:$0xff]
  %v1561 = vld [vmem:[#allocation3 + $0x190] sm:$0xff]
  %v1562 = vld [vmem:[#allocation3 + $0x198] sm:$0xff]
  %v1563 = vld [vmem:[#allocation3 + $0x1a0] sm:$0xff]
  %v1564 = vld [vmem:[#allocation3 + $0x1a8] sm:$0xff]
  %v1565 = vld [vmem:[#allocation3 + $0x1b0] sm:$0xff]
  %v1566 = vld [vmem:[#allocation3 + $0x1b8] sm:$0xff]
  %v1567 = vld [vmem:[#allocation3 + $0x1c0] sm:$0xff]
  %v1568 = vld [vmem:[#allocation3 + $0x1c8] sm:$0xff]
  %v1569 = vld [vmem:[#allocation3 + $0x1d0] sm:$0xff]
  %v1570 = vld [vmem:[#allocation3 + $0x1d8] sm:$0xff]
  %v1571 = vld [vmem:[#allocation3 + $0x1e0] sm:$0xff]
  %v1572 = vld [vmem:[#allocation3 + $0x1e8] sm:$0xff]
  %v1573 = vld [vmem:[#allocation3 + $0x1f0] sm:$0xff]
  %v1574 = vld [vmem:[#allocation3 + $0x1f8] sm:$0xff]
  %v1575 = vld [vmem:[#allocation3 + $0x200] sm:$0xff]
  %v1576 = vld [vmem:[#allocation3 + $0x208] sm:$0xff]
  %v1577 = vld [vmem:[#allocation3 + $0x210] sm:$0xff]
  %v1578 = vld [vmem:[#allocation3 + $0x218] sm:$0xff]
  %v1579 = vld [vmem:[#allocation3 + $0x220] sm:$0xff]
  %v1580 = vld [vmem:[#allocation3 + $0x228] sm:$0xff]
  %v1581 = vld [vmem:[#allocation3 + $0x230] sm:$0xff]
  %v1582 = vld [vmem:[#allocation3 + $0x238] sm:$0xff]
  %v1583 = vld [vmem:[#allocation3 + $0x240] sm:$0xff]
  %v1584 = vld [vmem:[#allocation3 + $0x248] sm:$0xff]
  %v1585 = vld [vmem:[#allocation3 + $0x250] sm:$0xff]
  %v1586 = vld [vmem:[#allocation3 + $0x258] sm:$0xff]
  %v1587 = vld [vmem:[#allocation3 + $0x260] sm:$0xff]
  %v1588 = vld [vmem:[#allocation3 + $0x268] sm:$0xff]
  %v1589 = vld [vmem:[#allocation3 + $0x270] sm:$0xff]
  %v1590 = vld [vmem:[#allocation3 + $0x278] sm:$0xff]
  %v1591 = vld [vmem:[#allocation3 + $0x280] sm:$0xff]
  %v1592 = vld [vmem:[#allocation3 + $0x288] sm:$0xff]
  %v1593 = vld [vmem:[#allocation3 + $0x290] sm:$0xff]
  %v1594 = vld [vmem:[#allocation3 + $0x298] sm:$0xff]
  %v1595 = vld [vmem:[#allocation3 + $0x2a0] sm:$0xff]
  %v1596 = vld [vmem:[#allocation3 + $0x2a8] sm:$0xff]
  %v1597 = vld [vmem:[#allocation3 + $0x2b0] sm:$0xff]
  %v1598 = vld [vmem:[#allocation3 + $0x2b8] sm:$0xff]
  %v1599 = vld [vmem:[#allocation3 + $0x2c0] sm:$0xff]
  %v1600 = vld [vmem:[#allocation3 + $0x2c8] sm:$0xff]
  %v1601 = vld [vmem:[#allocation3 + $0x2d0] sm:$0xff]
  %v1602 = vld [vmem:[#allocation3 + $0x2d8] sm:$0xff]
  %v1603 = vld [vmem:[#allocation3 + $0x2e0] sm:$0xff]
  %v1604 = vld [vmem:[#allocation3 + $0x2e8] sm:$0xff]
  %v1605 = vld [vmem:[#allocation3 + $0x2f0] sm:$0xff]
  %v1606 = vld [vmem:[#allocation3 + $0x2f8] sm:$0xff]
  %v1607 = vld [vmem:[#allocation3 + $0x300] sm:$0xff]
  %v1608 = vld [vmem:[#allocation3 + $0x308] sm:$0xff]
  %v1609 = vld [vmem:[#allocation3 + $0x310] sm:$0xff]
  %v1610 = vld [vmem:[#allocation3 + $0x318] sm:$0xff]
  %v1611 = vld [vmem:[#allocation3 + $0x320] sm:$0xff]
  %v1612 = vld [vmem:[#allocation3 + $0x328] sm:$0xff]
  %v1613 = vld [vmem:[#allocation3 + $0x330] sm:$0xff]
  %v1614 = vld [vmem:[#allocation3 + $0x338] sm:$0xff]
  %v1615 = vld [vmem:[#allocation3 + $0x340] sm:$0xff]
  %v1616 = vld [vmem:[#allocation3 + $0x348] sm:$0xff]
  %v1617 = vld [vmem:[#allocation3 + $0x350] sm:$0xff]
  %v1618 = vld [vmem:[#allocation3 + $0x358] sm:$0xff]
  %v1619 = vld [vmem:[#allocation3 + $0x360] sm:$0xff]
  %v1620 = vld [vmem:[#allocation3 + $0x368] sm:$0xff]
  %v1621 = vld [vmem:[#allocation3 + $0x370] sm:$0xff]
  %v1622 = vld [vmem:[#allocation3 + $0x378] sm:$0xff]
  %v1623 = vld [vmem:[#allocation3 + $0x380] sm:$0xff]
  %v1624 = vld [vmem:[#allocation3 + $0x388] sm:$0xff]
  %v1625 = vld [vmem:[#allocation3 + $0x390] sm:$0xff]
  %v1626 = vld [vmem:[#allocation3 + $0x398] sm:$0xff]
  %v1627 = vld [vmem:[#allocation3 + $0x3a0] sm:$0xff]
  %v1628 = vld [vmem:[#allocation3 + $0x3a8] sm:$0xff]
  %v1629 = vld [vmem:[#allocation3 + $0x3b0] sm:$0xff]
  %v1630 = vld [vmem:[#allocation3 + $0x3b8] sm:$0xff]
  %v1631 = vld [vmem:[#allocation3 + $0x3c0] sm:$0xff]
  %v1632 = vld [vmem:[#allocation3 + $0x3c8] sm:$0xff]
  %v1633 = vld [vmem:[#allocation3 + $0x3d0] sm:$0xff]
  %v1634 = vld [vmem:[#allocation3 + $0x3d8] sm:$0xff]
  %v1635 = vld [vmem:[#allocation3 + $0x3e0] sm:$0xff]
  %v1636 = vld [vmem:[#allocation3 + $0x3e8] sm:$0xff]
  %v1637 = vld [vmem:[#allocation3 + $0x3f0] sm:$0xff]
  %v1638 = vld [vmem:[#allocation3 + $0x3f8] sm:$0xff]
  %v1639 = vld [vmem:[#allocation3 + $0x400] sm:$0xff]
  %v1640 = vld [vmem:[#allocation3 + $0x408] sm:$0xff]
  %v1641 = vld [vmem:[#allocation3 + $0x410] sm:$0xff]
  %v1642 = vld [vmem:[#allocation3 + $0x418] sm:$0xff]
  %v1643 = vld [vmem:[#allocation3 + $0x420] sm:$0xff]
  %v1644 = vld [vmem:[#allocation3 + $0x428] sm:$0xff]
  %v1645 = vld [vmem:[#allocation3 + $0x430] sm:$0xff]
  %v1646 = vld [vmem:[#allocation3 + $0x438] sm:$0xff]
  %v1647 = vld [vmem:[#allocation3 + $0x440] sm:$0xff]
  %v1648 = vld [vmem:[#allocation3 + $0x448] sm:$0xff]
  %v1649 = vld [vmem:[#allocation3 + $0x450] sm:$0xff]
  %v1650 = vld [vmem:[#allocation3 + $0x458] sm:$0xff]
  %v1651 = vld [vmem:[#allocation3 + $0x460] sm:$0xff]
  %v1652 = vld [vmem:[#allocation3 + $0x468] sm:$0xff]
  %v1653 = vld [vmem:[#allocation3 + $0x470] sm:$0xff]
  %v1654 = vld [vmem:[#allocation3 + $0x478] sm:$0xff]
  %v1655 = vld [vmem:[#allocation3 + $0x480] sm:$0xff]
  %v1656 = vld [vmem:[#allocation3 + $0x488] sm:$0xff]
  %v1657 = vld [vmem:[#allocation3 + $0x490] sm:$0xff]
  %v1658 = vld [vmem:[#allocation3 + $0x498] sm:$0xff]
  %v1659 = vld [vmem:[#allocation3 + $0x4a0] sm:$0xff]
  %v1660 = vld [vmem:[#allocation3 + $0x4a8] sm:$0xff]
  %v1661 = vld [vmem:[#allocation3 + $0x4b0] sm:$0xff]
  %v1662 = vld [vmem:[#allocation3 + $0x4b8] sm:$0xff]
  %v1663 = vld [vmem:[#allocation3 + $0x4c0] sm:$0xff]
  %v1664 = vld [vmem:[#allocation3 + $0x4c8] sm:$0xff]
  %v1665 = vld [vmem:[#allocation3 + $0x4d0] sm:$0xff]
  %v1666 = vld [vmem:[#allocation3 + $0x4d8] sm:$0xff]
  %v1667 = vld [vmem:[#allocation3 + $0x4e0] sm:$0xff]
  %v1668 = vld [vmem:[#allocation3 + $0x4e8] sm:$0xff]
  %v1669 = vld [vmem:[#allocation3 + $0x4f0] sm:$0xff]
  %v1670 = vld [vmem:[#allocation3 + $0x4f8] sm:$0xff]
  %v1671 = vld [vmem:[#allocation3 + $0x500] sm:$0xff]
  %v1672 = vld [vmem:[#allocation3 + $0x508] sm:$0xff]
  %v1673 = vld [vmem:[#allocation3 + $0x510] sm:$0xff]
  %v1674 = vld [vmem:[#allocation3 + $0x518] sm:$0xff]
  %v1675 = vld [vmem:[#allocation3 + $0x520] sm:$0xff]
  %v1676 = vld [vmem:[#allocation3 + $0x528] sm:$0xff]
  %v1677 = vld [vmem:[#allocation3 + $0x530] sm:$0xff]
  %v1678 = vld [vmem:[#allocation3 + $0x538] sm:$0xff]
  %v1679 = vld [vmem:[#allocation3 + $0x540] sm:$0xff]
  %v1680 = vld [vmem:[#allocation3 + $0x548] sm:$0xff]
  %v1681 = vld [vmem:[#allocation3 + $0x550] sm:$0xff]
  %v1682 = vld [vmem:[#allocation3 + $0x558] sm:$0xff]
  %v1683 = vld [vmem:[#allocation3 + $0x560] sm:$0xff]
  %v1684 = vld [vmem:[#allocation3 + $0x568] sm:$0xff]
  %v1685 = vld [vmem:[#allocation3 + $0x570] sm:$0xff]
  %v1686 = vld [vmem:[#allocation3 + $0x578] sm:$0xff]
  %v1687 = vld [vmem:[#allocation3 + $0x580] sm:$0xff]
  %v1688 = vld [vmem:[#allocation3 + $0x588] sm:$0xff]
  %v1689 = vld [vmem:[#allocation3 + $0x590] sm:$0xff]
  %v1690 = vld [vmem:[#allocation3 + $0x598] sm:$0xff]
  %v1691 = vld [vmem:[#allocation3 + $0x5a0] sm:$0xff]
  %v1692 = vld [vmem:[#allocation3 + $0x5a8] sm:$0xff]
  %v1693 = vld [vmem:[#allocation3 + $0x5b0] sm:$0xff]
  %v1694 = vld [vmem:[#allocation3 + $0x5b8] sm:$0xff]
  %v1695 = vld [vmem:[#allocation3 + $0x5c0] sm:$0xff]
  %v1696 = vld [vmem:[#allocation3 + $0x5c8] sm:$0xff]
  %v1697 = vld [vmem:[#allocation3 + $0x5d0] sm:$0xff]
  %v1698 = vld [vmem:[#allocation3 + $0x5d8] sm:$0xff]
  %v1699 = vld [vmem:[#allocation3 + $0x5e0] sm:$0xff]
  %v1700 = vld [vmem:[#allocation3 + $0x5e8] sm:$0xff]
  %v1701 = vld [vmem:[#allocation3 + $0x5f0] sm:$0xff]
  %v1702 = vld [vmem:[#allocation3 + $0x5f8] sm:$0xff]
  %v1703 = vld [vmem:[%s1] sm:$0xff]
  %v1704 = vld [vmem:[%s1 + $0x8] sm:$0xff]
  %v1705 = vld [vmem:[%s1 + $0x10] sm:$0xff]
  %v1706 = vld [vmem:[%s1 + $0x18] sm:$0xff]
  %v1707 = vld [vmem:[%s1 + $0x20] sm:$0xff]
  %v1708 = vld [vmem:[%s1 + $0x28] sm:$0xff]
  %v1709 = vld [vmem:[%s1 + $0x30] sm:$0xff]
  %v1710 = vld [vmem:[%s1 + $0x38] sm:$0xff]
  %v1711 = vld [vmem:[%s1 + $0x40] sm:$0xff]
  %v1712 = vld [vmem:[%s1 + $0x48] sm:$0xff]
  %v1713 = vld [vmem:[%s1 + $0x50] sm:$0xff]
  %v1714 = vld [vmem:[%s1 + $0x58] sm:$0xff]
  %v1715 = vld [vmem:[%s1 + $0x60] sm:$0xff]
  %v1716 = vld [vmem:[%s1 + $0x68] sm:$0xff]
  %v1717 = vld [vmem:[%s1 + $0x70] sm:$0xff]
  %v1718 = vld [vmem:[%s1 + $0x78] sm:$0xff]
  %v1719 = vld [vmem:[%s1 + $0x80] sm:$0xff]
  %v1720 = vld [vmem:[%s1 + $0x88] sm:$0xff]
  %v1721 = vld [vmem:[%s1 + $0x90] sm:$0xff]
  %v1722 = vld [vmem:[%s1 + $0x98] sm:$0xff]
  %v1723 = vld [vmem:[%s1 + $0xa0] sm:$0xff]
  %v1724 = vld [vmem:[%s1 + $0xa8] sm:$0xff]
  %v1725 = vld [vmem:[%s1 + $0xb0] sm:$0xff]
  %v1726 = vld [vmem:[%s1 + $0xb8] sm:$0xff]
  %v1727 = vld [vmem:[%s1 + $0xc0] sm:$0xff]
  %v1728 = vld [vmem:[%s1 + $0xc8] sm:$0xff]
  %v1729 = vld [vmem:[%s1 + $0xd0] sm:$0xff]
  %v1730 = vld [vmem:[%s1 + $0xd8] sm:$0xff]
  %v1731 = vld [vmem:[%s1 + $0xe0] sm:$0xff]
  %v1732 = vld [vmem:[%s1 + $0xe8] sm:$0xff]
  %v1733 = vld [vmem:[%s1 + $0xf0] sm:$0xff]
  %v1734 = vld [vmem:[%s1 + $0xf8] sm:$0xff]
  %v1735 = vld [vmem:[%s1 + $0x100] sm:$0xff]
  %v1736 = vld [vmem:[%s1 + $0x108] sm:$0xff]
  %v1737 = vld [vmem:[%s1 + $0x110] sm:$0xff]
  %v1738 = vld [vmem:[%s1 + $0x118] sm:$0xff]
  %v1739 = vld [vmem:[%s1 + $0x120] sm:$0xff]
  %v1740 = vld [vmem:[%s1 + $0x128] sm:$0xff]
  %v1741 = vld [vmem:[%s1 + $0x130] sm:$0xff]
  %v1742 = vld [vmem:[%s1 + $0x138] sm:$0xff]
  %v1743 = vld [vmem:[%s1 + $0x140] sm:$0xff]
  %v1744 = vld [vmem:[%s1 + $0x148] sm:$0xff]
  %v1745 = vld [vmem:[%s1 + $0x150] sm:$0xff]
  %v1746 = vld [vmem:[%s1 + $0x158] sm:$0xff]
  %v1747 = vld [vmem:[%s1 + $0x160] sm:$0xff]
  %v1748 = vld [vmem:[%s1 + $0x168] sm:$0xff]
  %v1749 = vld [vmem:[%s1 + $0x170] sm:$0xff]
  %v1750 = vld [vmem:[%s1 + $0x178] sm:$0xff]
  %v1751 = vld [vmem:[%s1 + $0x180] sm:$0xff]
  %v1752 = vld [vmem:[%s1 + $0x188] sm:$0xff]
  %v1753 = vld [vmem:[%s1 + $0x190] sm:$0xff]
  %v1754 = vld [vmem:[%s1 + $0x198] sm:$0xff]
  %v1755 = vld [vmem:[%s1 + $0x1a0] sm:$0xff]
  %v1756 = vld [vmem:[%s1 + $0x1a8] sm:$0xff]
  %v1757 = vld [vmem:[%s1 + $0x1b0] sm:$0xff]
  %v1758 = vld [vmem:[%s1 + $0x1b8] sm:$0xff]
  %v1759 = vld [vmem:[%s1 + $0x1c0] sm:$0xff]
  %v1760 = vld [vmem:[%s1 + $0x1c8] sm:$0xff]
  %v1761 = vld [vmem:[%s1 + $0x1d0] sm:$0xff]
  %v1762 = vld [vmem:[%s1 + $0x1d8] sm:$0xff]
  %v1763 = vld [vmem:[%s1 + $0x1e0] sm:$0xff]
  %v1764 = vld [vmem:[%s1 + $0x1e8] sm:$0xff]
  %v1765 = vld [vmem:[%s1 + $0x1f0] sm:$0xff]
  %v1766 = vld [vmem:[%s1 + $0x1f8] sm:$0xff]
  %v1767 = vld [vmem:[%s1 + $0x200] sm:$0xff]
  %v1768 = vld [vmem:[%s1 + $0x208] sm:$0xff]
  %v1769 = vld [vmem:[%s1 + $0x210] sm:$0xff]
  %v1770 = vld [vmem:[%s1 + $0x218] sm:$0xff]
  %v1771 = vld [vmem:[%s1 + $0x220] sm:$0xff]
  %v1772 = vld [vmem:[%s1 + $0x228] sm:$0xff]
  %v1773 = vld [vmem:[%s1 + $0x230] sm:$0xff]
  %v1774 = vld [vmem:[%s1 + $0x238] sm:$0xff]
  %v1775 = vld [vmem:[%s1 + $0x240] sm:$0xff]
  %v1776 = vld [vmem:[%s1 + $0x248] sm:$0xff]
  %v1777 = vld [vmem:[%s1 + $0x250] sm:$0xff]
  %v1778 = vld [vmem:[%s1 + $0x258] sm:$0xff]
  %v1779 = vld [vmem:[%s1 + $0x260] sm:$0xff]
  %v1780 = vld [vmem:[%s1 + $0x268] sm:$0xff]
  %v1781 = vld [vmem:[%s1 + $0x270] sm:$0xff]
  %v1782 = vld [vmem:[%s1 + $0x278] sm:$0xff]
  %v1783 = vld [vmem:[%s1 + $0x280] sm:$0xff]
  %v1784 = vld [vmem:[%s1 + $0x288] sm:$0xff]
  %v1785 = vld [vmem:[%s1 + $0x290] sm:$0xff]
  %v1786 = vld [vmem:[%s1 + $0x298] sm:$0xff]
  %v1787 = vld [vmem:[%s1 + $0x2a0] sm:$0xff]
  %v1788 = vld [vmem:[%s1 + $0x2a8] sm:$0xff]
  %v1789 = vld [vmem:[%s1 + $0x2b0] sm:$0xff]
  %v1790 = vld [vmem:[%s1 + $0x2b8] sm:$0xff]
  %v1791 = vld [vmem:[%s1 + $0x2c0] sm:$0xff]
  %v1792 = vld [vmem:[%s1 + $0x2c8] sm:$0xff]
  %v1793 = vld [vmem:[%s1 + $0x2d0] sm:$0xff]
  %v1794 = vld [vmem:[%s1 + $0x2d8] sm:$0xff]
  %v1795 = vld [vmem:[%s1 + $0x2e0] sm:$0xff]
  %v1796 = vld [vmem:[%s1 + $0x2e8] sm:$0xff]
  %v1797 = vld [vmem:[%s1 + $0x2f0] sm:$0xff]
  %v1798 = vld [vmem:[%s1 + $0x2f8] sm:$0xff]
  %1799 = vmatprep.subr.mxu0 0.0
  %1800 = vmatpush1.msra.mxu0 %v1718
  %1801 = vmatprep.subr.mxu0 0.0
  %1802 = vmatpush1.msra.mxu0 %v1717
  %1803 = vmatprep.subr.mxu0 0.0
  %1804 = vmatpush1.msra.mxu0 %v1716
  %1805 = vmatprep.subr.mxu0 0.0
  %1806 = vmatpush1.msra.mxu0 %v1715
  %1807 = vmatprep.subr.mxu0 0.0
  %1808 = vmatpush1.msra.mxu0 %v1714
  %1809 = vmatprep.subr.mxu0 0.0
  %1810 = vmatpush1.msra.mxu0 %v1713
  %1811 = vmatprep.subr.mxu0 0.0
  %1812 = vmatpush1.msra.mxu0 %v1712
  %1813 = vmatprep.subr.mxu0 0.0
  %1814 = vmatpush1.msra.mxu0 %v1711
  %1815 = vmatprep.subr.mxu0 0.0
  %1816 = vmatpush1.msra.mxu0 %v1710
  %1817 = vmatprep.subr.mxu0 0.0
  %1818 = vmatpush1.msra.mxu0 %v1709
  %1819 = vmatprep.subr.mxu0 0.0
  %1820 = vmatpush1.msra.mxu0 %v1708
  %1821 = vmatprep.subr.mxu0 0.0
  %1822 = vmatpush1.msra.mxu0 %v1707
  %1823 = vmatprep.subr.mxu0 0.0
  %1824 = vmatpush1.msra.mxu0 %v1706
  %1825 = vmatprep.subr.mxu0 0.0
  %1826 = vmatpush1.msra.mxu0 %v1705
  %1827 = vmatprep.subr.mxu0 0.0
  %1828 = vmatpush1.msra.mxu0 %v1704
  %1829 = vmatprep.subr.mxu0 0.0
  %1830 = vmatpush1.msra.mxu0 %v1703
  %1831 = vmatprep.subr.mxu0 0.0
  %1832 = vmatpush2.msra.mxu0 %v1734
  %1833 = vmatprep.subr.mxu0 0.0
  %1834 = vmatpush2.msra.mxu0 %v1733
  %1835 = vmatprep.subr.mxu0 0.0
  %1836 = vmatpush2.msra.mxu0 %v1732
  %1837 = vmatprep.subr.mxu0 0.0
  %1838 = vmatpush2.msra.mxu0 %v1731
  %1839 = vmatprep.subr.mxu0 0.0
  %1840 = vmatpush2.msra.mxu0 %v1730
  %1841 = vmatprep.subr.mxu0 0.0
  %1842 = vmatpush2.msra.mxu0 %v1729
  %1843 = vmatprep.subr.mxu0 0.0
  %1844 = vmatpush2.msra.mxu0 %v1728
  %1845 = vmatprep.subr.mxu0 0.0
  %1846 = vmatpush2.msra.mxu0 %v1727
  %1847 = vmatprep.subr.mxu0 0.0
  %1848 = vmatpush2.msra.mxu0 %v1726
  %1849 = vmatprep.subr.mxu0 0.0
  %1850 = vmatpush2.msra.mxu0 %v1725
  %1851 = vmatprep.subr.mxu0 0.0
  %1852 = vmatpush2.msra.mxu0 %v1724
  %1853 = vmatprep.subr.mxu0 0.0
  %1854 = vmatpush2.msra.mxu0 %v1723
  %1855 = vmatprep.subr.mxu0 0.0
  %1856 = vmatpush2.msra.mxu0 %v1722
  %1857 = vmatprep.subr.mxu0 0.0
  %1858 = vmatpush2.msra.mxu0 %v1721
  %1859 = vmatprep.subr.mxu0 0.0
  %1860 = vmatpush2.msra.mxu0 %v1720
  %1861 = vmatprep.subr.mxu0 0.0
  %1862 = vmatpush2.msra.mxu0 %v1719
  %1863 = vmatprep.mubr.f32.mxu0 %v1512
  %1864 = vmatmul.mubr.f32.gmra.mxu0 %v1511
  %v1865 = vpop.f32.mrf.mxu0
  %v1866 = vadd.f32 0.0, %v1865
  %v1867 = vpop.f32.mrf.mxu0
  %1868 = vmatprep.mubr.f32.mxu0 %v1518
  %1869 = vmatmul.mubr.f32.gmra.mxu0 %v1517
  %v1870 = vpop.f32.mrf.mxu0
  %v1871 = vadd.f32 0.0, %v1870
  %v1872 = vpop.f32.mrf.mxu0
  %1873 = vmatprep.mubr.f32.mxu0 %v1524
  %1874 = vmatmul.mubr.f32.gmra.mxu0 %v1523
  %v1875 = vpop.f32.mrf.mxu0
  %v1876 = vadd.f32 0.0, %v1875
  %v1877 = vpop.f32.mrf.mxu0
  %1878 = vmatprep.mubr.f32.mxu0 %v1530
  %1879 = vmatmul.mubr.f32.gmra.mxu0 %v1529
  %v1880 = vpop.f32.mrf.mxu0
  %v1881 = vadd.f32 0.0, %v1880
  %v1882 = vpop.f32.mrf.mxu0
  %1883 = vmatprep.mubr.f32.mxu0 %v1536
  %1884 = vmatmul.mubr.f32.gmra.mxu0 %v1535
  %v1885 = vpop.f32.mrf.mxu0
  %v1886 = vadd.f32 0.0, %v1885
  %v1887 = vpop.f32.mrf.mxu0
  %1888 = vmatprep.mubr.f32.mxu0 %v1542
  %1889 = vmatmul.mubr.f32.gmra.mxu0 %v1541
  %v1890 = vpop.f32.mrf.mxu0
  %v1891 = vadd.f32 0.0, %v1890
  %v1892 = vpop.f32.mrf.mxu0
  %1893 = vmatprep.mubr.f32.mxu0 %v1548
  %1894 = vmatmul.mubr.f32.gmra.mxu0 %v1547
  %v1895 = vpop.f32.mrf.mxu0
  %v1896 = vadd.f32 0.0, %v1895
  %v1897 = vpop.f32.mrf.mxu0
  %1898 = vmatprep.mubr.f32.mxu0 %v1554
  %1899 = vmatmul.mubr.f32.gmra.mxu0 %v1553
  %v1900 = vpop.f32.mrf.mxu0
  %v1901 = vadd.f32 0.0, %v1900
  %v1902 = vpop.f32.mrf.mxu0
  %1903 = vmatprep.mubr.f32.mxu0 %v1560
  %1904 = vmatmul.mubr.f32.gmra.mxu0 %v1559
  %v1905 = vpop.f32.mrf.mxu0
  %v1906 = vadd.f32 0.0, %v1905
  %v1907 = vpop.f32.mrf.mxu0
  %1908 = vmatprep.mubr.f32.mxu0 %v1566
  %1909 = vmatmul.mubr.f32.gmra.mxu0 %v1565
  %v1910 = vpop.f32.mrf.mxu0
  %v1911 = vadd.f32 0.0, %v1910
  %v1912 = vpop.f32.mrf.mxu0
  %1913 = vmatprep.mubr.f32.mxu0 %v1572
  %1914 = vmatmul.mubr.f32.gmra.mxu0 %v1571
  %v1915 = vpop.f32.mrf.mxu0
  %v1916 = vadd.f32 0.0, %v1915
  %v1917 = vpop.f32.mrf.mxu0
  %1918 = vmatprep.mubr.f32.mxu0 %v1578
  %1919 = vmatmul.mubr.f32.gmra.mxu0 %v1577
  %v1920 = vpop.f32.mrf.mxu0
  %v1921 = vadd.f32 0.0, %v1920
  %v1922 = vpop.f32.mrf.mxu0
  %1923 = vmatprep.mubr.f32.mxu0 %v1584
  %1924 = vmatmul.mubr.f32.gmra.mxu0 %v1583
  %v1925 = vpop.f32.mrf.mxu0
  %v1926 = vadd.f32 0.0, %v1925
  %v1927 = vpop.f32.mrf.mxu0
  %1928 = vmatprep.mubr.f32.mxu0 %v1590
  %1929 = vmatmul.mubr.f32.gmra.mxu0 %v1589
  %v1930 = vpop.f32.mrf.mxu0
  %v1931 = vadd.f32 0.0, %v1930
  %v1932 = vpop.f32.mrf.mxu0
  %1933 = vmatprep.mubr.f32.mxu0 %v1596
  %1934 = vmatmul.mubr.f32.gmra.mxu0 %v1595
  %v1935 = vpop.f32.mrf.mxu0
  %v1936 = vadd.f32 0.0, %v1935
  %v1937 = vpop.f32.mrf.mxu0
  %1938 = vmatprep.mubr.f32.mxu0 %v1602
  %1939 = vmatmul.mubr.f32.gmra.mxu0 %v1601
  %v1940 = vpop.f32.mrf.mxu0
  %v1941 = vadd.f32 0.0, %v1940
  %v1942 = vpop.f32.mrf.mxu0
  %1943 = vmatprep.mubr.f32.mxu0 %v1608
  %1944 = vmatmul.mubr.f32.gmra.mxu0 %v1607
  %v1945 = vpop.f32.mrf.mxu0
  %v1946 = vadd.f32 0.0, %v1945
  %v1947 = vpop.f32.mrf.mxu0
  %1948 = vmatprep.mubr.f32.mxu0 %v1614
  %1949 = vmatmul.mubr.f32.gmra.mxu0 %v1613
  %v1950 = vpop.f32.mrf.mxu0
  %v1951 = vadd.f32 0.0, %v1950
  %v1952 = vpop.f32.mrf.mxu0
  %1953 = vmatprep.mubr.f32.mxu0 %v1620
  %1954 = vmatmul.mubr.f32.gmra.mxu0 %v1619
  %v1955 = vpop.f32.mrf.mxu0
  %v1956 = vadd.f32 0.0, %v1955
  %v1957 = vpop.f32.mrf.mxu0
  %1958 = vmatprep.mubr.f32.mxu0 %v1626
  %1959 = vmatmul.mubr.f32.gmra.mxu0 %v1625
  %v1960 = vpop.f32.mrf.mxu0
  %v1961 = vadd.f32 0.0, %v1960
  %v1962 = vpop.f32.mrf.mxu0
  %1963 = vmatprep.mubr.f32.mxu0 %v1632
  %1964 = vmatmul.mubr.f32.gmra.mxu0 %v1631
  %v1965 = vpop.f32.mrf.mxu0
  %v1966 = vadd.f32 0.0, %v1965
  %v1967 = vpop.f32.mrf.mxu0
  %1968 = vmatprep.mubr.f32.mxu0 %v1638
  %1969 = vmatmul.mubr.f32.gmra.mxu0 %v1637
  %v1970 = vpop.f32.mrf.mxu0
  %v1971 = vadd.f32 0.0, %v1970
  %v1972 = vpop.f32.mrf.mxu0
  %1973 = vmatprep.mubr.f32.mxu0 %v1644
  %1974 = vmatmul.mubr.f32.gmra.mxu0 %v1643
  %v1975 = vpop.f32.mrf.mxu0
  %v1976 = vadd.f32 0.0, %v1975
  %v1977 = vpop.f32.mrf.mxu0
  %1978 = vmatprep.mubr.f32.mxu0 %v1650
  %1979 = vmatmul.mubr.f32.gmra.mxu0 %v1649
  %v1980 = vpop.f32.mrf.mxu0
  %v1981 = vadd.f32 0.0, %v1980
  %v1982 = vpop.f32.mrf.mxu0
  %1983 = vmatprep.mubr.f32.mxu0 %v1656
  %1984 = vmatmul.mubr.f32.gmra.mxu0 %v1655
  %v1985 = vpop.f32.mrf.mxu0
  %v1986 = vadd.f32 0.0, %v1985
  %v1987 = vpop.f32.mrf.mxu0
  %1988 = vmatprep.mubr.f32.mxu0 %v1662
  %1989 = vmatmul.mubr.f32.gmra.mxu0 %v1661
  %v1990 = vpop.f32.mrf.mxu0
  %v1991 = vadd.f32 0.0, %v1990
  %v1992 = vpop.f32.mrf.mxu0
  %1993 = vmatprep.mubr.f32.mxu0 %v1668
  %1994 = vmatmul.mubr.f32.gmra.mxu0 %v1667
  %v1995 = vpop.f32.mrf.mxu0
  %v1996 = vadd.f32 0.0, %v1995
  %v1997 = vpop.f32.mrf.mxu0
  %1998 = vmatprep.mubr.f32.mxu0 %v1674
  %1999 = vmatmul.mubr.f32.gmra.mxu0 %v1673
  %v2000 = vpop.f32.mrf.mxu0
  %v2001 = vadd.f32 0.0, %v2000
  %v2002 = vpop.f32.mrf.mxu0
  %2003 = vmatprep.mubr.f32.mxu0 %v1680
  %2004 = vmatmul.mubr.f32.gmra.mxu0 %v1679
  %v2005 = vpop.f32.mrf.mxu0
  %v2006 = vadd.f32 0.0, %v2005
  %v2007 = vpop.f32.mrf.mxu0
  %2008 = vmatprep.mubr.f32.mxu0 %v1686
  %2009 = vmatmul.mubr.f32.gmra.mxu0 %v1685
  %v2010 = vpop.f32.mrf.mxu0
  %v2011 = vadd.f32 0.0, %v2010
  %v2012 = vpop.f32.mrf.mxu0
  %2013 = vmatprep.mubr.f32.mxu0 %v1692
  %2014 = vmatmul.mubr.f32.gmra.mxu0 %v1691
  %v2015 = vpop.f32.mrf.mxu0
  %v2016 = vadd.f32 0.0, %v2015
  %v2017 = vpop.f32.mrf.mxu0
  %2018 = vmatprep.mubr.f32.mxu0 %v1698
  %2019 = vmatmul.mubr.f32.gmra.mxu0 %v1697
  %v2020 = vpop.f32.mrf.mxu0
  %v2021 = vadd.f32 0.0, %v2020
  %v2022 = vpop.f32.mrf.mxu0
  %2023 = vdwg.mxu0
  %2024 = vmatprep.subr.mxu0 0.0
  %2025 = vmatpush1.msra.mxu0 %v1750
  %2026 = vmatprep.subr.mxu0 0.0
  %2027 = vmatpush1.msra.mxu0 %v1749
  %2028 = vmatprep.subr.mxu0 0.0
  %2029 = vmatpush1.msra.mxu0 %v1748
  %2030 = vmatprep.subr.mxu0 0.0
  %2031 = vmatpush1.msra.mxu0 %v1747
  %2032 = vmatprep.subr.mxu0 0.0
  %2033 = vmatpush1.msra.mxu0 %v1746
  %2034 = vmatprep.subr.mxu0 0.0
  %2035 = vmatpush1.msra.mxu0 %v1745
  %2036 = vmatprep.subr.mxu0 0.0
  %2037 = vmatpush1.msra.mxu0 %v1744
  %2038 = vmatprep.subr.mxu0 0.0
  %2039 = vmatpush1.msra.mxu0 %v1743
  %2040 = vmatprep.subr.mxu0 0.0
  %2041 = vmatpush1.msra.mxu0 %v1742
  %2042 = vmatprep.subr.mxu0 0.0
  %2043 = vmatpush1.msra.mxu0 %v1741
  %2044 = vmatprep.subr.mxu0 0.0
  %2045 = vmatpush1.msra.mxu0 %v1740
  %2046 = vmatprep.subr.mxu0 0.0
  %2047 = vmatpush1.msra.mxu0 %v1739
  %2048 = vmatprep.subr.mxu0 0.0
  %2049 = vmatpush1.msra.mxu0 %v1738
  %2050 = vmatprep.subr.mxu0 0.0
  %2051 = vmatpush1.msra.mxu0 %v1737
  %2052 = vmatprep.subr.mxu0 0.0
  %2053 = vmatpush1.msra.mxu0 %v1736
  %2054 = vmatprep.subr.mxu0 0.0
  %2055 = vmatpush1.msra.mxu0 %v1735
  %2056 = vmatprep.subr.mxu0 0.0
  %2057 = vmatpush2.msra.mxu0 %v1766
  %2058 = vmatprep.subr.mxu0 0.0
  %2059 = vmatpush2.msra.mxu0 %v1765
  %2060 = vmatprep.subr.mxu0 0.0
  %2061 = vmatpush2.msra.mxu0 %v1764
  %2062 = vmatprep.subr.mxu0 0.0
  %2063 = vmatpush2.msra.mxu0 %v1763
  %2064 = vmatprep.subr.mxu0 0.0
  %2065 = vmatpush2.msra.mxu0 %v1762
  %2066 = vmatprep.subr.mxu0 0.0
  %2067 = vmatpush2.msra.mxu0 %v1761
  %2068 = vmatprep.subr.mxu0 0.0
  %2069 = vmatpush2.msra.mxu0 %v1760
  %2070 = vmatprep.subr.mxu0 0.0
  %2071 = vmatpush2.msra.mxu0 %v1759
  %2072 = vmatprep.subr.mxu0 0.0
  %2073 = vmatpush2.msra.mxu0 %v1758
  %2074 = vmatprep.subr.mxu0 0.0
  %2075 = vmatpush2.msra.mxu0 %v1757
  %2076 = vmatprep.subr.mxu0 0.0
  %2077 = vmatpush2.msra.mxu0 %v1756
  %2078 = vmatprep.subr.mxu0 0.0
  %2079 = vmatpush2.msra.mxu0 %v1755
  %2080 = vmatprep.subr.mxu0 0.0
  %2081 = vmatpush2.msra.mxu0 %v1754
  %2082 = vmatprep.subr.mxu0 0.0
  %2083 = vmatpush2.msra.mxu0 %v1753
  %2084 = vmatprep.subr.mxu0 0.0
  %2085 = vmatpush2.msra.mxu0 %v1752
  %2086 = vmatprep.subr.mxu0 0.0
  %2087 = vmatpush2.msra.mxu0 %v1751
  %2088 = vmatprep.mubr.f32.mxu0 %v1514
  %2089 = vmatmul.mubr.f32.gmra.mxu0 %v1513
  %v2090 = vpop.f32.mrf.mxu0
  %v2091 = vadd.f32 %v1866, %v2090
  %v2092 = vpop.f32.mrf.mxu0
  %2093 = vmatprep.mubr.f32.mxu0 %v1520
  %2094 = vmatmul.mubr.f32.gmra.mxu0 %v1519
  %v2095 = vpop.f32.mrf.mxu0
  %v2096 = vadd.f32 %v1871, %v2095
  %v2097 = vpop.f32.mrf.mxu0
  %2098 = vmatprep.mubr.f32.mxu0 %v1526
  %2099 = vmatmul.mubr.f32.gmra.mxu0 %v1525
  %v2100 = vpop.f32.mrf.mxu0
  %v2101 = vadd.f32 %v1876, %v2100
  %v2102 = vpop.f32.mrf.mxu0
  %2103 = vmatprep.mubr.f32.mxu0 %v1532
  %2104 = vmatmul.mubr.f32.gmra.mxu0 %v1531
  %v2105 = vpop.f32.mrf.mxu0
  %v2106 = vadd.f32 %v1881, %v2105
  %v2107 = vpop.f32.mrf.mxu0
  %2108 = vmatprep.mubr.f32.mxu0 %v1538
  %2109 = vmatmul.mubr.f32.gmra.mxu0 %v1537
  %v2110 = vpop.f32.mrf.mxu0
  %v2111 = vadd.f32 %v1886, %v2110
  %v2112 = vpop.f32.mrf.mxu0
  %2113 = vmatprep.mubr.f32.mxu0 %v1544
  %2114 = vmatmul.mubr.f32.gmra.mxu0 %v1543
  %v2115 = vpop.f32.mrf.mxu0
  %v2116 = vadd.f32 %v1891, %v2115
  %v2117 = vpop.f32.mrf.mxu0
  %2118 = vmatprep.mubr.f32.mxu0 %v1550
  %2119 = vmatmul.mubr.f32.gmra.mxu0 %v1549
  %v2120 = vpop.f32.mrf.mxu0
  %v2121 = vadd.f32 %v1896, %v2120
  %v2122 = vpop.f32.mrf.mxu0
  %2123 = vmatprep.mubr.f32.mxu0 %v1556
  %2124 = vmatmul.mubr.f32.gmra.mxu0 %v1555
  %v2125 = vpop.f32.mrf.mxu0
  %v2126 = vadd.f32 %v1901, %v2125
  %v2127 = vpop.f32.mrf.mxu0
  %2128 = vmatprep.mubr.f32.mxu0 %v1562
  %2129 = vmatmul.mubr.f32.gmra.mxu0 %v1561
  %v2130 = vpop.f32.mrf.mxu0
  %v2131 = vadd.f32 %v1906, %v2130
  %v2132 = vpop.f32.mrf.mxu0
  %2133 = vmatprep.mubr.f32.mxu0 %v1568
  %2134 = vmatmul.mubr.f32.gmra.mxu0 %v1567
  %v2135 = vpop.f32.mrf.mxu0
  %v2136 = vadd.f32 %v1911, %v2135
  %v2137 = vpop.f32.mrf.mxu0
  %2138 = vmatprep.mubr.f32.mxu0 %v1574
  %2139 = vmatmul.mubr.f32.gmra.mxu0 %v1573
  %v2140 = vpop.f32.mrf.mxu0
  %v2141 = vadd.f32 %v1916, %v2140
  %v2142 = vpop.f32.mrf.mxu0
  %2143 = vmatprep.mubr.f32.mxu0 %v1580
  %2144 = vmatmul.mubr.f32.gmra.mxu0 %v1579
  %v2145 = vpop.f32.mrf.mxu0
  %v2146 = vadd.f32 %v1921, %v2145
  %v2147 = vpop.f32.mrf.mxu0
  %2148 = vmatprep.mubr.f32.mxu0 %v1586
  %2149 = vmatmul.mubr.f32.gmra.mxu0 %v1585
  %v2150 = vpop.f32.mrf.mxu0
  %v2151 = vadd.f32 %v1926, %v2150
  %v2152 = vpop.f32.mrf.mxu0
  %2153 = vmatprep.mubr.f32.mxu0 %v1592
  %2154 = vmatmul.mubr.f32.gmra.mxu0 %v1591
  %v2155 = vpop.f32.mrf.mxu0
  %v2156 = vadd.f32 %v1931, %v2155
  %v2157 = vpop.f32.mrf.mxu0
  %2158 = vmatprep.mubr.f32.mxu0 %v1598
  %2159 = vmatmul.mubr.f32.gmra.mxu0 %v1597
  %v2160 = vpop.f32.mrf.mxu0
  %v2161 = vadd.f32 %v1936, %v2160
  %v2162 = vpop.f32.mrf.mxu0
  %2163 = vmatprep.mubr.f32.mxu0 %v1604
  %2164 = vmatmul.mubr.f32.gmra.mxu0 %v1603
  %v2165 = vpop.f32.mrf.mxu0
  %v2166 = vadd.f32 %v1941, %v2165
  %v2167 = vpop.f32.mrf.mxu0
  %2168 = vmatprep.mubr.f32.mxu0 %v1610
  %2169 = vmatmul.mubr.f32.gmra.mxu0 %v1609
  %v2170 = vpop.f32.mrf.mxu0
  %v2171 = vadd.f32 %v1946, %v2170
  %v2172 = vpop.f32.mrf.mxu0
  %2173 = vmatprep.mubr.f32.mxu0 %v1616
  %2174 = vmatmul.mubr.f32.gmra.mxu0 %v1615
  %v2175 = vpop.f32.mrf.mxu0
  %v2176 = vadd.f32 %v1951, %v2175
  %v2177 = vpop.f32.mrf.mxu0
  %2178 = vmatprep.mubr.f32.mxu0 %v1622
  %2179 = vmatmul.mubr.f32.gmra.mxu0 %v1621
  %v2180 = vpop.f32.mrf.mxu0
  %v2181 = vadd.f32 %v1956, %v2180
  %v2182 = vpop.f32.mrf.mxu0
  %2183 = vmatprep.mubr.f32.mxu0 %v1628
  %2184 = vmatmul.mubr.f32.gmra.mxu0 %v1627
  %v2185 = vpop.f32.mrf.mxu0
  %v2186 = vadd.f32 %v1961, %v2185
  %v2187 = vpop.f32.mrf.mxu0
  %2188 = vmatprep.mubr.f32.mxu0 %v1634
  %2189 = vmatmul.mubr.f32.gmra.mxu0 %v1633
  %v2190 = vpop.f32.mrf.mxu0
  %v2191 = vadd.f32 %v1966, %v2190
  %v2192 = vpop.f32.mrf.mxu0
  %2193 = vmatprep.mubr.f32.mxu0 %v1640
  %2194 = vmatmul.mubr.f32.gmra.mxu0 %v1639
  %v2195 = vpop.f32.mrf.mxu0
  %v2196 = vadd.f32 %v1971, %v2195
  %v2197 = vpop.f32.mrf.mxu0
  %2198 = vmatprep.mubr.f32.mxu0 %v1646
  %2199 = vmatmul.mubr.f32.gmra.mxu0 %v1645
  %v2200 = vpop.f32.mrf.mxu0
  %v2201 = vadd.f32 %v1976, %v2200
  %v2202 = vpop.f32.mrf.mxu0
  %2203 = vmatprep.mubr.f32.mxu0 %v1652
  %2204 = vmatmul.mubr.f32.gmra.mxu0 %v1651
  %v2205 = vpop.f32.mrf.mxu0
  %v2206 = vadd.f32 %v1981, %v2205
  %v2207 = vpop.f32.mrf.mxu0
  %2208 = vmatprep.mubr.f32.mxu0 %v1658
  %2209 = vmatmul.mubr.f32.gmra.mxu0 %v1657
  %v2210 = vpop.f32.mrf.mxu0
  %v2211 = vadd.f32 %v1986, %v2210
  %v2212 = vpop.f32.mrf.mxu0
  %2213 = vmatprep.mubr.f32.mxu0 %v1664
  %2214 = vmatmul.mubr.f32.gmra.mxu0 %v1663
  %v2215 = vpop.f32.mrf.mxu0
  %v2216 = vadd.f32 %v1991, %v2215
  %v2217 = vpop.f32.mrf.mxu0
  %2218 = vmatprep.mubr.f32.mxu0 %v1670
  %2219 = vmatmul.mubr.f32.gmra.mxu0 %v1669
  %v2220 = vpop.f32.mrf.mxu0
  %v2221 = vadd.f32 %v1996, %v2220
  %v2222 = vpop.f32.mrf.mxu0
  %2223 = vmatprep.mubr.f32.mxu0 %v1676
  %2224 = vmatmul.mubr.f32.gmra.mxu0 %v1675
  %v2225 = vpop.f32.mrf.mxu0
  %v2226 = vadd.f32 %v2001, %v2225
  %v2227 = vpop.f32.mrf.mxu0
  %2228 = vmatprep.mubr.f32.mxu0 %v1682
  %2229 = vmatmul.mubr.f32.gmra.mxu0 %v1681
  %v2230 = vpop.f32.mrf.mxu0
  %v2231 = vadd.f32 %v2006, %v2230
  %v2232 = vpop.f32.mrf.mxu0
  %2233 = vmatprep.mubr.f32.mxu0 %v1688
  %2234 = vmatmul.mubr.f32.gmra.mxu0 %v1687
  %v2235 = vpop.f32.mrf.mxu0
  %v2236 = vadd.f32 %v2011, %v2235
  %v2237 = vpop.f32.mrf.mxu0
  %2238 = vmatprep.mubr.f32.mxu0 %v1694
  %2239 = vmatmul.mubr.f32.gmra.mxu0 %v1693
  %v2240 = vpop.f32.mrf.mxu0
  %v2241 = vadd.f32 %v2016, %v2240
  %v2242 = vpop.f32.mrf.mxu0
  %2243 = vmatprep.mubr.f32.mxu0 %v1700
  %2244 = vmatmul.mubr.f32.gmra.mxu0 %v1699
  %v2245 = vpop.f32.mrf.mxu0
  %v2246 = vadd.f32 %v2021, %v2245
  %v2247 = vpop.f32.mrf.mxu0
  %2248 = vdwg.mxu0
  %2249 = vmatprep.subr.mxu0 0.0
  %2250 = vmatpush1.msra.mxu0 %v1782
  %2251 = vmatprep.subr.mxu0 0.0
  %2252 = vmatpush1.msra.mxu0 %v1781
  %2253 = vmatprep.subr.mxu0 0.0
  %2254 = vmatpush1.msra.mxu0 %v1780
  %2255 = vmatprep.subr.mxu0 0.0
  %2256 = vmatpush1.msra.mxu0 %v1779
  %2257 = vmatprep.subr.mxu0 0.0
  %2258 = vmatpush1.msra.mxu0 %v1778
  %2259 = vmatprep.subr.mxu0 0.0
  %2260 = vmatpush1.msra.mxu0 %v1777
  %2261 = vmatprep.subr.mxu0 0.0
  %2262 = vmatpush1.msra.mxu0 %v1776
  %2263 = vmatprep.subr.mxu0 0.0
  %2264 = vmatpush1.msra.mxu0 %v1775
  %2265 = vmatprep.subr.mxu0 0.0
  %2266 = vmatpush1.msra.mxu0 %v1774
  %2267 = vmatprep.subr.mxu0 0.0
  %2268 = vmatpush1.msra.mxu0 %v1773
  %2269 = vmatprep.subr.mxu0 0.0
  %2270 = vmatpush1.msra.mxu0 %v1772
  %2271 = vmatprep.subr.mxu0 0.0
  %2272 = vmatpush1.msra.mxu0 %v1771
  %2273 = vmatprep.subr.mxu0 0.0
  %2274 = vmatpush1.msra.mxu0 %v1770
  %2275 = vmatprep.subr.mxu0 0.0
  %2276 = vmatpush1.msra.mxu0 %v1769
  %2277 = vmatprep.subr.mxu0 0.0
  %2278 = vmatpush1.msra.mxu0 %v1768
  %2279 = vmatprep.subr.mxu0 0.0
  %2280 = vmatpush1.msra.mxu0 %v1767
  %2281 = vmatprep.subr.mxu0 0.0
  %2282 = vmatpush2.msra.mxu0 %v1798
  %2283 = vmatprep.subr.mxu0 0.0
  %2284 = vmatpush2.msra.mxu0 %v1797
  %2285 = vmatprep.subr.mxu0 0.0
  %2286 = vmatpush2.msra.mxu0 %v1796
  %2287 = vmatprep.subr.mxu0 0.0
  %2288 = vmatpush2.msra.mxu0 %v1795
  %2289 = vmatprep.subr.mxu0 0.0
  %2290 = vmatpush2.msra.mxu0 %v1794
  %2291 = vmatprep.subr.mxu0 0.0
  %2292 = vmatpush2.msra.mxu0 %v1793
  %2293 = vmatprep.subr.mxu0 0.0
  %2294 = vmatpush2.msra.mxu0 %v1792
  %2295 = vmatprep.subr.mxu0 0.0
  %2296 = vmatpush2.msra.mxu0 %v1791
  %2297 = vmatprep.subr.mxu0 0.0
  %2298 = vmatpush2.msra.mxu0 %v1790
  %2299 = vmatprep.subr.mxu0 0.0
  %2300 = vmatpush2.msra.mxu0 %v1789
  %2301 = vmatprep.subr.mxu0 0.0
  %2302 = vmatpush2.msra.mxu0 %v1788
  %2303 = vmatprep.subr.mxu0 0.0
  %2304 = vmatpush2.msra.mxu0 %v1787
  %2305 = vmatprep.subr.mxu0 0.0
  %2306 = vmatpush2.msra.mxu0 %v1786
  %2307 = vmatprep.subr.mxu0 0.0
  %2308 = vmatpush2.msra.mxu0 %v1785
  %2309 = vmatprep.subr.mxu0 0.0
  %2310 = vmatpush2.msra.mxu0 %v1784
  %2311 = vmatprep.subr.mxu0 0.0
  %2312 = vmatpush2.msra.mxu0 %v1783
  %2313 = vmatprep.mubr.f32.mxu0 %v1516
  %2314 = vmatmul.mubr.f32.gmra.mxu0 %v1515
  %v2315 = vpop.f32.mrf.mxu0
  %v2316 = vadd.f32 %v2091, %v2315
  %v2317 = vpop.f32.mrf.mxu0
  %2318 = vmatprep.mubr.f32.mxu0 %v1522
  %2319 = vmatmul.mubr.f32.gmra.mxu0 %v1521
  %v2320 = vpop.f32.mrf.mxu0
  %v2321 = vadd.f32 %v2096, %v2320
  %v2322 = vpop.f32.mrf.mxu0
  %2323 = vmatprep.mubr.f32.mxu0 %v1528
  %2324 = vmatmul.mubr.f32.gmra.mxu0 %v1527
  %v2325 = vpop.f32.mrf.mxu0
  %v2326 = vadd.f32 %v2101, %v2325
  %v2327 = vpop.f32.mrf.mxu0
  %2328 = vmatprep.mubr.f32.mxu0 %v1534
  %2329 = vmatmul.mubr.f32.gmra.mxu0 %v1533
  %v2330 = vpop.f32.mrf.mxu0
  %v2331 = vadd.f32 %v2106, %v2330
  %v2332 = vpop.f32.mrf.mxu0
  %2333 = vmatprep.mubr.f32.mxu0 %v1540
  %2334 = vmatmul.mubr.f32.gmra.mxu0 %v1539
  %v2335 = vpop.f32.mrf.mxu0
  %v2336 = vadd.f32 %v2111, %v2335
  %v2337 = vpop.f32.mrf.mxu0
  %2338 = vmatprep.mubr.f32.mxu0 %v1546
  %2339 = vmatmul.mubr.f32.gmra.mxu0 %v1545
  %v2340 = vpop.f32.mrf.mxu0
  %v2341 = vadd.f32 %v2116, %v2340
  %v2342 = vpop.f32.mrf.mxu0
  %2343 = vmatprep.mubr.f32.mxu0 %v1552
  %2344 = vmatmul.mubr.f32.gmra.mxu0 %v1551
  %v2345 = vpop.f32.mrf.mxu0
  %v2346 = vadd.f32 %v2121, %v2345
  %v2347 = vpop.f32.mrf.mxu0
  %2348 = vmatprep.mubr.f32.mxu0 %v1558
  %2349 = vmatmul.mubr.f32.gmra.mxu0 %v1557
  %v2350 = vpop.f32.mrf.mxu0
  %v2351 = vadd.f32 %v2126, %v2350
  %v2352 = vpop.f32.mrf.mxu0
  %2353 = vmatprep.mubr.f32.mxu0 %v1564
  %2354 = vmatmul.mubr.f32.gmra.mxu0 %v1563
  %v2355 = vpop.f32.mrf.mxu0
  %v2356 = vadd.f32 %v2131, %v2355
  %v2357 = vpop.f32.mrf.mxu0
  %2358 = vmatprep.mubr.f32.mxu0 %v1570
  %2359 = vmatmul.mubr.f32.gmra.mxu0 %v1569
  %v2360 = vpop.f32.mrf.mxu0
  %v2361 = vadd.f32 %v2136, %v2360
  %v2362 = vpop.f32.mrf.mxu0
  %2363 = vmatprep.mubr.f32.mxu0 %v1576
  %2364 = vmatmul.mubr.f32.gmra.mxu0 %v1575
  %v2365 = vpop.f32.mrf.mxu0
  %v2366 = vadd.f32 %v2141, %v2365
  %v2367 = vpop.f32.mrf.mxu0
  %2368 = vmatprep.mubr.f32.mxu0 %v1582
  %2369 = vmatmul.mubr.f32.gmra.mxu0 %v1581
  %v2370 = vpop.f32.mrf.mxu0
  %v2371 = vadd.f32 %v2146, %v2370
  %v2372 = vpop.f32.mrf.mxu0
  %2373 = vmatprep.mubr.f32.mxu0 %v1588
  %2374 = vmatmul.mubr.f32.gmra.mxu0 %v1587
  %v2375 = vpop.f32.mrf.mxu0
  %v2376 = vadd.f32 %v2151, %v2375
  %v2377 = vpop.f32.mrf.mxu0
  %2378 = vmatprep.mubr.f32.mxu0 %v1594
  %2379 = vmatmul.mubr.f32.gmra.mxu0 %v1593
  %v2380 = vpop.f32.mrf.mxu0
  %v2381 = vadd.f32 %v2156, %v2380
  %v2382 = vpop.f32.mrf.mxu0
  %2383 = vmatprep.mubr.f32.mxu0 %v1600
  %2384 = vmatmul.mubr.f32.gmra.mxu0 %v1599
  %v2385 = vpop.f32.mrf.mxu0
  %v2386 = vadd.f32 %v2161, %v2385
  %v2387 = vpop.f32.mrf.mxu0
  %2388 = vmatprep.mubr.f32.mxu0 %v1606
  %2389 = vmatmul.mubr.f32.gmra.mxu0 %v1605
  %v2390 = vpop.f32.mrf.mxu0
  %v2391 = vadd.f32 %v2166, %v2390
  %v2392 = vpop.f32.mrf.mxu0
  %2393 = vmatprep.mubr.f32.mxu0 %v1612
  %2394 = vmatmul.mubr.f32.gmra.mxu0 %v1611
  %v2395 = vpop.f32.mrf.mxu0
  %v2396 = vadd.f32 %v2171, %v2395
  %v2397 = vpop.f32.mrf.mxu0
  %2398 = vmatprep.mubr.f32.mxu0 %v1618
  %2399 = vmatmul.mubr.f32.gmra.mxu0 %v1617
  %v2400 = vpop.f32.mrf.mxu0
  %v2401 = vadd.f32 %v2176, %v2400
  %v2402 = vpop.f32.mrf.mxu0
  %2403 = vmatprep.mubr.f32.mxu0 %v1624
  %2404 = vmatmul.mubr.f32.gmra.mxu0 %v1623
  %v2405 = vpop.f32.mrf.mxu0
  %v2406 = vadd.f32 %v2181, %v2405
  %v2407 = vpop.f32.mrf.mxu0
  %2408 = vmatprep.mubr.f32.mxu0 %v1630
  %2409 = vmatmul.mubr.f32.gmra.mxu0 %v1629
  %v2410 = vpop.f32.mrf.mxu0
  %v2411 = vadd.f32 %v2186, %v2410
  %v2412 = vpop.f32.mrf.mxu0
  %2413 = vmatprep.mubr.f32.mxu0 %v1636
  %2414 = vmatmul.mubr.f32.gmra.mxu0 %v1635
  %v2415 = vpop.f32.mrf.mxu0
  %v2416 = vadd.f32 %v2191, %v2415
  %v2417 = vpop.f32.mrf.mxu0
  %2418 = vmatprep.mubr.f32.mxu0 %v1642
  %2419 = vmatmul.mubr.f32.gmra.mxu0 %v1641
  %v2420 = vpop.f32.mrf.mxu0
  %v2421 = vadd.f32 %v2196, %v2420
  %v2422 = vpop.f32.mrf.mxu0
  %2423 = vmatprep.mubr.f32.mxu0 %v1648
  %2424 = vmatmul.mubr.f32.gmra.mxu0 %v1647
  %v2425 = vpop.f32.mrf.mxu0
  %v2426 = vadd.f32 %v2201, %v2425
  %v2427 = vpop.f32.mrf.mxu0
  %2428 = vmatprep.mubr.f32.mxu0 %v1654
  %2429 = vmatmul.mubr.f32.gmra.mxu0 %v1653
  %v2430 = vpop.f32.mrf.mxu0
  %v2431 = vadd.f32 %v2206, %v2430
  %v2432 = vpop.f32.mrf.mxu0
  %2433 = vmatprep.mubr.f32.mxu0 %v1660
  %2434 = vmatmul.mubr.f32.gmra.mxu0 %v1659
  %v2435 = vpop.f32.mrf.mxu0
  %v2436 = vadd.f32 %v2211, %v2435
  %v2437 = vpop.f32.mrf.mxu0
  %2438 = vmatprep.mubr.f32.mxu0 %v1666
  %2439 = vmatmul.mubr.f32.gmra.mxu0 %v1665
  %v2440 = vpop.f32.mrf.mxu0
  %v2441 = vadd.f32 %v2216, %v2440
  %v2442 = vpop.f32.mrf.mxu0
  %2443 = vmatprep.mubr.f32.mxu0 %v1672
  %2444 = vmatmul.mubr.f32.gmra.mxu0 %v1671
  %v2445 = vpop.f32.mrf.mxu0
  %v2446 = vadd.f32 %v2221, %v2445
  %v2447 = vpop.f32.mrf.mxu0
  %2448 = vmatprep.mubr.f32.mxu0 %v1678
  %2449 = vmatmul.mubr.f32.gmra.mxu0 %v1677
  %v2450 = vpop.f32.mrf.mxu0
  %v2451 = vadd.f32 %v2226, %v2450
  %v2452 = vpop.f32.mrf.mxu0
  %2453 = vmatprep.mubr.f32.mxu0 %v1684
  %2454 = vmatmul.mubr.f32.gmra.mxu0 %v1683
  %v2455 = vpop.f32.mrf.mxu0
  %v2456 = vadd.f32 %v2231, %v2455
  %v2457 = vpop.f32.mrf.mxu0
  %2458 = vmatprep.mubr.f32.mxu0 %v1690
  %2459 = vmatmul.mubr.f32.gmra.mxu0 %v1689
  %v2460 = vpop.f32.mrf.mxu0
  %v2461 = vadd.f32 %v2236, %v2460
  %v2462 = vpop.f32.mrf.mxu0
  %2463 = vmatprep.mubr.f32.mxu0 %v1696
  %2464 = vmatmul.mubr.f32.gmra.mxu0 %v1695
  %v2465 = vpop.f32.mrf.mxu0
  %v2466 = vadd.f32 %v2241, %v2465
  %v2467 = vpop.f32.mrf.mxu0
  %2468 = vmatprep.mubr.f32.mxu0 %v1702
  %2469 = vmatmul.mubr.f32.gmra.mxu0 %v1701
  %v2470 = vpop.f32.mrf.mxu0
  %v2471 = vadd.f32 %v2246, %v2470
  %v2472 = vpop.f32.mrf.mxu0
  %2473 = vdwg.mxu0
  %v2474 = vadd.f32 %v2316, %v2321
  %v2475 = vadd.f32 %v2474, %v2326
  %v2476 = vadd.f32 %v2475, %v2331
  %v2477 = vadd.f32 %v2476, %v2336
  %v2478 = vadd.f32 %v2477, %v2341
  %v2479 = vadd.f32 %v2478, %v2346
  %v2480 = vadd.f32 %v2479, %v2351
  %v2481 = vadd.f32 %v2480, %v2356
  %v2482 = vadd.f32 %v2481, %v2361
  %v2483 = vadd.f32 %v2482, %v2366
  %v2484 = vadd.f32 %v2483, %v2371
  %v2485 = vadd.f32 %v2484, %v2376
  %v2486 = vadd.f32 %v2485, %v2381
  %v2487 = vadd.f32 %v2486, %v2386
  %v2488 = vadd.f32 %v2487, %v2391
  %v2489 = vadd.f32 %v2488, %v2396
  %v2490 = vadd.f32 %v2489, %v2401
  %v2491 = vadd.f32 %v2490, %v2406
  %v2492 = vadd.f32 %v2491, %v2411
  %v2493 = vadd.f32 %v2492, %v2416
  %v2494 = vadd.f32 %v2493, %v2421
  %v2495 = vadd.f32 %v2494, %v2426
  %v2496 = vadd.f32 %v2495, %v2431
  %v2497 = vadd.f32 %v2496, %v2436
  %v2498 = vadd.f32 %v2497, %v2441
  %v2499 = vadd.f32 %v2498, %v2446
  %v2500 = vadd.f32 %v2499, %v2451
  %v2501 = vadd.f32 %v2500, %v2456
  %v2502 = vadd.f32 %v2501, %v2461
  %v2503 = vadd.f32 %v2502, %v2466
  %v2504 = vadd.f32 %v2503, %v2471
  %v2505 = vrot.slane %v2504, 4
  %v2506 = vadd.f32 %v2504, %v2505
  %v2507 = vrot.slane %v2506, 2
  %v2508 = vadd.f32 %v2506, %v2507
  %v2509 = vrot.slane %v2508, 1
  %v2510 = vadd.f32 %v2508, %v2509
  %v2511 = vmul.f32 %v2510, 0.00390625
  %2513 = vrot.lane.b32.xlu0 %v2511, 64
  %v2514 = vpop.permute.xlu0 %2513
  %v2516 = vadd.f32 %v2511, %v2514
  %v2517 = vmul.f32 %v2516, 0.5
  %2519 = vrot.lane.b32.xlu0 %v2517, 64
  %v2520 = vpop.permute.xlu0 %2519
  %v2522 = vsel %vm44, %v2517, %v2520
  %v2523 = vlaneseq
  %v2524 = vshrl.u32 %v2523, 7
  %v2525 = vsub.s32 0, %v2524
  %v2526 = vrot.slane %v2522, %v2525
  %v2527 = vsub.f32 %v2316, %v2526
  %v2528 = vsub.f32 %v2321, %v2526
  %v2529 = vsub.f32 %v2326, %v2526
  %v2530 = vsub.f32 %v2331, %v2526
  %v2531 = vsub.f32 %v2336, %v2526
  %v2532 = vsub.f32 %v2341, %v2526
  %v2533 = vsub.f32 %v2346, %v2526
  %v2534 = vsub.f32 %v2351, %v2526
  %v2535 = vsub.f32 %v2356, %v2526
  %v2536 = vsub.f32 %v2361, %v2526
  %v2537 = vsub.f32 %v2366, %v2526
  %v2538 = vsub.f32 %v2371, %v2526
  %v2539 = vsub.f32 %v2376, %v2526
  %v2540 = vsub.f32 %v2381, %v2526
  %v2541 = vsub.f32 %v2386, %v2526
  %v2542 = vsub.f32 %v2391, %v2526
  %v2543 = vsub.f32 %v2396, %v2526
  %v2544 = vsub.f32 %v2401, %v2526
  %v2545 = vsub.f32 %v2406, %v2526
  %v2546 = vsub.f32 %v2411, %v2526
  %v2547 = vsub.f32 %v2416, %v2526
  %v2548 = vsub.f32 %v2421, %v2526
  %v2549 = vsub.f32 %v2426, %v2526
  %v2550 = vsub.f32 %v2431, %v2526
  %v2551 = vsub.f32 %v2436, %v2526
  %v2552 = vsub.f32 %v2441, %v2526
  %v2553 = vsub.f32 %v2446, %v2526
  %v2554 = vsub.f32 %v2451, %v2526
  %v2555 = vsub.f32 %v2456, %v2526
  %v2556 = vsub.f32 %v2461, %v2526
  %v2557 = vsub.f32 %v2466, %v2526
  %v2558 = vsub.f32 %v2471, %v2526
  %v2559 = vmul.f32 %v2527, %v2527
  %v2560 = vmul.f32 %v2528, %v2528
  %v2561 = vmul.f32 %v2529, %v2529
  %v2562 = vmul.f32 %v2530, %v2530
  %v2563 = vmul.f32 %v2531, %v2531
  %v2564 = vmul.f32 %v2532, %v2532
  %v2565 = vmul.f32 %v2533, %v2533
  %v2566 = vmul.f32 %v2534, %v2534
  %v2567 = vmul.f32 %v2535, %v2535
  %v2568 = vmul.f32 %v2536, %v2536
  %v2569 = vmul.f32 %v2537, %v2537
  %v2570 = vmul.f32 %v2538, %v2538
  %v2571 = vmul.f32 %v2539, %v2539
  %v2572 = vmul.f32 %v2540, %v2540
  %v2573 = vmul.f32 %v2541, %v2541
  %v2574 = vmul.f32 %v2542, %v2542
  %v2575 = vmul.f32 %v2543, %v2543
  %v2576 = vmul.f32 %v2544, %v2544
  %v2577 = vmul.f32 %v2545, %v2545
  %v2578 = vmul.f32 %v2546, %v2546
  %v2579 = vmul.f32 %v2547, %v2547
  %v2580 = vmul.f32 %v2548, %v2548
  %v2581 = vmul.f32 %v2549, %v2549
  %v2582 = vmul.f32 %v2550, %v2550
  %v2583 = vmul.f32 %v2551, %v2551
  %v2584 = vmul.f32 %v2552, %v2552
  %v2585 = vmul.f32 %v2553, %v2553
  %v2586 = vmul.f32 %v2554, %v2554
  %v2587 = vmul.f32 %v2555, %v2555
  %v2588 = vmul.f32 %v2556, %v2556
  %v2589 = vmul.f32 %v2557, %v2557
  %v2590 = vmul.f32 %v2558, %v2558
  %v2591 = vadd.f32 %v2559, %v2560
  %v2592 = vadd.f32 %v2591, %v2561
  %v2593 = vadd.f32 %v2592, %v2562
  %v2594 = vadd.f32 %v2593, %v2563
  %v2595 = vadd.f32 %v2594, %v2564
  %v2596 = vadd.f32 %v2595, %v2565
  %v2597 = vadd.f32 %v2596, %v2566
  %v2598 = vadd.f32 %v2597, %v2567
  %v2599 = vadd.f32 %v2598, %v2568
  %v2600 = vadd.f32 %v2599, %v2569
  %v2601 = vadd.f32 %v2600, %v2570
  %v2602 = vadd.f32 %v2601, %v2571
  %v2603 = vadd.f32 %v2602, %v2572
  %v2604 = vadd.f32 %v2603, %v2573
  %v2605 = vadd.f32 %v2604, %v2574
  %v2606 = vadd.f32 %v2605, %v2575
  %v2607 = vadd.f32 %v2606, %v2576
  %v2608 = vadd.f32 %v2607, %v2577
  %v2609 = vadd.f32 %v2608, %v2578
  %v2610 = vadd.f32 %v2609, %v2579
  %v2611 = vadd.f32 %v2610, %v2580
  %v2612 = vadd.f32 %v2611, %v2581
  %v2613 = vadd.f32 %v2612, %v2582
  %v2614 = vadd.f32 %v2613, %v2583
  %v2615 = vadd.f32 %v2614, %v2584
  %v2616 = vadd.f32 %v2615, %v2585
  %v2617 = vadd.f32 %v2616, %v2586
  %v2618 = vadd.f32 %v2617, %v2587
  %v2619 = vadd.f32 %v2618, %v2588
  %v2620 = vadd.f32 %v2619, %v2589
  %v2621 = vadd.f32 %v2620, %v2590
  %v2622 = vrot.slane %v2621, 4
  %v2623 = vadd.f32 %v2621, %v2622
  %v2624 = vrot.slane %v2623, 2
  %v2625 = vadd.f32 %v2623, %v2624
  %v2626 = vrot.slane %v2625, 1
  %v2627 = vadd.f32 %v2625, %v2626
  %v2628 = vmul.f32 %v2627, 0.00390625
  %2630 = vrot.lane.b32.xlu0 %v2628, 64
  %v2631 = vpop.permute.xlu0 %2630
  %v2633 = vadd.f32 %v2628, %v2631
  %v2634 = vmul.f32 %v2633, 0.5
  %2636 = vrot.lane.b32.xlu0 %v2634, 64
  %v2637 = vpop.permute.xlu0 %2636
  %v2639 = vsel %vm44, %v2634, %v2637
  %v2640 = vadd.f32 %v2639, 1e-05
  %v2641 = vrsqrt.pop %v2640
  %v2642 = vmul.f32 %v60, %v2641
  %v2643 = vlaneseq
  %v2644 = vshrl.u32 %v2643, 7
  %v2645 = vsub.s32 0, %v2644
  %v2646 = vrot.slane %v2642, %v2645
  %v2647 = vmul.f32 %v2527, %v2646
  %v2648 = vmul.f32 %v2528, %v2646
  %v2649 = vmul.f32 %v2529, %v2646
  %v2650 = vmul.f32 %v2530, %v2646
  %v2651 = vmul.f32 %v2531, %v2646
  %v2652 = vmul.f32 %v2532, %v2646
  %v2653 = vmul.f32 %v2533, %v2646
  %v2654 = vmul.f32 %v2534, %v2646
  %v2655 = vmul.f32 %v2535, %v2646
  %v2656 = vmul.f32 %v2536, %v2646
  %v2657 = vmul.f32 %v2537, %v2646
  %v2658 = vmul.f32 %v2538, %v2646
  %v2659 = vmul.f32 %v2539, %v2646
  %v2660 = vmul.f32 %v2540, %v2646
  %v2661 = vmul.f32 %v2541, %v2646
  %v2662 = vmul.f32 %v2542, %v2646
  %v2663 = vmul.f32 %v2543, %v2646
  %v2664 = vmul.f32 %v2544, %v2646
  %v2665 = vmul.f32 %v2545, %v2646
  %v2666 = vmul.f32 %v2546, %v2646
  %v2667 = vmul.f32 %v2547, %v2646
  %v2668 = vmul.f32 %v2548, %v2646
  %v2669 = vmul.f32 %v2549, %v2646
  %v2670 = vmul.f32 %v2550, %v2646
  %v2671 = vmul.f32 %v2551, %v2646
  %v2672 = vmul.f32 %v2552, %v2646
  %v2673 = vmul.f32 %v2553, %v2646
  %v2674 = vmul.f32 %v2554, %v2646
  %v2675 = vmul.f32 %v2555, %v2646
  %v2676 = vmul.f32 %v2556, %v2646
  %v2677 = vmul.f32 %v2557, %v2646
  %v2678 = vmul.f32 %v2558, %v2646
  %v2679 = vlaneseq
  %v2680 = vshrl.u32 %v2679, 7
  %v2681 = vsub.s32 0, %v2680
  %v2682 = vrot.slane %v61, %v2681
  %v2683 = vadd.f32 %v2647, %v2682
  %v2684 = vadd.f32 %v2648, %v2682
  %v2685 = vadd.f32 %v2649, %v2682
  %v2686 = vadd.f32 %v2650, %v2682
  %v2687 = vadd.f32 %v2651, %v2682
  %v2688 = vadd.f32 %v2652, %v2682
  %v2689 = vadd.f32 %v2653, %v2682
  %v2690 = vadd.f32 %v2654, %v2682
  %v2691 = vadd.f32 %v2655, %v2682
  %v2692 = vadd.f32 %v2656, %v2682
  %v2693 = vadd.f32 %v2657, %v2682
  %v2694 = vadd.f32 %v2658, %v2682
  %v2695 = vadd.f32 %v2659, %v2682
  %v2696 = vadd.f32 %v2660, %v2682
  %v2697 = vadd.f32 %v2661, %v2682
  %v2698 = vadd.f32 %v2662, %v2682
  %v2699 = vadd.f32 %v2663, %v2682
  %v2700 = vadd.f32 %v2664, %v2682
  %v2701 = vadd.f32 %v2665, %v2682
  %v2702 = vadd.f32 %v2666, %v2682
  %v2703 = vadd.f32 %v2667, %v2682
  %v2704 = vadd.f32 %v2668, %v2682
  %v2705 = vadd.f32 %v2669, %v2682
  %v2706 = vadd.f32 %v2670, %v2682
  %v2707 = vadd.f32 %v2671, %v2682
  %v2708 = vadd.f32 %v2672, %v2682
  %v2709 = vadd.f32 %v2673, %v2682
  %v2710 = vadd.f32 %v2674, %v2682
  %v2711 = vadd.f32 %v2675, %v2682
  %v2712 = vadd.f32 %v2676, %v2682
  %v2713 = vadd.f32 %v2677, %v2682
  %v2714 = vadd.f32 %v2678, %v2682
  %vm2715 = vcmp.ge.f32.partialorder %v2683, 0.0
  %vm2716 = vcmp.ge.f32.partialorder %v2684, 0.0
  %vm2717 = vcmp.ge.f32.partialorder %v2685, 0.0
  %vm2718 = vcmp.ge.f32.partialorder %v2686, 0.0
  %vm2719 = vcmp.ge.f32.partialorder %v2687, 0.0
  %vm2720 = vcmp.ge.f32.partialorder %v2688, 0.0
  %vm2721 = vcmp.ge.f32.partialorder %v2689, 0.0
  %vm2722 = vcmp.ge.f32.partialorder %v2690, 0.0
  %vm2723 = vcmp.ge.f32.partialorder %v2691, 0.0
  %vm2724 = vcmp.ge.f32.partialorder %v2692, 0.0
  %vm2725 = vcmp.ge.f32.partialorder %v2693, 0.0
  %vm2726 = vcmp.ge.f32.partialorder %v2694, 0.0
  %vm2727 = vcmp.ge.f32.partialorder %v2695, 0.0
  %vm2728 = vcmp.ge.f32.partialorder %v2696, 0.0
  %vm2729 = vcmp.ge.f32.partialorder %v2697, 0.0
  %vm2730 = vcmp.ge.f32.partialorder %v2698, 0.0
  %vm2731 = vcmp.ge.f32.partialorder %v2699, 0.0
  %vm2732 = vcmp.ge.f32.partialorder %v2700, 0.0
  %vm2733 = vcmp.ge.f32.partialorder %v2701, 0.0
  %vm2734 = vcmp.ge.f32.partialorder %v2702, 0.0
  %vm2735 = vcmp.ge.f32.partialorder %v2703, 0.0
  %vm2736 = vcmp.ge.f32.partialorder %v2704, 0.0
  %vm2737 = vcmp.ge.f32.partialorder %v2705, 0.0
  %vm2738 = vcmp.ge.f32.partialorder %v2706, 0.0
  %vm2739 = vcmp.ge.f32.partialorder %v2707, 0.0
  %vm2740 = vcmp.ge.f32.partialorder %v2708, 0.0
  %vm2741 = vcmp.ge.f32.partialorder %v2709, 0.0
  %vm2742 = vcmp.ge.f32.partialorder %v2710, 0.0
  %vm2743 = vcmp.ge.f32.partialorder %v2711, 0.0
  %vm2744 = vcmp.ge.f32.partialorder %v2712, 0.0
  %vm2745 = vcmp.ge.f32.partialorder %v2713, 0.0
  %vm2746 = vcmp.ge.f32.partialorder %v2714, 0.0
  %v2747 = vmul.f32 %v2683, 0.2
  %v2748 = vmul.f32 %v2684, 0.2
  %v2749 = vmul.f32 %v2685, 0.2
  %v2750 = vmul.f32 %v2686, 0.2
  %v2751 = vmul.f32 %v2687, 0.2
  %v2752 = vmul.f32 %v2688, 0.2
  %v2753 = vmul.f32 %v2689, 0.2
  %v2754 = vmul.f32 %v2690, 0.2
  %v2755 = vmul.f32 %v2691, 0.2
  %v2756 = vmul.f32 %v2692, 0.2
  %v2757 = vmul.f32 %v2693, 0.2
  %v2758 = vmul.f32 %v2694, 0.2
  %v2759 = vmul.f32 %v2695, 0.2
  %v2760 = vmul.f32 %v2696, 0.2
  %v2761 = vmul.f32 %v2697, 0.2
  %v2762 = vmul.f32 %v2698, 0.2
  %v2763 = vmul.f32 %v2699, 0.2
  %v2764 = vmul.f32 %v2700, 0.2
  %v2765 = vmul.f32 %v2701, 0.2
  %v2766 = vmul.f32 %v2702, 0.2
  %v2767 = vmul.f32 %v2703, 0.2
  %v2768 = vmul.f32 %v2704, 0.2
  %v2769 = vmul.f32 %v2705, 0.2
  %v2770 = vmul.f32 %v2706, 0.2
  %v2771 = vmul.f32 %v2707, 0.2
  %v2772 = vmul.f32 %v2708, 0.2
  %v2773 = vmul.f32 %v2709, 0.2
  %v2774 = vmul.f32 %v2710, 0.2
  %v2775 = vmul.f32 %v2711, 0.2
  %v2776 = vmul.f32 %v2712, 0.2
  %v2777 = vmul.f32 %v2713, 0.2
  %v2778 = vmul.f32 %v2714, 0.2
  %v2779 = vsel %vm2715, %v2683, %v2747
  %v2780 = vsel %vm2716, %v2684, %v2748
  %v2781 = vsel %vm2717, %v2685, %v2749
  %v2782 = vsel %vm2718, %v2686, %v2750
  %v2783 = vsel %vm2719, %v2687, %v2751
  %v2784 = vsel %vm2720, %v2688, %v2752
  %v2785 = vsel %vm2721, %v2689, %v2753
  %v2786 = vsel %vm2722, %v2690, %v2754
  %v2787 = vsel %vm2723, %v2691, %v2755
  %v2788 = vsel %vm2724, %v2692, %v2756
  %v2789 = vsel %vm2725, %v2693, %v2757
  %v2790 = vsel %vm2726, %v2694, %v2758
  %v2791 = vsel %vm2727, %v2695, %v2759
  %v2792 = vsel %vm2728, %v2696, %v2760
  %v2793 = vsel %vm2729, %v2697, %v2761
  %v2794 = vsel %vm2730, %v2698, %v2762
  %v2795 = vsel %vm2731, %v2699, %v2763
  %v2796 = vsel %vm2732, %v2700, %v2764
  %v2797 = vsel %vm2733, %v2701, %v2765
  %v2798 = vsel %vm2734, %v2702, %v2766
  %v2799 = vsel %vm2735, %v2703, %v2767
  %v2800 = vsel %vm2736, %v2704, %v2768
  %v2801 = vsel %vm2737, %v2705, %v2769
  %v2802 = vsel %vm2738, %v2706, %v2770
  %v2803 = vsel %vm2739, %v2707, %v2771
  %v2804 = vsel %vm2740, %v2708, %v2772
  %v2805 = vsel %vm2741, %v2709, %v2773
  %v2806 = vsel %vm2742, %v2710, %v2774
  %v2807 = vsel %vm2743, %v2711, %v2775
  %v2808 = vsel %vm2744, %v2712, %v2776
  %v2809 = vsel %vm2745, %v2713, %v2777
  %v2810 = vsel %vm2746, %v2714, %v2778
  %v2815 = vrot.slane %v2779, 7
  %v2816 = vrot.slane %v2780, 7
  %v2817 = vsel %vm72, %v2815, %v2816
  %v2818 = vrot.slane %v2781, 7
  %v2819 = vrot.slane %v2782, 7
  %v2820 = vsel %vm72, %v2818, %v2819
  %2821 = vrot.lane.b32.xlu0 %v2815, 64
  %v2822 = vpop.permute.xlu0 %2821
  %2823 = vrot.lane.b32.xlu0 %v2817, 64
  %v2824 = vpop.permute.xlu0 %2823
  %2825 = vrot.lane.b32.xlu0 %v2816, 64
  %v2826 = vpop.permute.xlu0 %2825
  %2827 = vrot.lane.b32.xlu0 %v2818, 64
  %v2828 = vpop.permute.xlu0 %2827
  %2829 = vrot.lane.b32.xlu0 %v2820, 64
  %v2830 = vpop.permute.xlu0 %2829
  %2831 = vrot.lane.b32.xlu0 %v2819, 64
  %v2832 = vpop.permute.xlu0 %2831
  %2839 = vst.msk [vmem:[#allocation2] sm:$0xfe] %vm97, %v2822
  %2840 = vst.msk [vmem:[#allocation2 + $0x8] sm:$0xfe] %vm99, %v2822
  %2841 = vst.msk [vmem:[#allocation2 + $0x48] sm:$0xff] %vm52, %v2824
  %2842 = vst.msk [vmem:[#allocation2 + $0x50] sm:$0xff] %vm44, %v2824
  %2843 = vst.msk [vmem:[#allocation2 + $0x90] sm:$0x1] %vm103, %v2826
  %2844 = vst.msk [vmem:[#allocation2 + $0x98] sm:$0x1] %vm105, %v2826
  %2845 = vst.msk [vmem:[#allocation2 + $0xd8] sm:$0xfe] %vm97, %v2828
  %2846 = vst.msk [vmem:[#allocation2 + $0xe0] sm:$0xfe] %vm99, %v2828
  %2847 = vst.msk [vmem:[#allocation2 + $0x120] sm:$0xff] %vm52, %v2830
  %2848 = vst.msk [vmem:[#allocation2 + $0x128] sm:$0xff] %vm44, %v2830
  %2849 = vst.msk [vmem:[#allocation2 + $0x168] sm:$0x1] %vm103, %v2832
  %2850 = vst.msk [vmem:[#allocation2 + $0x170] sm:$0x1] %vm105, %v2832
  %v2855 = vrot.slane %v2783, 7
  %v2856 = vrot.slane %v2784, 7
  %v2857 = vsel %vm72, %v2855, %v2856
  %v2858 = vrot.slane %v2785, 7
  %v2859 = vrot.slane %v2786, 7
  %v2860 = vsel %vm72, %v2858, %v2859
  %2861 = vrot.lane.b32.xlu0 %v2855, 64
  %v2862 = vpop.permute.xlu0 %2861
  %2863 = vrot.lane.b32.xlu0 %v2857, 64
  %v2864 = vpop.permute.xlu0 %2863
  %2865 = vrot.lane.b32.xlu0 %v2856, 64
  %v2866 = vpop.permute.xlu0 %2865
  %2867 = vrot.lane.b32.xlu0 %v2858, 64
  %v2868 = vpop.permute.xlu0 %2867
  %2869 = vrot.lane.b32.xlu0 %v2860, 64
  %v2870 = vpop.permute.xlu0 %2869
  %2871 = vrot.lane.b32.xlu0 %v2859, 64
  %v2872 = vpop.permute.xlu0 %2871
  %2879 = vst.msk [vmem:[#allocation2 + $0x8] sm:$0xfe] %vm97, %v2862
  %2880 = vst.msk [vmem:[#allocation2 + $0x10] sm:$0xfe] %vm99, %v2862
  %2881 = vst.msk [vmem:[#allocation2 + $0x50] sm:$0xff] %vm52, %v2864
  %2882 = vst.msk [vmem:[#allocation2 + $0x58] sm:$0xff] %vm44, %v2864
  %2883 = vst.msk [vmem:[#allocation2 + $0x98] sm:$0x1] %vm103, %v2866
  %2884 = vst.msk [vmem:[#allocation2 + $0xa0] sm:$0x1] %vm105, %v2866
  %2885 = vst.msk [vmem:[#allocation2 + $0xe0] sm:$0xfe] %vm97, %v2868
  %2886 = vst.msk [vmem:[#allocation2 + $0xe8] sm:$0xfe] %vm99, %v2868
  %2887 = vst.msk [vmem:[#allocation2 + $0x128] sm:$0xff] %vm52, %v2870
  %2888 = vst.msk [vmem:[#allocation2 + $0x130] sm:$0xff] %vm44, %v2870
  %2889 = vst.msk [vmem:[#allocation2 + $0x170] sm:$0x1] %vm103, %v2872
  %2890 = vst.msk [vmem:[#allocation2 + $0x178] sm:$0x1] %vm105, %v2872
  %v2895 = vrot.slane %v2787, 7
  %v2896 = vrot.slane %v2788, 7
  %v2897 = vsel %vm72, %v2895, %v2896
  %v2898 = vrot.slane %v2789, 7
  %v2899 = vrot.slane %v2790, 7
  %v2900 = vsel %vm72, %v2898, %v2899
  %2901 = vrot.lane.b32.xlu0 %v2895, 64
  %v2902 = vpop.permute.xlu0 %2901
  %2903 = vrot.lane.b32.xlu0 %v2897, 64
  %v2904 = vpop.permute.xlu0 %2903
  %2905 = vrot.lane.b32.xlu0 %v2896, 64
  %v2906 = vpop.permute.xlu0 %2905
  %2907 = vrot.lane.b32.xlu0 %v2898, 64
  %v2908 = vpop.permute.xlu0 %2907
  %2909 = vrot.lane.b32.xlu0 %v2900, 64
  %v2910 = vpop.permute.xlu0 %2909
  %2911 = vrot.lane.b32.xlu0 %v2899, 64
  %v2912 = vpop.permute.xlu0 %2911
  %2919 = vst.msk [vmem:[#allocation2 + $0x10] sm:$0xfe] %vm97, %v2902
  %2920 = vst.msk [vmem:[#allocation2 + $0x18] sm:$0xfe] %vm99, %v2902
  %2921 = vst.msk [vmem:[#allocation2 + $0x58] sm:$0xff] %vm52, %v2904
  %2922 = vst.msk [vmem:[#allocation2 + $0x60] sm:$0xff] %vm44, %v2904
  %2923 = vst.msk [vmem:[#allocation2 + $0xa0] sm:$0x1] %vm103, %v2906
  %2924 = vst.msk [vmem:[#allocation2 + $0xa8] sm:$0x1] %vm105, %v2906
  %2925 = vst.msk [vmem:[#allocation2 + $0xe8] sm:$0xfe] %vm97, %v2908
  %2926 = vst.msk [vmem:[#allocation2 + $0xf0] sm:$0xfe] %vm99, %v2908
  %2927 = vst.msk [vmem:[#allocation2 + $0x130] sm:$0xff] %vm52, %v2910
  %2928 = vst.msk [vmem:[#allocation2 + $0x138] sm:$0xff] %vm44, %v2910
  %2929 = vst.msk [vmem:[#allocation2 + $0x178] sm:$0x1] %vm103, %v2912
  %2930 = vst.msk [vmem:[#allocation2 + $0x180] sm:$0x1] %vm105, %v2912
  %v2935 = vrot.slane %v2791, 7
  %v2936 = vrot.slane %v2792, 7
  %v2937 = vsel %vm72, %v2935, %v2936
  %v2938 = vrot.slane %v2793, 7
  %v2939 = vrot.slane %v2794, 7
  %v2940 = vsel %vm72, %v2938, %v2939
  %2941 = vrot.lane.b32.xlu0 %v2935, 64
  %v2942 = vpop.permute.xlu0 %2941
  %2943 = vrot.lane.b32.xlu0 %v2937, 64
  %v2944 = vpop.permute.xlu0 %2943
  %2945 = vrot.lane.b32.xlu0 %v2936, 64
  %v2946 = vpop.permute.xlu0 %2945
  %2947 = vrot.lane.b32.xlu0 %v2938, 64
  %v2948 = vpop.permute.xlu0 %2947
  %2949 = vrot.lane.b32.xlu0 %v2940, 64
  %v2950 = vpop.permute.xlu0 %2949
  %2951 = vrot.lane.b32.xlu0 %v2939, 64
  %v2952 = vpop.permute.xlu0 %2951
  %2959 = vst.msk [vmem:[#allocation2 + $0x18] sm:$0xfe] %vm97, %v2942
  %2960 = vst.msk [vmem:[#allocation2 + $0x20] sm:$0xfe] %vm99, %v2942
  %2961 = vst.msk [vmem:[#allocation2 + $0x60] sm:$0xff] %vm52, %v2944
  %2962 = vst.msk [vmem:[#allocation2 + $0x68] sm:$0xff] %vm44, %v2944
  %2963 = vst.msk [vmem:[#allocation2 + $0xa8] sm:$0x1] %vm103, %v2946
  %2964 = vst.msk [vmem:[#allocation2 + $0xb0] sm:$0x1] %vm105, %v2946
  %2965 = vst.msk [vmem:[#allocation2 + $0xf0] sm:$0xfe] %vm97, %v2948
  %2966 = vst.msk [vmem:[#allocation2 + $0xf8] sm:$0xfe] %vm99, %v2948
  %2967 = vst.msk [vmem:[#allocation2 + $0x138] sm:$0xff] %vm52, %v2950
  %2968 = vst.msk [vmem:[#allocation2 + $0x140] sm:$0xff] %vm44, %v2950
  %2969 = vst.msk [vmem:[#allocation2 + $0x180] sm:$0x1] %vm103, %v2952
  %2970 = vst.msk [vmem:[#allocation2 + $0x188] sm:$0x1] %vm105, %v2952
  %v2975 = vrot.slane %v2795, 7
  %v2976 = vrot.slane %v2796, 7
  %v2977 = vsel %vm72, %v2975, %v2976
  %v2978 = vrot.slane %v2797, 7
  %v2979 = vrot.slane %v2798, 7
  %v2980 = vsel %vm72, %v2978, %v2979
  %2981 = vrot.lane.b32.xlu0 %v2975, 64
  %v2982 = vpop.permute.xlu0 %2981
  %2983 = vrot.lane.b32.xlu0 %v2977, 64
  %v2984 = vpop.permute.xlu0 %2983
  %2985 = vrot.lane.b32.xlu0 %v2976, 64
  %v2986 = vpop.permute.xlu0 %2985
  %2987 = vrot.lane.b32.xlu0 %v2978, 64
  %v2988 = vpop.permute.xlu0 %2987
  %2989 = vrot.lane.b32.xlu0 %v2980, 64
  %v2990 = vpop.permute.xlu0 %2989
  %2991 = vrot.lane.b32.xlu0 %v2979, 64
  %v2992 = vpop.permute.xlu0 %2991
  %2999 = vst.msk [vmem:[#allocation2 + $0x20] sm:$0xfe] %vm97, %v2982
  %3000 = vst.msk [vmem:[#allocation2 + $0x28] sm:$0xfe] %vm99, %v2982
  %3001 = vst.msk [vmem:[#allocation2 + $0x68] sm:$0xff] %vm52, %v2984
  %3002 = vst.msk [vmem:[#allocation2 + $0x70] sm:$0xff] %vm44, %v2984
  %3003 = vst.msk [vmem:[#allocation2 + $0xb0] sm:$0x1] %vm103, %v2986
  %3004 = vst.msk [vmem:[#allocation2 + $0xb8] sm:$0x1] %vm105, %v2986
  %3005 = vst.msk [vmem:[#allocation2 + $0xf8] sm:$0xfe] %vm97, %v2988
  %3006 = vst.msk [vmem:[#allocation2 + $0x100] sm:$0xfe] %vm99, %v2988
  %3007 = vst.msk [vmem:[#allocation2 + $0x140] sm:$0xff] %vm52, %v2990
  %3008 = vst.msk [vmem:[#allocation2 + $0x148] sm:$0xff] %vm44, %v2990
  %3009 = vst.msk [vmem:[#allocation2 + $0x188] sm:$0x1] %vm103, %v2992
  %3010 = vst.msk [vmem:[#allocation2 + $0x190] sm:$0x1] %vm105, %v2992
  %v3015 = vrot.slane %v2799, 7
  %v3016 = vrot.slane %v2800, 7
  %v3017 = vsel %vm72, %v3015, %v3016
  %v3018 = vrot.slane %v2801, 7
  %v3019 = vrot.slane %v2802, 7
  %v3020 = vsel %vm72, %v3018, %v3019
  %3021 = vrot.lane.b32.xlu0 %v3015, 64
  %v3022 = vpop.permute.xlu0 %3021
  %3023 = vrot.lane.b32.xlu0 %v3017, 64
  %v3024 = vpop.permute.xlu0 %3023
  %3025 = vrot.lane.b32.xlu0 %v3016, 64
  %v3026 = vpop.permute.xlu0 %3025
  %3027 = vrot.lane.b32.xlu0 %v3018, 64
  %v3028 = vpop.permute.xlu0 %3027
  %3029 = vrot.lane.b32.xlu0 %v3020, 64
  %v3030 = vpop.permute.xlu0 %3029
  %3031 = vrot.lane.b32.xlu0 %v3019, 64
  %v3032 = vpop.permute.xlu0 %3031
  %3039 = vst.msk [vmem:[#allocation2 + $0x28] sm:$0xfe] %vm97, %v3022
  %3040 = vst.msk [vmem:[#allocation2 + $0x30] sm:$0xfe] %vm99, %v3022
  %3041 = vst.msk [vmem:[#allocation2 + $0x70] sm:$0xff] %vm52, %v3024
  %3042 = vst.msk [vmem:[#allocation2 + $0x78] sm:$0xff] %vm44, %v3024
  %3043 = vst.msk [vmem:[#allocation2 + $0xb8] sm:$0x1] %vm103, %v3026
  %3044 = vst.msk [vmem:[#allocation2 + $0xc0] sm:$0x1] %vm105, %v3026
  %3045 = vst.msk [vmem:[#allocation2 + $0x100] sm:$0xfe] %vm97, %v3028
  %3046 = vst.msk [vmem:[#allocation2 + $0x108] sm:$0xfe] %vm99, %v3028
  %3047 = vst.msk [vmem:[#allocation2 + $0x148] sm:$0xff] %vm52, %v3030
  %3048 = vst.msk [vmem:[#allocation2 + $0x150] sm:$0xff] %vm44, %v3030
  %3049 = vst.msk [vmem:[#allocation2 + $0x190] sm:$0x1] %vm103, %v3032
  %3050 = vst.msk [vmem:[#allocation2 + $0x198] sm:$0x1] %vm105, %v3032
  %v3055 = vrot.slane %v2803, 7
  %v3056 = vrot.slane %v2804, 7
  %v3057 = vsel %vm72, %v3055, %v3056
  %v3058 = vrot.slane %v2805, 7
  %v3059 = vrot.slane %v2806, 7
  %v3060 = vsel %vm72, %v3058, %v3059
  %3061 = vrot.lane.b32.xlu0 %v3055, 64
  %v3062 = vpop.permute.xlu0 %3061
  %3063 = vrot.lane.b32.xlu0 %v3057, 64
  %v3064 = vpop.permute.xlu0 %3063
  %3065 = vrot.lane.b32.xlu0 %v3056, 64
  %v3066 = vpop.permute.xlu0 %3065
  %3067 = vrot.lane.b32.xlu0 %v3058, 64
  %v3068 = vpop.permute.xlu0 %3067
  %3069 = vrot.lane.b32.xlu0 %v3060, 64
  %v3070 = vpop.permute.xlu0 %3069
  %3071 = vrot.lane.b32.xlu0 %v3059, 64
  %v3072 = vpop.permute.xlu0 %3071
  %3079 = vst.msk [vmem:[#allocation2 + $0x30] sm:$0xfe] %vm97, %v3062
  %3080 = vst.msk [vmem:[#allocation2 + $0x38] sm:$0xfe] %vm99, %v3062
  %3081 = vst.msk [vmem:[#allocation2 + $0x78] sm:$0xff] %vm52, %v3064
  %3082 = vst.msk [vmem:[#allocation2 + $0x80] sm:$0xff] %vm44, %v3064
  %3083 = vst.msk [vmem:[#allocation2 + $0xc0] sm:$0x1] %vm103, %v3066
  %3084 = vst.msk [vmem:[#allocation2 + $0xc8] sm:$0x1] %vm105, %v3066
  %3085 = vst.msk [vmem:[#allocation2 + $0x108] sm:$0xfe] %vm97, %v3068
  %3086 = vst.msk [vmem:[#allocation2 + $0x110] sm:$0xfe] %vm99, %v3068
  %3087 = vst.msk [vmem:[#allocation2 + $0x150] sm:$0xff] %vm52, %v3070
  %3088 = vst.msk [vmem:[#allocation2 + $0x158] sm:$0xff] %vm44, %v3070
  %3089 = vst.msk [vmem:[#allocation2 + $0x198] sm:$0x1] %vm103, %v3072
  %3090 = vst.msk [vmem:[#allocation2 + $0x1a0] sm:$0x1] %vm105, %v3072
  %v3095 = vrot.slane %v2807, 7
  %v3096 = vrot.slane %v2808, 7
  %v3097 = vsel %vm72, %v3095, %v3096
  %v3098 = vrot.slane %v2809, 7
  %v3099 = vrot.slane %v2810, 7
  %v3100 = vsel %vm72, %v3098, %v3099
  %3101 = vrot.lane.b32.xlu0 %v3095, 64
  %v3102 = vpop.permute.xlu0 %3101
  %3103 = vrot.lane.b32.xlu0 %v3097, 64
  %v3104 = vpop.permute.xlu0 %3103
  %3105 = vrot.lane.b32.xlu0 %v3096, 64
  %v3106 = vpop.permute.xlu0 %3105
  %3107 = vrot.lane.b32.xlu0 %v3098, 64
  %v3108 = vpop.permute.xlu0 %3107
  %3109 = vrot.lane.b32.xlu0 %v3100, 64
  %v3110 = vpop.permute.xlu0 %3109
  %3111 = vrot.lane.b32.xlu0 %v3099, 64
  %v3112 = vpop.permute.xlu0 %3111
  %3119 = vst.msk [vmem:[#allocation2 + $0x38] sm:$0xfe] %vm97, %v3102
  %3120 = vst.msk [vmem:[#allocation2 + $0x40] sm:$0xfe] %vm99, %v3102
  %3121 = vst.msk [vmem:[#allocation2 + $0x80] sm:$0xff] %vm52, %v3104
  %3122 = vst.msk [vmem:[#allocation2 + $0x88] sm:$0xff] %vm44, %v3104
  %3123 = vst.msk [vmem:[#allocation2 + $0xc8] sm:$0x1] %vm103, %v3106
  %3124 = vst.msk [vmem:[#allocation2 + $0xd0] sm:$0x1] %vm105, %v3106
  %3125 = vst.msk [vmem:[#allocation2 + $0x110] sm:$0xfe] %vm97, %v3108
  %3126 = vst.msk [vmem:[#allocation2 + $0x118] sm:$0xfe] %vm99, %v3108
  %3127 = vst.msk [vmem:[#allocation2 + $0x158] sm:$0xff] %vm52, %v3110
  %3128 = vst.msk [vmem:[#allocation2 + $0x160] sm:$0xff] %vm44, %v3110
  %3129 = vst.msk [vmem:[#allocation2 + $0x1a0] sm:$0x1] %vm103, %v3112
  %3130 = vst.msk [vmem:[#allocation2 + $0x1a8] sm:$0x1] %vm105, %v3112
  %v3131 = vld [vmem:[#allocation2] sm:$0xff]
  %v3132 = vld [vmem:[#allocation2 + $0x8] sm:$0xff]
  %v3133 = vld [vmem:[#allocation2 + $0x48] sm:$0xff]
  %v3134 = vld [vmem:[#allocation2 + $0x50] sm:$0xff]
  %v3135 = vld [vmem:[#allocation2 + $0xd8] sm:$0xff]
  %v3136 = vld [vmem:[#allocation2 + $0xe0] sm:$0xff]
  %v3137 = vld [vmem:[#allocation2 + $0x120] sm:$0xff]
  %v3138 = vld [vmem:[#allocation2 + $0x128] sm:$0xff]
  %3139 = vst [vmem:[#allocation3] sm:$0xff] %v3131
  %3140 = vst [vmem:[#allocation3 + $0x8] sm:$0xff] %v3132
  %3141 = vst [vmem:[#allocation3 + $0x30] sm:$0xff] %v3133
  %3142 = vst [vmem:[#allocation3 + $0x38] sm:$0xff] %v3134
  %3143 = vst [vmem:[#allocation3 + $0x60] sm:$0xff] %v3135
  %3144 = vst [vmem:[#allocation3 + $0x68] sm:$0xff] %v3136
  %3145 = vst [vmem:[#allocation3 + $0x90] sm:$0xff] %v3137
  %3146 = vst [vmem:[#allocation3 + $0x98] sm:$0xff] %v3138
  %v3147 = vld [vmem:[#allocation2 + $0x8] sm:$0xff]
  %v3148 = vld [vmem:[#allocation2 + $0x10] sm:$0xff]
  %v3149 = vld [vmem:[#allocation2 + $0x50] sm:$0xff]
  %v3150 = vld [vmem:[#allocation2 + $0x58] sm:$0xff]
  %v3151 = vld [vmem:[#allocation2 + $0xe0] sm:$0xff]
  %v3152 = vld [vmem:[#allocation2 + $0xe8] sm:$0xff]
  %v3153 = vld [vmem:[#allocation2 + $0x128] sm:$0xff]
  %v3154 = vld [vmem:[#allocation2 + $0x130] sm:$0xff]
  %3155 = vst [vmem:[#allocation3 + $0xc0] sm:$0xff] %v3147
  %3156 = vst [vmem:[#allocation3 + $0xc8] sm:$0xff] %v3148
  %3157 = vst [vmem:[#allocation3 + $0xf0] sm:$0xff] %v3149
  %3158 = vst [vmem:[#allocation3 + $0xf8] sm:$0xff] %v3150
  %3159 = vst [vmem:[#allocation3 + $0x120] sm:$0xff] %v3151
  %3160 = vst [vmem:[#allocation3 + $0x128] sm:$0xff] %v3152
  %3161 = vst [vmem:[#allocation3 + $0x150] sm:$0xff] %v3153
  %3162 = vst [vmem:[#allocation3 + $0x158] sm:$0xff] %v3154
  %v3163 = vld [vmem:[#allocation2 + $0x10] sm:$0xff]
  %v3164 = vld [vmem:[#allocation2 + $0x18] sm:$0xff]
  %v3165 = vld [vmem:[#allocation2 + $0x58] sm:$0xff]
  %v3166 = vld [vmem:[#allocation2 + $0x60] sm:$0xff]
  %v3167 = vld [vmem:[#allocation2 + $0xe8] sm:$0xff]
  %v3168 = vld [vmem:[#allocation2 + $0xf0] sm:$0xff]
  %v3169 = vld [vmem:[#allocation2 + $0x130] sm:$0xff]
  %v3170 = vld [vmem:[#allocation2 + $0x138] sm:$0xff]
  %3171 = vst [vmem:[#allocation3 + $0x180] sm:$0xff] %v3163
  %3172 = vst [vmem:[#allocation3 + $0x188] sm:$0xff] %v3164
  %3173 = vst [vmem:[#allocation3 + $0x1b0] sm:$0xff] %v3165
  %3174 = vst [vmem:[#allocation3 + $0x1b8] sm:$0xff] %v3166
  %3175 = vst [vmem:[#allocation3 + $0x1e0] sm:$0xff] %v3167
  %3176 = vst [vmem:[#allocation3 + $0x1e8] sm:$0xff] %v3168
  %3177 = vst [vmem:[#allocation3 + $0x210] sm:$0xff] %v3169
  %3178 = vst [vmem:[#allocation3 + $0x218] sm:$0xff] %v3170
  %v3179 = vld [vmem:[#allocation2 + $0x18] sm:$0xff]
  %v3180 = vld [vmem:[#allocation2 + $0x20] sm:$0xff]
  %v3181 = vld [vmem:[#allocation2 + $0x60] sm:$0xff]
  %v3182 = vld [vmem:[#allocation2 + $0x68] sm:$0xff]
  %v3183 = vld [vmem:[#allocation2 + $0xf0] sm:$0xff]
  %v3184 = vld [vmem:[#allocation2 + $0xf8] sm:$0xff]
  %v3185 = vld [vmem:[#allocation2 + $0x138] sm:$0xff]
  %v3186 = vld [vmem:[#allocation2 + $0x140] sm:$0xff]
  %3187 = vst [vmem:[#allocation3 + $0x240] sm:$0xff] %v3179
  %3188 = vst [vmem:[#allocation3 + $0x248] sm:$0xff] %v3180
  %3189 = vst [vmem:[#allocation3 + $0x270] sm:$0xff] %v3181
  %3190 = vst [vmem:[#allocation3 + $0x278] sm:$0xff] %v3182
  %3191 = vst [vmem:[#allocation3 + $0x2a0] sm:$0xff] %v3183
  %3192 = vst [vmem:[#allocation3 + $0x2a8] sm:$0xff] %v3184
  %3193 = vst [vmem:[#allocation3 + $0x2d0] sm:$0xff] %v3185
  %3194 = vst [vmem:[#allocation3 + $0x2d8] sm:$0xff] %v3186
  %v3195 = vld [vmem:[#allocation2 + $0x20] sm:$0xff]
  %v3196 = vld [vmem:[#allocation2 + $0x28] sm:$0xff]
  %v3197 = vld [vmem:[#allocation2 + $0x68] sm:$0xff]
  %v3198 = vld [vmem:[#allocation2 + $0x70] sm:$0xff]
  %v3199 = vld [vmem:[#allocation2 + $0xf8] sm:$0xff]
  %v3200 = vld [vmem:[#allocation2 + $0x100] sm:$0xff]
  %v3201 = vld [vmem:[#allocation2 + $0x140] sm:$0xff]
  %v3202 = vld [vmem:[#allocation2 + $0x148] sm:$0xff]
  %3203 = vst [vmem:[#allocation3 + $0x300] sm:$0xff] %v3195
  %3204 = vst [vmem:[#allocation3 + $0x308] sm:$0xff] %v3196
  %3205 = vst [vmem:[#allocation3 + $0x330] sm:$0xff] %v3197
  %3206 = vst [vmem:[#allocation3 + $0x338] sm:$0xff] %v3198
  %3207 = vst [vmem:[#allocation3 + $0x360] sm:$0xff] %v3199
  %3208 = vst [vmem:[#allocation3 + $0x368] sm:$0xff] %v3200
  %3209 = vst [vmem:[#allocation3 + $0x390] sm:$0xff] %v3201
  %3210 = vst [vmem:[#allocation3 + $0x398] sm:$0xff] %v3202
  %v3211 = vld [vmem:[#allocation2 + $0x28] sm:$0xff]
  %v3212 = vld [vmem:[#allocation2 + $0x30] sm:$0xff]
  %v3213 = vld [vmem:[#allocation2 + $0x70] sm:$0xff]
  %v3214 = vld [vmem:[#allocation2 + $0x78] sm:$0xff]
  %v3215 = vld [vmem:[#allocation2 + $0x100] sm:$0xff]
  %v3216 = vld [vmem:[#allocation2 + $0x108] sm:$0xff]
  %v3217 = vld [vmem:[#allocation2 + $0x148] sm:$0xff]
  %v3218 = vld [vmem:[#allocation2 + $0x150] sm:$0xff]
  %3219 = vst [vmem:[#allocation3 + $0x3c0] sm:$0xff] %v3211
  %3220 = vst [vmem:[#allocation3 + $0x3c8] sm:$0xff] %v3212
  %3221 = vst [vmem:[#allocation3 + $0x3f0] sm:$0xff] %v3213
  %3222 = vst [vmem:[#allocation3 + $0x3f8] sm:$0xff] %v3214
  %3223 = vst [vmem:[#allocation3 + $0x420] sm:$0xff] %v3215
  %3224 = vst [vmem:[#allocation3 + $0x428] sm:$0xff] %v3216
  %3225 = vst [vmem:[#allocation3 + $0x450] sm:$0xff] %v3217
  %3226 = vst [vmem:[#allocation3 + $0x458] sm:$0xff] %v3218
  %v3227 = vld [vmem:[#allocation2 + $0x30] sm:$0xff]
  %v3228 = vld [vmem:[#allocation2 + $0x38] sm:$0xff]
  %v3229 = vld [vmem:[#allocation2 + $0x78] sm:$0xff]
  %v3230 = vld [vmem:[#allocation2 + $0x80] sm:$0xff]
  %v3231 = vld [vmem:[#allocation2 + $0x108] sm:$0xff]
  %v3232 = vld [vmem:[#allocation2 + $0x110] sm:$0xff]
  %v3233 = vld [vmem:[#allocation2 + $0x150] sm:$0xff]
  %v3234 = vld [vmem:[#allocation2 + $0x158] sm:$0xff]
  %3235 = vst [vmem:[#allocation3 + $0x480] sm:$0xff] %v3227
  %3236 = vst [vmem:[#allocation3 + $0x488] sm:$0xff] %v3228
  %3237 = vst [vmem:[#allocation3 + $0x4b0] sm:$0xff] %v3229
  %3238 = vst [vmem:[#allocation3 + $0x4b8] sm:$0xff] %v3230
  %3239 = vst [vmem:[#allocation3 + $0x4e0] sm:$0xff] %v3231
  %3240 = vst [vmem:[#allocation3 + $0x4e8] sm:$0xff] %v3232
  %3241 = vst [vmem:[#allocation3 + $0x510] sm:$0xff] %v3233
  %3242 = vst [vmem:[#allocation3 + $0x518] sm:$0xff] %v3234
  %v3243 = vld [vmem:[#allocation2 + $0x38] sm:$0xff]
  %v3244 = vld [vmem:[#allocation2 + $0x40] sm:$0xff]
  %v3245 = vld [vmem:[#allocation2 + $0x80] sm:$0xff]
  %v3246 = vld [vmem:[#allocation2 + $0x88] sm:$0xff]
  %v3247 = vld [vmem:[#allocation2 + $0x110] sm:$0xff]
  %v3248 = vld [vmem:[#allocation2 + $0x118] sm:$0xff]
  %v3249 = vld [vmem:[#allocation2 + $0x158] sm:$0xff]
  %v3250 = vld [vmem:[#allocation2 + $0x160] sm:$0xff]
  %3251 = vst [vmem:[#allocation3 + $0x540] sm:$0xff] %v3243
  %3252 = vst [vmem:[#allocation3 + $0x548] sm:$0xff] %v3244
  %3253 = vst [vmem:[#allocation3 + $0x570] sm:$0xff] %v3245
  %3254 = vst [vmem:[#allocation3 + $0x578] sm:$0xff] %v3246
  %3255 = vst [vmem:[#allocation3 + $0x5a0] sm:$0xff] %v3247
  %3256 = vst [vmem:[#allocation3 + $0x5a8] sm:$0xff] %v3248
  %3257 = vst [vmem:[#allocation3 + $0x5d0] sm:$0xff] %v3249
  %3258 = vst [vmem:[#allocation3 + $0x5d8] sm:$0xff] %v3250
  %v3259 = vld [vmem:[#allocation2] sm:$0xfe]
  %v3260 = vld [vmem:[#allocation2 + $0x8] sm:$0xfe]
  %v3261 = vld [vmem:[#allocation2 + $0x48] sm:$0xff]
  %v3262 = vld [vmem:[#allocation2 + $0x50] sm:$0xff]
  %v3263 = vld [vmem:[#allocation2 + $0x90] sm:$0x1]
  %v3264 = vld [vmem:[#allocation2 + $0x98] sm:$0x1]
  %v3265 = vld [vmem:[#allocation2 + $0xd8] sm:$0xfe]
  %v3266 = vld [vmem:[#allocation2 + $0xe0] sm:$0xfe]
  %v3267 = vld [vmem:[#allocation2 + $0x120] sm:$0xff]
  %v3268 = vld [vmem:[#allocation2 + $0x128] sm:$0xff]
  %v3269 = vld [vmem:[#allocation2 + $0x168] sm:$0x1]
  %v3270 = vld [vmem:[#allocation2 + $0x170] sm:$0x1]
  %v3283 = vrot.slane %v3259, 1
  %v3284 = vrot.slane %v3261, 1
  %v3285 = vsel %vm573, %v3283, %v3284
  %v3286 = vrot.slane %v3260, 1
  %v3287 = vrot.slane %v3262, 1
  %v3288 = vsel %vm573, %v3286, %v3287
  %v3289 = vrot.slane %v3263, 1
  %v3290 = vsel %vm573, %v3284, %v3289
  %v3291 = vrot.slane %v3264, 1
  %v3292 = vsel %vm573, %v3287, %v3291
  %v3293 = vrot.slane %v3265, 1
  %v3294 = vrot.slane %v3267, 1
  %v3295 = vsel %vm573, %v3293, %v3294
  %v3296 = vrot.slane %v3266, 1
  %v3297 = vrot.slane %v3268, 1
  %v3298 = vsel %vm573, %v3296, %v3297
  %v3299 = vrot.slane %v3269, 1
  %v3300 = vsel %vm573, %v3294, %v3299
  %v3301 = vrot.slane %v3270, 1
  %v3302 = vsel %vm573, %v3297, %v3301
  %3311 = vst [vmem:[#allocation3 + $0x10] sm:$0xff] %v3285
  %3312 = vst [vmem:[#allocation3 + $0x18] sm:$0xff] %v3288
  %3313 = vst [vmem:[#allocation3 + $0x40] sm:$0xff] %v3290
  %3314 = vst [vmem:[#allocation3 + $0x48] sm:$0xff] %v3292
  %3315 = vst [vmem:[#allocation3 + $0x70] sm:$0xff] %v3295
  %3316 = vst [vmem:[#allocation3 + $0x78] sm:$0xff] %v3298
  %3317 = vst [vmem:[#allocation3 + $0xa0] sm:$0xff] %v3300
  %3318 = vst [vmem:[#allocation3 + $0xa8] sm:$0xff] %v3302
  %v3319 = vld [vmem:[#allocation2 + $0x8] sm:$0xfe]
  %v3320 = vld [vmem:[#allocation2 + $0x10] sm:$0xfe]
  %v3321 = vld [vmem:[#allocation2 + $0x50] sm:$0xff]
  %v3322 = vld [vmem:[#allocation2 + $0x58] sm:$0xff]
  %v3323 = vld [vmem:[#allocation2 + $0x98] sm:$0x1]
  %v3324 = vld [vmem:[#allocation2 + $0xa0] sm:$0x1]
  %v3325 = vld [vmem:[#allocation2 + $0xe0] sm:$0xfe]
  %v3326 = vld [vmem:[#allocation2 + $0xe8] sm:$0xfe]
  %v3327 = vld [vmem:[#allocation2 + $0x128] sm:$0xff]
  %v3328 = vld [vmem:[#allocation2 + $0x130] sm:$0xff]
  %v3329 = vld [vmem:[#allocation2 + $0x170] sm:$0x1]
  %v3330 = vld [vmem:[#allocation2 + $0x178] sm:$0x1]
  %v3343 = vrot.slane %v3319, 1
  %v3344 = vrot.slane %v3321, 1
  %v3345 = vsel %vm573, %v3343, %v3344
  %v3346 = vrot.slane %v3320, 1
  %v3347 = vrot.slane %v3322, 1
  %v3348 = vsel %vm573, %v3346, %v3347
  %v3349 = vrot.slane %v3323, 1
  %v3350 = vsel %vm573, %v3344, %v3349
  %v3351 = vrot.slane %v3324, 1
  %v3352 = vsel %vm573, %v3347, %v3351
  %v3353 = vrot.slane %v3325, 1
  %v3354 = vrot.slane %v3327, 1
  %v3355 = vsel %vm573, %v3353, %v3354
  %v3356 = vrot.slane %v3326, 1
  %v3357 = vrot.slane %v3328, 1
  %v3358 = vsel %vm573, %v3356, %v3357
  %v3359 = vrot.slane %v3329, 1
  %v3360 = vsel %vm573, %v3354, %v3359
  %v3361 = vrot.slane %v3330, 1
  %v3362 = vsel %vm573, %v3357, %v3361
  %3371 = vst [vmem:[#allocation3 + $0xd0] sm:$0xff] %v3345
  %3372 = vst [vmem:[#allocation3 + $0xd8] sm:$0xff] %v3348
  %3373 = vst [vmem:[#allocation3 + $0x100] sm:$0xff] %v3350
  %3374 = vst [vmem:[#allocation3 + $0x108] sm:$0xff] %v3352
  %3375 = vst [vmem:[#allocation3 + $0x130] sm:$0xff] %v3355
  %3376 = vst [vmem:[#allocation3 + $0x138] sm:$0xff] %v3358
  %3377 = vst [vmem:[#allocation3 + $0x160] sm:$0xff] %v3360
  %3378 = vst [vmem:[#allocation3 + $0x168] sm:$0xff] %v3362
  %v3379 = vld [vmem:[#allocation2 + $0x10] sm:$0xfe]
  %v3380 = vld [vmem:[#allocation2 + $0x18] sm:$0xfe]
  %v3381 = vld [vmem:[#allocation2 + $0x58] sm:$0xff]
  %v3382 = vld [vmem:[#allocation2 + $0x60] sm:$0xff]
  %v3383 = vld [vmem:[#allocation2 + $0xa0] sm:$0x1]
  %v3384 = vld [vmem:[#allocation2 + $0xa8] sm:$0x1]
  %v3385 = vld [vmem:[#allocation2 + $0xe8] sm:$0xfe]
  %v3386 = vld [vmem:[#allocation2 + $0xf0] sm:$0xfe]
  %v3387 = vld [vmem:[#allocation2 + $0x130] sm:$0xff]
  %v3388 = vld [vmem:[#allocation2 + $0x138] sm:$0xff]
  %v3389 = vld [vmem:[#allocation2 + $0x178] sm:$0x1]
  %v3390 = vld [vmem:[#allocation2 + $0x180] sm:$0x1]
  %v3403 = vrot.slane %v3379, 1
  %v3404 = vrot.slane %v3381, 1
  %v3405 = vsel %vm573, %v3403, %v3404
  %v3406 = vrot.slane %v3380, 1
  %v3407 = vrot.slane %v3382, 1
  %v3408 = vsel %vm573, %v3406, %v3407
  %v3409 = vrot.slane %v3383, 1
  %v3410 = vsel %vm573, %v3404, %v3409
  %v3411 = vrot.slane %v3384, 1
  %v3412 = vsel %vm573, %v3407, %v3411
  %v3413 = vrot.slane %v3385, 1
  %v3414 = vrot.slane %v3387, 1
  %v3415 = vsel %vm573, %v3413, %v3414
  %v3416 = vrot.slane %v3386, 1
  %v3417 = vrot.slane %v3388, 1
  %v3418 = vsel %vm573, %v3416, %v3417
  %v3419 = vrot.slane %v3389, 1
  %v3420 = vsel %vm573, %v3414, %v3419
  %v3421 = vrot.slane %v3390, 1
  %v3422 = vsel %vm573, %v3417, %v3421
  %3431 = vst [vmem:[#allocation3 + $0x190] sm:$0xff] %v3405
  %3432 = vst [vmem:[#allocation3 + $0x198] sm:$0xff] %v3408
  %3433 = vst [vmem:[#allocation3 + $0x1c0] sm:$0xff] %v3410
  %3434 = vst [vmem:[#allocation3 + $0x1c8] sm:$0xff] %v3412
  %3435 = vst [vmem:[#allocation3 + $0x1f0] sm:$0xff] %v3415
  %3436 = vst [vmem:[#allocation3 + $0x1f8] sm:$0xff] %v3418
  %3437 = vst [vmem:[#allocation3 + $0x220] sm:$0xff] %v3420
  %3438 = vst [vmem:[#allocation3 + $0x228] sm:$0xff] %v3422
  %v3439 = vld [vmem:[#allocation2 + $0x18] sm:$0xfe]
  %v3440 = vld [vmem:[#allocation2 + $0x20] sm:$0xfe]
  %v3441 = vld [vmem:[#allocation2 + $0x60] sm:$0xff]
  %v3442 = vld [vmem:[#allocation2 + $0x68] sm:$0xff]
  %v3443 = vld [vmem:[#allocation2 + $0xa8] sm:$0x1]
  %v3444 = vld [vmem:[#allocation2 + $0xb0] sm:$0x1]
  %v3445 = vld [vmem:[#allocation2 + $0xf0] sm:$0xfe]
  %v3446 = vld [vmem:[#allocation2 + $0xf8] sm:$0xfe]
  %v3447 = vld [vmem:[#allocation2 + $0x138] sm:$0xff]
  %v3448 = vld [vmem:[#allocation2 + $0x140] sm:$0xff]
  %v3449 = vld [vmem:[#allocation2 + $0x180] sm:$0x1]
  %v3450 = vld [vmem:[#allocation2 + $0x188] sm:$0x1]
  %v3463 = vrot.slane %v3439, 1
  %v3464 = vrot.slane %v3441, 1
  %v3465 = vsel %vm573, %v3463, %v3464
  %v3466 = vrot.slane %v3440, 1
  %v3467 = vrot.slane %v3442, 1
  %v3468 = vsel %vm573, %v3466, %v3467
  %v3469 = vrot.slane %v3443, 1
  %v3470 = vsel %vm573, %v3464, %v3469
  %v3471 = vrot.slane %v3444, 1
  %v3472 = vsel %vm573, %v3467, %v3471
  %v3473 = vrot.slane %v3445, 1
  %v3474 = vrot.slane %v3447, 1
  %v3475 = vsel %vm573, %v3473, %v3474
  %v3476 = vrot.slane %v3446, 1
  %v3477 = vrot.slane %v3448, 1
  %v3478 = vsel %vm573, %v3476, %v3477
  %v3479 = vrot.slane %v3449, 1
  %v3480 = vsel %vm573, %v3474, %v3479
  %v3481 = vrot.slane %v3450, 1
  %v3482 = vsel %vm573, %v3477, %v3481
  %3491 = vst [vmem:[#allocation3 + $0x250] sm:$0xff] %v3465
  %3492 = vst [vmem:[#allocation3 + $0x258] sm:$0xff] %v3468
  %3493 = vst [vmem:[#allocation3 + $0x280] sm:$0xff] %v3470
  %3494 = vst [vmem:[#allocation3 + $0x288] sm:$0xff] %v3472
  %3495 = vst [vmem:[#allocation3 + $0x2b0] sm:$0xff] %v3475
  %3496 = vst [vmem:[#allocation3 + $0x2b8] sm:$0xff] %v3478
  %3497 = vst [vmem:[#allocation3 + $0x2e0] sm:$0xff] %v3480
  %3498 = vst [vmem:[#allocation3 + $0x2e8] sm:$0xff] %v3482
  %v3499 = vld [vmem:[#allocation2 + $0x20] sm:$0xfe]
  %v3500 = vld [vmem:[#allocation2 + $0x28] sm:$0xfe]
  %v3501 = vld [vmem:[#allocation2 + $0x68] sm:$0xff]
  %v3502 = vld [vmem:[#allocation2 + $0x70] sm:$0xff]
  %v3503 = vld [vmem:[#allocation2 + $0xb0] sm:$0x1]
  %v3504 = vld [vmem:[#allocation2 + $0xb8] sm:$0x1]
  %v3505 = vld [vmem:[#allocation2 + $0xf8] sm:$0xfe]
  %v3506 = vld [vmem:[#allocation2 + $0x100] sm:$0xfe]
  %v3507 = vld [vmem:[#allocation2 + $0x140] sm:$0xff]
  %v3508 = vld [vmem:[#allocation2 + $0x148] sm:$0xff]
  %v3509 = vld [vmem:[#allocation2 + $0x188] sm:$0x1]
  %v3510 = vld [vmem:[#allocation2 + $0x190] sm:$0x1]
  %v3523 = vrot.slane %v3499, 1
  %v3524 = vrot.slane %v3501, 1
  %v3525 = vsel %vm573, %v3523, %v3524
  %v3526 = vrot.slane %v3500, 1
  %v3527 = vrot.slane %v3502, 1
  %v3528 = vsel %vm573, %v3526, %v3527
  %v3529 = vrot.slane %v3503, 1
  %v3530 = vsel %vm573, %v3524, %v3529
  %v3531 = vrot.slane %v3504, 1
  %v3532 = vsel %vm573, %v3527, %v3531
  %v3533 = vrot.slane %v3505, 1
  %v3534 = vrot.slane %v3507, 1
  %v3535 = vsel %vm573, %v3533, %v3534
  %v3536 = vrot.slane %v3506, 1
  %v3537 = vrot.slane %v3508, 1
  %v3538 = vsel %vm573, %v3536, %v3537
  %v3539 = vrot.slane %v3509, 1
  %v3540 = vsel %vm573, %v3534, %v3539
  %v3541 = vrot.slane %v3510, 1
  %v3542 = vsel %vm573, %v3537, %v3541
  %3551 = vst [vmem:[#allocation3 + $0x310] sm:$0xff] %v3525
  %3552 = vst [vmem:[#allocation3 + $0x318] sm:$0xff] %v3528
  %3553 = vst [vmem:[#allocation3 + $0x340] sm:$0xff] %v3530
  %3554 = vst [vmem:[#allocation3 + $0x348] sm:$0xff] %v3532
  %3555 = vst [vmem:[#allocation3 + $0x370] sm:$0xff] %v3535
  %3556 = vst [vmem:[#allocation3 + $0x378] sm:$0xff] %v3538
  %3557 = vst [vmem:[#allocation3 + $0x3a0] sm:$0xff] %v3540
  %3558 = vst [vmem:[#allocation3 + $0x3a8] sm:$0xff] %v3542
  %v3559 = vld [vmem:[#allocation2 + $0x28] sm:$0xfe]
  %v3560 = vld [vmem:[#allocation2 + $0x30] sm:$0xfe]
  %v3561 = vld [vmem:[#allocation2 + $0x70] sm:$0xff]
  %v3562 = vld [vmem:[#allocation2 + $0x78] sm:$0xff]
  %v3563 = vld [vmem:[#allocation2 + $0xb8] sm:$0x1]
  %v3564 = vld [vmem:[#allocation2 + $0xc0] sm:$0x1]
  %v3565 = vld [vmem:[#allocation2 + $0x100] sm:$0xfe]
  %v3566 = vld [vmem:[#allocation2 + $0x108] sm:$0xfe]
  %v3567 = vld [vmem:[#allocation2 + $0x148] sm:$0xff]
  %v3568 = vld [vmem:[#allocation2 + $0x150] sm:$0xff]
  %v3569 = vld [vmem:[#allocation2 + $0x190] sm:$0x1]
  %v3570 = vld [vmem:[#allocation2 + $0x198] sm:$0x1]
  %v3583 = vrot.slane %v3559, 1
  %v3584 = vrot.slane %v3561, 1
  %v3585 = vsel %vm573, %v3583, %v3584
  %v3586 = vrot.slane %v3560, 1
  %v3587 = vrot.slane %v3562, 1
  %v3588 = vsel %vm573, %v3586, %v3587
  %v3589 = vrot.slane %v3563, 1
  %v3590 = vsel %vm573, %v3584, %v3589
  %v3591 = vrot.slane %v3564, 1
  %v3592 = vsel %vm573, %v3587, %v3591
  %v3593 = vrot.slane %v3565, 1
  %v3594 = vrot.slane %v3567, 1
  %v3595 = vsel %vm573, %v3593, %v3594
  %v3596 = vrot.slane %v3566, 1
  %v3597 = vrot.slane %v3568, 1
  %v3598 = vsel %vm573, %v3596, %v3597
  %v3599 = vrot.slane %v3569, 1
  %v3600 = vsel %vm573, %v3594, %v3599
  %v3601 = vrot.slane %v3570, 1
  %v3602 = vsel %vm573, %v3597, %v3601
  %3611 = vst [vmem:[#allocation3 + $0x3d0] sm:$0xff] %v3585
  %3612 = vst [vmem:[#allocation3 + $0x3d8] sm:$0xff] %v3588
  %3613 = vst [vmem:[#allocation3 + $0x400] sm:$0xff] %v3590
  %3614 = vst [vmem:[#allocation3 + $0x408] sm:$0xff] %v3592
  %3615 = vst [vmem:[#allocation3 + $0x430] sm:$0xff] %v3595
  %3616 = vst [vmem:[#allocation3 + $0x438] sm:$0xff] %v3598
  %3617 = vst [vmem:[#allocation3 + $0x460] sm:$0xff] %v3600
  %3618 = vst [vmem:[#allocation3 + $0x468] sm:$0xff] %v3602
  %v3619 = vld [vmem:[#allocation2 + $0x30] sm:$0xfe]
  %v3620 = vld [vmem:[#allocation2 + $0x38] sm:$0xfe]
  %v3621 = vld [vmem:[#allocation2 + $0x78] sm:$0xff]
  %v3622 = vld [vmem:[#allocation2 + $0x80] sm:$0xff]
  %v3623 = vld [vmem:[#allocation2 + $0xc0] sm:$0x1]
  %v3624 = vld [vmem:[#allocation2 + $0xc8] sm:$0x1]
  %v3625 = vld [vmem:[#allocation2 + $0x108] sm:$0xfe]
  %v3626 = vld [vmem:[#allocation2 + $0x110] sm:$0xfe]
  %v3627 = vld [vmem:[#allocation2 + $0x150] sm:$0xff]
  %v3628 = vld [vmem:[#allocation2 + $0x158] sm:$0xff]
  %v3629 = vld [vmem:[#allocation2 + $0x198] sm:$0x1]
  %v3630 = vld [vmem:[#allocation2 + $0x1a0] sm:$0x1]
  %v3643 = vrot.slane %v3619, 1
  %v3644 = vrot.slane %v3621, 1
  %v3645 = vsel %vm573, %v3643, %v3644
  %v3646 = vrot.slane %v3620, 1
  %v3647 = vrot.slane %v3622, 1
  %v3648 = vsel %vm573, %v3646, %v3647
  %v3649 = vrot.slane %v3623, 1
  %v3650 = vsel %vm573, %v3644, %v3649
  %v3651 = vrot.slane %v3624, 1
  %v3652 = vsel %vm573, %v3647, %v3651
  %v3653 = vrot.slane %v3625, 1
  %v3654 = vrot.slane %v3627, 1
  %v3655 = vsel %vm573, %v3653, %v3654
  %v3656 = vrot.slane %v3626, 1
  %v3657 = vrot.slane %v3628, 1
  %v3658 = vsel %vm573, %v3656, %v3657
  %v3659 = vrot.slane %v3629, 1
  %v3660 = vsel %vm573, %v3654, %v3659
  %v3661 = vrot.slane %v3630, 1
  %v3662 = vsel %vm573, %v3657, %v3661
  %3671 = vst [vmem:[#allocation3 + $0x490] sm:$0xff] %v3645
  %3672 = vst [vmem:[#allocation3 + $0x498] sm:$0xff] %v3648
  %3673 = vst [vmem:[#allocation3 + $0x4c0] sm:$0xff] %v3650
  %3674 = vst [vmem:[#allocation3 + $0x4c8] sm:$0xff] %v3652
  %3675 = vst [vmem:[#allocation3 + $0x4f0] sm:$0xff] %v3655
  %3676 = vst [vmem:[#allocation3 + $0x4f8] sm:$0xff] %v3658
  %3677 = vst [vmem:[#allocation3 + $0x520] sm:$0xff] %v3660
  %3678 = vst [vmem:[#allocation3 + $0x528] sm:$0xff] %v3662
  %v3679 = vld [vmem:[#allocation2 + $0x38] sm:$0xfe]
  %v3680 = vld [vmem:[#allocation2 + $0x40] sm:$0xfe]
  %v3681 = vld [vmem:[#allocation2 + $0x80] sm:$0xff]
  %v3682 = vld [vmem:[#allocation2 + $0x88] sm:$0xff]
  %v3683 = vld [vmem:[#allocation2 + $0xc8] sm:$0x1]
  %v3684 = vld [vmem:[#allocation2 + $0xd0] sm:$0x1]
  %v3685 = vld [vmem:[#allocation2 + $0x110] sm:$0xfe]
  %v3686 = vld [vmem:[#allocation2 + $0x118] sm:$0xfe]
  %v3687 = vld [vmem:[#allocation2 + $0x158] sm:$0xff]
  %v3688 = vld [vmem:[#allocation2 + $0x160] sm:$0xff]
  %v3689 = vld [vmem:[#allocation2 + $0x1a0] sm:$0x1]
  %v3690 = vld [vmem:[#allocation2 + $0x1a8] sm:$0x1]
  %v3703 = vrot.slane %v3679, 1
  %v3704 = vrot.slane %v3681, 1
  %v3705 = vsel %vm573, %v3703, %v3704
  %v3706 = vrot.slane %v3680, 1
  %v3707 = vrot.slane %v3682, 1
  %v3708 = vsel %vm573, %v3706, %v3707
  %v3709 = vrot.slane %v3683, 1
  %v3710 = vsel %vm573, %v3704, %v3709
  %v3711 = vrot.slane %v3684, 1
  %v3712 = vsel %vm573, %v3707, %v3711
  %v3713 = vrot.slane %v3685, 1
  %v3714 = vrot.slane %v3687, 1
  %v3715 = vsel %vm573, %v3713, %v3714
  %v3716 = vrot.slane %v3686, 1
  %v3717 = vrot.slane %v3688, 1
  %v3718 = vsel %vm573, %v3716, %v3717
  %v3719 = vrot.slane %v3689, 1
  %v3720 = vsel %vm573, %v3714, %v3719
  %v3721 = vrot.slane %v3690, 1
  %v3722 = vsel %vm573, %v3717, %v3721
  %3731 = vst [vmem:[#allocation3 + $0x550] sm:$0xff] %v3705
  %3732 = vst [vmem:[#allocation3 + $0x558] sm:$0xff] %v3708
  %3733 = vst [vmem:[#allocation3 + $0x580] sm:$0xff] %v3710
  %3734 = vst [vmem:[#allocation3 + $0x588] sm:$0xff] %v3712
  %3735 = vst [vmem:[#allocation3 + $0x5b0] sm:$0xff] %v3715
  %3736 = vst [vmem:[#allocation3 + $0x5b8] sm:$0xff] %v3718
  %3737 = vst [vmem:[#allocation3 + $0x5e0] sm:$0xff] %v3720
  %3738 = vst [vmem:[#allocation3 + $0x5e8] sm:$0xff] %v3722
  %v3739 = vld [vmem:[#allocation2] sm:$0xfc]
  %v3740 = vld [vmem:[#allocation2 + $0x8] sm:$0xfc]
  %v3741 = vld [vmem:[#allocation2 + $0x48] sm:$0xff]
  %v3742 = vld [vmem:[#allocation2 + $0x50] sm:$0xff]
  %v3743 = vld [vmem:[#allocation2 + $0x90] sm:$0x3]
  %v3744 = vld [vmem:[#allocation2 + $0x98] sm:$0x3]
  %v3745 = vld [vmem:[#allocation2 + $0xd8] sm:$0xfc]
  %v3746 = vld [vmem:[#allocation2 + $0xe0] sm:$0xfc]
  %v3747 = vld [vmem:[#allocation2 + $0x120] sm:$0xff]
  %v3748 = vld [vmem:[#allocation2 + $0x128] sm:$0xff]
  %v3749 = vld [vmem:[#allocation2 + $0x168] sm:$0x3]
  %v3750 = vld [vmem:[#allocation2 + $0x170] sm:$0x3]
  %v3763 = vrot.slane %v3739, 2
  %v3764 = vrot.slane %v3741, 2
  %v3765 = vsel %vm1054, %v3763, %v3764
  %v3766 = vrot.slane %v3740, 2
  %v3767 = vrot.slane %v3742, 2
  %v3768 = vsel %vm1054, %v3766, %v3767
  %v3769 = vrot.slane %v3743, 2
  %v3770 = vsel %vm1054, %v3764, %v3769
  %v3771 = vrot.slane %v3744, 2
  %v3772 = vsel %vm1054, %v3767, %v3771
  %v3773 = vrot.slane %v3745, 2
  %v3774 = vrot.slane %v3747, 2
  %v3775 = vsel %vm1054, %v3773, %v3774
  %v3776 = vrot.slane %v3746, 2
  %v3777 = vrot.slane %v3748, 2
  %v3778 = vsel %vm1054, %v3776, %v3777
  %v3779 = vrot.slane %v3749, 2
  %v3780 = vsel %vm1054, %v3774, %v3779
  %v3781 = vrot.slane %v3750, 2
  %v3782 = vsel %vm1054, %v3777, %v3781
  %3791 = vst [vmem:[#allocation3 + $0x20] sm:$0xff] %v3765
  %3792 = vst [vmem:[#allocation3 + $0x28] sm:$0xff] %v3768
  %3793 = vst [vmem:[#allocation3 + $0x50] sm:$0xff] %v3770
  %3794 = vst [vmem:[#allocation3 + $0x58] sm:$0xff] %v3772
  %3795 = vst [vmem:[#allocation3 + $0x80] sm:$0xff] %v3775
  %3796 = vst [vmem:[#allocation3 + $0x88] sm:$0xff] %v3778
  %3797 = vst [vmem:[#allocation3 + $0xb0] sm:$0xff] %v3780
  %3798 = vst [vmem:[#allocation3 + $0xb8] sm:$0xff] %v3782
  %v3799 = vld [vmem:[#allocation2 + $0x8] sm:$0xfc]
  %v3800 = vld [vmem:[#allocation2 + $0x10] sm:$0xfc]
  %v3801 = vld [vmem:[#allocation2 + $0x50] sm:$0xff]
  %v3802 = vld [vmem:[#allocation2 + $0x58] sm:$0xff]
  %v3803 = vld [vmem:[#allocation2 + $0x98] sm:$0x3]
  %v3804 = vld [vmem:[#allocation2 + $0xa0] sm:$0x3]
  %v3805 = vld [vmem:[#allocation2 + $0xe0] sm:$0xfc]
  %v3806 = vld [vmem:[#allocation2 + $0xe8] sm:$0xfc]
  %v3807 = vld [vmem:[#allocation2 + $0x128] sm:$0xff]
  %v3808 = vld [vmem:[#allocation2 + $0x130] sm:$0xff]
  %v3809 = vld [vmem:[#allocation2 + $0x170] sm:$0x3]
  %v3810 = vld [vmem:[#allocation2 + $0x178] sm:$0x3]
  %v3823 = vrot.slane %v3799, 2
  %v3824 = vrot.slane %v3801, 2
  %v3825 = vsel %vm1054, %v3823, %v3824
  %v3826 = vrot.slane %v3800, 2
  %v3827 = vrot.slane %v3802, 2
  %v3828 = vsel %vm1054, %v3826, %v3827
  %v3829 = vrot.slane %v3803, 2
  %v3830 = vsel %vm1054, %v3824, %v3829
  %v3831 = vrot.slane %v3804, 2
  %v3832 = vsel %vm1054, %v3827, %v3831
  %v3833 = vrot.slane %v3805, 2
  %v3834 = vrot.slane %v3807, 2
  %v3835 = vsel %vm1054, %v3833, %v3834
  %v3836 = vrot.slane %v3806, 2
  %v3837 = vrot.slane %v3808, 2
  %v3838 = vsel %vm1054, %v3836, %v3837
  %v3839 = vrot.slane %v3809, 2
  %v3840 = vsel %vm1054, %v3834, %v3839
  %v3841 = vrot.slane %v3810, 2
  %v3842 = vsel %vm1054, %v3837, %v3841
  %3851 = vst [vmem:[#allocation3 + $0xe0] sm:$0xff] %v3825
  %3852 = vst [vmem:[#allocation3 + $0xe8] sm:$0xff] %v3828
  %3853 = vst [vmem:[#allocation3 + $0x110] sm:$0xff] %v3830
  %3854 = vst [vmem:[#allocation3 + $0x118] sm:$0xff] %v3832
  %3855 = vst [vmem:[#allocation3 + $0x140] sm:$0xff] %v3835
  %3856 = vst [vmem:[#allocation3 + $0x148] sm:$0xff] %v3838
  %3857 = vst [vmem:[#allocation3 + $0x170] sm:$0xff] %v3840
  %3858 = vst [vmem:[#allocation3 + $0x178] sm:$0xff] %v3842
  %v3859 = vld [vmem:[#allocation2 + $0x10] sm:$0xfc]
  %v3860 = vld [vmem:[#allocation2 + $0x18] sm:$0xfc]
  %v3861 = vld [vmem:[#allocation2 + $0x58] sm:$0xff]
  %v3862 = vld [vmem:[#allocation2 + $0x60] sm:$0xff]
  %v3863 = vld [vmem:[#allocation2 + $0xa0] sm:$0x3]
  %v3864 = vld [vmem:[#allocation2 + $0xa8] sm:$0x3]
  %v3865 = vld [vmem:[#allocation2 + $0xe8] sm:$0xfc]
  %v3866 = vld [vmem:[#allocation2 + $0xf0] sm:$0xfc]
  %v3867 = vld [vmem:[#allocation2 + $0x130] sm:$0xff]
  %v3868 = vld [vmem:[#allocation2 + $0x138] sm:$0xff]
  %v3869 = vld [vmem:[#allocation2 + $0x178] sm:$0x3]
  %v3870 = vld [vmem:[#allocation2 + $0x180] sm:$0x3]
  %v3883 = vrot.slane %v3859, 2
  %v3884 = vrot.slane %v3861, 2
  %v3885 = vsel %vm1054, %v3883, %v3884
  %v3886 = vrot.slane %v3860, 2
  %v3887 = vrot.slane %v3862, 2
  %v3888 = vsel %vm1054, %v3886, %v3887
  %v3889 = vrot.slane %v3863, 2
  %v3890 = vsel %vm1054, %v3884, %v3889
  %v3891 = vrot.slane %v3864, 2
  %v3892 = vsel %vm1054, %v3887, %v3891
  %v3893 = vrot.slane %v3865, 2
  %v3894 = vrot.slane %v3867, 2
  %v3895 = vsel %vm1054, %v3893, %v3894
  %v3896 = vrot.slane %v3866, 2
  %v3897 = vrot.slane %v3868, 2
  %v3898 = vsel %vm1054, %v3896, %v3897
  %v3899 = vrot.slane %v3869, 2
  %v3900 = vsel %vm1054, %v3894, %v3899
  %v3901 = vrot.slane %v3870, 2
  %v3902 = vsel %vm1054, %v3897, %v3901
  %3911 = vst [vmem:[#allocation3 + $0x1a0] sm:$0xff] %v3885
  %3912 = vst [vmem:[#allocation3 + $0x1a8] sm:$0xff] %v3888
  %3913 = vst [vmem:[#allocation3 + $0x1d0] sm:$0xff] %v3890
  %3914 = vst [vmem:[#allocation3 + $0x1d8] sm:$0xff] %v3892
  %3915 = vst [vmem:[#allocation3 + $0x200] sm:$0xff] %v3895
  %3916 = vst [vmem:[#allocation3 + $0x208] sm:$0xff] %v3898
  %3917 = vst [vmem:[#allocation3 + $0x230] sm:$0xff] %v3900
  %3918 = vst [vmem:[#allocation3 + $0x238] sm:$0xff] %v3902
  %v3919 = vld [vmem:[#allocation2 + $0x18] sm:$0xfc]
  %v3920 = vld [vmem:[#allocation2 + $0x20] sm:$0xfc]
  %v3921 = vld [vmem:[#allocation2 + $0x60] sm:$0xff]
  %v3922 = vld [vmem:[#allocation2 + $0x68] sm:$0xff]
  %v3923 = vld [vmem:[#allocation2 + $0xa8] sm:$0x3]
  %v3924 = vld [vmem:[#allocation2 + $0xb0] sm:$0x3]
  %v3925 = vld [vmem:[#allocation2 + $0xf0] sm:$0xfc]
  %v3926 = vld [vmem:[#allocation2 + $0xf8] sm:$0xfc]
  %v3927 = vld [vmem:[#allocation2 + $0x138] sm:$0xff]
  %v3928 = vld [vmem:[#allocation2 + $0x140] sm:$0xff]
  %v3929 = vld [vmem:[#allocation2 + $0x180] sm:$0x3]
  %v3930 = vld [vmem:[#allocation2 + $0x188] sm:$0x3]
  %v3943 = vrot.slane %v3919, 2
  %v3944 = vrot.slane %v3921, 2
  %v3945 = vsel %vm1054, %v3943, %v3944
  %v3946 = vrot.slane %v3920, 2
  %v3947 = vrot.slane %v3922, 2
  %v3948 = vsel %vm1054, %v3946, %v3947
  %v3949 = vrot.slane %v3923, 2
  %v3950 = vsel %vm1054, %v3944, %v3949
  %v3951 = vrot.slane %v3924, 2
  %v3952 = vsel %vm1054, %v3947, %v3951
  %v3953 = vrot.slane %v3925, 2
  %v3954 = vrot.slane %v3927, 2
  %v3955 = vsel %vm1054, %v3953, %v3954
  %v3956 = vrot.slane %v3926, 2
  %v3957 = vrot.slane %v3928, 2
  %v3958 = vsel %vm1054, %v3956, %v3957
  %v3959 = vrot.slane %v3929, 2
  %v3960 = vsel %vm1054, %v3954, %v3959
  %v3961 = vrot.slane %v3930, 2
  %v3962 = vsel %vm1054, %v3957, %v3961
  %3971 = vst [vmem:[#allocation3 + $0x260] sm:$0xff] %v3945
  %3972 = vst [vmem:[#allocation3 + $0x268] sm:$0xff] %v3948
  %3973 = vst [vmem:[#allocation3 + $0x290] sm:$0xff] %v3950
  %3974 = vst [vmem:[#allocation3 + $0x298] sm:$0xff] %v3952
  %3975 = vst [vmem:[#allocation3 + $0x2c0] sm:$0xff] %v3955
  %3976 = vst [vmem:[#allocation3 + $0x2c8] sm:$0xff] %v3958
  %3977 = vst [vmem:[#allocation3 + $0x2f0] sm:$0xff] %v3960
  %3978 = vst [vmem:[#allocation3 + $0x2f8] sm:$0xff] %v3962
  %v3979 = vld [vmem:[#allocation2 + $0x20] sm:$0xfc]
  %v3980 = vld [vmem:[#allocation2 + $0x28] sm:$0xfc]
  %v3981 = vld [vmem:[#allocation2 + $0x68] sm:$0xff]
  %v3982 = vld [vmem:[#allocation2 + $0x70] sm:$0xff]
  %v3983 = vld [vmem:[#allocation2 + $0xb0] sm:$0x3]
  %v3984 = vld [vmem:[#allocation2 + $0xb8] sm:$0x3]
  %v3985 = vld [vmem:[#allocation2 + $0xf8] sm:$0xfc]
  %v3986 = vld [vmem:[#allocation2 + $0x100] sm:$0xfc]
  %v3987 = vld [vmem:[#allocation2 + $0x140] sm:$0xff]
  %v3988 = vld [vmem:[#allocation2 + $0x148] sm:$0xff]
  %v3989 = vld [vmem:[#allocation2 + $0x188] sm:$0x3]
  %v3990 = vld [vmem:[#allocation2 + $0x190] sm:$0x3]
  %v4003 = vrot.slane %v3979, 2
  %v4004 = vrot.slane %v3981, 2
  %v4005 = vsel %vm1054, %v4003, %v4004
  %v4006 = vrot.slane %v3980, 2
  %v4007 = vrot.slane %v3982, 2
  %v4008 = vsel %vm1054, %v4006, %v4007
  %v4009 = vrot.slane %v3983, 2
  %v4010 = vsel %vm1054, %v4004, %v4009
  %v4011 = vrot.slane %v3984, 2
  %v4012 = vsel %vm1054, %v4007, %v4011
  %v4013 = vrot.slane %v3985, 2
  %v4014 = vrot.slane %v3987, 2
  %v4015 = vsel %vm1054, %v4013, %v4014
  %v4016 = vrot.slane %v3986, 2
  %v4017 = vrot.slane %v3988, 2
  %v4018 = vsel %vm1054, %v4016, %v4017
  %v4019 = vrot.slane %v3989, 2
  %v4020 = vsel %vm1054, %v4014, %v4019
  %v4021 = vrot.slane %v3990, 2
  %v4022 = vsel %vm1054, %v4017, %v4021
  %4031 = vst [vmem:[#allocation3 + $0x320] sm:$0xff] %v4005
  %4032 = vst [vmem:[#allocation3 + $0x328] sm:$0xff] %v4008
  %4033 = vst [vmem:[#allocation3 + $0x350] sm:$0xff] %v4010
  %4034 = vst [vmem:[#allocation3 + $0x358] sm:$0xff] %v4012
  %4035 = vst [vmem:[#allocation3 + $0x380] sm:$0xff] %v4015
  %4036 = vst [vmem:[#allocation3 + $0x388] sm:$0xff] %v4018
  %4037 = vst [vmem:[#allocation3 + $0x3b0] sm:$0xff] %v4020
  %4038 = vst [vmem:[#allocation3 + $0x3b8] sm:$0xff] %v4022
  %v4039 = vld [vmem:[#allocation2 + $0x28] sm:$0xfc]
  %v4040 = vld [vmem:[#allocation2 + $0x30] sm:$0xfc]
  %v4041 = vld [vmem:[#allocation2 + $0x70] sm:$0xff]
  %v4042 = vld [vmem:[#allocation2 + $0x78] sm:$0xff]
  %v4043 = vld [vmem:[#allocation2 + $0xb8] sm:$0x3]
  %v4044 = vld [vmem:[#allocation2 + $0xc0] sm:$0x3]
  %v4045 = vld [vmem:[#allocation2 + $0x100] sm:$0xfc]
  %v4046 = vld [vmem:[#allocation2 + $0x108] sm:$0xfc]
  %v4047 = vld [vmem:[#allocation2 + $0x148] sm:$0xff]
  %v4048 = vld [vmem:[#allocation2 + $0x150] sm:$0xff]
  %v4049 = vld [vmem:[#allocation2 + $0x190] sm:$0x3]
  %v4050 = vld [vmem:[#allocation2 + $0x198] sm:$0x3]
  %v4063 = vrot.slane %v4039, 2
  %v4064 = vrot.slane %v4041, 2
  %v4065 = vsel %vm1054, %v4063, %v4064
  %v4066 = vrot.slane %v4040, 2
  %v4067 = vrot.slane %v4042, 2
  %v4068 = vsel %vm1054, %v4066, %v4067
  %v4069 = vrot.slane %v4043, 2
  %v4070 = vsel %vm1054, %v4064, %v4069
  %v4071 = vrot.slane %v4044, 2
  %v4072 = vsel %vm1054, %v4067, %v4071
  %v4073 = vrot.slane %v4045, 2
  %v4074 = vrot.slane %v4047, 2
  %v4075 = vsel %vm1054, %v4073, %v4074
  %v4076 = vrot.slane %v4046, 2
  %v4077 = vrot.slane %v4048, 2
  %v4078 = vsel %vm1054, %v4076, %v4077
  %v4079 = vrot.slane %v4049, 2
  %v4080 = vsel %vm1054, %v4074, %v4079
  %v4081 = vrot.slane %v4050, 2
  %v4082 = vsel %vm1054, %v4077, %v4081
  %4091 = vst [vmem:[#allocation3 + $0x3e0] sm:$0xff] %v4065
  %4092 = vst [vmem:[#allocation3 + $0x3e8] sm:$0xff] %v4068
  %4093 = vst [vmem:[#allocation3 + $0x410] sm:$0xff] %v4070
  %4094 = vst [vmem:[#allocation3 + $0x418] sm:$0xff] %v4072
  %4095 = vst [vmem:[#allocation3 + $0x440] sm:$0xff] %v4075
  %4096 = vst [vmem:[#allocation3 + $0x448] sm:$0xff] %v4078
  %4097 = vst [vmem:[#allocation3 + $0x470] sm:$0xff] %v4080
  %4098 = vst [vmem:[#allocation3 + $0x478] sm:$0xff] %v4082
  %v4099 = vld [vmem:[#allocation2 + $0x30] sm:$0xfc]
  %v4100 = vld [vmem:[#allocation2 + $0x38] sm:$0xfc]
  %v4101 = vld [vmem:[#allocation2 + $0x78] sm:$0xff]
  %v4102 = vld [vmem:[#allocation2 + $0x80] sm:$0xff]
  %v4103 = vld [vmem:[#allocation2 + $0xc0] sm:$0x3]
  %v4104 = vld [vmem:[#allocation2 + $0xc8] sm:$0x3]
  %v4105 = vld [vmem:[#allocation2 + $0x108] sm:$0xfc]
  %v4106 = vld [vmem:[#allocation2 + $0x110] sm:$0xfc]
  %v4107 = vld [vmem:[#allocation2 + $0x150] sm:$0xff]
  %v4108 = vld [vmem:[#allocation2 + $0x158] sm:$0xff]
  %v4109 = vld [vmem:[#allocation2 + $0x198] sm:$0x3]
  %v4110 = vld [vmem:[#allocation2 + $0x1a0] sm:$0x3]
  %v4123 = vrot.slane %v4099, 2
  %v4124 = vrot.slane %v4101, 2
  %v4125 = vsel %vm1054, %v4123, %v4124
  %v4126 = vrot.slane %v4100, 2
  %v4127 = vrot.slane %v4102, 2
  %v4128 = vsel %vm1054, %v4126, %v4127
  %v4129 = vrot.slane %v4103, 2
  %v4130 = vsel %vm1054, %v4124, %v4129
  %v4131 = vrot.slane %v4104, 2
  %v4132 = vsel %vm1054, %v4127, %v4131
  %v4133 = vrot.slane %v4105, 2
  %v4134 = vrot.slane %v4107, 2
  %v4135 = vsel %vm1054, %v4133, %v4134
  %v4136 = vrot.slane %v4106, 2
  %v4137 = vrot.slane %v4108, 2
  %v4138 = vsel %vm1054, %v4136, %v4137
  %v4139 = vrot.slane %v4109, 2
  %v4140 = vsel %vm1054, %v4134, %v4139
  %v4141 = vrot.slane %v4110, 2
  %v4142 = vsel %vm1054, %v4137, %v4141
  %4151 = vst [vmem:[#allocation3 + $0x4a0] sm:$0xff] %v4125
  %4152 = vst [vmem:[#allocation3 + $0x4a8] sm:$0xff] %v4128
  %4153 = vst [vmem:[#allocation3 + $0x4d0] sm:$0xff] %v4130
  %4154 = vst [vmem:[#allocation3 + $0x4d8] sm:$0xff] %v4132
  %4155 = vst [vmem:[#allocation3 + $0x500] sm:$0xff] %v4135
  %4156 = vst [vmem:[#allocation3 + $0x508] sm:$0xff] %v4138
  %4157 = vst [vmem:[#allocation3 + $0x530] sm:$0xff] %v4140
  %4158 = vst [vmem:[#allocation3 + $0x538] sm:$0xff] %v4142
  %v4159 = vld [vmem:[#allocation2 + $0x38] sm:$0xfc]
  %v4160 = vld [vmem:[#allocation2 + $0x40] sm:$0xfc]
  %v4161 = vld [vmem:[#allocation2 + $0x80] sm:$0xff]
  %v4162 = vld [vmem:[#allocation2 + $0x88] sm:$0xff]
  %v4163 = vld [vmem:[#allocation2 + $0xc8] sm:$0x3]
  %v4164 = vld [vmem:[#allocation2 + $0xd0] sm:$0x3]
  %v4165 = vld [vmem:[#allocation2 + $0x110] sm:$0xfc]
  %v4166 = vld [vmem:[#allocation2 + $0x118] sm:$0xfc]
  %v4167 = vld [vmem:[#allocation2 + $0x158] sm:$0xff]
  %v4168 = vld [vmem:[#allocation2 + $0x160] sm:$0xff]
  %v4169 = vld [vmem:[#allocation2 + $0x1a0] sm:$0x3]
  %v4170 = vld [vmem:[#allocation2 + $0x1a8] sm:$0x3]
  %v4183 = vrot.slane %v4159, 2
  %v4184 = vrot.slane %v4161, 2
  %v4185 = vsel %vm1054, %v4183, %v4184
  %v4186 = vrot.slane %v4160, 2
  %v4187 = vrot.slane %v4162, 2
  %v4188 = vsel %vm1054, %v4186, %v4187
  %v4189 = vrot.slane %v4163, 2
  %v4190 = vsel %vm1054, %v4184, %v4189
  %v4191 = vrot.slane %v4164, 2
  %v4192 = vsel %vm1054, %v4187, %v4191
  %v4193 = vrot.slane %v4165, 2
  %v4194 = vrot.slane %v4167, 2
  %v4195 = vsel %vm1054, %v4193, %v4194
  %v4196 = vrot.slane %v4166, 2
  %v4197 = vrot.slane %v4168, 2
  %v4198 = vsel %vm1054, %v4196, %v4197
  %v4199 = vrot.slane %v4169, 2
  %v4200 = vsel %vm1054, %v4194, %v4199
  %v4201 = vrot.slane %v4170, 2
  %v4202 = vsel %vm1054, %v4197, %v4201
  %4211 = vst [vmem:[#allocation3 + $0x560] sm:$0xff] %v4185
  %4212 = vst [vmem:[#allocation3 + $0x568] sm:$0xff] %v4188
  %4213 = vst [vmem:[#allocation3 + $0x590] sm:$0xff] %v4190
  %4214 = vst [vmem:[#allocation3 + $0x598] sm:$0xff] %v4192
  %4215 = vst [vmem:[#allocation3 + $0x5c0] sm:$0xff] %v4195
  %4216 = vst [vmem:[#allocation3 + $0x5c8] sm:$0xff] %v4198
  %4217 = vst [vmem:[#allocation3 + $0x5f0] sm:$0xff] %v4200
  %4218 = vst [vmem:[#allocation3 + $0x5f8] sm:$0xff] %v4202
  %v4219 = vld [vmem:[#allocation3] sm:$0xff]
  %v4220 = vld [vmem:[#allocation3 + $0x8] sm:$0xff]
  %v4221 = vld [vmem:[#allocation3 + $0x10] sm:$0xff]
  %v4222 = vld [vmem:[#allocation3 + $0x18] sm:$0xff]
  %v4223 = vld [vmem:[#allocation3 + $0x20] sm:$0xff]
  %v4224 = vld [vmem:[#allocation3 + $0x28] sm:$0xff]
  %v4225 = vld [vmem:[#allocation3 + $0x30] sm:$0xff]
  %v4226 = vld [vmem:[#allocation3 + $0x38] sm:$0xff]
  %v4227 = vld [vmem:[#allocation3 + $0x40] sm:$0xff]
  %v4228 = vld [vmem:[#allocation3 + $0x48] sm:$0xff]
  %v4229 = vld [vmem:[#allocation3 + $0x50] sm:$0xff]
  %v4230 = vld [vmem:[#allocation3 + $0x58] sm:$0xff]
  %v4231 = vld [vmem:[#allocation3 + $0x60] sm:$0xff]
  %v4232 = vld [vmem:[#allocation3 + $0x68] sm:$0xff]
  %v4233 = vld [vmem:[#allocation3 + $0x70] sm:$0xff]
  %v4234 = vld [vmem:[#allocation3 + $0x78] sm:$0xff]
  %v4235 = vld [vmem:[#allocation3 + $0x80] sm:$0xff]
  %v4236 = vld [vmem:[#allocation3 + $0x88] sm:$0xff]
  %v4237 = vld [vmem:[#allocation3 + $0x90] sm:$0xff]
  %v4238 = vld [vmem:[#allocation3 + $0x98] sm:$0xff]
  %v4239 = vld [vmem:[#allocation3 + $0xa0] sm:$0xff]
  %v4240 = vld [vmem:[#allocation3 + $0xa8] sm:$0xff]
  %v4241 = vld [vmem:[#allocation3 + $0xb0] sm:$0xff]
  %v4242 = vld [vmem:[#allocation3 + $0xb8] sm:$0xff]
  %v4243 = vld [vmem:[#allocation3 + $0xc0] sm:$0xff]
  %v4244 = vld [vmem:[#allocation3 + $0xc8] sm:$0xff]
  %v4245 = vld [vmem:[#allocation3 + $0xd0] sm:$0xff]
  %v4246 = vld [vmem:[#allocation3 + $0xd8] sm:$0xff]
  %v4247 = vld [vmem:[#allocation3 + $0xe0] sm:$0xff]
  %v4248 = vld [vmem:[#allocation3 + $0xe8] sm:$0xff]
  %v4249 = vld [vmem:[#allocation3 + $0xf0] sm:$0xff]
  %v4250 = vld [vmem:[#allocation3 + $0xf8] sm:$0xff]
  %v4251 = vld [vmem:[#allocation3 + $0x100] sm:$0xff]
  %v4252 = vld [vmem:[#allocation3 + $0x108] sm:$0xff]
  %v4253 = vld [vmem:[#allocation3 + $0x110] sm:$0xff]
  %v4254 = vld [vmem:[#allocation3 + $0x118] sm:$0xff]
  %v4255 = vld [vmem:[#allocation3 + $0x120] sm:$0xff]
  %v4256 = vld [vmem:[#allocation3 + $0x128] sm:$0xff]
  %v4257 = vld [vmem:[#allocation3 + $0x130] sm:$0xff]
  %v4258 = vld [vmem:[#allocation3 + $0x138] sm:$0xff]
  %v4259 = vld [vmem:[#allocation3 + $0x140] sm:$0xff]
  %v4260 = vld [vmem:[#allocation3 + $0x148] sm:$0xff]
  %v4261 = vld [vmem:[#allocation3 + $0x150] sm:$0xff]
  %v4262 = vld [vmem:[#allocation3 + $0x158] sm:$0xff]
  %v4263 = vld [vmem:[#allocation3 + $0x160] sm:$0xff]
  %v4264 = vld [vmem:[#allocation3 + $0x168] sm:$0xff]
  %v4265 = vld [vmem:[#allocation3 + $0x170] sm:$0xff]
  %v4266 = vld [vmem:[#allocation3 + $0x178] sm:$0xff]
  %v4267 = vld [vmem:[#allocation3 + $0x180] sm:$0xff]
  %v4268 = vld [vmem:[#allocation3 + $0x188] sm:$0xff]
  %v4269 = vld [vmem:[#allocation3 + $0x190] sm:$0xff]
  %v4270 = vld [vmem:[#allocation3 + $0x198] sm:$0xff]
  %v4271 = vld [vmem:[#allocation3 + $0x1a0] sm:$0xff]
  %v4272 = vld [vmem:[#allocation3 + $0x1a8] sm:$0xff]
  %v4273 = vld [vmem:[#allocation3 + $0x1b0] sm:$0xff]
  %v4274 = vld [vmem:[#allocation3 + $0x1b8] sm:$0xff]
  %v4275 = vld [vmem:[#allocation3 + $0x1c0] sm:$0xff]
  %v4276 = vld [vmem:[#allocation3 + $0x1c8] sm:$0xff]
  %v4277 = vld [vmem:[#allocation3 + $0x1d0] sm:$0xff]
  %v4278 = vld [vmem:[#allocation3 + $0x1d8] sm:$0xff]
  %v4279 = vld [vmem:[#allocation3 + $0x1e0] sm:$0xff]
  %v4280 = vld [vmem:[#allocation3 + $0x1e8] sm:$0xff]
  %v4281 = vld [vmem:[#allocation3 + $0x1f0] sm:$0xff]
  %v4282 = vld [vmem:[#allocation3 + $0x1f8] sm:$0xff]
  %v4283 = vld [vmem:[#allocation3 + $0x200] sm:$0xff]
  %v4284 = vld [vmem:[#allocation3 + $0x208] sm:$0xff]
  %v4285 = vld [vmem:[#allocation3 + $0x210] sm:$0xff]
  %v4286 = vld [vmem:[#allocation3 + $0x218] sm:$0xff]
  %v4287 = vld [vmem:[#allocation3 + $0x220] sm:$0xff]
  %v4288 = vld [vmem:[#allocation3 + $0x228] sm:$0xff]
  %v4289 = vld [vmem:[#allocation3 + $0x230] sm:$0xff]
  %v4290 = vld [vmem:[#allocation3 + $0x238] sm:$0xff]
  %v4291 = vld [vmem:[#allocation3 + $0x240] sm:$0xff]
  %v4292 = vld [vmem:[#allocation3 + $0x248] sm:$0xff]
  %v4293 = vld [vmem:[#allocation3 + $0x250] sm:$0xff]
  %v4294 = vld [vmem:[#allocation3 + $0x258] sm:$0xff]
  %v4295 = vld [vmem:[#allocation3 + $0x260] sm:$0xff]
  %v4296 = vld [vmem:[#allocation3 + $0x268] sm:$0xff]
  %v4297 = vld [vmem:[#allocation3 + $0x270] sm:$0xff]
  %v4298 = vld [vmem:[#allocation3 + $0x278] sm:$0xff]
  %v4299 = vld [vmem:[#allocation3 + $0x280] sm:$0xff]
  %v4300 = vld [vmem:[#allocation3 + $0x288] sm:$0xff]
  %v4301 = vld [vmem:[#allocation3 + $0x290] sm:$0xff]
  %v4302 = vld [vmem:[#allocation3 + $0x298] sm:$0xff]
  %v4303 = vld [vmem:[#allocation3 + $0x2a0] sm:$0xff]
  %v4304 = vld [vmem:[#allocation3 + $0x2a8] sm:$0xff]
  %v4305 = vld [vmem:[#allocation3 + $0x2b0] sm:$0xff]
  %v4306 = vld [vmem:[#allocation3 + $0x2b8] sm:$0xff]
  %v4307 = vld [vmem:[#allocation3 + $0x2c0] sm:$0xff]
  %v4308 = vld [vmem:[#allocation3 + $0x2c8] sm:$0xff]
  %v4309 = vld [vmem:[#allocation3 + $0x2d0] sm:$0xff]
  %v4310 = vld [vmem:[#allocation3 + $0x2d8] sm:$0xff]
  %v4311 = vld [vmem:[#allocation3 + $0x2e0] sm:$0xff]
  %v4312 = vld [vmem:[#allocation3 + $0x2e8] sm:$0xff]
  %v4313 = vld [vmem:[#allocation3 + $0x2f0] sm:$0xff]
  %v4314 = vld [vmem:[#allocation3 + $0x2f8] sm:$0xff]
  %v4315 = vld [vmem:[#allocation3 + $0x300] sm:$0xff]
  %v4316 = vld [vmem:[#allocation3 + $0x308] sm:$0xff]
  %v4317 = vld [vmem:[#allocation3 + $0x310] sm:$0xff]
  %v4318 = vld [vmem:[#allocation3 + $0x318] sm:$0xff]
  %v4319 = vld [vmem:[#allocation3 + $0x320] sm:$0xff]
  %v4320 = vld [vmem:[#allocation3 + $0x328] sm:$0xff]
  %v4321 = vld [vmem:[#allocation3 + $0x330] sm:$0xff]
  %v4322 = vld [vmem:[#allocation3 + $0x338] sm:$0xff]
  %v4323 = vld [vmem:[#allocation3 + $0x340] sm:$0xff]
  %v4324 = vld [vmem:[#allocation3 + $0x348] sm:$0xff]
  %v4325 = vld [vmem:[#allocation3 + $0x350] sm:$0xff]
  %v4326 = vld [vmem:[#allocation3 + $0x358] sm:$0xff]
  %v4327 = vld [vmem:[#allocation3 + $0x360] sm:$0xff]
  %v4328 = vld [vmem:[#allocation3 + $0x368] sm:$0xff]
  %v4329 = vld [vmem:[#allocation3 + $0x370] sm:$0xff]
  %v4330 = vld [vmem:[#allocation3 + $0x378] sm:$0xff]
  %v4331 = vld [vmem:[#allocation3 + $0x380] sm:$0xff]
  %v4332 = vld [vmem:[#allocation3 + $0x388] sm:$0xff]
  %v4333 = vld [vmem:[#allocation3 + $0x390] sm:$0xff]
  %v4334 = vld [vmem:[#allocation3 + $0x398] sm:$0xff]
  %v4335 = vld [vmem:[#allocation3 + $0x3a0] sm:$0xff]
  %v4336 = vld [vmem:[#allocation3 + $0x3a8] sm:$0xff]
  %v4337 = vld [vmem:[#allocation3 + $0x3b0] sm:$0xff]
  %v4338 = vld [vmem:[#allocation3 + $0x3b8] sm:$0xff]
  %v4339 = vld [vmem:[#allocation3 + $0x3c0] sm:$0xff]
  %v4340 = vld [vmem:[#allocation3 + $0x3c8] sm:$0xff]
  %v4341 = vld [vmem:[#allocation3 + $0x3d0] sm:$0xff]
  %v4342 = vld [vmem:[#allocation3 + $0x3d8] sm:$0xff]
  %v4343 = vld [vmem:[#allocation3 + $0x3e0] sm:$0xff]
  %v4344 = vld [vmem:[#allocation3 + $0x3e8] sm:$0xff]
  %v4345 = vld [vmem:[#allocation3 + $0x3f0] sm:$0xff]
  %v4346 = vld [vmem:[#allocation3 + $0x3f8] sm:$0xff]
  %v4347 = vld [vmem:[#allocation3 + $0x400] sm:$0xff]
  %v4348 = vld [vmem:[#allocation3 + $0x408] sm:$0xff]
  %v4349 = vld [vmem:[#allocation3 + $0x410] sm:$0xff]
  %v4350 = vld [vmem:[#allocation3 + $0x418] sm:$0xff]
  %v4351 = vld [vmem:[#allocation3 + $0x420] sm:$0xff]
  %v4352 = vld [vmem:[#allocation3 + $0x428] sm:$0xff]
  %v4353 = vld [vmem:[#allocation3 + $0x430] sm:$0xff]
  %v4354 = vld [vmem:[#allocation3 + $0x438] sm:$0xff]
  %v4355 = vld [vmem:[#allocation3 + $0x440] sm:$0xff]
  %v4356 = vld [vmem:[#allocation3 + $0x448] sm:$0xff]
  %v4357 = vld [vmem:[#allocation3 + $0x450] sm:$0xff]
  %v4358 = vld [vmem:[#allocation3 + $0x458] sm:$0xff]
  %v4359 = vld [vmem:[#allocation3 + $0x460] sm:$0xff]
  %v4360 = vld [vmem:[#allocation3 + $0x468] sm:$0xff]
  %v4361 = vld [vmem:[#allocation3 + $0x470] sm:$0xff]
  %v4362 = vld [vmem:[#allocation3 + $0x478] sm:$0xff]
  %v4363 = vld [vmem:[#allocation3 + $0x480] sm:$0xff]
  %v4364 = vld [vmem:[#allocation3 + $0x488] sm:$0xff]
  %v4365 = vld [vmem:[#allocation3 + $0x490] sm:$0xff]
  %v4366 = vld [vmem:[#allocation3 + $0x498] sm:$0xff]
  %v4367 = vld [vmem:[#allocation3 + $0x4a0] sm:$0xff]
  %v4368 = vld [vmem:[#allocation3 + $0x4a8] sm:$0xff]
  %v4369 = vld [vmem:[#allocation3 + $0x4b0] sm:$0xff]
  %v4370 = vld [vmem:[#allocation3 + $0x4b8] sm:$0xff]
  %v4371 = vld [vmem:[#allocation3 + $0x4c0] sm:$0xff]
  %v4372 = vld [vmem:[#allocation3 + $0x4c8] sm:$0xff]
  %v4373 = vld [vmem:[#allocation3 + $0x4d0] sm:$0xff]
  %v4374 = vld [vmem:[#allocation3 + $0x4d8] sm:$0xff]
  %v4375 = vld [vmem:[#allocation3 + $0x4e0] sm:$0xff]
  %v4376 = vld [vmem:[#allocation3 + $0x4e8] sm:$0xff]
  %v4377 = vld [vmem:[#allocation3 + $0x4f0] sm:$0xff]
  %v4378 = vld [vmem:[#allocation3 + $0x4f8] sm:$0xff]
  %v4379 = vld [vmem:[#allocation3 + $0x500] sm:$0xff]
  %v4380 = vld [vmem:[#allocation3 + $0x508] sm:$0xff]
  %v4381 = vld [vmem:[#allocation3 + $0x510] sm:$0xff]
  %v4382 = vld [vmem:[#allocation3 + $0x518] sm:$0xff]
  %v4383 = vld [vmem:[#allocation3 + $0x520] sm:$0xff]
  %v4384 = vld [vmem:[#allocation3 + $0x528] sm:$0xff]
  %v4385 = vld [vmem:[#allocation3 + $0x530] sm:$0xff]
  %v4386 = vld [vmem:[#allocation3 + $0x538] sm:$0xff]
  %v4387 = vld [vmem:[#allocation3 + $0x540] sm:$0xff]
  %v4388 = vld [vmem:[#allocation3 + $0x548] sm:$0xff]
  %v4389 = vld [vmem:[#allocation3 + $0x550] sm:$0xff]
  %v4390 = vld [vmem:[#allocation3 + $0x558] sm:$0xff]
  %v4391 = vld [vmem:[#allocation3 + $0x560] sm:$0xff]
  %v4392 = vld [vmem:[#allocation3 + $0x568] sm:$0xff]
  %v4393 = vld [vmem:[#allocation3 + $0x570] sm:$0xff]
  %v4394 = vld [vmem:[#allocation3 + $0x578] sm:$0xff]
  %v4395 = vld [vmem:[#allocation3 + $0x580] sm:$0xff]
  %v4396 = vld [vmem:[#allocation3 + $0x588] sm:$0xff]
  %v4397 = vld [vmem:[#allocation3 + $0x590] sm:$0xff]
  %v4398 = vld [vmem:[#allocation3 + $0x598] sm:$0xff]
  %v4399 = vld [vmem:[#allocation3 + $0x5a0] sm:$0xff]
  %v4400 = vld [vmem:[#allocation3 + $0x5a8] sm:$0xff]
  %v4401 = vld [vmem:[#allocation3 + $0x5b0] sm:$0xff]
  %v4402 = vld [vmem:[#allocation3 + $0x5b8] sm:$0xff]
  %v4403 = vld [vmem:[#allocation3 + $0x5c0] sm:$0xff]
  %v4404 = vld [vmem:[#allocation3 + $0x5c8] sm:$0xff]
  %v4405 = vld [vmem:[#allocation3 + $0x5d0] sm:$0xff]
  %v4406 = vld [vmem:[#allocation3 + $0x5d8] sm:$0xff]
  %v4407 = vld [vmem:[#allocation3 + $0x5e0] sm:$0xff]
  %v4408 = vld [vmem:[#allocation3 + $0x5e8] sm:$0xff]
  %v4409 = vld [vmem:[#allocation3 + $0x5f0] sm:$0xff]
  %v4410 = vld [vmem:[#allocation3 + $0x5f8] sm:$0xff]
  %v4411 = vld [vmem:[%s2] sm:$0xff]
  %v4412 = vld [vmem:[%s2 + $0x8] sm:$0xff]
  %v4413 = vld [vmem:[%s2 + $0x10] sm:$0xff]
  %v4414 = vld [vmem:[%s2 + $0x18] sm:$0xff]
  %v4415 = vld [vmem:[%s2 + $0x20] sm:$0xff]
  %v4416 = vld [vmem:[%s2 + $0x28] sm:$0xff]
  %v4417 = vld [vmem:[%s2 + $0x30] sm:$0xff]
  %v4418 = vld [vmem:[%s2 + $0x38] sm:$0xff]
  %v4419 = vld [vmem:[%s2 + $0x40] sm:$0xff]
  %v4420 = vld [vmem:[%s2 + $0x48] sm:$0xff]
  %v4421 = vld [vmem:[%s2 + $0x50] sm:$0xff]
  %v4422 = vld [vmem:[%s2 + $0x58] sm:$0xff]
  %v4423 = vld [vmem:[%s2 + $0x60] sm:$0xff]
  %v4424 = vld [vmem:[%s2 + $0x68] sm:$0xff]
  %v4425 = vld [vmem:[%s2 + $0x70] sm:$0xff]
  %v4426 = vld [vmem:[%s2 + $0x78] sm:$0xff]
  %v4427 = vld [vmem:[%s2 + $0x80] sm:$0xff]
  %v4428 = vld [vmem:[%s2 + $0x88] sm:$0xff]
  %v4429 = vld [vmem:[%s2 + $0x90] sm:$0xff]
  %v4430 = vld [vmem:[%s2 + $0x98] sm:$0xff]
  %v4431 = vld [vmem:[%s2 + $0xa0] sm:$0xff]
  %v4432 = vld [vmem:[%s2 + $0xa8] sm:$0xff]
  %v4433 = vld [vmem:[%s2 + $0xb0] sm:$0xff]
  %v4434 = vld [vmem:[%s2 + $0xb8] sm:$0xff]
  %v4435 = vld [vmem:[%s2 + $0xc0] sm:$0xff]
  %v4436 = vld [vmem:[%s2 + $0xc8] sm:$0xff]
  %v4437 = vld [vmem:[%s2 + $0xd0] sm:$0xff]
  %v4438 = vld [vmem:[%s2 + $0xd8] sm:$0xff]
  %v4439 = vld [vmem:[%s2 + $0xe0] sm:$0xff]
  %v4440 = vld [vmem:[%s2 + $0xe8] sm:$0xff]
  %v4441 = vld [vmem:[%s2 + $0xf0] sm:$0xff]
  %v4442 = vld [vmem:[%s2 + $0xf8] sm:$0xff]
  %v4443 = vld [vmem:[%s2 + $0x100] sm:$0xff]
  %v4444 = vld [vmem:[%s2 + $0x108] sm:$0xff]
  %v4445 = vld [vmem:[%s2 + $0x110] sm:$0xff]
  %v4446 = vld [vmem:[%s2 + $0x118] sm:$0xff]
  %v4447 = vld [vmem:[%s2 + $0x120] sm:$0xff]
  %v4448 = vld [vmem:[%s2 + $0x128] sm:$0xff]
  %v4449 = vld [vmem:[%s2 + $0x130] sm:$0xff]
  %v4450 = vld [vmem:[%s2 + $0x138] sm:$0xff]
  %v4451 = vld [vmem:[%s2 + $0x140] sm:$0xff]
  %v4452 = vld [vmem:[%s2 + $0x148] sm:$0xff]
  %v4453 = vld [vmem:[%s2 + $0x150] sm:$0xff]
  %v4454 = vld [vmem:[%s2 + $0x158] sm:$0xff]
  %v4455 = vld [vmem:[%s2 + $0x160] sm:$0xff]
  %v4456 = vld [vmem:[%s2 + $0x168] sm:$0xff]
  %v4457 = vld [vmem:[%s2 + $0x170] sm:$0xff]
  %v4458 = vld [vmem:[%s2 + $0x178] sm:$0xff]
  %v4459 = vld [vmem:[%s2 + $0x180] sm:$0xff]
  %v4460 = vld [vmem:[%s2 + $0x188] sm:$0xff]
  %v4461 = vld [vmem:[%s2 + $0x190] sm:$0xff]
  %v4462 = vld [vmem:[%s2 + $0x198] sm:$0xff]
  %v4463 = vld [vmem:[%s2 + $0x1a0] sm:$0xff]
  %v4464 = vld [vmem:[%s2 + $0x1a8] sm:$0xff]
  %v4465 = vld [vmem:[%s2 + $0x1b0] sm:$0xff]
  %v4466 = vld [vmem:[%s2 + $0x1b8] sm:$0xff]
  %v4467 = vld [vmem:[%s2 + $0x1c0] sm:$0xff]
  %v4468 = vld [vmem:[%s2 + $0x1c8] sm:$0xff]
  %v4469 = vld [vmem:[%s2 + $0x1d0] sm:$0xff]
  %v4470 = vld [vmem:[%s2 + $0x1d8] sm:$0xff]
  %v4471 = vld [vmem:[%s2 + $0x1e0] sm:$0xff]
  %v4472 = vld [vmem:[%s2 + $0x1e8] sm:$0xff]
  %v4473 = vld [vmem:[%s2 + $0x1f0] sm:$0xff]
  %v4474 = vld [vmem:[%s2 + $0x1f8] sm:$0xff]
  %v4475 = vld [vmem:[%s2 + $0x200] sm:$0xff]
  %v4476 = vld [vmem:[%s2 + $0x208] sm:$0xff]
  %v4477 = vld [vmem:[%s2 + $0x210] sm:$0xff]
  %v4478 = vld [vmem:[%s2 + $0x218] sm:$0xff]
  %v4479 = vld [vmem:[%s2 + $0x220] sm:$0xff]
  %v4480 = vld [vmem:[%s2 + $0x228] sm:$0xff]
  %v4481 = vld [vmem:[%s2 + $0x230] sm:$0xff]
  %v4482 = vld [vmem:[%s2 + $0x238] sm:$0xff]
  %v4483 = vld [vmem:[%s2 + $0x240] sm:$0xff]
  %v4484 = vld [vmem:[%s2 + $0x248] sm:$0xff]
  %v4485 = vld [vmem:[%s2 + $0x250] sm:$0xff]
  %v4486 = vld [vmem:[%s2 + $0x258] sm:$0xff]
  %v4487 = vld [vmem:[%s2 + $0x260] sm:$0xff]
  %v4488 = vld [vmem:[%s2 + $0x268] sm:$0xff]
  %v4489 = vld [vmem:[%s2 + $0x270] sm:$0xff]
  %v4490 = vld [vmem:[%s2 + $0x278] sm:$0xff]
  %v4491 = vld [vmem:[%s2 + $0x280] sm:$0xff]
  %v4492 = vld [vmem:[%s2 + $0x288] sm:$0xff]
  %v4493 = vld [vmem:[%s2 + $0x290] sm:$0xff]
  %v4494 = vld [vmem:[%s2 + $0x298] sm:$0xff]
  %v4495 = vld [vmem:[%s2 + $0x2a0] sm:$0xff]
  %v4496 = vld [vmem:[%s2 + $0x2a8] sm:$0xff]
  %v4497 = vld [vmem:[%s2 + $0x2b0] sm:$0xff]
  %v4498 = vld [vmem:[%s2 + $0x2b8] sm:$0xff]
  %v4499 = vld [vmem:[%s2 + $0x2c0] sm:$0xff]
  %v4500 = vld [vmem:[%s2 + $0x2c8] sm:$0xff]
  %v4501 = vld [vmem:[%s2 + $0x2d0] sm:$0xff]
  %v4502 = vld [vmem:[%s2 + $0x2d8] sm:$0xff]
  %v4503 = vld [vmem:[%s2 + $0x2e0] sm:$0xff]
  %v4504 = vld [vmem:[%s2 + $0x2e8] sm:$0xff]
  %v4505 = vld [vmem:[%s2 + $0x2f0] sm:$0xff]
  %v4506 = vld [vmem:[%s2 + $0x2f8] sm:$0xff]
  %4507 = vmatprep.subr.mxu0 0.0
  %4508 = vmatpush1.msra.mxu0 %v4426
  %4509 = vmatprep.subr.mxu0 0.0
  %4510 = vmatpush1.msra.mxu0 %v4425
  %4511 = vmatprep.subr.mxu0 0.0
  %4512 = vmatpush1.msra.mxu0 %v4424
  %4513 = vmatprep.subr.mxu0 0.0
  %4514 = vmatpush1.msra.mxu0 %v4423
  %4515 = vmatprep.subr.mxu0 0.0
  %4516 = vmatpush1.msra.mxu0 %v4422
  %4517 = vmatprep.subr.mxu0 0.0
  %4518 = vmatpush1.msra.mxu0 %v4421
  %4519 = vmatprep.subr.mxu0 0.0
  %4520 = vmatpush1.msra.mxu0 %v4420
  %4521 = vmatprep.subr.mxu0 0.0
  %4522 = vmatpush1.msra.mxu0 %v4419
  %4523 = vmatprep.subr.mxu0 0.0
  %4524 = vmatpush1.msra.mxu0 %v4418
  %4525 = vmatprep.subr.mxu0 0.0
  %4526 = vmatpush1.msra.mxu0 %v4417
  %4527 = vmatprep.subr.mxu0 0.0
  %4528 = vmatpush1.msra.mxu0 %v4416
  %4529 = vmatprep.subr.mxu0 0.0
  %4530 = vmatpush1.msra.mxu0 %v4415
  %4531 = vmatprep.subr.mxu0 0.0
  %4532 = vmatpush1.msra.mxu0 %v4414
  %4533 = vmatprep.subr.mxu0 0.0
  %4534 = vmatpush1.msra.mxu0 %v4413
  %4535 = vmatprep.subr.mxu0 0.0
  %4536 = vmatpush1.msra.mxu0 %v4412
  %4537 = vmatprep.subr.mxu0 0.0
  %4538 = vmatpush1.msra.mxu0 %v4411
  %4539 = vmatprep.subr.mxu0 0.0
  %4540 = vmatpush2.msra.mxu0 %v4442
  %4541 = vmatprep.subr.mxu0 0.0
  %4542 = vmatpush2.msra.mxu0 %v4441
  %4543 = vmatprep.subr.mxu0 0.0
  %4544 = vmatpush2.msra.mxu0 %v4440
  %4545 = vmatprep.subr.mxu0 0.0
  %4546 = vmatpush2.msra.mxu0 %v4439
  %4547 = vmatprep.subr.mxu0 0.0
  %4548 = vmatpush2.msra.mxu0 %v4438
  %4549 = vmatprep.subr.mxu0 0.0
  %4550 = vmatpush2.msra.mxu0 %v4437
  %4551 = vmatprep.subr.mxu0 0.0
  %4552 = vmatpush2.msra.mxu0 %v4436
  %4553 = vmatprep.subr.mxu0 0.0
  %4554 = vmatpush2.msra.mxu0 %v4435
  %4555 = vmatprep.subr.mxu0 0.0
  %4556 = vmatpush2.msra.mxu0 %v4434
  %4557 = vmatprep.subr.mxu0 0.0
  %4558 = vmatpush2.msra.mxu0 %v4433
  %4559 = vmatprep.subr.mxu0 0.0
  %4560 = vmatpush2.msra.mxu0 %v4432
  %4561 = vmatprep.subr.mxu0 0.0
  %4562 = vmatpush2.msra.mxu0 %v4431
  %4563 = vmatprep.subr.mxu0 0.0
  %4564 = vmatpush2.msra.mxu0 %v4430
  %4565 = vmatprep.subr.mxu0 0.0
  %4566 = vmatpush2.msra.mxu0 %v4429
  %4567 = vmatprep.subr.mxu0 0.0
  %4568 = vmatpush2.msra.mxu0 %v4428
  %4569 = vmatprep.subr.mxu0 0.0
  %4570 = vmatpush2.msra.mxu0 %v4427
  %4571 = vmatprep.mubr.f32.mxu0 %v4220
  %4572 = vmatmul.mubr.f32.gmra.mxu0 %v4219
  %v4573 = vpop.f32.mrf.mxu0
  %v4574 = vadd.f32 0.0, %v4573
  %v4575 = vpop.f32.mrf.mxu0
  %4576 = vmatprep.mubr.f32.mxu0 %v4226
  %4577 = vmatmul.mubr.f32.gmra.mxu0 %v4225
  %v4578 = vpop.f32.mrf.mxu0
  %v4579 = vadd.f32 0.0, %v4578
  %v4580 = vpop.f32.mrf.mxu0
  %4581 = vmatprep.mubr.f32.mxu0 %v4232
  %4582 = vmatmul.mubr.f32.gmra.mxu0 %v4231
  %v4583 = vpop.f32.mrf.mxu0
  %v4584 = vadd.f32 0.0, %v4583
  %v4585 = vpop.f32.mrf.mxu0
  %4586 = vmatprep.mubr.f32.mxu0 %v4238
  %4587 = vmatmul.mubr.f32.gmra.mxu0 %v4237
  %v4588 = vpop.f32.mrf.mxu0
  %v4589 = vadd.f32 0.0, %v4588
  %v4590 = vpop.f32.mrf.mxu0
  %4591 = vmatprep.mubr.f32.mxu0 %v4244
  %4592 = vmatmul.mubr.f32.gmra.mxu0 %v4243
  %v4593 = vpop.f32.mrf.mxu0
  %v4594 = vadd.f32 0.0, %v4593
  %v4595 = vpop.f32.mrf.mxu0
  %4596 = vmatprep.mubr.f32.mxu0 %v4250
  %4597 = vmatmul.mubr.f32.gmra.mxu0 %v4249
  %v4598 = vpop.f32.mrf.mxu0
  %v4599 = vadd.f32 0.0, %v4598
  %v4600 = vpop.f32.mrf.mxu0
  %4601 = vmatprep.mubr.f32.mxu0 %v4256
  %4602 = vmatmul.mubr.f32.gmra.mxu0 %v4255
  %v4603 = vpop.f32.mrf.mxu0
  %v4604 = vadd.f32 0.0, %v4603
  %v4605 = vpop.f32.mrf.mxu0
  %4606 = vmatprep.mubr.f32.mxu0 %v4262
  %4607 = vmatmul.mubr.f32.gmra.mxu0 %v4261
  %v4608 = vpop.f32.mrf.mxu0
  %v4609 = vadd.f32 0.0, %v4608
  %v4610 = vpop.f32.mrf.mxu0
  %4611 = vmatprep.mubr.f32.mxu0 %v4268
  %4612 = vmatmul.mubr.f32.gmra.mxu0 %v4267
  %v4613 = vpop.f32.mrf.mxu0
  %v4614 = vadd.f32 0.0, %v4613
  %v4615 = vpop.f32.mrf.mxu0
  %4616 = vmatprep.mubr.f32.mxu0 %v4274
  %4617 = vmatmul.mubr.f32.gmra.mxu0 %v4273
  %v4618 = vpop.f32.mrf.mxu0
  %v4619 = vadd.f32 0.0, %v4618
  %v4620 = vpop.f32.mrf.mxu0
  %4621 = vmatprep.mubr.f32.mxu0 %v4280
  %4622 = vmatmul.mubr.f32.gmra.mxu0 %v4279
  %v4623 = vpop.f32.mrf.mxu0
  %v4624 = vadd.f32 0.0, %v4623
  %v4625 = vpop.f32.mrf.mxu0
  %4626 = vmatprep.mubr.f32.mxu0 %v4286
  %4627 = vmatmul.mubr.f32.gmra.mxu0 %v4285
  %v4628 = vpop.f32.mrf.mxu0
  %v4629 = vadd.f32 0.0, %v4628
  %v4630 = vpop.f32.mrf.mxu0
  %4631 = vmatprep.mubr.f32.mxu0 %v4292
  %4632 = vmatmul.mubr.f32.gmra.mxu0 %v4291
  %v4633 = vpop.f32.mrf.mxu0
  %v4634 = vadd.f32 0.0, %v4633
  %v4635 = vpop.f32.mrf.mxu0
  %4636 = vmatprep.mubr.f32.mxu0 %v4298
  %4637 = vmatmul.mubr.f32.gmra.mxu0 %v4297
  %v4638 = vpop.f32.mrf.mxu0
  %v4639 = vadd.f32 0.0, %v4638
  %v4640 = vpop.f32.mrf.mxu0
  %4641 = vmatprep.mubr.f32.mxu0 %v4304
  %4642 = vmatmul.mubr.f32.gmra.mxu0 %v4303
  %v4643 = vpop.f32.mrf.mxu0
  %v4644 = vadd.f32 0.0, %v4643
  %v4645 = vpop.f32.mrf.mxu0
  %4646 = vmatprep.mubr.f32.mxu0 %v4310
  %4647 = vmatmul.mubr.f32.gmra.mxu0 %v4309
  %v4648 = vpop.f32.mrf.mxu0
  %v4649 = vadd.f32 0.0, %v4648
  %v4650 = vpop.f32.mrf.mxu0
  %4651 = vmatprep.mubr.f32.mxu0 %v4316
  %4652 = vmatmul.mubr.f32.gmra.mxu0 %v4315
  %v4653 = vpop.f32.mrf.mxu0
  %v4654 = vadd.f32 0.0, %v4653
  %v4655 = vpop.f32.mrf.mxu0
  %4656 = vmatprep.mubr.f32.mxu0 %v4322
  %4657 = vmatmul.mubr.f32.gmra.mxu0 %v4321
  %v4658 = vpop.f32.mrf.mxu0
  %v4659 = vadd.f32 0.0, %v4658
  %v4660 = vpop.f32.mrf.mxu0
  %4661 = vmatprep.mubr.f32.mxu0 %v4328
  %4662 = vmatmul.mubr.f32.gmra.mxu0 %v4327
  %v4663 = vpop.f32.mrf.mxu0
  %v4664 = vadd.f32 0.0, %v4663
  %v4665 = vpop.f32.mrf.mxu0
  %4666 = vmatprep.mubr.f32.mxu0 %v4334
  %4667 = vmatmul.mubr.f32.gmra.mxu0 %v4333
  %v4668 = vpop.f32.mrf.mxu0
  %v4669 = vadd.f32 0.0, %v4668
  %v4670 = vpop.f32.mrf.mxu0
  %4671 = vmatprep.mubr.f32.mxu0 %v4340
  %4672 = vmatmul.mubr.f32.gmra.mxu0 %v4339
  %v4673 = vpop.f32.mrf.mxu0
  %v4674 = vadd.f32 0.0, %v4673
  %v4675 = vpop.f32.mrf.mxu0
  %4676 = vmatprep.mubr.f32.mxu0 %v4346
  %4677 = vmatmul.mubr.f32.gmra.mxu0 %v4345
  %v4678 = vpop.f32.mrf.mxu0
  %v4679 = vadd.f32 0.0, %v4678
  %v4680 = vpop.f32.mrf.mxu0
  %4681 = vmatprep.mubr.f32.mxu0 %v4352
  %4682 = vmatmul.mubr.f32.gmra.mxu0 %v4351
  %v4683 = vpop.f32.mrf.mxu0
  %v4684 = vadd.f32 0.0, %v4683
  %v4685 = vpop.f32.mrf.mxu0
  %4686 = vmatprep.mubr.f32.mxu0 %v4358
  %4687 = vmatmul.mubr.f32.gmra.mxu0 %v4357
  %v4688 = vpop.f32.mrf.mxu0
  %v4689 = vadd.f32 0.0, %v4688
  %v4690 = vpop.f32.mrf.mxu0
  %4691 = vmatprep.mubr.f32.mxu0 %v4364
  %4692 = vmatmul.mubr.f32.gmra.mxu0 %v4363
  %v4693 = vpop.f32.mrf.mxu0
  %v4694 = vadd.f32 0.0, %v4693
  %v4695 = vpop.f32.mrf.mxu0
  %4696 = vmatprep.mubr.f32.mxu0 %v4370
  %4697 = vmatmul.mubr.f32.gmra.mxu0 %v4369
  %v4698 = vpop.f32.mrf.mxu0
  %v4699 = vadd.f32 0.0, %v4698
  %v4700 = vpop.f32.mrf.mxu0
  %4701 = vmatprep.mubr.f32.mxu0 %v4376
  %4702 = vmatmul.mubr.f32.gmra.mxu0 %v4375
  %v4703 = vpop.f32.mrf.mxu0
  %v4704 = vadd.f32 0.0, %v4703
  %v4705 = vpop.f32.mrf.mxu0
  %4706 = vmatprep.mubr.f32.mxu0 %v4382
  %4707 = vmatmul.mubr.f32.gmra.mxu0 %v4381
  %v4708 = vpop.f32.mrf.mxu0
  %v4709 = vadd.f32 0.0, %v4708
  %v4710 = vpop.f32.mrf.mxu0
  %4711 = vmatprep.mubr.f32.mxu0 %v4388
  %4712 = vmatmul.mubr.f32.gmra.mxu0 %v4387
  %v4713 = vpop.f32.mrf.mxu0
  %v4714 = vadd.f32 0.0, %v4713
  %v4715 = vpop.f32.mrf.mxu0
  %4716 = vmatprep.mubr.f32.mxu0 %v4394
  %4717 = vmatmul.mubr.f32.gmra.mxu0 %v4393
  %v4718 = vpop.f32.mrf.mxu0
  %v4719 = vadd.f32 0.0, %v4718
  %v4720 = vpop.f32.mrf.mxu0
  %4721 = vmatprep.mubr.f32.mxu0 %v4400
  %4722 = vmatmul.mubr.f32.gmra.mxu0 %v4399
  %v4723 = vpop.f32.mrf.mxu0
  %v4724 = vadd.f32 0.0, %v4723
  %v4725 = vpop.f32.mrf.mxu0
  %4726 = vmatprep.mubr.f32.mxu0 %v4406
  %4727 = vmatmul.mubr.f32.gmra.mxu0 %v4405
  %v4728 = vpop.f32.mrf.mxu0
  %v4729 = vadd.f32 0.0, %v4728
  %v4730 = vpop.f32.mrf.mxu0
  %4731 = vdwg.mxu0
  %4732 = vmatprep.subr.mxu0 0.0
  %4733 = vmatpush1.msra.mxu0 %v4458
  %4734 = vmatprep.subr.mxu0 0.0
  %4735 = vmatpush1.msra.mxu0 %v4457
  %4736 = vmatprep.subr.mxu0 0.0
  %4737 = vmatpush1.msra.mxu0 %v4456
  %4738 = vmatprep.subr.mxu0 0.0
  %4739 = vmatpush1.msra.mxu0 %v4455
  %4740 = vmatprep.subr.mxu0 0.0
  %4741 = vmatpush1.msra.mxu0 %v4454
  %4742 = vmatprep.subr.mxu0 0.0
  %4743 = vmatpush1.msra.mxu0 %v4453
  %4744 = vmatprep.subr.mxu0 0.0
  %4745 = vmatpush1.msra.mxu0 %v4452
  %4746 = vmatprep.subr.mxu0 0.0
  %4747 = vmatpush1.msra.mxu0 %v4451
  %4748 = vmatprep.subr.mxu0 0.0
  %4749 = vmatpush1.msra.mxu0 %v4450
  %4750 = vmatprep.subr.mxu0 0.0
  %4751 = vmatpush1.msra.mxu0 %v4449
  %4752 = vmatprep.subr.mxu0 0.0
  %4753 = vmatpush1.msra.mxu0 %v4448
  %4754 = vmatprep.subr.mxu0 0.0
  %4755 = vmatpush1.msra.mxu0 %v4447
  %4756 = vmatprep.subr.mxu0 0.0
  %4757 = vmatpush1.msra.mxu0 %v4446
  %4758 = vmatprep.subr.mxu0 0.0
  %4759 = vmatpush1.msra.mxu0 %v4445
  %4760 = vmatprep.subr.mxu0 0.0
  %4761 = vmatpush1.msra.mxu0 %v4444
  %4762 = vmatprep.subr.mxu0 0.0
  %4763 = vmatpush1.msra.mxu0 %v4443
  %4764 = vmatprep.subr.mxu0 0.0
  %4765 = vmatpush2.msra.mxu0 %v4474
  %4766 = vmatprep.subr.mxu0 0.0
  %4767 = vmatpush2.msra.mxu0 %v4473
  %4768 = vmatprep.subr.mxu0 0.0
  %4769 = vmatpush2.msra.mxu0 %v4472
  %4770 = vmatprep.subr.mxu0 0.0
  %4771 = vmatpush2.msra.mxu0 %v4471
  %4772 = vmatprep.subr.mxu0 0.0
  %4773 = vmatpush2.msra.mxu0 %v4470
  %4774 = vmatprep.subr.mxu0 0.0
  %4775 = vmatpush2.msra.mxu0 %v4469
  %4776 = vmatprep.subr.mxu0 0.0
  %4777 = vmatpush2.msra.mxu0 %v4468
  %4778 = vmatprep.subr.mxu0 0.0
  %4779 = vmatpush2.msra.mxu0 %v4467
  %4780 = vmatprep.subr.mxu0 0.0
  %4781 = vmatpush2.msra.mxu0 %v4466
  %4782 = vmatprep.subr.mxu0 0.0
  %4783 = vmatpush2.msra.mxu0 %v4465
  %4784 = vmatprep.subr.mxu0 0.0
  %4785 = vmatpush2.msra.mxu0 %v4464
  %4786 = vmatprep.subr.mxu0 0.0
  %4787 = vmatpush2.msra.mxu0 %v4463
  %4788 = vmatprep.subr.mxu0 0.0
  %4789 = vmatpush2.msra.mxu0 %v4462
  %4790 = vmatprep.subr.mxu0 0.0
  %4791 = vmatpush2.msra.mxu0 %v4461
  %4792 = vmatprep.subr.mxu0 0.0
  %4793 = vmatpush2.msra.mxu0 %v4460
  %4794 = vmatprep.subr.mxu0 0.0
  %4795 = vmatpush2.msra.mxu0 %v4459
  %4796 = vmatprep.mubr.f32.mxu0 %v4222
  %4797 = vmatmul.mubr.f32.gmra.mxu0 %v4221
  %v4798 = vpop.f32.mrf.mxu0
  %v4799 = vadd.f32 %v4574, %v4798
  %v4800 = vpop.f32.mrf.mxu0
  %4801 = vmatprep.mubr.f32.mxu0 %v4228
  %4802 = vmatmul.mubr.f32.gmra.mxu0 %v4227
  %v4803 = vpop.f32.mrf.mxu0
  %v4804 = vadd.f32 %v4579, %v4803
  %v4805 = vpop.f32.mrf.mxu0
  %4806 = vmatprep.mubr.f32.mxu0 %v4234
  %4807 = vmatmul.mubr.f32.gmra.mxu0 %v4233
  %v4808 = vpop.f32.mrf.mxu0
  %v4809 = vadd.f32 %v4584, %v4808
  %v4810 = vpop.f32.mrf.mxu0
  %4811 = vmatprep.mubr.f32.mxu0 %v4240
  %4812 = vmatmul.mubr.f32.gmra.mxu0 %v4239
  %v4813 = vpop.f32.mrf.mxu0
  %v4814 = vadd.f32 %v4589, %v4813
  %v4815 = vpop.f32.mrf.mxu0
  %4816 = vmatprep.mubr.f32.mxu0 %v4246
  %4817 = vmatmul.mubr.f32.gmra.mxu0 %v4245
  %v4818 = vpop.f32.mrf.mxu0
  %v4819 = vadd.f32 %v4594, %v4818
  %v4820 = vpop.f32.mrf.mxu0
  %4821 = vmatprep.mubr.f32.mxu0 %v4252
  %4822 = vmatmul.mubr.f32.gmra.mxu0 %v4251
  %v4823 = vpop.f32.mrf.mxu0
  %v4824 = vadd.f32 %v4599, %v4823
  %v4825 = vpop.f32.mrf.mxu0
  %4826 = vmatprep.mubr.f32.mxu0 %v4258
  %4827 = vmatmul.mubr.f32.gmra.mxu0 %v4257
  %v4828 = vpop.f32.mrf.mxu0
  %v4829 = vadd.f32 %v4604, %v4828
  %v4830 = vpop.f32.mrf.mxu0
  %4831 = vmatprep.mubr.f32.mxu0 %v4264
  %4832 = vmatmul.mubr.f32.gmra.mxu0 %v4263
  %v4833 = vpop.f32.mrf.mxu0
  %v4834 = vadd.f32 %v4609, %v4833
  %v4835 = vpop.f32.mrf.mxu0
  %4836 = vmatprep.mubr.f32.mxu0 %v4270
  %4837 = vmatmul.mubr.f32.gmra.mxu0 %v4269
  %v4838 = vpop.f32.mrf.mxu0
  %v4839 = vadd.f32 %v4614, %v4838
  %v4840 = vpop.f32.mrf.mxu0
  %4841 = vmatprep.mubr.f32.mxu0 %v4276
  %4842 = vmatmul.mubr.f32.gmra.mxu0 %v4275
  %v4843 = vpop.f32.mrf.mxu0
  %v4844 = vadd.f32 %v4619, %v4843
  %v4845 = vpop.f32.mrf.mxu0
  %4846 = vmatprep.mubr.f32.mxu0 %v4282
  %4847 = vmatmul.mubr.f32.gmra.mxu0 %v4281
  %v4848 = vpop.f32.mrf.mxu0
  %v4849 = vadd.f32 %v4624, %v4848
  %v4850 = vpop.f32.mrf.mxu0
  %4851 = vmatprep.mubr.f32.mxu0 %v4288
  %4852 = vmatmul.mubr.f32.gmra.mxu0 %v4287
  %v4853 = vpop.f32.mrf.mxu0
  %v4854 = vadd.f32 %v4629, %v4853
  %v4855 = vpop.f32.mrf.mxu0
  %4856 = vmatprep.mubr.f32.mxu0 %v4294
  %4857 = vmatmul.mubr.f32.gmra.mxu0 %v4293
  %v4858 = vpop.f32.mrf.mxu0
  %v4859 = vadd.f32 %v4634, %v4858
  %v4860 = vpop.f32.mrf.mxu0
  %4861 = vmatprep.mubr.f32.mxu0 %v4300
  %4862 = vmatmul.mubr.f32.gmra.mxu0 %v4299
  %v4863 = vpop.f32.mrf.mxu0
  %v4864 = vadd.f32 %v4639, %v4863
  %v4865 = vpop.f32.mrf.mxu0
  %4866 = vmatprep.mubr.f32.mxu0 %v4306
  %4867 = vmatmul.mubr.f32.gmra.mxu0 %v4305
  %v4868 = vpop.f32.mrf.mxu0
  %v4869 = vadd.f32 %v4644, %v4868
  %v4870 = vpop.f32.mrf.mxu0
  %4871 = vmatprep.mubr.f32.mxu0 %v4312
  %4872 = vmatmul.mubr.f32.gmra.mxu0 %v4311
  %v4873 = vpop.f32.mrf.mxu0
  %v4874 = vadd.f32 %v4649, %v4873
  %v4875 = vpop.f32.mrf.mxu0
  %4876 = vmatprep.mubr.f32.mxu0 %v4318
  %4877 = vmatmul.mubr.f32.gmra.mxu0 %v4317
  %v4878 = vpop.f32.mrf.mxu0
  %v4879 = vadd.f32 %v4654, %v4878
  %v4880 = vpop.f32.mrf.mxu0
  %4881 = vmatprep.mubr.f32.mxu0 %v4324
  %4882 = vmatmul.mubr.f32.gmra.mxu0 %v4323
  %v4883 = vpop.f32.mrf.mxu0
  %v4884 = vadd.f32 %v4659, %v4883
  %v4885 = vpop.f32.mrf.mxu0
  %4886 = vmatprep.mubr.f32.mxu0 %v4330
  %4887 = vmatmul.mubr.f32.gmra.mxu0 %v4329
  %v4888 = vpop.f32.mrf.mxu0
  %v4889 = vadd.f32 %v4664, %v4888
  %v4890 = vpop.f32.mrf.mxu0
  %4891 = vmatprep.mubr.f32.mxu0 %v4336
  %4892 = vmatmul.mubr.f32.gmra.mxu0 %v4335
  %v4893 = vpop.f32.mrf.mxu0
  %v4894 = vadd.f32 %v4669, %v4893
  %v4895 = vpop.f32.mrf.mxu0
  %4896 = vmatprep.mubr.f32.mxu0 %v4342
  %4897 = vmatmul.mubr.f32.gmra.mxu0 %v4341
  %v4898 = vpop.f32.mrf.mxu0
  %v4899 = vadd.f32 %v4674, %v4898
  %v4900 = vpop.f32.mrf.mxu0
  %4901 = vmatprep.mubr.f32.mxu0 %v4348
  %4902 = vmatmul.mubr.f32.gmra.mxu0 %v4347
  %v4903 = vpop.f32.mrf.mxu0
  %v4904 = vadd.f32 %v4679, %v4903
  %v4905 = vpop.f32.mrf.mxu0
  %4906 = vmatprep.mubr.f32.mxu0 %v4354
  %4907 = vmatmul.mubr.f32.gmra.mxu0 %v4353
  %v4908 = vpop.f32.mrf.mxu0
  %v4909 = vadd.f32 %v4684, %v4908
  %v4910 = vpop.f32.mrf.mxu0
  %4911 = vmatprep.mubr.f32.mxu0 %v4360
  %4912 = vmatmul.mubr.f32.gmra.mxu0 %v4359
  %v4913 = vpop.f32.mrf.mxu0
  %v4914 = vadd.f32 %v4689, %v4913
  %v4915 = vpop.f32.mrf.mxu0
  %4916 = vmatprep.mubr.f32.mxu0 %v4366
  %4917 = vmatmul.mubr.f32.gmra.mxu0 %v4365
  %v4918 = vpop.f32.mrf.mxu0
  %v4919 = vadd.f32 %v4694, %v4918
  %v4920 = vpop.f32.mrf.mxu0
  %4921 = vmatprep.mubr.f32.mxu0 %v4372
  %4922 = vmatmul.mubr.f32.gmra.mxu0 %v4371
  %v4923 = vpop.f32.mrf.mxu0
  %v4924 = vadd.f32 %v4699, %v4923
  %v4925 = vpop.f32.mrf.mxu0
  %4926 = vmatprep.mubr.f32.mxu0 %v4378
  %4927 = vmatmul.mubr.f32.gmra.mxu0 %v4377
  %v4928 = vpop.f32.mrf.mxu0
  %v4929 = vadd.f32 %v4704, %v4928
  %v4930 = vpop.f32.mrf.mxu0
  %4931 = vmatprep.mubr.f32.mxu0 %v4384
  %4932 = vmatmul.mubr.f32.gmra.mxu0 %v4383
  %v4933 = vpop.f32.mrf.mxu0
  %v4934 = vadd.f32 %v4709, %v4933
  %v4935 = vpop.f32.mrf.mxu0
  %4936 = vmatprep.mubr.f32.mxu0 %v4390
  %4937 = vmatmul.mubr.f32.gmra.mxu0 %v4389
  %v4938 = vpop.f32.mrf.mxu0
  %v4939 = vadd.f32 %v4714, %v4938
  %v4940 = vpop.f32.mrf.mxu0
  %4941 = vmatprep.mubr.f32.mxu0 %v4396
  %4942 = vmatmul.mubr.f32.gmra.mxu0 %v4395
  %v4943 = vpop.f32.mrf.mxu0
  %v4944 = vadd.f32 %v4719, %v4943
  %v4945 = vpop.f32.mrf.mxu0
  %4946 = vmatprep.mubr.f32.mxu0 %v4402
  %4947 = vmatmul.mubr.f32.gmra.mxu0 %v4401
  %v4948 = vpop.f32.mrf.mxu0
  %v4949 = vadd.f32 %v4724, %v4948
  %v4950 = vpop.f32.mrf.mxu0
  %4951 = vmatprep.mubr.f32.mxu0 %v4408
  %4952 = vmatmul.mubr.f32.gmra.mxu0 %v4407
  %v4953 = vpop.f32.mrf.mxu0
  %v4954 = vadd.f32 %v4729, %v4953
  %v4955 = vpop.f32.mrf.mxu0
  %4956 = vdwg.mxu0
  %4957 = vmatprep.subr.mxu0 0.0
  %4958 = vmatpush1.msra.mxu0 %v4490
  %4959 = vmatprep.subr.mxu0 0.0
  %4960 = vmatpush1.msra.mxu0 %v4489
  %4961 = vmatprep.subr.mxu0 0.0
  %4962 = vmatpush1.msra.mxu0 %v4488
  %4963 = vmatprep.subr.mxu0 0.0
  %4964 = vmatpush1.msra.mxu0 %v4487
  %4965 = vmatprep.subr.mxu0 0.0
  %4966 = vmatpush1.msra.mxu0 %v4486
  %4967 = vmatprep.subr.mxu0 0.0
  %4968 = vmatpush1.msra.mxu0 %v4485
  %4969 = vmatprep.subr.mxu0 0.0
  %4970 = vmatpush1.msra.mxu0 %v4484
  %4971 = vmatprep.subr.mxu0 0.0
  %4972 = vmatpush1.msra.mxu0 %v4483
  %4973 = vmatprep.subr.mxu0 0.0
  %4974 = vmatpush1.msra.mxu0 %v4482
  %4975 = vmatprep.subr.mxu0 0.0
  %4976 = vmatpush1.msra.mxu0 %v4481
  %4977 = vmatprep.subr.mxu0 0.0
  %4978 = vmatpush1.msra.mxu0 %v4480
  %4979 = vmatprep.subr.mxu0 0.0
  %4980 = vmatpush1.msra.mxu0 %v4479
  %4981 = vmatprep.subr.mxu0 0.0
  %4982 = vmatpush1.msra.mxu0 %v4478
  %4983 = vmatprep.subr.mxu0 0.0
  %4984 = vmatpush1.msra.mxu0 %v4477
  %4985 = vmatprep.subr.mxu0 0.0
  %4986 = vmatpush1.msra.mxu0 %v4476
  %4987 = vmatprep.subr.mxu0 0.0
  %4988 = vmatpush1.msra.mxu0 %v4475
  %4989 = vmatprep.subr.mxu0 0.0
  %4990 = vmatpush2.msra.mxu0 %v4506
  %4991 = vmatprep.subr.mxu0 0.0
  %4992 = vmatpush2.msra.mxu0 %v4505
  %4993 = vmatprep.subr.mxu0 0.0
  %4994 = vmatpush2.msra.mxu0 %v4504
  %4995 = vmatprep.subr.mxu0 0.0
  %4996 = vmatpush2.msra.mxu0 %v4503
  %4997 = vmatprep.subr.mxu0 0.0
  %4998 = vmatpush2.msra.mxu0 %v4502
  %4999 = vmatprep.subr.mxu0 0.0
  %5000 = vmatpush2.msra.mxu0 %v4501
  %5001 = vmatprep.subr.mxu0 0.0
  %5002 = vmatpush2.msra.mxu0 %v4500
  %5003 = vmatprep.subr.mxu0 0.0
  %5004 = vmatpush2.msra.mxu0 %v4499
  %5005 = vmatprep.subr.mxu0 0.0
  %5006 = vmatpush2.msra.mxu0 %v4498
  %5007 = vmatprep.subr.mxu0 0.0
  %5008 = vmatpush2.msra.mxu0 %v4497
  %5009 = vmatprep.subr.mxu0 0.0
  %5010 = vmatpush2.msra.mxu0 %v4496
  %5011 = vmatprep.subr.mxu0 0.0
  %5012 = vmatpush2.msra.mxu0 %v4495
  %5013 = vmatprep.subr.mxu0 0.0
  %5014 = vmatpush2.msra.mxu0 %v4494
  %5015 = vmatprep.subr.mxu0 0.0
  %5016 = vmatpush2.msra.mxu0 %v4493
  %5017 = vmatprep.subr.mxu0 0.0
  %5018 = vmatpush2.msra.mxu0 %v4492
  %5019 = vmatprep.subr.mxu0 0.0
  %5020 = vmatpush2.msra.mxu0 %v4491
  %5021 = vmatprep.mubr.f32.mxu0 %v4224
  %5022 = vmatmul.mubr.f32.gmra.mxu0 %v4223
  %v5023 = vpop.f32.mrf.mxu0
  %v5024 = vadd.f32 %v4799, %v5023
  %v5025 = vpop.f32.mrf.mxu0
  %5026 = vmatprep.mubr.f32.mxu0 %v4230
  %5027 = vmatmul.mubr.f32.gmra.mxu0 %v4229
  %v5028 = vpop.f32.mrf.mxu0
  %v5029 = vadd.f32 %v4804, %v5028
  %v5030 = vpop.f32.mrf.mxu0
  %5031 = vmatprep.mubr.f32.mxu0 %v4236
  %5032 = vmatmul.mubr.f32.gmra.mxu0 %v4235
  %v5033 = vpop.f32.mrf.mxu0
  %v5034 = vadd.f32 %v4809, %v5033
  %v5035 = vpop.f32.mrf.mxu0
  %5036 = vmatprep.mubr.f32.mxu0 %v4242
  %5037 = vmatmul.mubr.f32.gmra.mxu0 %v4241
  %v5038 = vpop.f32.mrf.mxu0
  %v5039 = vadd.f32 %v4814, %v5038
  %v5040 = vpop.f32.mrf.mxu0
  %5041 = vmatprep.mubr.f32.mxu0 %v4248
  %5042 = vmatmul.mubr.f32.gmra.mxu0 %v4247
  %v5043 = vpop.f32.mrf.mxu0
  %v5044 = vadd.f32 %v4819, %v5043
  %v5045 = vpop.f32.mrf.mxu0
  %5046 = vmatprep.mubr.f32.mxu0 %v4254
  %5047 = vmatmul.mubr.f32.gmra.mxu0 %v4253
  %v5048 = vpop.f32.mrf.mxu0
  %v5049 = vadd.f32 %v4824, %v5048
  %v5050 = vpop.f32.mrf.mxu0
  %5051 = vmatprep.mubr.f32.mxu0 %v4260
  %5052 = vmatmul.mubr.f32.gmra.mxu0 %v4259
  %v5053 = vpop.f32.mrf.mxu0
  %v5054 = vadd.f32 %v4829, %v5053
  %v5055 = vpop.f32.mrf.mxu0
  %5056 = vmatprep.mubr.f32.mxu0 %v4266
  %5057 = vmatmul.mubr.f32.gmra.mxu0 %v4265
  %v5058 = vpop.f32.mrf.mxu0
  %v5059 = vadd.f32 %v4834, %v5058
  %v5060 = vpop.f32.mrf.mxu0
  %5061 = vmatprep.mubr.f32.mxu0 %v4272
  %5062 = vmatmul.mubr.f32.gmra.mxu0 %v4271
  %v5063 = vpop.f32.mrf.mxu0
  %v5064 = vadd.f32 %v4839, %v5063
  %v5065 = vpop.f32.mrf.mxu0
  %5066 = vmatprep.mubr.f32.mxu0 %v4278
  %5067 = vmatmul.mubr.f32.gmra.mxu0 %v4277
  %v5068 = vpop.f32.mrf.mxu0
  %v5069 = vadd.f32 %v4844, %v5068
  %v5070 = vpop.f32.mrf.mxu0
  %5071 = vmatprep.mubr.f32.mxu0 %v4284
  %5072 = vmatmul.mubr.f32.gmra.mxu0 %v4283
  %v5073 = vpop.f32.mrf.mxu0
  %v5074 = vadd.f32 %v4849, %v5073
  %v5075 = vpop.f32.mrf.mxu0
  %5076 = vmatprep.mubr.f32.mxu0 %v4290
  %5077 = vmatmul.mubr.f32.gmra.mxu0 %v4289
  %v5078 = vpop.f32.mrf.mxu0
  %v5079 = vadd.f32 %v4854, %v5078
  %v5080 = vpop.f32.mrf.mxu0
  %5081 = vmatprep.mubr.f32.mxu0 %v4296
  %5082 = vmatmul.mubr.f32.gmra.mxu0 %v4295
  %v5083 = vpop.f32.mrf.mxu0
  %v5084 = vadd.f32 %v4859, %v5083
  %v5085 = vpop.f32.mrf.mxu0
  %5086 = vmatprep.mubr.f32.mxu0 %v4302
  %5087 = vmatmul.mubr.f32.gmra.mxu0 %v4301
  %v5088 = vpop.f32.mrf.mxu0
  %v5089 = vadd.f32 %v4864, %v5088
  %v5090 = vpop.f32.mrf.mxu0
  %5091 = vmatprep.mubr.f32.mxu0 %v4308
  %5092 = vmatmul.mubr.f32.gmra.mxu0 %v4307
  %v5093 = vpop.f32.mrf.mxu0
  %v5094 = vadd.f32 %v4869, %v5093
  %v5095 = vpop.f32.mrf.mxu0
  %5096 = vmatprep.mubr.f32.mxu0 %v4314
  %5097 = vmatmul.mubr.f32.gmra.mxu0 %v4313
  %v5098 = vpop.f32.mrf.mxu0
  %v5099 = vadd.f32 %v4874, %v5098
  %v5100 = vpop.f32.mrf.mxu0
  %5101 = vmatprep.mubr.f32.mxu0 %v4320
  %5102 = vmatmul.mubr.f32.gmra.mxu0 %v4319
  %v5103 = vpop.f32.mrf.mxu0
  %v5104 = vadd.f32 %v4879, %v5103
  %v5105 = vpop.f32.mrf.mxu0
  %5106 = vmatprep.mubr.f32.mxu0 %v4326
  %5107 = vmatmul.mubr.f32.gmra.mxu0 %v4325
  %v5108 = vpop.f32.mrf.mxu0
  %v5109 = vadd.f32 %v4884, %v5108
  %v5110 = vpop.f32.mrf.mxu0
  %5111 = vmatprep.mubr.f32.mxu0 %v4332
  %5112 = vmatmul.mubr.f32.gmra.mxu0 %v4331
  %v5113 = vpop.f32.mrf.mxu0
  %v5114 = vadd.f32 %v4889, %v5113
  %v5115 = vpop.f32.mrf.mxu0
  %5116 = vmatprep.mubr.f32.mxu0 %v4338
  %5117 = vmatmul.mubr.f32.gmra.mxu0 %v4337
  %v5118 = vpop.f32.mrf.mxu0
  %v5119 = vadd.f32 %v4894, %v5118
  %v5120 = vpop.f32.mrf.mxu0
  %5121 = vmatprep.mubr.f32.mxu0 %v4344
  %5122 = vmatmul.mubr.f32.gmra.mxu0 %v4343
  %v5123 = vpop.f32.mrf.mxu0
  %v5124 = vadd.f32 %v4899, %v5123
  %v5125 = vpop.f32.mrf.mxu0
  %5126 = vmatprep.mubr.f32.mxu0 %v4350
  %5127 = vmatmul.mubr.f32.gmra.mxu0 %v4349
  %v5128 = vpop.f32.mrf.mxu0
  %v5129 = vadd.f32 %v4904, %v5128
  %v5130 = vpop.f32.mrf.mxu0
  %5131 = vmatprep.mubr.f32.mxu0 %v4356
  %5132 = vmatmul.mubr.f32.gmra.mxu0 %v4355
  %v5133 = vpop.f32.mrf.mxu0
  %v5134 = vadd.f32 %v4909, %v5133
  %v5135 = vpop.f32.mrf.mxu0
  %5136 = vmatprep.mubr.f32.mxu0 %v4362
  %5137 = vmatmul.mubr.f32.gmra.mxu0 %v4361
  %v5138 = vpop.f32.mrf.mxu0
  %v5139 = vadd.f32 %v4914, %v5138
  %v5140 = vpop.f32.mrf.mxu0
  %5141 = vmatprep.mubr.f32.mxu0 %v4368
  %5142 = vmatmul.mubr.f32.gmra.mxu0 %v4367
  %v5143 = vpop.f32.mrf.mxu0
  %v5144 = vadd.f32 %v4919, %v5143
  %v5145 = vpop.f32.mrf.mxu0
  %5146 = vmatprep.mubr.f32.mxu0 %v4374
  %5147 = vmatmul.mubr.f32.gmra.mxu0 %v4373
  %v5148 = vpop.f32.mrf.mxu0
  %v5149 = vadd.f32 %v4924, %v5148
  %v5150 = vpop.f32.mrf.mxu0
  %5151 = vmatprep.mubr.f32.mxu0 %v4380
  %5152 = vmatmul.mubr.f32.gmra.mxu0 %v4379
  %v5153 = vpop.f32.mrf.mxu0
  %v5154 = vadd.f32 %v4929, %v5153
  %v5155 = vpop.f32.mrf.mxu0
  %5156 = vmatprep.mubr.f32.mxu0 %v4386
  %5157 = vmatmul.mubr.f32.gmra.mxu0 %v4385
  %v5158 = vpop.f32.mrf.mxu0
  %v5159 = vadd.f32 %v4934, %v5158
  %v5160 = vpop.f32.mrf.mxu0
  %5161 = vmatprep.mubr.f32.mxu0 %v4392
  %5162 = vmatmul.mubr.f32.gmra.mxu0 %v4391
  %v5163 = vpop.f32.mrf.mxu0
  %v5164 = vadd.f32 %v4939, %v5163
  %v5165 = vpop.f32.mrf.mxu0
  %5166 = vmatprep.mubr.f32.mxu0 %v4398
  %5167 = vmatmul.mubr.f32.gmra.mxu0 %v4397
  %v5168 = vpop.f32.mrf.mxu0
  %v5169 = vadd.f32 %v4944, %v5168
  %v5170 = vpop.f32.mrf.mxu0
  %5171 = vmatprep.mubr.f32.mxu0 %v4404
  %5172 = vmatmul.mubr.f32.gmra.mxu0 %v4403
  %v5173 = vpop.f32.mrf.mxu0
  %v5174 = vadd.f32 %v4949, %v5173
  %v5175 = vpop.f32.mrf.mxu0
  %5176 = vmatprep.mubr.f32.mxu0 %v4410
  %5177 = vmatmul.mubr.f32.gmra.mxu0 %v4409
  %v5178 = vpop.f32.mrf.mxu0
  %v5179 = vadd.f32 %v4954, %v5178
  %v5180 = vpop.f32.mrf.mxu0
  %5181 = vdwg.mxu0
  %v5182 = vadd.f32 %v5024, %v5029
  %v5183 = vadd.f32 %v5182, %v5034
  %v5184 = vadd.f32 %v5183, %v5039
  %v5185 = vadd.f32 %v5184, %v5044
  %v5186 = vadd.f32 %v5185, %v5049
  %v5187 = vadd.f32 %v5186, %v5054
  %v5188 = vadd.f32 %v5187, %v5059
  %v5189 = vadd.f32 %v5188, %v5064
  %v5190 = vadd.f32 %v5189, %v5069
  %v5191 = vadd.f32 %v5190, %v5074
  %v5192 = vadd.f32 %v5191, %v5079
  %v5193 = vadd.f32 %v5192, %v5084
  %v5194 = vadd.f32 %v5193, %v5089
  %v5195 = vadd.f32 %v5194, %v5094
  %v5196 = vadd.f32 %v5195, %v5099
  %v5197 = vadd.f32 %v5196, %v5104
  %v5198 = vadd.f32 %v5197, %v5109
  %v5199 = vadd.f32 %v5198, %v5114
  %v5200 = vadd.f32 %v5199, %v5119
  %v5201 = vadd.f32 %v5200, %v5124
  %v5202 = vadd.f32 %v5201, %v5129
  %v5203 = vadd.f32 %v5202, %v5134
  %v5204 = vadd.f32 %v5203, %v5139
  %v5205 = vadd.f32 %v5204, %v5144
  %v5206 = vadd.f32 %v5205, %v5149
  %v5207 = vadd.f32 %v5206, %v5154
  %v5208 = vadd.f32 %v5207, %v5159
  %v5209 = vadd.f32 %v5208, %v5164
  %v5210 = vadd.f32 %v5209, %v5169
  %v5211 = vadd.f32 %v5210, %v5174
  %v5212 = vadd.f32 %v5211, %v5179
  %v5213 = vrot.slane %v5212, 4
  %v5214 = vadd.f32 %v5212, %v5213
  %v5215 = vrot.slane %v5214, 2
  %v5216 = vadd.f32 %v5214, %v5215
  %v5217 = vrot.slane %v5216, 1
  %v5218 = vadd.f32 %v5216, %v5217
  %v5219 = vmul.f32 %v5218, 0.00390625
  %5221 = vrot.lane.b32.xlu0 %v5219, 64
  %v5222 = vpop.permute.xlu0 %5221
  %v5224 = vadd.f32 %v5219, %v5222
  %v5225 = vmul.f32 %v5224, 0.5
  %5227 = vrot.lane.b32.xlu0 %v5225, 64
  %v5228 = vpop.permute.xlu0 %5227
  %v5230 = vsel %vm44, %v5225, %v5228
  %v5231 = vlaneseq
  %v5232 = vshrl.u32 %v5231, 7
  %v5233 = vsub.s32 0, %v5232
  %v5234 = vrot.slane %v5230, %v5233
  %v5235 = vsub.f32 %v5024, %v5234
  %v5236 = vsub.f32 %v5029, %v5234
  %v5237 = vsub.f32 %v5034, %v5234
  %v5238 = vsub.f32 %v5039, %v5234
  %v5239 = vsub.f32 %v5044, %v5234
  %v5240 = vsub.f32 %v5049, %v5234
  %v5241 = vsub.f32 %v5054, %v5234
  %v5242 = vsub.f32 %v5059, %v5234
  %v5243 = vsub.f32 %v5064, %v5234
  %v5244 = vsub.f32 %v5069, %v5234
  %v5245 = vsub.f32 %v5074, %v5234
  %v5246 = vsub.f32 %v5079, %v5234
  %v5247 = vsub.f32 %v5084, %v5234
  %v5248 = vsub.f32 %v5089, %v5234
  %v5249 = vsub.f32 %v5094, %v5234
  %v5250 = vsub.f32 %v5099, %v5234
  %v5251 = vsub.f32 %v5104, %v5234
  %v5252 = vsub.f32 %v5109, %v5234
  %v5253 = vsub.f32 %v5114, %v5234
  %v5254 = vsub.f32 %v5119, %v5234
  %v5255 = vsub.f32 %v5124, %v5234
  %v5256 = vsub.f32 %v5129, %v5234
  %v5257 = vsub.f32 %v5134, %v5234
  %v5258 = vsub.f32 %v5139, %v5234
  %v5259 = vsub.f32 %v5144, %v5234
  %v5260 = vsub.f32 %v5149, %v5234
  %v5261 = vsub.f32 %v5154, %v5234
  %v5262 = vsub.f32 %v5159, %v5234
  %v5263 = vsub.f32 %v5164, %v5234
  %v5264 = vsub.f32 %v5169, %v5234
  %v5265 = vsub.f32 %v5174, %v5234
  %v5266 = vsub.f32 %v5179, %v5234
  %v5267 = vmul.f32 %v5235, %v5235
  %v5268 = vmul.f32 %v5236, %v5236
  %v5269 = vmul.f32 %v5237, %v5237
  %v5270 = vmul.f32 %v5238, %v5238
  %v5271 = vmul.f32 %v5239, %v5239
  %v5272 = vmul.f32 %v5240, %v5240
  %v5273 = vmul.f32 %v5241, %v5241
  %v5274 = vmul.f32 %v5242, %v5242
  %v5275 = vmul.f32 %v5243, %v5243
  %v5276 = vmul.f32 %v5244, %v5244
  %v5277 = vmul.f32 %v5245, %v5245
  %v5278 = vmul.f32 %v5246, %v5246
  %v5279 = vmul.f32 %v5247, %v5247
  %v5280 = vmul.f32 %v5248, %v5248
  %v5281 = vmul.f32 %v5249, %v5249
  %v5282 = vmul.f32 %v5250, %v5250
  %v5283 = vmul.f32 %v5251, %v5251
  %v5284 = vmul.f32 %v5252, %v5252
  %v5285 = vmul.f32 %v5253, %v5253
  %v5286 = vmul.f32 %v5254, %v5254
  %v5287 = vmul.f32 %v5255, %v5255
  %v5288 = vmul.f32 %v5256, %v5256
  %v5289 = vmul.f32 %v5257, %v5257
  %v5290 = vmul.f32 %v5258, %v5258
  %v5291 = vmul.f32 %v5259, %v5259
  %v5292 = vmul.f32 %v5260, %v5260
  %v5293 = vmul.f32 %v5261, %v5261
  %v5294 = vmul.f32 %v5262, %v5262
  %v5295 = vmul.f32 %v5263, %v5263
  %v5296 = vmul.f32 %v5264, %v5264
  %v5297 = vmul.f32 %v5265, %v5265
  %v5298 = vmul.f32 %v5266, %v5266
  %v5299 = vadd.f32 %v5267, %v5268
  %v5300 = vadd.f32 %v5299, %v5269
  %v5301 = vadd.f32 %v5300, %v5270
  %v5302 = vadd.f32 %v5301, %v5271
  %v5303 = vadd.f32 %v5302, %v5272
  %v5304 = vadd.f32 %v5303, %v5273
  %v5305 = vadd.f32 %v5304, %v5274
  %v5306 = vadd.f32 %v5305, %v5275
  %v5307 = vadd.f32 %v5306, %v5276
  %v5308 = vadd.f32 %v5307, %v5277
  %v5309 = vadd.f32 %v5308, %v5278
  %v5310 = vadd.f32 %v5309, %v5279
  %v5311 = vadd.f32 %v5310, %v5280
  %v5312 = vadd.f32 %v5311, %v5281
  %v5313 = vadd.f32 %v5312, %v5282
  %v5314 = vadd.f32 %v5313, %v5283
  %v5315 = vadd.f32 %v5314, %v5284
  %v5316 = vadd.f32 %v5315, %v5285
  %v5317 = vadd.f32 %v5316, %v5286
  %v5318 = vadd.f32 %v5317, %v5287
  %v5319 = vadd.f32 %v5318, %v5288
  %v5320 = vadd.f32 %v5319, %v5289
  %v5321 = vadd.f32 %v5320, %v5290
  %v5322 = vadd.f32 %v5321, %v5291
  %v5323 = vadd.f32 %v5322, %v5292
  %v5324 = vadd.f32 %v5323, %v5293
  %v5325 = vadd.f32 %v5324, %v5294
  %v5326 = vadd.f32 %v5325, %v5295
  %v5327 = vadd.f32 %v5326, %v5296
  %v5328 = vadd.f32 %v5327, %v5297
  %v5329 = vadd.f32 %v5328, %v5298
  %v5330 = vrot.slane %v5329, 4
  %v5331 = vadd.f32 %v5329, %v5330
  %v5332 = vrot.slane %v5331, 2
  %v5333 = vadd.f32 %v5331, %v5332
  %v5334 = vrot.slane %v5333, 1
  %v5335 = vadd.f32 %v5333, %v5334
  %v5336 = vmul.f32 %v5335, 0.00390625
  %5338 = vrot.lane.b32.xlu0 %v5336, 64
  %v5339 = vpop.permute.xlu0 %5338
  %v5341 = vadd.f32 %v5336, %v5339
  %v5342 = vmul.f32 %v5341, 0.5
  %5344 = vrot.lane.b32.xlu0 %v5342, 64
  %v5345 = vpop.permute.xlu0 %5344
  %v5347 = vsel %vm44, %v5342, %v5345
  %v5348 = vadd.f32 %v5347, 1e-05
  %v5349 = vrsqrt.pop %v5348
  %v5350 = vmul.f32 %v62, %v5349
  %v5351 = vlaneseq
  %v5352 = vshrl.u32 %v5351, 7
  %v5353 = vsub.s32 0, %v5352
  %v5354 = vrot.slane %v5350, %v5353
  %v5355 = vmul.f32 %v5235, %v5354
  %v5356 = vmul.f32 %v5236, %v5354
  %v5357 = vmul.f32 %v5237, %v5354
  %v5358 = vmul.f32 %v5238, %v5354
  %v5359 = vmul.f32 %v5239, %v5354
  %v5360 = vmul.f32 %v5240, %v5354
  %v5361 = vmul.f32 %v5241, %v5354
  %v5362 = vmul.f32 %v5242, %v5354
  %v5363 = vmul.f32 %v5243, %v5354
  %v5364 = vmul.f32 %v5244, %v5354
  %v5365 = vmul.f32 %v5245, %v5354
  %v5366 = vmul.f32 %v5246, %v5354
  %v5367 = vmul.f32 %v5247, %v5354
  %v5368 = vmul.f32 %v5248, %v5354
  %v5369 = vmul.f32 %v5249, %v5354
  %v5370 = vmul.f32 %v5250, %v5354
  %v5371 = vmul.f32 %v5251, %v5354
  %v5372 = vmul.f32 %v5252, %v5354
  %v5373 = vmul.f32 %v5253, %v5354
  %v5374 = vmul.f32 %v5254, %v5354
  %v5375 = vmul.f32 %v5255, %v5354
  %v5376 = vmul.f32 %v5256, %v5354
  %v5377 = vmul.f32 %v5257, %v5354
  %v5378 = vmul.f32 %v5258, %v5354
  %v5379 = vmul.f32 %v5259, %v5354
  %v5380 = vmul.f32 %v5260, %v5354
  %v5381 = vmul.f32 %v5261, %v5354
  %v5382 = vmul.f32 %v5262, %v5354
  %v5383 = vmul.f32 %v5263, %v5354
  %v5384 = vmul.f32 %v5264, %v5354
  %v5385 = vmul.f32 %v5265, %v5354
  %v5386 = vmul.f32 %v5266, %v5354
  %v5387 = vlaneseq
  %v5388 = vshrl.u32 %v5387, 7
  %v5389 = vsub.s32 0, %v5388
  %v5390 = vrot.slane %v63, %v5389
  %v5391 = vadd.f32 %v5355, %v5390
  %v5392 = vadd.f32 %v5356, %v5390
  %v5393 = vadd.f32 %v5357, %v5390
  %v5394 = vadd.f32 %v5358, %v5390
  %v5395 = vadd.f32 %v5359, %v5390
  %v5396 = vadd.f32 %v5360, %v5390
  %v5397 = vadd.f32 %v5361, %v5390
  %v5398 = vadd.f32 %v5362, %v5390
  %v5399 = vadd.f32 %v5363, %v5390
  %v5400 = vadd.f32 %v5364, %v5390
  %v5401 = vadd.f32 %v5365, %v5390
  %v5402 = vadd.f32 %v5366, %v5390
  %v5403 = vadd.f32 %v5367, %v5390
  %v5404 = vadd.f32 %v5368, %v5390
  %v5405 = vadd.f32 %v5369, %v5390
  %v5406 = vadd.f32 %v5370, %v5390
  %v5407 = vadd.f32 %v5371, %v5390
  %v5408 = vadd.f32 %v5372, %v5390
  %v5409 = vadd.f32 %v5373, %v5390
  %v5410 = vadd.f32 %v5374, %v5390
  %v5411 = vadd.f32 %v5375, %v5390
  %v5412 = vadd.f32 %v5376, %v5390
  %v5413 = vadd.f32 %v5377, %v5390
  %v5414 = vadd.f32 %v5378, %v5390
  %v5415 = vadd.f32 %v5379, %v5390
  %v5416 = vadd.f32 %v5380, %v5390
  %v5417 = vadd.f32 %v5381, %v5390
  %v5418 = vadd.f32 %v5382, %v5390
  %v5419 = vadd.f32 %v5383, %v5390
  %v5420 = vadd.f32 %v5384, %v5390
  %v5421 = vadd.f32 %v5385, %v5390
  %v5422 = vadd.f32 %v5386, %v5390
  %v5423 = vld [vmem:[%s0] sm:$0xff]
  %v5424 = vld [vmem:[%s0 + $0x8] sm:$0xff]
  %v5425 = vld [vmem:[%s0 + $0x10] sm:$0xff]
  %v5426 = vld [vmem:[%s0 + $0x18] sm:$0xff]
  %v5427 = vld [vmem:[%s0 + $0x20] sm:$0xff]
  %v5428 = vld [vmem:[%s0 + $0x28] sm:$0xff]
  %v5429 = vld [vmem:[%s0 + $0x30] sm:$0xff]
  %v5430 = vld [vmem:[%s0 + $0x38] sm:$0xff]
  %v5431 = vld [vmem:[%s0 + $0x40] sm:$0xff]
  %v5432 = vld [vmem:[%s0 + $0x48] sm:$0xff]
  %v5433 = vld [vmem:[%s0 + $0x50] sm:$0xff]
  %v5434 = vld [vmem:[%s0 + $0x58] sm:$0xff]
  %v5435 = vld [vmem:[%s0 + $0x60] sm:$0xff]
  %v5436 = vld [vmem:[%s0 + $0x68] sm:$0xff]
  %v5437 = vld [vmem:[%s0 + $0x70] sm:$0xff]
  %v5438 = vld [vmem:[%s0 + $0x78] sm:$0xff]
  %v5439 = vld [vmem:[%s0 + $0x80] sm:$0xff]
  %v5440 = vld [vmem:[%s0 + $0x88] sm:$0xff]
  %v5441 = vld [vmem:[%s0 + $0x90] sm:$0xff]
  %v5442 = vld [vmem:[%s0 + $0x98] sm:$0xff]
  %v5443 = vld [vmem:[%s0 + $0xa0] sm:$0xff]
  %v5444 = vld [vmem:[%s0 + $0xa8] sm:$0xff]
  %v5445 = vld [vmem:[%s0 + $0xb0] sm:$0xff]
  %v5446 = vld [vmem:[%s0 + $0xb8] sm:$0xff]
  %v5447 = vld [vmem:[%s0 + $0xc0] sm:$0xff]
  %v5448 = vld [vmem:[%s0 + $0xc8] sm:$0xff]
  %v5449 = vld [vmem:[%s0 + $0xd0] sm:$0xff]
  %v5450 = vld [vmem:[%s0 + $0xd8] sm:$0xff]
  %v5451 = vld [vmem:[%s0 + $0xe0] sm:$0xff]
  %v5452 = vld [vmem:[%s0 + $0xe8] sm:$0xff]
  %v5453 = vld [vmem:[%s0 + $0xf0] sm:$0xff]
  %v5454 = vld [vmem:[%s0 + $0xf8] sm:$0xff]
  %v5455 = vadd.f32 %v5391, %v5423
  %v5456 = vadd.f32 %v5392, %v5424
  %v5457 = vadd.f32 %v5393, %v5425
  %v5458 = vadd.f32 %v5394, %v5426
  %v5459 = vadd.f32 %v5395, %v5427
  %v5460 = vadd.f32 %v5396, %v5428
  %v5461 = vadd.f32 %v5397, %v5429
  %v5462 = vadd.f32 %v5398, %v5430
  %v5463 = vadd.f32 %v5399, %v5431
  %v5464 = vadd.f32 %v5400, %v5432
  %v5465 = vadd.f32 %v5401, %v5433
  %v5466 = vadd.f32 %v5402, %v5434
  %v5467 = vadd.f32 %v5403, %v5435
  %v5468 = vadd.f32 %v5404, %v5436
  %v5469 = vadd.f32 %v5405, %v5437
  %v5470 = vadd.f32 %v5406, %v5438
  %v5471 = vadd.f32 %v5407, %v5439
  %v5472 = vadd.f32 %v5408, %v5440
  %v5473 = vadd.f32 %v5409, %v5441
  %v5474 = vadd.f32 %v5410, %v5442
  %v5475 = vadd.f32 %v5411, %v5443
  %v5476 = vadd.f32 %v5412, %v5444
  %v5477 = vadd.f32 %v5413, %v5445
  %v5478 = vadd.f32 %v5414, %v5446
  %v5479 = vadd.f32 %v5415, %v5447
  %v5480 = vadd.f32 %v5416, %v5448
  %v5481 = vadd.f32 %v5417, %v5449
  %v5482 = vadd.f32 %v5418, %v5450
  %v5483 = vadd.f32 %v5419, %v5451
  %v5484 = vadd.f32 %v5420, %v5452
  %v5485 = vadd.f32 %v5421, %v5453
  %v5486 = vadd.f32 %v5422, %v5454
  %5487 = vst [vmem:[%s4] sm:$0xff] %v5455
  %5488 = vst [vmem:[%s4 + $0x8] sm:$0xff] %v5456
  %5489 = vst [vmem:[%s4 + $0x10] sm:$0xff] %v5457
  %5490 = vst [vmem:[%s4 + $0x18] sm:$0xff] %v5458
  %5491 = vst [vmem:[%s4 + $0x20] sm:$0xff] %v5459
  %5492 = vst [vmem:[%s4 + $0x28] sm:$0xff] %v5460
  %5493 = vst [vmem:[%s4 + $0x30] sm:$0xff] %v5461
  %5494 = vst [vmem:[%s4 + $0x38] sm:$0xff] %v5462
  %5495 = vst [vmem:[%s4 + $0x40] sm:$0xff] %v5463
  %5496 = vst [vmem:[%s4 + $0x48] sm:$0xff] %v5464
  %5497 = vst [vmem:[%s4 + $0x50] sm:$0xff] %v5465
  %5498 = vst [vmem:[%s4 + $0x58] sm:$0xff] %v5466
  %5499 = vst [vmem:[%s4 + $0x60] sm:$0xff] %v5467
  %5500 = vst [vmem:[%s4 + $0x68] sm:$0xff] %v5468
  %5501 = vst [vmem:[%s4 + $0x70] sm:$0xff] %v5469
  %5502 = vst [vmem:[%s4 + $0x78] sm:$0xff] %v5470
  %5503 = vst [vmem:[%s4 + $0x80] sm:$0xff] %v5471
  %5504 = vst [vmem:[%s4 + $0x88] sm:$0xff] %v5472
  %5505 = vst [vmem:[%s4 + $0x90] sm:$0xff] %v5473
  %5506 = vst [vmem:[%s4 + $0x98] sm:$0xff] %v5474
  %5507 = vst [vmem:[%s4 + $0xa0] sm:$0xff] %v5475
  %5508 = vst [vmem:[%s4 + $0xa8] sm:$0xff] %v5476
  %5509 = vst [vmem:[%s4 + $0xb0] sm:$0xff] %v5477
  %5510 = vst [vmem:[%s4 + $0xb8] sm:$0xff] %v5478
  %5511 = vst [vmem:[%s4 + $0xc0] sm:$0xff] %v5479
  %5512 = vst [vmem:[%s4 + $0xc8] sm:$0xff] %v5480
  %5513 = vst [vmem:[%s4 + $0xd0] sm:$0xff] %v5481
  %5514 = vst [vmem:[%s4 + $0xd8] sm:$0xff] %v5482
  %5515 = vst [vmem:[%s4 + $0xe0] sm:$0xff] %v5483
  %5516 = vst [vmem:[%s4 + $0xe8] sm:$0xff] %v5484
  %5517 = vst [vmem:[%s4 + $0xf0] sm:$0xff] %v5485
  %5518 = vst [vmem:[%s4 + $0xf8] sm:$0xff] %v5486
  // Predicated region
  $region18: #{conv_block_forward.1} parent=0 // pred_check
    _
  $region19: #{conv_block_forward.1} parent=0 // pred_check_branch
    %5520 = sbr.rel (0) target = $region21
  $region20: #{conv_block_forward.1} parent=0 // pred_region
    _
  $region21: #{conv_block_forward.1} parent=0 // pred_fallthru
    _
  // Predicated region
  $region22: #{conv_block_forward.1} parent=0 // pred_check
    _
  $region23: #{conv_block_forward.1} parent=0 // pred_check_branch
    %5522 = sbr.rel (0) target = $region25
  $region24: #{conv_block_forward.1} parent=0 // pred_region
    _
  $region25: #{conv_block_forward.1} parent=0 // pred_fallthru
    _

</llo_original>
